<compile_context>
chip_gen: v6e
topology: v6e:2x2x1
jax: 0.10.0
libtpu: 0.0.40
codegen_flags: <defaults>
</compile_context>

<pallas_src>
import functools

import jax
import jax.numpy as jnp
import numpy as np
from jax import lax
from jax.experimental import pallas as pl
from jax.experimental.pallas import tpu as pltpu

LRELU_SLOPE = 0.1


def _leaky(x, slope):
    return jnp.where(x >= 0, x, x * slope)


def _get_padding(kernel_size, dilation=1):
    return (kernel_size * dilation - dilation) // 2


def _cdiv(a, b):
    return -(-a // b)


# ----------------------------------------------------------------------------
# tile selection (VMEM aware: v7x has 64 MiB physical / 32 MiB default scoped)
# ----------------------------------------------------------------------------
@functools.lru_cache(maxsize=None)
def _vmem_tile_budget():
    try:
        cap = int(pltpu.get_tpu_info().vmem_capacity_bytes)
    except Exception:
        cap = 64 * 1024 * 1024
    return int(min(max(cap // 6, 6 * 1024 * 1024), 16 * 1024 * 1024))


def _choose_tile(t_out, cin, cout, itemsize=2):
    """Output-time tile TT (multiple of 128 when tiled) and number of tiles."""
    budget = _vmem_tile_budget()
    per_lane = 2 * itemsize * (cin + cout)      # double-buffered input + output rows
    cap = (budget // per_lane) // 128 * 128
    cap = max(256, min(cap, 8192))
    if t_out <= cap:
        return t_out, 1
    return cap, _cdiv(t_out, cap)


# ----------------------------------------------------------------------------
# Pallas kernel: fused [leaky_relu] -> dilated stride-1 Conv1d -> +bias -> [tanh]
# ----------------------------------------------------------------------------
def _conv1d_kernel(x_ref, w_ref, b_ref, o_ref, *, K, Cin, dilation, pre_slope,
                   post_tanh, use_stack):
    # x_ref : (Cin, TT + dilation*(K-1))  bf16, zero-padded / haloed window
    # w_ref : (Cout, K*Cin)               bf16, [co, k*Cin+ci] = w_torch[co, ci, k]
    # b_ref : (Cout, 1)                   f32 (zeros when the conv has no bias)
    # o_ref : (Cout, TT)
    TT = o_ref.shape[1]
    x = x_ref[...]
    if pre_slope is not None:
        # leaky(0) == 0, so applying it after zero padding is identical to
        # applying it to the raw input first.
        x = _leaky(x, pre_slope)
    if K == 1:
        acc = jnp.dot(w_ref[...], x[:, :TT], preferred_element_type=jnp.float32)
    elif use_stack:
        # collapse the K taps into one big-contraction MXU matmul
        xs = jnp.concatenate(
            [x[:, k * dilation:k * dilation + TT] for k in range(K)], axis=0)
        acc = jnp.dot(w_ref[...], xs, preferred_element_type=jnp.float32)
    else:
        # fallback for sublane-misaligned channel counts
        acc = jnp.dot(w_ref[:, :Cin], x[:, :TT], preferred_element_type=jnp.float32)
        for k in range(1, K):
            lo = k * dilation
            acc = acc + jnp.dot(w_ref[:, k * Cin:(k + 1) * Cin],
                                x[:, lo:lo + TT],
                                preferred_element_type=jnp.float32)
    acc = acc + b_ref[...]
    if post_tanh:
        acc = jnp.tanh(acc)
    o_ref[...] = acc.astype(o_ref.dtype)


def conv1d_pallas(x, w_stack, b_col, *, dilation=1, padding=(0, 0),
                  pre_slope=None, post_tanh=False):
    """Stride-1 dilated Conv1d.  x: (B, Cin, T) bf16, w_stack: (Cout, K*Cin) bf16."""
    if not isinstance(padding, tuple):
        padding = (padding, padding)
    pad_l, pad_r = padding
    B, Cin, T = x.shape
    Cout, KC = w_stack.shape
    K = KC // Cin
    halo = dilation * (K - 1)
    T_out = T + pad_l + pad_r - halo
    TT, nt = _choose_tile(T_out, Cin, Cout, x.dtype.itemsize)
    TT_in = TT + halo

    # Build per-tile overlapping (haloed) input windows.  This is one fused
    # pad+slice pass over the activation (XLA fuses it into a single copy).
    need = nt * TT + halo
    x_pad = jnp.pad(x, ((0, 0), (0, 0), (pad_l, need - pad_l - T)))
    if nt == 1:
        xw = x_pad[:, None]                                   # (B, 1, Cin, TT_in)
    else:
        xw = jnp.stack(
            [lax.slice_in_dim(x_pad, t * TT, t * TT + TT_in, axis=2)
             for t in range(nt)], axis=1)                     # (B, nt, Cin, TT_in)

    use_stack = (Cin % 16 == 0)   # bf16 sublane-tile aligned in-kernel concat
    kernel = functools.partial(
        _conv1d_kernel, K=K, Cin=Cin, dilation=dilation, pre_slope=pre_slope,
        post_tanh=post_tanh, use_stack=use_stack)

    cost = pl.CostEstimate(
        flops=int(2 * B * T_out * Cout * Cin * K),
        transcendentals=int(B * T_out * Cout) if post_tanh else 0,
        bytes_accessed=int(xw.size * xw.dtype.itemsize + w_stack.size * 2
                           + B * Cout * T_out * x.dtype.itemsize),
    )

    return pl.pallas_call(
        kernel,
        out_shape=jax.ShapeDtypeStruct((B, Cout, T_out), x.dtype),
        grid=(B, nt),
        in_specs=[
            pl.BlockSpec((None, None, Cin, TT_in), lambda b, t: (b, t, 0, 0)),
            pl.BlockSpec((Cout, KC), lambda b, t: (0, 0)),
            pl.BlockSpec((Cout, 1), lambda b, t: (0, 0)),
        ],
        out_specs=pl.BlockSpec((None, Cout, TT), lambda b, t: (b, 0, t)),
        compiler_params=pltpu.CompilerParams(
            dimension_semantics=("parallel", "parallel"),
            vmem_limit_bytes=32 * 1024 * 1024),
        cost_estimate=cost,
    )(xw, w_stack, b_col)


# ----------------------------------------------------------------------------
# Polyphase ConvTranspose1d (no zero-insertion in HBM, no MXU work on zeros)
# ----------------------------------------------------------------------------
def _phase_meta(kernel_size, stride, padding):
    metas = []
    for r in range(stride):
        m_min = -((r + padding) // stride)
        m_max = (kernel_size - 1 - r - padding) // stride
        assert m_max >= m_min, "ConvTranspose phase with no taps is unsupported"
        metas.append((m_min, m_max))
    return metas


def conv_transpose1d_pallas(x, phase_ws, b_col, *, stride, kernel_size, padding,
                            pre_slope=None):
    """out[:, :, q*stride + r] = (phase-r stride-1 conv of x)[:, :, q]."""
    B, Cin, T = x.shape
    Cout = phase_ws[0].shape[0]
    out_len = (T - 1) * stride - 2 * padding + kernel_size
    Q = _cdiv(out_len, stride)
    ys = []
    for w_r, (m_min, m_max) in zip(phase_ws, _phase_meta(kernel_size, stride, padding)):
        pad_l = m_max
        pad_r = max(0, Q - m_min - T)
        y = conv1d_pallas(x, w_r, b_col, dilation=1, padding=(pad_l, pad_r),
                          pre_slope=pre_slope)
        ys.append(y[:, :, :Q])
    out = jnp.stack(ys, axis=-1).reshape(B, Cout, Q * stride)
    return out[:, :, :out_len]


# ----------------------------------------------------------------------------
# Parameter packing (done ONCE at load time, not inside the jitted forward)
# ----------------------------------------------------------------------------
def _stack_conv_weight(w):
    # torch Conv1d layout (Cout, Cin, K) -> (Cout, K*Cin) bf16
    Cout, Cin, K = w.shape
    return jnp.transpose(w, (0, 2, 1)).reshape(Cout, K * Cin).astype(jnp.bfloat16)


def _polyphase_weights(w, stride, padding):
    # torch ConvTranspose1d layout (Cin, Cout, K) -> list of per-phase (Cout, Kr*Cin)
    Cin, Cout, K = w.shape
    ws = []
    for r, (m_min, m_max) in enumerate(_phase_meta(K, stride, padding)):
        taps = [(m_max - a) * stride + r + padding for a in range(m_max - m_min + 1)]
        w_r = jnp.stack([jnp.transpose(w[:, :, j]) for j in taps], axis=1)  # (Cout,Kr,Cin)
        ws.append(w_r.reshape(Cout, -1).astype(jnp.bfloat16))
    return ws


def _bias_col(b, cout=None, dtype=jnp.float32):
    if b is None:
        return jnp.zeros((cout, 1), dtype)
    return b.reshape(-1, 1).astype(dtype)


def prepare_params(params, cfg):
    """weight_norm collapsed weights (torch layout, f32) -> kernel-layout bf16."""
    kp = {}
    kp["conv_pre"] = (_stack_conv_weight(params["conv_pre_w"]),
                      _bias_col(params["conv_pre_b"]))
    kp["ups"] = []
    for i, (u, k) in enumerate(zip(cfg["upsample_rates"], cfg["upsample_kernel_sizes"])):
        w, b = params["ups"][i]
        kp["ups"].append((_polyphase_weights(w, u, (k - u) // 2), _bias_col(b)))
    kp["resblocks"] = []
    for rp in params["resblocks"]:
        if cfg["resblock"] == "1":
            kp["resblocks"].append({
                "convs1": [(_stack_conv_weight(w), _bias_col(b)) for (w, b) in rp["convs1"]],
                "convs2": [(_stack_conv_weight(w), _bias_col(b)) for (w, b) in rp["convs2"]],
            })
        else:
            kp["resblocks"].append({
                "convs": [(_stack_conv_weight(w), _bias_col(b)) for (w, b) in rp["convs"]],
            })
    kp["conv_post"] = (_stack_conv_weight(params["conv_post_w"]),
                       _bias_col(None, cout=params["conv_post_w"].shape[0]))
    if "cond_w" in params:
        kp["cond"] = (_stack_conv_weight(params["cond_w"]), _bias_col(params["cond_b"]))
    return kp


# ----------------------------------------------------------------------------
# Generator forward (Pallas path) -- structure matches the PyTorch module
# ----------------------------------------------------------------------------
def resblock1_pallas(x, rp, kernel_size, dilations):
    for (w1, b1), (w2, b2), d in zip(rp["convs1"], rp["convs2"], dilations):
        p1 = _get_padding(kernel_size, d)
        xt = conv1d_pallas(x, w1, b1, dilation=d, padding=(p1, p1),
                           pre_slope=LRELU_SLOPE)
        p2 = _get_padding(kernel_size, 1)
        xt = conv1d_pallas(xt, w2, b2, dilation=1, padding=(p2, p2),
                           pre_slope=LRELU_SLOPE)
        x = xt + x
    return x


def resblock2_pallas(x, rp, kernel_size, dilations):
    for (w1, b1), d in zip(rp["convs"], dilations):
        p1 = _get_padding(kernel_size, d)
        xt = conv1d_pallas(x, w1, b1, dilation=d, padding=(p1, p1),
                           pre_slope=LRELU_SLOPE)
        x = xt + x
    return x


# TODO(synk): fuse each resblock chain (leaky->conv->leaky->conv->residual plus
# the xs accumulation / num_kernels divide) into a single pallas_call per time
# tile so intermediates stay in VMEM instead of bouncing through HBM.
def generator_forward_pallas(kp, x, g=None, *, cfg):
    num_kernels = len(cfg["resblock_kernel_sizes"])
    x = x.astype(jnp.bfloat16)
    w, b = kp["conv_pre"]
    x = conv1d_pallas(x, w, b, padding=(3, 3))
    if g is not None:
        wc, bc = kp["cond"]
        x = x + conv1d_pallas(g.astype(jnp.bfloat16), wc, bc, padding=(0, 0))
    for i, (u, k) in enumerate(zip(cfg["upsample_rates"], cfg["upsample_kernel_sizes"])):
        phases, b_up = kp["ups"][i]
        x = conv_transpose1d_pallas(x, phases, b_up, stride=u, kernel_size=k,
                                    padding=(k - u) // 2, pre_slope=LRELU_SLOPE)
        xs = None
        for j, (rk, rd) in enumerate(zip(cfg["resblock_kernel_sizes"],
                                         cfg["resblock_dilation_sizes"])):
            rp = kp["resblocks"][i * num_kernels + j]
            if cfg["resblock"] == "1":
                r = resblock1_pallas(x, rp, rk, rd)
            else:
                r = resblock2_pallas(x, rp, rk, rd)
            xs = r if xs is None else xs + r
        x = xs / num_kernels
    w, b = kp["conv_post"]
    # final F.leaky_relu uses torch's default slope 0.01; conv_post has no bias
    x = conv1d_pallas(x, w, b, padding=(3, 3), pre_slope=0.01, post_tanh=True)
    return x.astype(jnp.float32)


# ----------------------------------------------------------------------------
# Pure-JAX reference with identical bf16-in / f32-accumulate numerics
# ----------------------------------------------------------------------------
def conv1d_ref(x, w, b, *, dilation=1, padding=0, pre_slope=None, post_tanh=False):
    x = x.astype(jnp.bfloat16)
    if pre_slope is not None:
        x = _leaky(x, pre_slope)
    y = lax.conv_general_dilated(
        x, w.astype(jnp.bfloat16), window_strides=(1,), padding=[(padding, padding)],
        rhs_dilation=(dilation,), dimension_numbers=("NCH", "OIH", "NCH"),
        preferred_element_type=jnp.float32)
    if b is not None:
        y = y + b[None, :, None].astype(jnp.float32)
    if post_tanh:
        y = jnp.tanh(y)
    return y.astype(jnp.bfloat16)


def conv_transpose1d_ref(x, w, b, *, stride, padding, pre_slope=None):
    x = x.astype(jnp.bfloat16)
    if pre_slope is not None:
        x = _leaky(x, pre_slope)
    Cin, Cout, K = w.shape
    w_eq = jnp.transpose(jnp.flip(w, axis=-1), (1, 0, 2)).astype(jnp.bfloat16)
    y = lax.conv_general_dilated(
        x, w_eq, window_strides=(1,), padding=[(K - 1 - padding, K - 1 - padding)],
        lhs_dilation=(stride,), dimension_numbers=("NCH", "OIH", "NCH"),
        preferred_element_type=jnp.float32)
    y = y + b[None, :, None].astype(jnp.float32)
    return y.astype(jnp.bfloat16)


def resblock1_ref(x, rp, kernel_size, dilations):
    for (w1, b1), (w2, b2), d in zip(rp["convs1"], rp["convs2"], dilations):
        xt = conv1d_ref(x, w1, b1, dilation=d, padding=_get_padding(kernel_size, d),
                        pre_slope=LRELU_SLOPE)
        xt = conv1d_ref(xt, w2, b2, dilation=1, padding=_get_padding(kernel_size, 1),
                        pre_slope=LRELU_SLOPE)
        x = xt + x
    return x


def resblock2_ref(x, rp, kernel_size, dilations):
    for (w1, b1), d in zip(rp["convs"], dilations):
        xt = conv1d_ref(x, w1, b1, dilation=d, padding=_get_padding(kernel_size, d),
                        pre_slope=LRELU_SLOPE)
        x = xt + x
    return x


def generator_forward_ref(params, x, g=None, *, cfg):
    num_kernels = len(cfg["resblock_kernel_sizes"])
    x = conv1d_ref(x, params["conv_pre_w"], params["conv_pre_b"], padding=3)
    if g is not None:
        x = x + conv1d_ref(g, params["cond_w"], params["cond_b"], padding=0)
    for i, (u, k) in enumerate(zip(cfg["upsample_rates"], cfg["upsample_kernel_sizes"])):
        w_up, b_up = params["ups"][i]
        x = conv_transpose1d_ref(x, w_up, b_up, stride=u, padding=(k - u) // 2,
                                 pre_slope=LRELU_SLOPE)
        xs = None
        for j, (rk, rd) in enumerate(zip(cfg["resblock_kernel_sizes"],
                                         cfg["resblock_dilation_sizes"])):
            rp = params["resblocks"][i * num_kernels + j]
            if cfg["resblock"] == "1":
                r = resblock1_ref(x, rp, rk, rd)
            else:
                r = resblock2_ref(x, rp, rk, rd)
            xs = r if xs is None else xs + r
        x = xs / num_kernels
    x = conv1d_ref(x, params["conv_post_w"], None, padding=3, pre_slope=0.01,
                   post_tanh=True)
    return x.astype(jnp.float32)


# ----------------------------------------------------------------------------
# Deterministic synthetic parameter init (weight_norm collapsed, torch layouts)
# ----------------------------------------------------------------------------
def init_params(key, cfg):
    keys = iter(jax.random.split(key, 512))

    def nrm(shape, scale=0.1):
        return jax.random.normal(next(keys), shape, jnp.float32) * scale

    uic = cfg["upsample_initial_channel"]
    p = {}
    p["conv_pre_w"] = nrm((uic, cfg["initial_channel"], 7))
    p["conv_pre_b"] = nrm((uic,), 0.01)
    p["ups"] = []
    for i, (u, k) in enumerate(zip(cfg["upsample_rates"], cfg["upsample_kernel_sizes"])):
        cin = uic // (2 ** i)
        cout = uic // (2 ** (i + 1))
        p["ups"].append((nrm((cin, cout, k)), nrm((cout,), 0.01)))
    p["resblocks"] = []
    for i in range(len(cfg["upsample_rates"])):
        ch = uic // (2 ** (i + 1))
        for rk, rd in zip(cfg["resblock_kernel_sizes"], cfg["resblock_dilation_sizes"]):
            if cfg["resblock"] == "1":
                rp = {
                    "convs1": [(nrm((ch, ch, rk)), nrm((ch,), 0.01)) for _ in rd],
                    "convs2": [(nrm((ch, ch, rk)), nrm((ch,), 0.01)) for _ in rd],
                }
            else:
                rp = {"convs": [(nrm((ch, ch, rk)), nrm((ch,), 0.01)) for _ in rd]}
            p["resblocks"].append(rp)
    ch = uic // (2 ** len(cfg["upsample_rates"]))
    p["conv_post_w"] = nrm((2, ch, 7))
    if cfg.get("gin_channels", 0):
        p["cond_w"] = nrm((uic, cfg["gin_channels"], 1))
        p["cond_b"] = nrm((uic,), 0.01)
    return p


if __name__ == "__main__":
    cfg = dict(
        initial_channel=32,
        resblock="1",
        resblock_kernel_sizes=[3, 5],
        resblock_dilation_sizes=[[1, 3, 5], [1, 3, 5]],
        upsample_rates=[2, 2],
        upsample_initial_channel=32,
        upsample_kernel_sizes=[4, 4],
        gin_channels=0,
    )
    key = jax.random.PRNGKey(0)
    pkey, xkey = jax.random.split(key)
    params = init_params(pkey, cfg)
    kparams = prepare_params(params, cfg)

    B, T = 2, 16
    x = jax.random.normal(xkey, (B, cfg["initial_channel"], T), jnp.float32)

    fwd_pallas = jax.jit(functools.partial(generator_forward_pallas, cfg=cfg))
    y = jax.block_until_ready(fwd_pallas(kparams, x))

    y_ref = jax.block_until_ready(
        jax.jit(functools.partial(generator_forward_ref, cfg=cfg))(params, x))

    total_upsample = 1
    for u in cfg["upsample_rates"]:
        total_upsample *= u
    assert y.shape == (B, 2, T * total_upsample), y.shape
    np.testing.assert_allclose(np.asarray(y), np.asarray(y_ref), atol=2e-2, rtol=2e-2)

    print("KERNEL_OK")
</pallas_src>

<mosaic_0001>
module attributes {stable_mosaic.version = 11 : i64} {
  func.func @_conv1d_kernel(%arg0: i32, %arg1: i32, %arg2: memref<1x1x32x22xbf16, #tpu.memory_space<vmem>>, %arg3: memref<32x224xbf16, #tpu.memory_space<vmem>>, %arg4: memref<32x1xf32, #tpu.memory_space<vmem>>, %arg5: memref<1x32x16xbf16, #tpu.memory_space<vmem>>) attributes {dimension_semantics = [#tpu.dimension_semantics<parallel>, #tpu.dimension_semantics<parallel>], iteration_bounds = array<i64: 2, 1>, scalar_prefetch = 0 : i64, scratch_operands = 0 : i64, tpu.core_type = #tpu.core_type<tc>, window_params = [{transform_indices = @transform_0, window_bounds = array<i64: 1, 1, 32, 22>}, {pipeline_mode = #tpu.pipeline_mode<synchronous>, transform_indices = @transform_1, window_bounds = array<i64: 32, 224>}, {pipeline_mode = #tpu.pipeline_mode<synchronous>, transform_indices = @transform_2, window_bounds = array<i64: 32, 1>}, {transform_indices = @transform_3, window_bounds = array<i64: 1, 32, 16>}]} {
    %c0 = arith.constant 0 : index
    %c0_0 = arith.constant 0 : index
    %c0_1 = arith.constant 0 : index
    %c0_2 = arith.constant 0 : index
    %0 = vector.load %arg2[%c0, %c0_0, %c0_1, %c0_2] : memref<1x1x32x22xbf16, #tpu.memory_space<vmem>>, vector<1x1x32x22xbf16>
    %1 = vector.shape_cast %0 : vector<1x1x32x22xbf16> to vector<32x22xbf16>
    %2 = vector.extract_strided_slice %1 {offsets = [0, 0], sizes = [32, 16], strides = [1, 1]} : vector<32x22xbf16> to vector<32x16xbf16>
    %3 = vector.extract_strided_slice %1 {offsets = [0, 1], sizes = [32, 16], strides = [1, 1]} : vector<32x22xbf16> to vector<32x16xbf16>
    %4 = vector.extract_strided_slice %1 {offsets = [0, 2], sizes = [32, 16], strides = [1, 1]} : vector<32x22xbf16> to vector<32x16xbf16>
    %5 = vector.extract_strided_slice %1 {offsets = [0, 3], sizes = [32, 16], strides = [1, 1]} : vector<32x22xbf16> to vector<32x16xbf16>
    %6 = vector.extract_strided_slice %1 {offsets = [0, 4], sizes = [32, 16], strides = [1, 1]} : vector<32x22xbf16> to vector<32x16xbf16>
    %7 = vector.extract_strided_slice %1 {offsets = [0, 5], sizes = [32, 16], strides = [1, 1]} : vector<32x22xbf16> to vector<32x16xbf16>
    %8 = vector.extract_strided_slice %1 {offsets = [0, 6], sizes = [32, 16], strides = [1, 1]} : vector<32x22xbf16> to vector<32x16xbf16>
    %9 = tpu.concatenate %2, %3, %4, %5, %6, %7, %8 in 0 : vector<32x16xbf16>, vector<32x16xbf16>, vector<32x16xbf16>, vector<32x16xbf16>, vector<32x16xbf16>, vector<32x16xbf16>, vector<32x16xbf16> -> vector<224x16xbf16>
    %c0_3 = arith.constant 0 : index
    %c0_4 = arith.constant 0 : index
    %10 = vector.load %arg3[%c0_3, %c0_4] : memref<32x224xbf16, #tpu.memory_space<vmem>>, vector<32x224xbf16>
    %cst = arith.constant dense<0.000000e+00> : vector<32x16xf32>
    %11 = tpu.matmul %10, %9, %cst {dimension_numbers = #tpu.dot_dimension_numbers<[1], [0], [0], [1], [0, 0, 1, 1], [], []>} : vector<32x224xbf16>, vector<224x16xbf16>, vector<32x16xf32> -> vector<32x16xf32>
    %c0_5 = arith.constant 0 : index
    %c0_6 = arith.constant 0 : index
    %12 = vector.load %arg4[%c0_5, %c0_6] : memref<32x1xf32, #tpu.memory_space<vmem>>, vector<32x1xf32>
    %13 = vector.broadcast %12 : vector<32x1xf32> to vector<32x16xf32>
    %14 = arith.addf %11, %13 : vector<32x16xf32>
    %15 = arith.truncf %14 : vector<32x16xf32> to vector<32x16xbf16>
    %c0_7 = arith.constant 0 : index
    %c0_8 = arith.constant 0 : index
    %c0_9 = arith.constant 0 : index
    %16 = vector.load %arg5[%c0_7, %c0_8, %c0_9] : memref<1x32x16xbf16, #tpu.memory_space<vmem>>, vector<1x32x16xbf16>
    %17 = vector.shape_cast %16 : vector<1x32x16xbf16> to vector<32x16xbf16>
    %18 = vector.shape_cast %15 : vector<32x16xbf16> to vector<1x32x16xbf16>
    tpu.vector_store %arg5[%c0_7, %c0_8, %c0_9], %18 {strides = array<i32>} : memref<1x32x16xbf16, #tpu.memory_space<vmem>>, vector<1x32x16xbf16>,
    return
  }
  func.func @transform_0(%arg0: i32, %arg1: i32) -> (i32, i32, i32, i32) {
    %c0_i32 = arith.constant 0 : i32
    %c0_i32_0 = arith.constant 0 : i32
    %c0_i32_1 = arith.constant 0 : i32
    return %arg0, %arg1, %c0_i32, %c0_i32_0 : i32, i32, i32, i32
  }
  func.func @transform_1(%arg0: i32, %arg1: i32) -> (i32, i32) {
    %c0_i32 = arith.constant 0 : i32
    %c0_i32_0 = arith.constant 0 : i32
    %c0_i32_1 = arith.constant 0 : i32
    return %c0_i32, %c0_i32_0 : i32, i32
  }
  func.func @transform_2(%arg0: i32, %arg1: i32) -> (i32, i32) {
    %c0_i32 = arith.constant 0 : i32
    %c0_i32_0 = arith.constant 0 : i32
    %c0_i32_1 = arith.constant 0 : i32
    return %c0_i32, %c0_i32_0 : i32, i32
  }
  func.func @transform_3(%arg0: i32, %arg1: i32) -> (i32, i32, i32) {
    %c0_i32 = arith.constant 0 : i32
    %c0_i32_0 = arith.constant 0 : i32
    return %arg0, %c0_i32, %arg1 : i32, i32, i32
  }
}

module attributes {stable_mosaic.version = 11 : i64} {
  func.func @_conv1d_kernel(%arg0: i32, %arg1: i32, %arg2: memref<1x1x32x17xbf16, #tpu.memory_space<vmem>>, %arg3: memref<16x64xbf16, #tpu.memory_space<vmem>>, %arg4: memref<16x1xf32, #tpu.memory_space<vmem>>, %arg5: memref<1x16x16xbf16, #tpu.memory_space<vmem>>) attributes {dimension_semantics = [#tpu.dimension_semantics<parallel>, #tpu.dimension_semantics<parallel>], iteration_bounds = array<i64: 2, 1>, scalar_prefetch = 0 : i64, scratch_operands = 0 : i64, tpu.core_type = #tpu.core_type<tc>, window_params = [{transform_indices = @transform_0, window_bounds = array<i64: 1, 1, 32, 17>}, {pipeline_mode = #tpu.pipeline_mode<synchronous>, transform_indices = @transform_1, window_bounds = array<i64: 16, 64>}, {pipeline_mode = #tpu.pipeline_mode<synchronous>, transform_indices = @transform_2, window_bounds = array<i64: 16, 1>}, {transform_indices = @transform_3, window_bounds = array<i64: 1, 16, 16>}]} {
    %c0 = arith.constant 0 : index
    %c0_0 = arith.constant 0 : index
    %c0_1 = arith.constant 0 : index
    %c0_2 = arith.constant 0 : index
    %0 = vector.load %arg2[%c0, %c0_0, %c0_1, %c0_2] : memref<1x1x32x17xbf16, #tpu.memory_space<vmem>>, vector<1x1x32x17xbf16>
    %1 = vector.shape_cast %0 : vector<1x1x32x17xbf16> to vector<32x17xbf16>
    %cst = arith.constant 0.000000e+00 : bf16
    %2 = vector.broadcast %cst : bf16 to vector<32x17xbf16>
    %3 = arith.cmpf oge, %1, %2 : vector<32x17xbf16>
    %cst_3 = arith.constant 1.000980e-01 : bf16
    %4 = vector.broadcast %cst_3 : bf16 to vector<32x17xbf16>
    %5 = arith.mulf %1, %4 : vector<32x17xbf16>
    %6 = arith.select %3, %1, %5 : vector<32x17xi1>, vector<32x17xbf16>
    %7 = vector.extract_strided_slice %6 {offsets = [0, 0], sizes = [32, 16], strides = [1, 1]} : vector<32x17xbf16> to vector<32x16xbf16>
    %8 = vector.extract_strided_slice %6 {offsets = [0, 1], sizes = [32, 16], strides = [1, 1]} : vector<32x17xbf16> to vector<32x16xbf16>
    %9 = tpu.concatenate %7, %8 in 0 : vector<32x16xbf16>, vector<32x16xbf16> -> vector<64x16xbf16>
    %c0_4 = arith.constant 0 : index
    %c0_5 = arith.constant 0 : index
    %10 = vector.load %arg3[%c0_4, %c0_5] : memref<16x64xbf16, #tpu.memory_space<vmem>>, vector<16x64xbf16>
    %cst_6 = arith.constant dense<0.000000e+00> : vector<16x16xf32>
    %11 = tpu.matmul %10, %9, %cst_6 {dimension_numbers = #tpu.dot_dimension_numbers<[1], [0], [0], [1], [0, 0, 1, 1], [], []>} : vector<16x64xbf16>, vector<64x16xbf16>, vector<16x16xf32> -> vector<16x16xf32>
    %c0_7 = arith.constant 0 : index
    %c0_8 = arith.constant 0 : index
    %12 = vector.load %arg4[%c0_7, %c0_8] : memref<16x1xf32, #tpu.memory_space<vmem>>, vector<16x1xf32>
    %13 = vector.broadcast %12 : vector<16x1xf32> to vector<16x16xf32>
    %14 = arith.addf %11, %13 : vector<16x16xf32>
    %15 = arith.truncf %14 : vector<16x16xf32> to vector<16x16xbf16>
    %c0_9 = arith.constant 0 : index
    %c0_10 = arith.constant 0 : index
    %c0_11 = arith.constant 0 : index
    %16 = vector.load %arg5[%c0_9, %c0_10, %c0_11] : memref<1x16x16xbf16, #tpu.memory_space<vmem>>, vector<1x16x16xbf16>
    %17 = vector.shape_cast %16 : vector<1x16x16xbf16> to vector<16x16xbf16>
    %18 = vector.shape_cast %15 : vector<16x16xbf16> to vector<1x16x16xbf16>
    tpu.vector_store %arg5[%c0_9, %c0_10, %c0_11], %18 {strides = array<i32>} : memref<1x16x16xbf16, #tpu.memory_space<vmem>>, vector<1x16x16xbf16>,
    return
  }
  func.func @transform_0(%arg0: i32, %arg1: i32) -> (i32, i32, i32, i32) {
    %c0_i32 = arith.constant 0 : i32
    %c0_i32_0 = arith.constant 0 : i32
    %c0_i32_1 = arith.constant 0 : i32
    return %arg0, %arg1, %c0_i32, %c0_i32_0 : i32, i32, i32, i32
  }
  func.func @transform_1(%arg0: i32, %arg1: i32) -> (i32, i32) {
    %c0_i32 = arith.constant 0 : i32
    %c0_i32_0 = arith.constant 0 : i32
    %c0_i32_1 = arith.constant 0 : i32
    return %c0_i32, %c0_i32_0 : i32, i32
  }
  func.func @transform_2(%arg0: i32, %arg1: i32) -> (i32, i32) {
    %c0_i32 = arith.constant 0 : i32
    %c0_i32_0 = arith.constant 0 : i32
    %c0_i32_1 = arith.constant 0 : i32
    return %c0_i32, %c0_i32_0 : i32, i32
  }
  func.func @transform_3(%arg0: i32, %arg1: i32) -> (i32, i32, i32) {
    %c0_i32 = arith.constant 0 : i32
    %c0_i32_0 = arith.constant 0 : i32
    return %arg0, %c0_i32, %arg1 : i32, i32, i32
  }
}

module attributes {stable_mosaic.version = 11 : i64} {
  func.func @_conv1d_kernel(%arg0: i32, %arg1: i32, %arg2: memref<1x1x16x34xbf16, #tpu.memory_space<vmem>>, %arg3: memref<16x48xbf16, #tpu.memory_space<vmem>>, %arg4: memref<16x1xf32, #tpu.memory_space<vmem>>, %arg5: memref<1x16x32xbf16, #tpu.memory_space<vmem>>) attributes {dimension_semantics = [#tpu.dimension_semantics<parallel>, #tpu.dimension_semantics<parallel>], iteration_bounds = array<i64: 2, 1>, scalar_prefetch = 0 : i64, scratch_operands = 0 : i64, tpu.core_type = #tpu.core_type<tc>, window_params = [{transform_indices = @transform_0, window_bounds = array<i64: 1, 1, 16, 34>}, {pipeline_mode = #tpu.pipeline_mode<synchronous>, transform_indices = @transform_1, window_bounds = array<i64: 16, 48>}, {pipeline_mode = #tpu.pipeline_mode<synchronous>, transform_indices = @transform_2, window_bounds = array<i64: 16, 1>}, {transform_indices = @transform_3, window_bounds = array<i64: 1, 16, 32>}]} {
    %c0 = arith.constant 0 : index
    %c0_0 = arith.constant 0 : index
    %c0_1 = arith.constant 0 : index
    %c0_2 = arith.constant 0 : index
    %0 = vector.load %arg2[%c0, %c0_0, %c0_1, %c0_2] : memref<1x1x16x34xbf16, #tpu.memory_space<vmem>>, vector<1x1x16x34xbf16>
    %1 = vector.shape_cast %0 : vector<1x1x16x34xbf16> to vector<16x34xbf16>
    %cst = arith.constant 0.000000e+00 : bf16
    %2 = vector.broadcast %cst : bf16 to vector<16x34xbf16>
    %3 = arith.cmpf oge, %1, %2 : vector<16x34xbf16>
    %cst_3 = arith.constant 1.000980e-01 : bf16
    %4 = vector.broadcast %cst_3 : bf16 to vector<16x34xbf16>
    %5 = arith.mulf %1, %4 : vector<16x34xbf16>
    %6 = arith.select %3, %1, %5 : vector<16x34xi1>, vector<16x34xbf16>
    %7 = vector.extract_strided_slice %6 {offsets = [0, 0], sizes = [16, 32], strides = [1, 1]} : vector<16x34xbf16> to vector<16x32xbf16>
    %8 = vector.extract_strided_slice %6 {offsets = [0, 1], sizes = [16, 32], strides = [1, 1]} : vector<16x34xbf16> to vector<16x32xbf16>
    %9 = vector.extract_strided_slice %6 {offsets = [0, 2], sizes = [16, 32], strides = [1, 1]} : vector<16x34xbf16> to vector<16x32xbf16>
    %10 = tpu.concatenate %7, %8, %9 in 0 : vector<16x32xbf16>, vector<16x32xbf16>, vector<16x32xbf16> -> vector<48x32xbf16>
    %c0_4 = arith.constant 0 : index
    %c0_5 = arith.constant 0 : index
    %11 = vector.load %arg3[%c0_4, %c0_5] : memref<16x48xbf16, #tpu.memory_space<vmem>>, vector<16x48xbf16>
    %cst_6 = arith.constant dense<0.000000e+00> : vector<16x32xf32>
    %12 = tpu.matmul %11, %10, %cst_6 {dimension_numbers = #tpu.dot_dimension_numbers<[1], [0], [0], [1], [0, 0, 1, 1], [], []>} : vector<16x48xbf16>, vector<48x32xbf16>, vector<16x32xf32> -> vector<16x32xf32>
    %c0_7 = arith.constant 0 : index
    %c0_8 = arith.constant 0 : index
    %13 = vector.load %arg4[%c0_7, %c0_8] : memref<16x1xf32, #tpu.memory_space<vmem>>, vector<16x1xf32>
    %14 = vector.broadcast %13 : vector<16x1xf32> to vector<16x32xf32>
    %15 = arith.addf %12, %14 : vector<16x32xf32>
    %16 = arith.truncf %15 : vector<16x32xf32> to vector<16x32xbf16>
    %c0_9 = arith.constant 0 : index
    %c0_10 = arith.constant 0 : index
    %c0_11 = arith.constant 0 : index
    %17 = vector.load %arg5[%c0_9, %c0_10, %c0_11] : memref<1x16x32xbf16, #tpu.memory_space<vmem>>, vector<1x16x32xbf16>
    %18 = vector.shape_cast %17 : vector<1x16x32xbf16> to vector<16x32xbf16>
    %19 = vector.shape_cast %16 : vector<16x32xbf16> to vector<1x16x32xbf16>
    tpu.vector_store %arg5[%c0_9, %c0_10, %c0_11], %19 {strides = array<i32>} : memref<1x16x32xbf16, #tpu.memory_space<vmem>>, vector<1x16x32xbf16>,
    return
  }
  func.func @transform_0(%arg0: i32, %arg1: i32) -> (i32, i32, i32, i32) {
    %c0_i32 = arith.constant 0 : i32
    %c0_i32_0 = arith.constant 0 : i32
    %c0_i32_1 = arith.constant 0 : i32
    return %arg0, %arg1, %c0_i32, %c0_i32_0 : i32, i32, i32, i32
  }
  func.func @transform_1(%arg0: i32, %arg1: i32) -> (i32, i32) {
    %c0_i32 = arith.constant 0 : i32
    %c0_i32_0 = arith.constant 0 : i32
    %c0_i32_1 = arith.constant 0 : i32
    return %c0_i32, %c0_i32_0 : i32, i32
  }
  func.func @transform_2(%arg0: i32, %arg1: i32) -> (i32, i32) {
    %c0_i32 = arith.constant 0 : i32
    %c0_i32_0 = arith.constant 0 : i32
    %c0_i32_1 = arith.constant 0 : i32
    return %c0_i32, %c0_i32_0 : i32, i32
  }
  func.func @transform_3(%arg0: i32, %arg1: i32) -> (i32, i32, i32) {
    %c0_i32 = arith.constant 0 : i32
    %c0_i32_0 = arith.constant 0 : i32
    return %arg0, %c0_i32, %arg1 : i32, i32, i32
  }
}

module attributes {stable_mosaic.version = 11 : i64} {
  func.func @_conv1d_kernel(%arg0: i32, %arg1: i32, %arg2: memref<1x1x16x36xbf16, #tpu.memory_space<vmem>>, %arg3: memref<16x80xbf16, #tpu.memory_space<vmem>>, %arg4: memref<16x1xf32, #tpu.memory_space<vmem>>, %arg5: memref<1x16x32xbf16, #tpu.memory_space<vmem>>) attributes {dimension_semantics = [#tpu.dimension_semantics<parallel>, #tpu.dimension_semantics<parallel>], iteration_bounds = array<i64: 2, 1>, scalar_prefetch = 0 : i64, scratch_operands = 0 : i64, tpu.core_type = #tpu.core_type<tc>, window_params = [{transform_indices = @transform_0, window_bounds = array<i64: 1, 1, 16, 36>}, {pipeline_mode = #tpu.pipeline_mode<synchronous>, transform_indices = @transform_1, window_bounds = array<i64: 16, 80>}, {pipeline_mode = #tpu.pipeline_mode<synchronous>, transform_indices = @transform_2, window_bounds = array<i64: 16, 1>}, {transform_indices = @transform_3, window_bounds = array<i64: 1, 16, 32>}]} {
    %c0 = arith.constant 0 : index
    %c0_0 = arith.constant 0 : index
    %c0_1 = arith.constant 0 : index
    %c0_2 = arith.constant 0 : index
    %0 = vector.load %arg2[%c0, %c0_0, %c0_1, %c0_2] : memref<1x1x16x36xbf16, #tpu.memory_space<vmem>>, vector<1x1x16x36xbf16>
    %1 = vector.shape_cast %0 : vector<1x1x16x36xbf16> to vector<16x36xbf16>
    %cst = arith.constant 0.000000e+00 : bf16
    %2 = vector.broadcast %cst : bf16 to vector<16x36xbf16>
    %3 = arith.cmpf oge, %1, %2 : vector<16x36xbf16>
    %cst_3 = arith.constant 1.000980e-01 : bf16
    %4 = vector.broadcast %cst_3 : bf16 to vector<16x36xbf16>
    %5 = arith.mulf %1, %4 : vector<16x36xbf16>
    %6 = arith.select %3, %1, %5 : vector<16x36xi1>, vector<16x36xbf16>
    %7 = vector.extract_strided_slice %6 {offsets = [0, 0], sizes = [16, 32], strides = [1, 1]} : vector<16x36xbf16> to vector<16x32xbf16>
    %8 = vector.extract_strided_slice %6 {offsets = [0, 1], sizes = [16, 32], strides = [1, 1]} : vector<16x36xbf16> to vector<16x32xbf16>
    %9 = vector.extract_strided_slice %6 {offsets = [0, 2], sizes = [16, 32], strides = [1, 1]} : vector<16x36xbf16> to vector<16x32xbf16>
    %10 = vector.extract_strided_slice %6 {offsets = [0, 3], sizes = [16, 32], strides = [1, 1]} : vector<16x36xbf16> to vector<16x32xbf16>
    %11 = vector.extract_strided_slice %6 {offsets = [0, 4], sizes = [16, 32], strides = [1, 1]} : vector<16x36xbf16> to vector<16x32xbf16>
    %12 = tpu.concatenate %7, %8, %9, %10, %11 in 0 : vector<16x32xbf16>, vector<16x32xbf16>, vector<16x32xbf16>, vector<16x32xbf16>, vector<16x32xbf16> -> vector<80x32xbf16>
    %c0_4 = arith.constant 0 : index
    %c0_5 = arith.constant 0 : index
    %13 = vector.load %arg3[%c0_4, %c0_5] : memref<16x80xbf16, #tpu.memory_space<vmem>>, vector<16x80xbf16>
    %cst_6 = arith.constant dense<0.000000e+00> : vector<16x32xf32>
    %14 = tpu.matmul %13, %12, %cst_6 {dimension_numbers = #tpu.dot_dimension_numbers<[1], [0], [0], [1], [0, 0, 1, 1], [], []>} : vector<16x80xbf16>, vector<80x32xbf16>, vector<16x32xf32> -> vector<16x32xf32>
    %c0_7 = arith.constant 0 : index
    %c0_8 = arith.constant 0 : index
    %15 = vector.load %arg4[%c0_7, %c0_8] : memref<16x1xf32, #tpu.memory_space<vmem>>, vector<16x1xf32>
    %16 = vector.broadcast %15 : vector<16x1xf32> to vector<16x32xf32>
    %17 = arith.addf %14, %16 : vector<16x32xf32>
    %18 = arith.truncf %17 : vector<16x32xf32> to vector<16x32xbf16>
    %c0_9 = arith.constant 0 : index
    %c0_10 = arith.constant 0 : index
    %c0_11 = arith.constant 0 : index
    %19 = vector.load %arg5[%c0_9, %c0_10, %c0_11] : memref<1x16x32xbf16, #tpu.memory_space<vmem>>, vector<1x16x32xbf16>
    %20 = vector.shape_cast %19 : vector<1x16x32xbf16> to vector<16x32xbf16>
    %21 = vector.shape_cast %18 : vector<16x32xbf16> to vector<1x16x32xbf16>
    tpu.vector_store %arg5[%c0_9, %c0_10, %c0_11], %21 {strides = array<i32>} : memref<1x16x32xbf16, #tpu.memory_space<vmem>>, vector<1x16x32xbf16>,
    return
  }
  func.func @transform_0(%arg0: i32, %arg1: i32) -> (i32, i32, i32, i32) {
    %c0_i32 = arith.constant 0 : i32
    %c0_i32_0 = arith.constant 0 : i32
    %c0_i32_1 = arith.constant 0 : i32
    return %arg0, %arg1, %c0_i32, %c0_i32_0 : i32, i32, i32, i32
  }
  func.func @transform_1(%arg0: i32, %arg1: i32) -> (i32, i32) {
    %c0_i32 = arith.constant 0 : i32
    %c0_i32_0 = arith.constant 0 : i32
    %c0_i32_1 = arith.constant 0 : i32
    return %c0_i32, %c0_i32_0 : i32, i32
  }
  func.func @transform_2(%arg0: i32, %arg1: i32) -> (i32, i32) {
    %c0_i32 = arith.constant 0 : i32
    %c0_i32_0 = arith.constant 0 : i32
    %c0_i32_1 = arith.constant 0 : i32
    return %c0_i32, %c0_i32_0 : i32, i32
  }
  func.func @transform_3(%arg0: i32, %arg1: i32) -> (i32, i32, i32) {
    %c0_i32 = arith.constant 0 : i32
    %c0_i32_0 = arith.constant 0 : i32
    return %arg0, %c0_i32, %arg1 : i32, i32, i32
  }
}

module attributes {stable_mosaic.version = 11 : i64} {
  func.func @_conv1d_kernel(%arg0: i32, %arg1: i32, %arg2: memref<1x1x16x38xbf16, #tpu.memory_space<vmem>>, %arg3: memref<16x48xbf16, #tpu.memory_space<vmem>>, %arg4: memref<16x1xf32, #tpu.memory_space<vmem>>, %arg5: memref<1x16x32xbf16, #tpu.memory_space<vmem>>) attributes {dimension_semantics = [#tpu.dimension_semantics<parallel>, #tpu.dimension_semantics<parallel>], iteration_bounds = array<i64: 2, 1>, scalar_prefetch = 0 : i64, scratch_operands = 0 : i64, tpu.core_type = #tpu.core_type<tc>, window_params = [{transform_indices = @transform_0, window_bounds = array<i64: 1, 1, 16, 38>}, {pipeline_mode = #tpu.pipeline_mode<synchronous>, transform_indices = @transform_1, window_bounds = array<i64: 16, 48>}, {pipeline_mode = #tpu.pipeline_mode<synchronous>, transform_indices = @transform_2, window_bounds = array<i64: 16, 1>}, {transform_indices = @transform_3, window_bounds = array<i64: 1, 16, 32>}]} {
    %c0 = arith.constant 0 : index
    %c0_0 = arith.constant 0 : index
    %c0_1 = arith.constant 0 : index
    %c0_2 = arith.constant 0 : index
    %0 = vector.load %arg2[%c0, %c0_0, %c0_1, %c0_2] : memref<1x1x16x38xbf16, #tpu.memory_space<vmem>>, vector<1x1x16x38xbf16>
    %1 = vector.shape_cast %0 : vector<1x1x16x38xbf16> to vector<16x38xbf16>
    %cst = arith.constant 0.000000e+00 : bf16
    %2 = vector.broadcast %cst : bf16 to vector<16x38xbf16>
    %3 = arith.cmpf oge, %1, %2 : vector<16x38xbf16>
    %cst_3 = arith.constant 1.000980e-01 : bf16
    %4 = vector.broadcast %cst_3 : bf16 to vector<16x38xbf16>
    %5 = arith.mulf %1, %4 : vector<16x38xbf16>
    %6 = arith.select %3, %1, %5 : vector<16x38xi1>, vector<16x38xbf16>
    %7 = vector.extract_strided_slice %6 {offsets = [0, 0], sizes = [16, 32], strides = [1, 1]} : vector<16x38xbf16> to vector<16x32xbf16>
    %8 = vector.extract_strided_slice %6 {offsets = [0, 3], sizes = [16, 32], strides = [1, 1]} : vector<16x38xbf16> to vector<16x32xbf16>
    %9 = vector.extract_strided_slice %6 {offsets = [0, 6], sizes = [16, 32], strides = [1, 1]} : vector<16x38xbf16> to vector<16x32xbf16>
    %10 = tpu.concatenate %7, %8, %9 in 0 : vector<16x32xbf16>, vector<16x32xbf16>, vector<16x32xbf16> -> vector<48x32xbf16>
    %c0_4 = arith.constant 0 : index
    %c0_5 = arith.constant 0 : index
    %11 = vector.load %arg3[%c0_4, %c0_5] : memref<16x48xbf16, #tpu.memory_space<vmem>>, vector<16x48xbf16>
    %cst_6 = arith.constant dense<0.000000e+00> : vector<16x32xf32>
    %12 = tpu.matmul %11, %10, %cst_6 {dimension_numbers = #tpu.dot_dimension_numbers<[1], [0], [0], [1], [0, 0, 1, 1], [], []>} : vector<16x48xbf16>, vector<48x32xbf16>, vector<16x32xf32> -> vector<16x32xf32>
    %c0_7 = arith.constant 0 : index
    %c0_8 = arith.constant 0 : index
    %13 = vector.load %arg4[%c0_7, %c0_8] : memref<16x1xf32, #tpu.memory_space<vmem>>, vector<16x1xf32>
    %14 = vector.broadcast %13 : vector<16x1xf32> to vector<16x32xf32>
    %15 = arith.addf %12, %14 : vector<16x32xf32>
    %16 = arith.truncf %15 : vector<16x32xf32> to vector<16x32xbf16>
    %c0_9 = arith.constant 0 : index
    %c0_10 = arith.constant 0 : index
    %c0_11 = arith.constant 0 : index
    %17 = vector.load %arg5[%c0_9, %c0_10, %c0_11] : memref<1x16x32xbf16, #tpu.memory_space<vmem>>, vector<1x16x32xbf16>
    %18 = vector.shape_cast %17 : vector<1x16x32xbf16> to vector<16x32xbf16>
    %19 = vector.shape_cast %16 : vector<16x32xbf16> to vector<1x16x32xbf16>
    tpu.vector_store %arg5[%c0_9, %c0_10, %c0_11], %19 {strides = array<i32>} : memref<1x16x32xbf16, #tpu.memory_space<vmem>>, vector<1x16x32xbf16>,
    return
  }
  func.func @transform_0(%arg0: i32, %arg1: i32) -> (i32, i32, i32, i32) {
    %c0_i32 = arith.constant 0 : i32
    %c0_i32_0 = arith.constant 0 : i32
    %c0_i32_1 = arith.constant 0 : i32
    return %arg0, %arg1, %c0_i32, %c0_i32_0 : i32, i32, i32, i32
  }
  func.func @transform_1(%arg0: i32, %arg1: i32) -> (i32, i32) {
    %c0_i32 = arith.constant 0 : i32
    %c0_i32_0 = arith.constant 0 : i32
    %c0_i32_1 = arith.constant 0 : i32
    return %c0_i32, %c0_i32_0 : i32, i32
  }
  func.func @transform_2(%arg0: i32, %arg1: i32) -> (i32, i32) {
    %c0_i32 = arith.constant 0 : i32
    %c0_i32_0 = arith.constant 0 : i32
    %c0_i32_1 = arith.constant 0 : i32
    return %c0_i32, %c0_i32_0 : i32, i32
  }
  func.func @transform_3(%arg0: i32, %arg1: i32) -> (i32, i32, i32) {
    %c0_i32 = arith.constant 0 : i32
    %c0_i32_0 = arith.constant 0 : i32
    return %arg0, %c0_i32, %arg1 : i32, i32, i32
  }
}

module attributes {stable_mosaic.version = 11 : i64} {
  func.func @_conv1d_kernel(%arg0: i32, %arg1: i32, %arg2: memref<1x1x16x42xbf16, #tpu.memory_space<vmem>>, %arg3: memref<16x48xbf16, #tpu.memory_space<vmem>>, %arg4: memref<16x1xf32, #tpu.memory_space<vmem>>, %arg5: memref<1x16x32xbf16, #tpu.memory_space<vmem>>) attributes {dimension_semantics = [#tpu.dimension_semantics<parallel>, #tpu.dimension_semantics<parallel>], iteration_bounds = array<i64: 2, 1>, scalar_prefetch = 0 : i64, scratch_operands = 0 : i64, tpu.core_type = #tpu.core_type<tc>, window_params = [{transform_indices = @transform_0, window_bounds = array<i64: 1, 1, 16, 42>}, {pipeline_mode = #tpu.pipeline_mode<synchronous>, transform_indices = @transform_1, window_bounds = array<i64: 16, 48>}, {pipeline_mode = #tpu.pipeline_mode<synchronous>, transform_indices = @transform_2, window_bounds = array<i64: 16, 1>}, {transform_indices = @transform_3, window_bounds = array<i64: 1, 16, 32>}]} {
    %c0 = arith.constant 0 : index
    %c0_0 = arith.constant 0 : index
    %c0_1 = arith.constant 0 : index
    %c0_2 = arith.constant 0 : index
    %0 = vector.load %arg2[%c0, %c0_0, %c0_1, %c0_2] : memref<1x1x16x42xbf16, #tpu.memory_space<vmem>>, vector<1x1x16x42xbf16>
    %1 = vector.shape_cast %0 : vector<1x1x16x42xbf16> to vector<16x42xbf16>
    %cst = arith.constant 0.000000e+00 : bf16
    %2 = vector.broadcast %cst : bf16 to vector<16x42xbf16>
    %3 = arith.cmpf oge, %1, %2 : vector<16x42xbf16>
    %cst_3 = arith.constant 1.000980e-01 : bf16
    %4 = vector.broadcast %cst_3 : bf16 to vector<16x42xbf16>
    %5 = arith.mulf %1, %4 : vector<16x42xbf16>
    %6 = arith.select %3, %1, %5 : vector<16x42xi1>, vector<16x42xbf16>
    %7 = vector.extract_strided_slice %6 {offsets = [0, 0], sizes = [16, 32], strides = [1, 1]} : vector<16x42xbf16> to vector<16x32xbf16>
    %8 = vector.extract_strided_slice %6 {offsets = [0, 5], sizes = [16, 32], strides = [1, 1]} : vector<16x42xbf16> to vector<16x32xbf16>
    %9 = vector.extract_strided_slice %6 {offsets = [0, 10], sizes = [16, 32], strides = [1, 1]} : vector<16x42xbf16> to vector<16x32xbf16>
    %10 = tpu.concatenate %7, %8, %9 in 0 : vector<16x32xbf16>, vector<16x32xbf16>, vector<16x32xbf16> -> vector<48x32xbf16>
    %c0_4 = arith.constant 0 : index
    %c0_5 = arith.constant 0 : index
    %11 = vector.load %arg3[%c0_4, %c0_5] : memref<16x48xbf16, #tpu.memory_space<vmem>>, vector<16x48xbf16>
    %cst_6 = arith.constant dense<0.000000e+00> : vector<16x32xf32>
    %12 = tpu.matmul %11, %10, %cst_6 {dimension_numbers = #tpu.dot_dimension_numbers<[1], [0], [0], [1], [0, 0, 1, 1], [], []>} : vector<16x48xbf16>, vector<48x32xbf16>, vector<16x32xf32> -> vector<16x32xf32>
    %c0_7 = arith.constant 0 : index
    %c0_8 = arith.constant 0 : index
    %13 = vector.load %arg4[%c0_7, %c0_8] : memref<16x1xf32, #tpu.memory_space<vmem>>, vector<16x1xf32>
    %14 = vector.broadcast %13 : vector<16x1xf32> to vector<16x32xf32>
    %15 = arith.addf %12, %14 : vector<16x32xf32>
    %16 = arith.truncf %15 : vector<16x32xf32> to vector<16x32xbf16>
    %c0_9 = arith.constant 0 : index
    %c0_10 = arith.constant 0 : index
    %c0_11 = arith.constant 0 : index
    %17 = vector.load %arg5[%c0_9, %c0_10, %c0_11] : memref<1x16x32xbf16, #tpu.memory_space<vmem>>, vector<1x16x32xbf16>
    %18 = vector.shape_cast %17 : vector<1x16x32xbf16> to vector<16x32xbf16>
    %19 = vector.shape_cast %16 : vector<16x32xbf16> to vector<1x16x32xbf16>
    tpu.vector_store %arg5[%c0_9, %c0_10, %c0_11], %19 {strides = array<i32>} : memref<1x16x32xbf16, #tpu.memory_space<vmem>>, vector<1x16x32xbf16>,
    return
  }
  func.func @transform_0(%arg0: i32, %arg1: i32) -> (i32, i32, i32, i32) {
    %c0_i32 = arith.constant 0 : i32
    %c0_i32_0 = arith.constant 0 : i32
    %c0_i32_1 = arith.constant 0 : i32
    return %arg0, %arg1, %c0_i32, %c0_i32_0 : i32, i32, i32, i32
  }
  func.func @transform_1(%arg0: i32, %arg1: i32) -> (i32, i32) {
    %c0_i32 = arith.constant 0 : i32
    %c0_i32_0 = arith.constant 0 : i32
    %c0_i32_1 = arith.constant 0 : i32
    return %c0_i32, %c0_i32_0 : i32, i32
  }
  func.func @transform_2(%arg0: i32, %arg1: i32) -> (i32, i32) {
    %c0_i32 = arith.constant 0 : i32
    %c0_i32_0 = arith.constant 0 : i32
    %c0_i32_1 = arith.constant 0 : i32
    return %c0_i32, %c0_i32_0 : i32, i32
  }
  func.func @transform_3(%arg0: i32, %arg1: i32) -> (i32, i32, i32) {
    %c0_i32 = arith.constant 0 : i32
    %c0_i32_0 = arith.constant 0 : i32
    return %arg0, %c0_i32, %arg1 : i32, i32, i32
  }
}

module attributes {stable_mosaic.version = 11 : i64} {
  func.func @_conv1d_kernel(%arg0: i32, %arg1: i32, %arg2: memref<1x1x16x44xbf16, #tpu.memory_space<vmem>>, %arg3: memref<16x80xbf16, #tpu.memory_space<vmem>>, %arg4: memref<16x1xf32, #tpu.memory_space<vmem>>, %arg5: memref<1x16x32xbf16, #tpu.memory_space<vmem>>) attributes {dimension_semantics = [#tpu.dimension_semantics<parallel>, #tpu.dimension_semantics<parallel>], iteration_bounds = array<i64: 2, 1>, scalar_prefetch = 0 : i64, scratch_operands = 0 : i64, tpu.core_type = #tpu.core_type<tc>, window_params = [{transform_indices = @transform_0, window_bounds = array<i64: 1, 1, 16, 44>}, {pipeline_mode = #tpu.pipeline_mode<synchronous>, transform_indices = @transform_1, window_bounds = array<i64: 16, 80>}, {pipeline_mode = #tpu.pipeline_mode<synchronous>, transform_indices = @transform_2, window_bounds = array<i64: 16, 1>}, {transform_indices = @transform_3, window_bounds = array<i64: 1, 16, 32>}]} {
    %c0 = arith.constant 0 : index
    %c0_0 = arith.constant 0 : index
    %c0_1 = arith.constant 0 : index
    %c0_2 = arith.constant 0 : index
    %0 = vector.load %arg2[%c0, %c0_0, %c0_1, %c0_2] : memref<1x1x16x44xbf16, #tpu.memory_space<vmem>>, vector<1x1x16x44xbf16>
    %1 = vector.shape_cast %0 : vector<1x1x16x44xbf16> to vector<16x44xbf16>
    %cst = arith.constant 0.000000e+00 : bf16
    %2 = vector.broadcast %cst : bf16 to vector<16x44xbf16>
    %3 = arith.cmpf oge, %1, %2 : vector<16x44xbf16>
    %cst_3 = arith.constant 1.000980e-01 : bf16
    %4 = vector.broadcast %cst_3 : bf16 to vector<16x44xbf16>
    %5 = arith.mulf %1, %4 : vector<16x44xbf16>
    %6 = arith.select %3, %1, %5 : vector<16x44xi1>, vector<16x44xbf16>
    %7 = vector.extract_strided_slice %6 {offsets = [0, 0], sizes = [16, 32], strides = [1, 1]} : vector<16x44xbf16> to vector<16x32xbf16>
    %8 = vector.extract_strided_slice %6 {offsets = [0, 3], sizes = [16, 32], strides = [1, 1]} : vector<16x44xbf16> to vector<16x32xbf16>
    %9 = vector.extract_strided_slice %6 {offsets = [0, 6], sizes = [16, 32], strides = [1, 1]} : vector<16x44xbf16> to vector<16x32xbf16>
    %10 = vector.extract_strided_slice %6 {offsets = [0, 9], sizes = [16, 32], strides = [1, 1]} : vector<16x44xbf16> to vector<16x32xbf16>
    %11 = vector.extract_strided_slice %6 {offsets = [0, 12], sizes = [16, 32], strides = [1, 1]} : vector<16x44xbf16> to vector<16x32xbf16>
    %12 = tpu.concatenate %7, %8, %9, %10, %11 in 0 : vector<16x32xbf16>, vector<16x32xbf16>, vector<16x32xbf16>, vector<16x32xbf16>, vector<16x32xbf16> -> vector<80x32xbf16>
    %c0_4 = arith.constant 0 : index
    %c0_5 = arith.constant 0 : index
    %13 = vector.load %arg3[%c0_4, %c0_5] : memref<16x80xbf16, #tpu.memory_space<vmem>>, vector<16x80xbf16>
    %cst_6 = arith.constant dense<0.000000e+00> : vector<16x32xf32>
    %14 = tpu.matmul %13, %12, %cst_6 {dimension_numbers = #tpu.dot_dimension_numbers<[1], [0], [0], [1], [0, 0, 1, 1], [], []>} : vector<16x80xbf16>, vector<80x32xbf16>, vector<16x32xf32> -> vector<16x32xf32>
    %c0_7 = arith.constant 0 : index
    %c0_8 = arith.constant 0 : index
    %15 = vector.load %arg4[%c0_7, %c0_8] : memref<16x1xf32, #tpu.memory_space<vmem>>, vector<16x1xf32>
    %16 = vector.broadcast %15 : vector<16x1xf32> to vector<16x32xf32>
    %17 = arith.addf %14, %16 : vector<16x32xf32>
    %18 = arith.truncf %17 : vector<16x32xf32> to vector<16x32xbf16>
    %c0_9 = arith.constant 0 : index
    %c0_10 = arith.constant 0 : index
    %c0_11 = arith.constant 0 : index
    %19 = vector.load %arg5[%c0_9, %c0_10, %c0_11] : memref<1x16x32xbf16, #tpu.memory_space<vmem>>, vector<1x16x32xbf16>
    %20 = vector.shape_cast %19 : vector<1x16x32xbf16> to vector<16x32xbf16>
    %21 = vector.shape_cast %18 : vector<16x32xbf16> to vector<1x16x32xbf16>
    tpu.vector_store %arg5[%c0_9, %c0_10, %c0_11], %21 {strides = array<i32>} : memref<1x16x32xbf16, #tpu.memory_space<vmem>>, vector<1x16x32xbf16>,
    return
  }
  func.func @transform_0(%arg0: i32, %arg1: i32) -> (i32, i32, i32, i32) {
    %c0_i32 = arith.constant 0 : i32
    %c0_i32_0 = arith.constant 0 : i32
    %c0_i32_1 = arith.constant 0 : i32
    return %arg0, %arg1, %c0_i32, %c0_i32_0 : i32, i32, i32, i32
  }
  func.func @transform_1(%arg0: i32, %arg1: i32) -> (i32, i32) {
    %c0_i32 = arith.constant 0 : i32
    %c0_i32_0 = arith.constant 0 : i32
    %c0_i32_1 = arith.constant 0 : i32
    return %c0_i32, %c0_i32_0 : i32, i32
  }
  func.func @transform_2(%arg0: i32, %arg1: i32) -> (i32, i32) {
    %c0_i32 = arith.constant 0 : i32
    %c0_i32_0 = arith.constant 0 : i32
    %c0_i32_1 = arith.constant 0 : i32
    return %c0_i32, %c0_i32_0 : i32, i32
  }
  func.func @transform_3(%arg0: i32, %arg1: i32) -> (i32, i32, i32) {
    %c0_i32 = arith.constant 0 : i32
    %c0_i32_0 = arith.constant 0 : i32
    return %arg0, %c0_i32, %arg1 : i32, i32, i32
  }
}

module attributes {stable_mosaic.version = 11 : i64} {
  func.func @_conv1d_kernel(%arg0: i32, %arg1: i32, %arg2: memref<1x1x16x52xbf16, #tpu.memory_space<vmem>>, %arg3: memref<16x80xbf16, #tpu.memory_space<vmem>>, %arg4: memref<16x1xf32, #tpu.memory_space<vmem>>, %arg5: memref<1x16x32xbf16, #tpu.memory_space<vmem>>) attributes {dimension_semantics = [#tpu.dimension_semantics<parallel>, #tpu.dimension_semantics<parallel>], iteration_bounds = array<i64: 2, 1>, scalar_prefetch = 0 : i64, scratch_operands = 0 : i64, tpu.core_type = #tpu.core_type<tc>, window_params = [{transform_indices = @transform_0, window_bounds = array<i64: 1, 1, 16, 52>}, {pipeline_mode = #tpu.pipeline_mode<synchronous>, transform_indices = @transform_1, window_bounds = array<i64: 16, 80>}, {pipeline_mode = #tpu.pipeline_mode<synchronous>, transform_indices = @transform_2, window_bounds = array<i64: 16, 1>}, {transform_indices = @transform_3, window_bounds = array<i64: 1, 16, 32>}]} {
    %c0 = arith.constant 0 : index
    %c0_0 = arith.constant 0 : index
    %c0_1 = arith.constant 0 : index
    %c0_2 = arith.constant 0 : index
    %0 = vector.load %arg2[%c0, %c0_0, %c0_1, %c0_2] : memref<1x1x16x52xbf16, #tpu.memory_space<vmem>>, vector<1x1x16x52xbf16>
    %1 = vector.shape_cast %0 : vector<1x1x16x52xbf16> to vector<16x52xbf16>
    %cst = arith.constant 0.000000e+00 : bf16
    %2 = vector.broadcast %cst : bf16 to vector<16x52xbf16>
    %3 = arith.cmpf oge, %1, %2 : vector<16x52xbf16>
    %cst_3 = arith.constant 1.000980e-01 : bf16
    %4 = vector.broadcast %cst_3 : bf16 to vector<16x52xbf16>
    %5 = arith.mulf %1, %4 : vector<16x52xbf16>
    %6 = arith.select %3, %1, %5 : vector<16x52xi1>, vector<16x52xbf16>
    %7 = vector.extract_strided_slice %6 {offsets = [0, 0], sizes = [16, 32], strides = [1, 1]} : vector<16x52xbf16> to vector<16x32xbf16>
    %8 = vector.extract_strided_slice %6 {offsets = [0, 5], sizes = [16, 32], strides = [1, 1]} : vector<16x52xbf16> to vector<16x32xbf16>
    %9 = vector.extract_strided_slice %6 {offsets = [0, 10], sizes = [16, 32], strides = [1, 1]} : vector<16x52xbf16> to vector<16x32xbf16>
    %10 = vector.extract_strided_slice %6 {offsets = [0, 15], sizes = [16, 32], strides = [1, 1]} : vector<16x52xbf16> to vector<16x32xbf16>
    %11 = vector.extract_strided_slice %6 {offsets = [0, 20], sizes = [16, 32], strides = [1, 1]} : vector<16x52xbf16> to vector<16x32xbf16>
    %12 = tpu.concatenate %7, %8, %9, %10, %11 in 0 : vector<16x32xbf16>, vector<16x32xbf16>, vector<16x32xbf16>, vector<16x32xbf16>, vector<16x32xbf16> -> vector<80x32xbf16>
    %c0_4 = arith.constant 0 : index
    %c0_5 = arith.constant 0 : index
    %13 = vector.load %arg3[%c0_4, %c0_5] : memref<16x80xbf16, #tpu.memory_space<vmem>>, vector<16x80xbf16>
    %cst_6 = arith.constant dense<0.000000e+00> : vector<16x32xf32>
    %14 = tpu.matmul %13, %12, %cst_6 {dimension_numbers = #tpu.dot_dimension_numbers<[1], [0], [0], [1], [0, 0, 1, 1], [], []>} : vector<16x80xbf16>, vector<80x32xbf16>, vector<16x32xf32> -> vector<16x32xf32>
    %c0_7 = arith.constant 0 : index
    %c0_8 = arith.constant 0 : index
    %15 = vector.load %arg4[%c0_7, %c0_8] : memref<16x1xf32, #tpu.memory_space<vmem>>, vector<16x1xf32>
    %16 = vector.broadcast %15 : vector<16x1xf32> to vector<16x32xf32>
    %17 = arith.addf %14, %16 : vector<16x32xf32>
    %18 = arith.truncf %17 : vector<16x32xf32> to vector<16x32xbf16>
    %c0_9 = arith.constant 0 : index
    %c0_10 = arith.constant 0 : index
    %c0_11 = arith.constant 0 : index
    %19 = vector.load %arg5[%c0_9, %c0_10, %c0_11] : memref<1x16x32xbf16, #tpu.memory_space<vmem>>, vector<1x16x32xbf16>
    %20 = vector.shape_cast %19 : vector<1x16x32xbf16> to vector<16x32xbf16>
    %21 = vector.shape_cast %18 : vector<16x32xbf16> to vector<1x16x32xbf16>
    tpu.vector_store %arg5[%c0_9, %c0_10, %c0_11], %21 {strides = array<i32>} : memref<1x16x32xbf16, #tpu.memory_space<vmem>>, vector<1x16x32xbf16>,
    return
  }
  func.func @transform_0(%arg0: i32, %arg1: i32) -> (i32, i32, i32, i32) {
    %c0_i32 = arith.constant 0 : i32
    %c0_i32_0 = arith.constant 0 : i32
    %c0_i32_1 = arith.constant 0 : i32
    return %arg0, %arg1, %c0_i32, %c0_i32_0 : i32, i32, i32, i32
  }
  func.func @transform_1(%arg0: i32, %arg1: i32) -> (i32, i32) {
    %c0_i32 = arith.constant 0 : i32
    %c0_i32_0 = arith.constant 0 : i32
    %c0_i32_1 = arith.constant 0 : i32
    return %c0_i32, %c0_i32_0 : i32, i32
  }
  func.func @transform_2(%arg0: i32, %arg1: i32) -> (i32, i32) {
    %c0_i32 = arith.constant 0 : i32
    %c0_i32_0 = arith.constant 0 : i32
    %c0_i32_1 = arith.constant 0 : i32
    return %c0_i32, %c0_i32_0 : i32, i32
  }
  func.func @transform_3(%arg0: i32, %arg1: i32) -> (i32, i32, i32) {
    %c0_i32 = arith.constant 0 : i32
    %c0_i32_0 = arith.constant 0 : i32
    return %arg0, %c0_i32, %arg1 : i32, i32, i32
  }
}

module attributes {stable_mosaic.version = 11 : i64} {
  func.func @_conv1d_kernel(%arg0: i32, %arg1: i32, %arg2: memref<1x1x16x33xbf16, #tpu.memory_space<vmem>>, %arg3: memref<8x32xbf16, #tpu.memory_space<vmem>>, %arg4: memref<8x1xf32, #tpu.memory_space<vmem>>, %arg5: memref<1x8x32xbf16, #tpu.memory_space<vmem>>) attributes {dimension_semantics = [#tpu.dimension_semantics<parallel>, #tpu.dimension_semantics<parallel>], iteration_bounds = array<i64: 2, 1>, scalar_prefetch = 0 : i64, scratch_operands = 0 : i64, tpu.core_type = #tpu.core_type<tc>, window_params = [{transform_indices = @transform_0, window_bounds = array<i64: 1, 1, 16, 33>}, {pipeline_mode = #tpu.pipeline_mode<synchronous>, transform_indices = @transform_1, window_bounds = array<i64: 8, 32>}, {pipeline_mode = #tpu.pipeline_mode<synchronous>, transform_indices = @transform_2, window_bounds = array<i64: 8, 1>}, {transform_indices = @transform_3, window_bounds = array<i64: 1, 8, 32>}]} {
    %c0 = arith.constant 0 : index
    %c0_0 = arith.constant 0 : index
    %c0_1 = arith.constant 0 : index
    %c0_2 = arith.constant 0 : index
    %0 = vector.load %arg2[%c0, %c0_0, %c0_1, %c0_2] : memref<1x1x16x33xbf16, #tpu.memory_space<vmem>>, vector<1x1x16x33xbf16>
    %1 = vector.shape_cast %0 : vector<1x1x16x33xbf16> to vector<16x33xbf16>
    %cst = arith.constant 0.000000e+00 : bf16
    %2 = vector.broadcast %cst : bf16 to vector<16x33xbf16>
    %3 = arith.cmpf oge, %1, %2 : vector<16x33xbf16>
    %cst_3 = arith.constant 1.000980e-01 : bf16
    %4 = vector.broadcast %cst_3 : bf16 to vector<16x33xbf16>
    %5 = arith.mulf %1, %4 : vector<16x33xbf16>
    %6 = arith.select %3, %1, %5 : vector<16x33xi1>, vector<16x33xbf16>
    %7 = vector.extract_strided_slice %6 {offsets = [0, 0], sizes = [16, 32], strides = [1, 1]} : vector<16x33xbf16> to vector<16x32xbf16>
    %8 = vector.extract_strided_slice %6 {offsets = [0, 1], sizes = [16, 32], strides = [1, 1]} : vector<16x33xbf16> to vector<16x32xbf16>
    %9 = tpu.concatenate %7, %8 in 0 : vector<16x32xbf16>, vector<16x32xbf16> -> vector<32x32xbf16>
    %c0_4 = arith.constant 0 : index
    %c0_5 = arith.constant 0 : index
    %10 = vector.load %arg3[%c0_4, %c0_5] : memref<8x32xbf16, #tpu.memory_space<vmem>>, vector<8x32xbf16>
    %cst_6 = arith.constant dense<0.000000e+00> : vector<8x32xf32>
    %11 = tpu.matmul %10, %9, %cst_6 {dimension_numbers = #tpu.dot_dimension_numbers<[1], [0], [0], [1], [0, 0, 1, 1], [], []>} : vector<8x32xbf16>, vector<32x32xbf16>, vector<8x32xf32> -> vector<8x32xf32>
    %c0_7 = arith.constant 0 : index
    %c0_8 = arith.constant 0 : index
    %12 = vector.load %arg4[%c0_7, %c0_8] : memref<8x1xf32, #tpu.memory_space<vmem>>, vector<8x1xf32>
    %13 = vector.broadcast %12 : vector<8x1xf32> to vector<8x32xf32>
    %14 = arith.addf %11, %13 : vector<8x32xf32>
    %15 = arith.truncf %14 : vector<8x32xf32> to vector<8x32xbf16>
    %c0_9 = arith.constant 0 : index
    %c0_10 = arith.constant 0 : index
    %c0_11 = arith.constant 0 : index
    %16 = vector.load %arg5[%c0_9, %c0_10, %c0_11] : memref<1x8x32xbf16, #tpu.memory_space<vmem>>, vector<1x8x32xbf16>
    %17 = vector.shape_cast %16 : vector<1x8x32xbf16> to vector<8x32xbf16>
    %18 = vector.shape_cast %15 : vector<8x32xbf16> to vector<1x8x32xbf16>
    tpu.vector_store %arg5[%c0_9, %c0_10, %c0_11], %18 {strides = array<i32>} : memref<1x8x32xbf16, #tpu.memory_space<vmem>>, vector<1x8x32xbf16>,
    return
  }
  func.func @transform_0(%arg0: i32, %arg1: i32) -> (i32, i32, i32, i32) {
    %c0_i32 = arith.constant 0 : i32
    %c0_i32_0 = arith.constant 0 : i32
    %c0_i32_1 = arith.constant 0 : i32
    return %arg0, %arg1, %c0_i32, %c0_i32_0 : i32, i32, i32, i32
  }
  func.func @transform_1(%arg0: i32, %arg1: i32) -> (i32, i32) {
    %c0_i32 = arith.constant 0 : i32
    %c0_i32_0 = arith.constant 0 : i32
    %c0_i32_1 = arith.constant 0 : i32
    return %c0_i32, %c0_i32_0 : i32, i32
  }
  func.func @transform_2(%arg0: i32, %arg1: i32) -> (i32, i32) {
    %c0_i32 = arith.constant 0 : i32
    %c0_i32_0 = arith.constant 0 : i32
    %c0_i32_1 = arith.constant 0 : i32
    return %c0_i32, %c0_i32_0 : i32, i32
  }
  func.func @transform_3(%arg0: i32, %arg1: i32) -> (i32, i32, i32) {
    %c0_i32 = arith.constant 0 : i32
    %c0_i32_0 = arith.constant 0 : i32
    return %arg0, %c0_i32, %arg1 : i32, i32, i32
  }
}

module attributes {stable_mosaic.version = 11 : i64} {
  func.func @_conv1d_kernel(%arg0: i32, %arg1: i32, %arg2: memref<1x1x8x66xbf16, #tpu.memory_space<vmem>>, %arg3: memref<8x24xbf16, #tpu.memory_space<vmem>>, %arg4: memref<8x1xf32, #tpu.memory_space<vmem>>, %arg5: memref<1x8x64xbf16, #tpu.memory_space<vmem>>) attributes {dimension_semantics = [#tpu.dimension_semantics<parallel>, #tpu.dimension_semantics<parallel>], iteration_bounds = array<i64: 2, 1>, scalar_prefetch = 0 : i64, scratch_operands = 0 : i64, tpu.core_type = #tpu.core_type<tc>, window_params = [{transform_indices = @transform_0, window_bounds = array<i64: 1, 1, 8, 66>}, {pipeline_mode = #tpu.pipeline_mode<synchronous>, transform_indices = @transform_1, window_bounds = array<i64: 8, 24>}, {pipeline_mode = #tpu.pipeline_mode<synchronous>, transform_indices = @transform_2, window_bounds = array<i64: 8, 1>}, {transform_indices = @transform_3, window_bounds = array<i64: 1, 8, 64>}]} {
    %c0 = arith.constant 0 : index
    %c0_0 = arith.constant 0 : index
    %c0_1 = arith.constant 0 : index
    %c0_2 = arith.constant 0 : index
    %0 = vector.load %arg2[%c0, %c0_0, %c0_1, %c0_2] : memref<1x1x8x66xbf16, #tpu.memory_space<vmem>>, vector<1x1x8x66xbf16>
    %1 = vector.shape_cast %0 : vector<1x1x8x66xbf16> to vector<8x66xbf16>
    %cst = arith.constant 0.000000e+00 : bf16
    %2 = vector.broadcast %cst : bf16 to vector<8x66xbf16>
    %3 = arith.cmpf oge, %1, %2 : vector<8x66xbf16>
    %cst_3 = arith.constant 1.000980e-01 : bf16
    %4 = vector.broadcast %cst_3 : bf16 to vector<8x66xbf16>
    %5 = arith.mulf %1, %4 : vector<8x66xbf16>
    %6 = arith.select %3, %1, %5 : vector<8x66xi1>, vector<8x66xbf16>
    %c0_4 = arith.constant 0 : index
    %c0_5 = arith.constant 0 : index
    %7 = vector.load %arg3[%c0_4, %c0_5] : memref<8x24xbf16, #tpu.memory_space<vmem>>, vector<8x8xbf16>
    %8 = vector.extract_strided_slice %6 {offsets = [0, 0], sizes = [8, 64], strides = [1, 1]} : vector<8x66xbf16> to vector<8x64xbf16>
    %cst_6 = arith.constant dense<0.000000e+00> : vector<8x64xf32>
    %9 = tpu.matmul %7, %8, %cst_6 {dimension_numbers = #tpu.dot_dimension_numbers<[1], [0], [0], [1], [0, 0, 1, 1], [], []>} : vector<8x8xbf16>, vector<8x64xbf16>, vector<8x64xf32> -> vector<8x64xf32>
    %c0_7 = arith.constant 0 : index
    %c8 = arith.constant 8 : index
    %10 = vector.load %arg3[%c0_7, %c8] : memref<8x24xbf16, #tpu.memory_space<vmem>>, vector<8x8xbf16>
    %11 = vector.extract_strided_slice %6 {offsets = [0, 1], sizes = [8, 64], strides = [1, 1]} : vector<8x66xbf16> to vector<8x64xbf16>
    %cst_8 = arith.constant dense<0.000000e+00> : vector<8x64xf32>
    %12 = tpu.matmul %10, %11, %cst_8 {dimension_numbers = #tpu.dot_dimension_numbers<[1], [0], [0], [1], [0, 0, 1, 1], [], []>} : vector<8x8xbf16>, vector<8x64xbf16>, vector<8x64xf32> -> vector<8x64xf32>
    %13 = arith.addf %9, %12 : vector<8x64xf32>
    %c0_9 = arith.constant 0 : index
    %c16 = arith.constant 16 : index
    %14 = vector.load %arg3[%c0_9, %c16] : memref<8x24xbf16, #tpu.memory_space<vmem>>, vector<8x8xbf16>
    %15 = vector.extract_strided_slice %6 {offsets = [0, 2], sizes = [8, 64], strides = [1, 1]} : vector<8x66xbf16> to vector<8x64xbf16>
    %cst_10 = arith.constant dense<0.000000e+00> : vector<8x64xf32>
    %16 = tpu.matmul %14, %15, %cst_10 {dimension_numbers = #tpu.dot_dimension_numbers<[1], [0], [0], [1], [0, 0, 1, 1], [], []>} : vector<8x8xbf16>, vector<8x64xbf16>, vector<8x64xf32> -> vector<8x64xf32>
    %17 = arith.addf %13, %16 : vector<8x64xf32>
    %c0_11 = arith.constant 0 : index
    %c0_12 = arith.constant 0 : index
    %18 = vector.load %arg4[%c0_11, %c0_12] : memref<8x1xf32, #tpu.memory_space<vmem>>, vector<8x1xf32>
    %19 = vector.broadcast %18 : vector<8x1xf32> to vector<8x64xf32>
    %20 = arith.addf %17, %19 : vector<8x64xf32>
    %21 = arith.truncf %20 : vector<8x64xf32> to vector<8x64xbf16>
    %c0_13 = arith.constant 0 : index
    %c0_14 = arith.constant 0 : index
    %c0_15 = arith.constant 0 : index
    %22 = vector.load %arg5[%c0_13, %c0_14, %c0_15] : memref<1x8x64xbf16, #tpu.memory_space<vmem>>, vector<1x8x64xbf16>
    %23 = vector.shape_cast %22 : vector<1x8x64xbf16> to vector<8x64xbf16>
    %24 = vector.shape_cast %21 : vector<8x64xbf16> to vector<1x8x64xbf16>
    tpu.vector_store %arg5[%c0_13, %c0_14, %c0_15], %24 {strides = array<i32>} : memref<1x8x64xbf16, #tpu.memory_space<vmem>>, vector<1x8x64xbf16>,
    return
  }
  func.func @transform_0(%arg0: i32, %arg1: i32) -> (i32, i32, i32, i32) {
    %c0_i32 = arith.constant 0 : i32
    %c0_i32_0 = arith.constant 0 : i32
    %c0_i32_1 = arith.constant 0 : i32
    return %arg0, %arg1, %c0_i32, %c0_i32_0 : i32, i32, i32, i32
  }
  func.func @transform_1(%arg0: i32, %arg1: i32) -> (i32, i32) {
    %c0_i32 = arith.constant 0 : i32
    %c0_i32_0 = arith.constant 0 : i32
    %c0_i32_1 = arith.constant 0 : i32
    return %c0_i32, %c0_i32_0 : i32, i32
  }
  func.func @transform_2(%arg0: i32, %arg1: i32) -> (i32, i32) {
    %c0_i32 = arith.constant 0 : i32
    %c0_i32_0 = arith.constant 0 : i32
    %c0_i32_1 = arith.constant 0 : i32
    return %c0_i32, %c0_i32_0 : i32, i32
  }
  func.func @transform_3(%arg0: i32, %arg1: i32) -> (i32, i32, i32) {
    %c0_i32 = arith.constant 0 : i32
    %c0_i32_0 = arith.constant 0 : i32
    return %arg0, %c0_i32, %arg1 : i32, i32, i32
  }
}

module attributes {stable_mosaic.version = 11 : i64} {
  func.func @_conv1d_kernel(%arg0: i32, %arg1: i32, %arg2: memref<1x1x8x68xbf16, #tpu.memory_space<vmem>>, %arg3: memref<8x40xbf16, #tpu.memory_space<vmem>>, %arg4: memref<8x1xf32, #tpu.memory_space<vmem>>, %arg5: memref<1x8x64xbf16, #tpu.memory_space<vmem>>) attributes {dimension_semantics = [#tpu.dimension_semantics<parallel>, #tpu.dimension_semantics<parallel>], iteration_bounds = array<i64: 2, 1>, scalar_prefetch = 0 : i64, scratch_operands = 0 : i64, tpu.core_type = #tpu.core_type<tc>, window_params = [{transform_indices = @transform_0, window_bounds = array<i64: 1, 1, 8, 68>}, {pipeline_mode = #tpu.pipeline_mode<synchronous>, transform_indices = @transform_1, window_bounds = array<i64: 8, 40>}, {pipeline_mode = #tpu.pipeline_mode<synchronous>, transform_indices = @transform_2, window_bounds = array<i64: 8, 1>}, {transform_indices = @transform_3, window_bounds = array<i64: 1, 8, 64>}]} {
    %c0 = arith.constant 0 : index
    %c0_0 = arith.constant 0 : index
    %c0_1 = arith.constant 0 : index
    %c0_2 = arith.constant 0 : index
    %0 = vector.load %arg2[%c0, %c0_0, %c0_1, %c0_2] : memref<1x1x8x68xbf16, #tpu.memory_space<vmem>>, vector<1x1x8x68xbf16>
    %1 = vector.shape_cast %0 : vector<1x1x8x68xbf16> to vector<8x68xbf16>
    %cst = arith.constant 0.000000e+00 : bf16
    %2 = vector.broadcast %cst : bf16 to vector<8x68xbf16>
    %3 = arith.cmpf oge, %1, %2 : vector<8x68xbf16>
    %cst_3 = arith.constant 1.000980e-01 : bf16
    %4 = vector.broadcast %cst_3 : bf16 to vector<8x68xbf16>
    %5 = arith.mulf %1, %4 : vector<8x68xbf16>
    %6 = arith.select %3, %1, %5 : vector<8x68xi1>, vector<8x68xbf16>
    %c0_4 = arith.constant 0 : index
    %c0_5 = arith.constant 0 : index
    %7 = vector.load %arg3[%c0_4, %c0_5] : memref<8x40xbf16, #tpu.memory_space<vmem>>, vector<8x8xbf16>
    %8 = vector.extract_strided_slice %6 {offsets = [0, 0], sizes = [8, 64], strides = [1, 1]} : vector<8x68xbf16> to vector<8x64xbf16>
    %cst_6 = arith.constant dense<0.000000e+00> : vector<8x64xf32>
    %9 = tpu.matmul %7, %8, %cst_6 {dimension_numbers = #tpu.dot_dimension_numbers<[1], [0], [0], [1], [0, 0, 1, 1], [], []>} : vector<8x8xbf16>, vector<8x64xbf16>, vector<8x64xf32> -> vector<8x64xf32>
    %c0_7 = arith.constant 0 : index
    %c8 = arith.constant 8 : index
    %10 = vector.load %arg3[%c0_7, %c8] : memref<8x40xbf16, #tpu.memory_space<vmem>>, vector<8x8xbf16>
    %11 = vector.extract_strided_slice %6 {offsets = [0, 1], sizes = [8, 64], strides = [1, 1]} : vector<8x68xbf16> to vector<8x64xbf16>
    %cst_8 = arith.constant dense<0.000000e+00> : vector<8x64xf32>
    %12 = tpu.matmul %10, %11, %cst_8 {dimension_numbers = #tpu.dot_dimension_numbers<[1], [0], [0], [1], [0, 0, 1, 1], [], []>} : vector<8x8xbf16>, vector<8x64xbf16>, vector<8x64xf32> -> vector<8x64xf32>
    %13 = arith.addf %9, %12 : vector<8x64xf32>
    %c0_9 = arith.constant 0 : index
    %c16 = arith.constant 16 : index
    %14 = vector.load %arg3[%c0_9, %c16] : memref<8x40xbf16, #tpu.memory_space<vmem>>, vector<8x8xbf16>
    %15 = vector.extract_strided_slice %6 {offsets = [0, 2], sizes = [8, 64], strides = [1, 1]} : vector<8x68xbf16> to vector<8x64xbf16>
    %cst_10 = arith.constant dense<0.000000e+00> : vector<8x64xf32>
    %16 = tpu.matmul %14, %15, %cst_10 {dimension_numbers = #tpu.dot_dimension_numbers<[1], [0], [0], [1], [0, 0, 1, 1], [], []>} : vector<8x8xbf16>, vector<8x64xbf16>, vector<8x64xf32> -> vector<8x64xf32>
    %17 = arith.addf %13, %16 : vector<8x64xf32>
    %c0_11 = arith.constant 0 : index
    %c24 = arith.constant 24 : index
    %18 = vector.load %arg3[%c0_11, %c24] : memref<8x40xbf16, #tpu.memory_space<vmem>>, vector<8x8xbf16>
    %19 = vector.extract_strided_slice %6 {offsets = [0, 3], sizes = [8, 64], strides = [1, 1]} : vector<8x68xbf16> to vector<8x64xbf16>
    %cst_12 = arith.constant dense<0.000000e+00> : vector<8x64xf32>
    %20 = tpu.matmul %18, %19, %cst_12 {dimension_numbers = #tpu.dot_dimension_numbers<[1], [0], [0], [1], [0, 0, 1, 1], [], []>} : vector<8x8xbf16>, vector<8x64xbf16>, vector<8x64xf32> -> vector<8x64xf32>
    %21 = arith.addf %17, %20 : vector<8x64xf32>
    %c0_13 = arith.constant 0 : index
    %c32 = arith.constant 32 : index
    %22 = vector.load %arg3[%c0_13, %c32] : memref<8x40xbf16, #tpu.memory_space<vmem>>, vector<8x8xbf16>
    %23 = vector.extract_strided_slice %6 {offsets = [0, 4], sizes = [8, 64], strides = [1, 1]} : vector<8x68xbf16> to vector<8x64xbf16>
    %cst_14 = arith.constant dense<0.000000e+00> : vector<8x64xf32>
    %24 = tpu.matmul %22, %23, %cst_14 {dimension_numbers = #tpu.dot_dimension_numbers<[1], [0], [0], [1], [0, 0, 1, 1], [], []>} : vector<8x8xbf16>, vector<8x64xbf16>, vector<8x64xf32> -> vector<8x64xf32>
    %25 = arith.addf %21, %24 : vector<8x64xf32>
    %c0_15 = arith.constant 0 : index
    %c0_16 = arith.constant 0 : index
    %26 = vector.load %arg4[%c0_15, %c0_16] : memref<8x1xf32, #tpu.memory_space<vmem>>, vector<8x1xf32>
    %27 = vector.broadcast %26 : vector<8x1xf32> to vector<8x64xf32>
    %28 = arith.addf %25, %27 : vector<8x64xf32>
    %29 = arith.truncf %28 : vector<8x64xf32> to vector<8x64xbf16>
    %c0_17 = arith.constant 0 : index
    %c0_18 = arith.constant 0 : index
    %c0_19 = arith.constant 0 : index
    %30 = vector.load %arg5[%c0_17, %c0_18, %c0_19] : memref<1x8x64xbf16, #tpu.memory_space<vmem>>, vector<1x8x64xbf16>
    %31 = vector.shape_cast %30 : vector<1x8x64xbf16> to vector<8x64xbf16>
    %32 = vector.shape_cast %29 : vector<8x64xbf16> to vector<1x8x64xbf16>
    tpu.vector_store %arg5[%c0_17, %c0_18, %c0_19], %32 {strides = array<i32>} : memref<1x8x64xbf16, #tpu.memory_space<vmem>>, vector<1x8x64xbf16>,
    return
  }
  func.func @transform_0(%arg0: i32, %arg1: i32) -> (i32, i32, i32, i32) {
    %c0_i32 = arith.constant 0 : i32
    %c0_i32_0 = arith.constant 0 : i32
    %c0_i32_1 = arith.constant 0 : i32
    return %arg0, %arg1, %c0_i32, %c0_i32_0 : i32, i32, i32, i32
  }
  func.func @transform_1(%arg0: i32, %arg1: i32) -> (i32, i32) {
    %c0_i32 = arith.constant 0 : i32
    %c0_i32_0 = arith.constant 0 : i32
    %c0_i32_1 = arith.constant 0 : i32
    return %c0_i32, %c0_i32_0 : i32, i32
  }
  func.func @transform_2(%arg0: i32, %arg1: i32) -> (i32, i32) {
    %c0_i32 = arith.constant 0 : i32
    %c0_i32_0 = arith.constant 0 : i32
    %c0_i32_1 = arith.constant 0 : i32
    return %c0_i32, %c0_i32_0 : i32, i32
  }
  func.func @transform_3(%arg0: i32, %arg1: i32) -> (i32, i32, i32) {
    %c0_i32 = arith.constant 0 : i32
    %c0_i32_0 = arith.constant 0 : i32
    return %arg0, %c0_i32, %arg1 : i32, i32, i32
  }
}

module attributes {stable_mosaic.version = 11 : i64} {
  func.func @_conv1d_kernel(%arg0: i32, %arg1: i32, %arg2: memref<1x1x8x70xbf16, #tpu.memory_space<vmem>>, %arg3: memref<8x24xbf16, #tpu.memory_space<vmem>>, %arg4: memref<8x1xf32, #tpu.memory_space<vmem>>, %arg5: memref<1x8x64xbf16, #tpu.memory_space<vmem>>) attributes {dimension_semantics = [#tpu.dimension_semantics<parallel>, #tpu.dimension_semantics<parallel>], iteration_bounds = array<i64: 2, 1>, scalar_prefetch = 0 : i64, scratch_operands = 0 : i64, tpu.core_type = #tpu.core_type<tc>, window_params = [{transform_indices = @transform_0, window_bounds = array<i64: 1, 1, 8, 70>}, {pipeline_mode = #tpu.pipeline_mode<synchronous>, transform_indices = @transform_1, window_bounds = array<i64: 8, 24>}, {pipeline_mode = #tpu.pipeline_mode<synchronous>, transform_indices = @transform_2, window_bounds = array<i64: 8, 1>}, {transform_indices = @transform_3, window_bounds = array<i64: 1, 8, 64>}]} {
    %c0 = arith.constant 0 : index
    %c0_0 = arith.constant 0 : index
    %c0_1 = arith.constant 0 : index
    %c0_2 = arith.constant 0 : index
    %0 = vector.load %arg2[%c0, %c0_0, %c0_1, %c0_2] : memref<1x1x8x70xbf16, #tpu.memory_space<vmem>>, vector<1x1x8x70xbf16>
    %1 = vector.shape_cast %0 : vector<1x1x8x70xbf16> to vector<8x70xbf16>
    %cst = arith.constant 0.000000e+00 : bf16
    %2 = vector.broadcast %cst : bf16 to vector<8x70xbf16>
    %3 = arith.cmpf oge, %1, %2 : vector<8x70xbf16>
    %cst_3 = arith.constant 1.000980e-01 : bf16
    %4 = vector.broadcast %cst_3 : bf16 to vector<8x70xbf16>
    %5 = arith.mulf %1, %4 : vector<8x70xbf16>
    %6 = arith.select %3, %1, %5 : vector<8x70xi1>, vector<8x70xbf16>
    %c0_4 = arith.constant 0 : index
    %c0_5 = arith.constant 0 : index
    %7 = vector.load %arg3[%c0_4, %c0_5] : memref<8x24xbf16, #tpu.memory_space<vmem>>, vector<8x8xbf16>
    %8 = vector.extract_strided_slice %6 {offsets = [0, 0], sizes = [8, 64], strides = [1, 1]} : vector<8x70xbf16> to vector<8x64xbf16>
    %cst_6 = arith.constant dense<0.000000e+00> : vector<8x64xf32>
    %9 = tpu.matmul %7, %8, %cst_6 {dimension_numbers = #tpu.dot_dimension_numbers<[1], [0], [0], [1], [0, 0, 1, 1], [], []>} : vector<8x8xbf16>, vector<8x64xbf16>, vector<8x64xf32> -> vector<8x64xf32>
    %c0_7 = arith.constant 0 : index
    %c8 = arith.constant 8 : index
    %10 = vector.load %arg3[%c0_7, %c8] : memref<8x24xbf16, #tpu.memory_space<vmem>>, vector<8x8xbf16>
    %11 = vector.extract_strided_slice %6 {offsets = [0, 3], sizes = [8, 64], strides = [1, 1]} : vector<8x70xbf16> to vector<8x64xbf16>
    %cst_8 = arith.constant dense<0.000000e+00> : vector<8x64xf32>
    %12 = tpu.matmul %10, %11, %cst_8 {dimension_numbers = #tpu.dot_dimension_numbers<[1], [0], [0], [1], [0, 0, 1, 1], [], []>} : vector<8x8xbf16>, vector<8x64xbf16>, vector<8x64xf32> -> vector<8x64xf32>
    %13 = arith.addf %9, %12 : vector<8x64xf32>
    %c0_9 = arith.constant 0 : index
    %c16 = arith.constant 16 : index
    %14 = vector.load %arg3[%c0_9, %c16] : memref<8x24xbf16, #tpu.memory_space<vmem>>, vector<8x8xbf16>
    %15 = vector.extract_strided_slice %6 {offsets = [0, 6], sizes = [8, 64], strides = [1, 1]} : vector<8x70xbf16> to vector<8x64xbf16>
    %cst_10 = arith.constant dense<0.000000e+00> : vector<8x64xf32>
    %16 = tpu.matmul %14, %15, %cst_10 {dimension_numbers = #tpu.dot_dimension_numbers<[1], [0], [0], [1], [0, 0, 1, 1], [], []>} : vector<8x8xbf16>, vector<8x64xbf16>, vector<8x64xf32> -> vector<8x64xf32>
    %17 = arith.addf %13, %16 : vector<8x64xf32>
    %c0_11 = arith.constant 0 : index
    %c0_12 = arith.constant 0 : index
    %18 = vector.load %arg4[%c0_11, %c0_12] : memref<8x1xf32, #tpu.memory_space<vmem>>, vector<8x1xf32>
    %19 = vector.broadcast %18 : vector<8x1xf32> to vector<8x64xf32>
    %20 = arith.addf %17, %19 : vector<8x64xf32>
    %21 = arith.truncf %20 : vector<8x64xf32> to vector<8x64xbf16>
    %c0_13 = arith.constant 0 : index
    %c0_14 = arith.constant 0 : index
    %c0_15 = arith.constant 0 : index
    %22 = vector.load %arg5[%c0_13, %c0_14, %c0_15] : memref<1x8x64xbf16, #tpu.memory_space<vmem>>, vector<1x8x64xbf16>
    %23 = vector.shape_cast %22 : vector<1x8x64xbf16> to vector<8x64xbf16>
    %24 = vector.shape_cast %21 : vector<8x64xbf16> to vector<1x8x64xbf16>
    tpu.vector_store %arg5[%c0_13, %c0_14, %c0_15], %24 {strides = array<i32>} : memref<1x8x64xbf16, #tpu.memory_space<vmem>>, vector<1x8x64xbf16>,
    return
  }
  func.func @transform_0(%arg0: i32, %arg1: i32) -> (i32, i32, i32, i32) {
    %c0_i32 = arith.constant 0 : i32
    %c0_i32_0 = arith.constant 0 : i32
    %c0_i32_1 = arith.constant 0 : i32
    return %arg0, %arg1, %c0_i32, %c0_i32_0 : i32, i32, i32, i32
  }
  func.func @transform_1(%arg0: i32, %arg1: i32) -> (i32, i32) {
    %c0_i32 = arith.constant 0 : i32
    %c0_i32_0 = arith.constant 0 : i32
    %c0_i32_1 = arith.constant 0 : i32
    return %c0_i32, %c0_i32_0 : i32, i32
  }
  func.func @transform_2(%arg0: i32, %arg1: i32) -> (i32, i32) {
    %c0_i32 = arith.constant 0 : i32
    %c0_i32_0 = arith.constant 0 : i32
    %c0_i32_1 = arith.constant 0 : i32
    return %c0_i32, %c0_i32_0 : i32, i32
  }
  func.func @transform_3(%arg0: i32, %arg1: i32) -> (i32, i32, i32) {
    %c0_i32 = arith.constant 0 : i32
    %c0_i32_0 = arith.constant 0 : i32
    return %arg0, %c0_i32, %arg1 : i32, i32, i32
  }
}

module attributes {stable_mosaic.version = 11 : i64} {
  func.func @_conv1d_kernel(%arg0: i32, %arg1: i32, %arg2: memref<1x1x8x74xbf16, #tpu.memory_space<vmem>>, %arg3: memref<8x24xbf16, #tpu.memory_space<vmem>>, %arg4: memref<8x1xf32, #tpu.memory_space<vmem>>, %arg5: memref<1x8x64xbf16, #tpu.memory_space<vmem>>) attributes {dimension_semantics = [#tpu.dimension_semantics<parallel>, #tpu.dimension_semantics<parallel>], iteration_bounds = array<i64: 2, 1>, scalar_prefetch = 0 : i64, scratch_operands = 0 : i64, tpu.core_type = #tpu.core_type<tc>, window_params = [{transform_indices = @transform_0, window_bounds = array<i64: 1, 1, 8, 74>}, {pipeline_mode = #tpu.pipeline_mode<synchronous>, transform_indices = @transform_1, window_bounds = array<i64: 8, 24>}, {pipeline_mode = #tpu.pipeline_mode<synchronous>, transform_indices = @transform_2, window_bounds = array<i64: 8, 1>}, {transform_indices = @transform_3, window_bounds = array<i64: 1, 8, 64>}]} {
    %c0 = arith.constant 0 : index
    %c0_0 = arith.constant 0 : index
    %c0_1 = arith.constant 0 : index
    %c0_2 = arith.constant 0 : index
    %0 = vector.load %arg2[%c0, %c0_0, %c0_1, %c0_2] : memref<1x1x8x74xbf16, #tpu.memory_space<vmem>>, vector<1x1x8x74xbf16>
    %1 = vector.shape_cast %0 : vector<1x1x8x74xbf16> to vector<8x74xbf16>
    %cst = arith.constant 0.000000e+00 : bf16
    %2 = vector.broadcast %cst : bf16 to vector<8x74xbf16>
    %3 = arith.cmpf oge, %1, %2 : vector<8x74xbf16>
    %cst_3 = arith.constant 1.000980e-01 : bf16
    %4 = vector.broadcast %cst_3 : bf16 to vector<8x74xbf16>
    %5 = arith.mulf %1, %4 : vector<8x74xbf16>
    %6 = arith.select %3, %1, %5 : vector<8x74xi1>, vector<8x74xbf16>
    %c0_4 = arith.constant 0 : index
    %c0_5 = arith.constant 0 : index
    %7 = vector.load %arg3[%c0_4, %c0_5] : memref<8x24xbf16, #tpu.memory_space<vmem>>, vector<8x8xbf16>
    %8 = vector.extract_strided_slice %6 {offsets = [0, 0], sizes = [8, 64], strides = [1, 1]} : vector<8x74xbf16> to vector<8x64xbf16>
    %cst_6 = arith.constant dense<0.000000e+00> : vector<8x64xf32>
    %9 = tpu.matmul %7, %8, %cst_6 {dimension_numbers = #tpu.dot_dimension_numbers<[1], [0], [0], [1], [0, 0, 1, 1], [], []>} : vector<8x8xbf16>, vector<8x64xbf16>, vector<8x64xf32> -> vector<8x64xf32>
    %c0_7 = arith.constant 0 : index
    %c8 = arith.constant 8 : index
    %10 = vector.load %arg3[%c0_7, %c8] : memref<8x24xbf16, #tpu.memory_space<vmem>>, vector<8x8xbf16>
    %11 = vector.extract_strided_slice %6 {offsets = [0, 5], sizes = [8, 64], strides = [1, 1]} : vector<8x74xbf16> to vector<8x64xbf16>
    %cst_8 = arith.constant dense<0.000000e+00> : vector<8x64xf32>
    %12 = tpu.matmul %10, %11, %cst_8 {dimension_numbers = #tpu.dot_dimension_numbers<[1], [0], [0], [1], [0, 0, 1, 1], [], []>} : vector<8x8xbf16>, vector<8x64xbf16>, vector<8x64xf32> -> vector<8x64xf32>
    %13 = arith.addf %9, %12 : vector<8x64xf32>
    %c0_9 = arith.constant 0 : index
    %c16 = arith.constant 16 : index
    %14 = vector.load %arg3[%c0_9, %c16] : memref<8x24xbf16, #tpu.memory_space<vmem>>, vector<8x8xbf16>
    %15 = vector.extract_strided_slice %6 {offsets = [0, 10], sizes = [8, 64], strides = [1, 1]} : vector<8x74xbf16> to vector<8x64xbf16>
    %cst_10 = arith.constant dense<0.000000e+00> : vector<8x64xf32>
    %16 = tpu.matmul %14, %15, %cst_10 {dimension_numbers = #tpu.dot_dimension_numbers<[1], [0], [0], [1], [0, 0, 1, 1], [], []>} : vector<8x8xbf16>, vector<8x64xbf16>, vector<8x64xf32> -> vector<8x64xf32>
    %17 = arith.addf %13, %16 : vector<8x64xf32>
    %c0_11 = arith.constant 0 : index
    %c0_12 = arith.constant 0 : index
    %18 = vector.load %arg4[%c0_11, %c0_12] : memref<8x1xf32, #tpu.memory_space<vmem>>, vector<8x1xf32>
    %19 = vector.broadcast %18 : vector<8x1xf32> to vector<8x64xf32>
    %20 = arith.addf %17, %19 : vector<8x64xf32>
    %21 = arith.truncf %20 : vector<8x64xf32> to vector<8x64xbf16>
    %c0_13 = arith.constant 0 : index
    %c0_14 = arith.constant 0 : index
    %c0_15 = arith.constant 0 : index
    %22 = vector.load %arg5[%c0_13, %c0_14, %c0_15] : memref<1x8x64xbf16, #tpu.memory_space<vmem>>, vector<1x8x64xbf16>
    %23 = vector.shape_cast %22 : vector<1x8x64xbf16> to vector<8x64xbf16>
    %24 = vector.shape_cast %21 : vector<8x64xbf16> to vector<1x8x64xbf16>
    tpu.vector_store %arg5[%c0_13, %c0_14, %c0_15], %24 {strides = array<i32>} : memref<1x8x64xbf16, #tpu.memory_space<vmem>>, vector<1x8x64xbf16>,
    return
  }
  func.func @transform_0(%arg0: i32, %arg1: i32) -> (i32, i32, i32, i32) {
    %c0_i32 = arith.constant 0 : i32
    %c0_i32_0 = arith.constant 0 : i32
    %c0_i32_1 = arith.constant 0 : i32
    return %arg0, %arg1, %c0_i32, %c0_i32_0 : i32, i32, i32, i32
  }
  func.func @transform_1(%arg0: i32, %arg1: i32) -> (i32, i32) {
    %c0_i32 = arith.constant 0 : i32
    %c0_i32_0 = arith.constant 0 : i32
    %c0_i32_1 = arith.constant 0 : i32
    return %c0_i32, %c0_i32_0 : i32, i32
  }
  func.func @transform_2(%arg0: i32, %arg1: i32) -> (i32, i32) {
    %c0_i32 = arith.constant 0 : i32
    %c0_i32_0 = arith.constant 0 : i32
    %c0_i32_1 = arith.constant 0 : i32
    return %c0_i32, %c0_i32_0 : i32, i32
  }
  func.func @transform_3(%arg0: i32, %arg1: i32) -> (i32, i32, i32) {
    %c0_i32 = arith.constant 0 : i32
    %c0_i32_0 = arith.constant 0 : i32
    return %arg0, %c0_i32, %arg1 : i32, i32, i32
  }
}

module attributes {stable_mosaic.version = 11 : i64} {
  func.func @_conv1d_kernel(%arg0: i32, %arg1: i32, %arg2: memref<1x1x8x76xbf16, #tpu.memory_space<vmem>>, %arg3: memref<8x40xbf16, #tpu.memory_space<vmem>>, %arg4: memref<8x1xf32, #tpu.memory_space<vmem>>, %arg5: memref<1x8x64xbf16, #tpu.memory_space<vmem>>) attributes {dimension_semantics = [#tpu.dimension_semantics<parallel>, #tpu.dimension_semantics<parallel>], iteration_bounds = array<i64: 2, 1>, scalar_prefetch = 0 : i64, scratch_operands = 0 : i64, tpu.core_type = #tpu.core_type<tc>, window_params = [{transform_indices = @transform_0, window_bounds = array<i64: 1, 1, 8, 76>}, {pipeline_mode = #tpu.pipeline_mode<synchronous>, transform_indices = @transform_1, window_bounds = array<i64: 8, 40>}, {pipeline_mode = #tpu.pipeline_mode<synchronous>, transform_indices = @transform_2, window_bounds = array<i64: 8, 1>}, {transform_indices = @transform_3, window_bounds = array<i64: 1, 8, 64>}]} {
    %c0 = arith.constant 0 : index
    %c0_0 = arith.constant 0 : index
    %c0_1 = arith.constant 0 : index
    %c0_2 = arith.constant 0 : index
    %0 = vector.load %arg2[%c0, %c0_0, %c0_1, %c0_2] : memref<1x1x8x76xbf16, #tpu.memory_space<vmem>>, vector<1x1x8x76xbf16>
    %1 = vector.shape_cast %0 : vector<1x1x8x76xbf16> to vector<8x76xbf16>
    %cst = arith.constant 0.000000e+00 : bf16
    %2 = vector.broadcast %cst : bf16 to vector<8x76xbf16>
    %3 = arith.cmpf oge, %1, %2 : vector<8x76xbf16>
    %cst_3 = arith.constant 1.000980e-01 : bf16
    %4 = vector.broadcast %cst_3 : bf16 to vector<8x76xbf16>
    %5 = arith.mulf %1, %4 : vector<8x76xbf16>
    %6 = arith.select %3, %1, %5 : vector<8x76xi1>, vector<8x76xbf16>
    %c0_4 = arith.constant 0 : index
    %c0_5 = arith.constant 0 : index
    %7 = vector.load %arg3[%c0_4, %c0_5] : memref<8x40xbf16, #tpu.memory_space<vmem>>, vector<8x8xbf16>
    %8 = vector.extract_strided_slice %6 {offsets = [0, 0], sizes = [8, 64], strides = [1, 1]} : vector<8x76xbf16> to vector<8x64xbf16>
    %cst_6 = arith.constant dense<0.000000e+00> : vector<8x64xf32>
    %9 = tpu.matmul %7, %8, %cst_6 {dimension_numbers = #tpu.dot_dimension_numbers<[1], [0], [0], [1], [0, 0, 1, 1], [], []>} : vector<8x8xbf16>, vector<8x64xbf16>, vector<8x64xf32> -> vector<8x64xf32>
    %c0_7 = arith.constant 0 : index
    %c8 = arith.constant 8 : index
    %10 = vector.load %arg3[%c0_7, %c8] : memref<8x40xbf16, #tpu.memory_space<vmem>>, vector<8x8xbf16>
    %11 = vector.extract_strided_slice %6 {offsets = [0, 3], sizes = [8, 64], strides = [1, 1]} : vector<8x76xbf16> to vector<8x64xbf16>
    %cst_8 = arith.constant dense<0.000000e+00> : vector<8x64xf32>
    %12 = tpu.matmul %10, %11, %cst_8 {dimension_numbers = #tpu.dot_dimension_numbers<[1], [0], [0], [1], [0, 0, 1, 1], [], []>} : vector<8x8xbf16>, vector<8x64xbf16>, vector<8x64xf32> -> vector<8x64xf32>
    %13 = arith.addf %9, %12 : vector<8x64xf32>
    %c0_9 = arith.constant 0 : index
    %c16 = arith.constant 16 : index
    %14 = vector.load %arg3[%c0_9, %c16] : memref<8x40xbf16, #tpu.memory_space<vmem>>, vector<8x8xbf16>
    %15 = vector.extract_strided_slice %6 {offsets = [0, 6], sizes = [8, 64], strides = [1, 1]} : vector<8x76xbf16> to vector<8x64xbf16>
    %cst_10 = arith.constant dense<0.000000e+00> : vector<8x64xf32>
    %16 = tpu.matmul %14, %15, %cst_10 {dimension_numbers = #tpu.dot_dimension_numbers<[1], [0], [0], [1], [0, 0, 1, 1], [], []>} : vector<8x8xbf16>, vector<8x64xbf16>, vector<8x64xf32> -> vector<8x64xf32>
    %17 = arith.addf %13, %16 : vector<8x64xf32>
    %c0_11 = arith.constant 0 : index
    %c24 = arith.constant 24 : index
    %18 = vector.load %arg3[%c0_11, %c24] : memref<8x40xbf16, #tpu.memory_space<vmem>>, vector<8x8xbf16>
    %19 = vector.extract_strided_slice %6 {offsets = [0, 9], sizes = [8, 64], strides = [1, 1]} : vector<8x76xbf16> to vector<8x64xbf16>
    %cst_12 = arith.constant dense<0.000000e+00> : vector<8x64xf32>
    %20 = tpu.matmul %18, %19, %cst_12 {dimension_numbers = #tpu.dot_dimension_numbers<[1], [0], [0], [1], [0, 0, 1, 1], [], []>} : vector<8x8xbf16>, vector<8x64xbf16>, vector<8x64xf32> -> vector<8x64xf32>
    %21 = arith.addf %17, %20 : vector<8x64xf32>
    %c0_13 = arith.constant 0 : index
    %c32 = arith.constant 32 : index
    %22 = vector.load %arg3[%c0_13, %c32] : memref<8x40xbf16, #tpu.memory_space<vmem>>, vector<8x8xbf16>
    %23 = vector.extract_strided_slice %6 {offsets = [0, 12], sizes = [8, 64], strides = [1, 1]} : vector<8x76xbf16> to vector<8x64xbf16>
    %cst_14 = arith.constant dense<0.000000e+00> : vector<8x64xf32>
    %24 = tpu.matmul %22, %23, %cst_14 {dimension_numbers = #tpu.dot_dimension_numbers<[1], [0], [0], [1], [0, 0, 1, 1], [], []>} : vector<8x8xbf16>, vector<8x64xbf16>, vector<8x64xf32> -> vector<8x64xf32>
    %25 = arith.addf %21, %24 : vector<8x64xf32>
    %c0_15 = arith.constant 0 : index
    %c0_16 = arith.constant 0 : index
    %26 = vector.load %arg4[%c0_15, %c0_16] : memref<8x1xf32, #tpu.memory_space<vmem>>, vector<8x1xf32>
    %27 = vector.broadcast %26 : vector<8x1xf32> to vector<8x64xf32>
    %28 = arith.addf %25, %27 : vector<8x64xf32>
    %29 = arith.truncf %28 : vector<8x64xf32> to vector<8x64xbf16>
    %c0_17 = arith.constant 0 : index
    %c0_18 = arith.constant 0 : index
    %c0_19 = arith.constant 0 : index
    %30 = vector.load %arg5[%c0_17, %c0_18, %c0_19] : memref<1x8x64xbf16, #tpu.memory_space<vmem>>, vector<1x8x64xbf16>
    %31 = vector.shape_cast %30 : vector<1x8x64xbf16> to vector<8x64xbf16>
    %32 = vector.shape_cast %29 : vector<8x64xbf16> to vector<1x8x64xbf16>
    tpu.vector_store %arg5[%c0_17, %c0_18, %c0_19], %32 {strides = array<i32>} : memref<1x8x64xbf16, #tpu.memory_space<vmem>>, vector<1x8x64xbf16>,
    return
  }
  func.func @transform_0(%arg0: i32, %arg1: i32) -> (i32, i32, i32, i32) {
    %c0_i32 = arith.constant 0 : i32
    %c0_i32_0 = arith.constant 0 : i32
    %c0_i32_1 = arith.constant 0 : i32
    return %arg0, %arg1, %c0_i32, %c0_i32_0 : i32, i32, i32, i32
  }
  func.func @transform_1(%arg0: i32, %arg1: i32) -> (i32, i32) {
    %c0_i32 = arith.constant 0 : i32
    %c0_i32_0 = arith.constant 0 : i32
    %c0_i32_1 = arith.constant 0 : i32
    return %c0_i32, %c0_i32_0 : i32, i32
  }
  func.func @transform_2(%arg0: i32, %arg1: i32) -> (i32, i32) {
    %c0_i32 = arith.constant 0 : i32
    %c0_i32_0 = arith.constant 0 : i32
    %c0_i32_1 = arith.constant 0 : i32
    return %c0_i32, %c0_i32_0 : i32, i32
  }
  func.func @transform_3(%arg0: i32, %arg1: i32) -> (i32, i32, i32) {
    %c0_i32 = arith.constant 0 : i32
    %c0_i32_0 = arith.constant 0 : i32
    return %arg0, %c0_i32, %arg1 : i32, i32, i32
  }
}

module attributes {stable_mosaic.version = 11 : i64} {
  func.func @_conv1d_kernel(%arg0: i32, %arg1: i32, %arg2: memref<1x1x8x84xbf16, #tpu.memory_space<vmem>>, %arg3: memref<8x40xbf16, #tpu.memory_space<vmem>>, %arg4: memref<8x1xf32, #tpu.memory_space<vmem>>, %arg5: memref<1x8x64xbf16, #tpu.memory_space<vmem>>) attributes {dimension_semantics = [#tpu.dimension_semantics<parallel>, #tpu.dimension_semantics<parallel>], iteration_bounds = array<i64: 2, 1>, scalar_prefetch = 0 : i64, scratch_operands = 0 : i64, tpu.core_type = #tpu.core_type<tc>, window_params = [{transform_indices = @transform_0, window_bounds = array<i64: 1, 1, 8, 84>}, {pipeline_mode = #tpu.pipeline_mode<synchronous>, transform_indices = @transform_1, window_bounds = array<i64: 8, 40>}, {pipeline_mode = #tpu.pipeline_mode<synchronous>, transform_indices = @transform_2, window_bounds = array<i64: 8, 1>}, {transform_indices = @transform_3, window_bounds = array<i64: 1, 8, 64>}]} {
    %c0 = arith.constant 0 : index
    %c0_0 = arith.constant 0 : index
    %c0_1 = arith.constant 0 : index
    %c0_2 = arith.constant 0 : index
    %0 = vector.load %arg2[%c0, %c0_0, %c0_1, %c0_2] : memref<1x1x8x84xbf16, #tpu.memory_space<vmem>>, vector<1x1x8x84xbf16>
    %1 = vector.shape_cast %0 : vector<1x1x8x84xbf16> to vector<8x84xbf16>
    %cst = arith.constant 0.000000e+00 : bf16
    %2 = vector.broadcast %cst : bf16 to vector<8x84xbf16>
    %3 = arith.cmpf oge, %1, %2 : vector<8x84xbf16>
    %cst_3 = arith.constant 1.000980e-01 : bf16
    %4 = vector.broadcast %cst_3 : bf16 to vector<8x84xbf16>
    %5 = arith.mulf %1, %4 : vector<8x84xbf16>
    %6 = arith.select %3, %1, %5 : vector<8x84xi1>, vector<8x84xbf16>
    %c0_4 = arith.constant 0 : index
    %c0_5 = arith.constant 0 : index
    %7 = vector.load %arg3[%c0_4, %c0_5] : memref<8x40xbf16, #tpu.memory_space<vmem>>, vector<8x8xbf16>
    %8 = vector.extract_strided_slice %6 {offsets = [0, 0], sizes = [8, 64], strides = [1, 1]} : vector<8x84xbf16> to vector<8x64xbf16>
    %cst_6 = arith.constant dense<0.000000e+00> : vector<8x64xf32>
    %9 = tpu.matmul %7, %8, %cst_6 {dimension_numbers = #tpu.dot_dimension_numbers<[1], [0], [0], [1], [0, 0, 1, 1], [], []>} : vector<8x8xbf16>, vector<8x64xbf16>, vector<8x64xf32> -> vector<8x64xf32>
    %c0_7 = arith.constant 0 : index
    %c8 = arith.constant 8 : index
    %10 = vector.load %arg3[%c0_7, %c8] : memref<8x40xbf16, #tpu.memory_space<vmem>>, vector<8x8xbf16>
    %11 = vector.extract_strided_slice %6 {offsets = [0, 5], sizes = [8, 64], strides = [1, 1]} : vector<8x84xbf16> to vector<8x64xbf16>
    %cst_8 = arith.constant dense<0.000000e+00> : vector<8x64xf32>
    %12 = tpu.matmul %10, %11, %cst_8 {dimension_numbers = #tpu.dot_dimension_numbers<[1], [0], [0], [1], [0, 0, 1, 1], [], []>} : vector<8x8xbf16>, vector<8x64xbf16>, vector<8x64xf32> -> vector<8x64xf32>
    %13 = arith.addf %9, %12 : vector<8x64xf32>
    %c0_9 = arith.constant 0 : index
    %c16 = arith.constant 16 : index
    %14 = vector.load %arg3[%c0_9, %c16] : memref<8x40xbf16, #tpu.memory_space<vmem>>, vector<8x8xbf16>
    %15 = vector.extract_strided_slice %6 {offsets = [0, 10], sizes = [8, 64], strides = [1, 1]} : vector<8x84xbf16> to vector<8x64xbf16>
    %cst_10 = arith.constant dense<0.000000e+00> : vector<8x64xf32>
    %16 = tpu.matmul %14, %15, %cst_10 {dimension_numbers = #tpu.dot_dimension_numbers<[1], [0], [0], [1], [0, 0, 1, 1], [], []>} : vector<8x8xbf16>, vector<8x64xbf16>, vector<8x64xf32> -> vector<8x64xf32>
    %17 = arith.addf %13, %16 : vector<8x64xf32>
    %c0_11 = arith.constant 0 : index
    %c24 = arith.constant 24 : index
    %18 = vector.load %arg3[%c0_11, %c24] : memref<8x40xbf16, #tpu.memory_space<vmem>>, vector<8x8xbf16>
    %19 = vector.extract_strided_slice %6 {offsets = [0, 15], sizes = [8, 64], strides = [1, 1]} : vector<8x84xbf16> to vector<8x64xbf16>
    %cst_12 = arith.constant dense<0.000000e+00> : vector<8x64xf32>
    %20 = tpu.matmul %18, %19, %cst_12 {dimension_numbers = #tpu.dot_dimension_numbers<[1], [0], [0], [1], [0, 0, 1, 1], [], []>} : vector<8x8xbf16>, vector<8x64xbf16>, vector<8x64xf32> -> vector<8x64xf32>
    %21 = arith.addf %17, %20 : vector<8x64xf32>
    %c0_13 = arith.constant 0 : index
    %c32 = arith.constant 32 : index
    %22 = vector.load %arg3[%c0_13, %c32] : memref<8x40xbf16, #tpu.memory_space<vmem>>, vector<8x8xbf16>
    %23 = vector.extract_strided_slice %6 {offsets = [0, 20], sizes = [8, 64], strides = [1, 1]} : vector<8x84xbf16> to vector<8x64xbf16>
    %cst_14 = arith.constant dense<0.000000e+00> : vector<8x64xf32>
    %24 = tpu.matmul %22, %23, %cst_14 {dimension_numbers = #tpu.dot_dimension_numbers<[1], [0], [0], [1], [0, 0, 1, 1], [], []>} : vector<8x8xbf16>, vector<8x64xbf16>, vector<8x64xf32> -> vector<8x64xf32>
    %25 = arith.addf %21, %24 : vector<8x64xf32>
    %c0_15 = arith.constant 0 : index
    %c0_16 = arith.constant 0 : index
    %26 = vector.load %arg4[%c0_15, %c0_16] : memref<8x1xf32, #tpu.memory_space<vmem>>, vector<8x1xf32>
    %27 = vector.broadcast %26 : vector<8x1xf32> to vector<8x64xf32>
    %28 = arith.addf %25, %27 : vector<8x64xf32>
    %29 = arith.truncf %28 : vector<8x64xf32> to vector<8x64xbf16>
    %c0_17 = arith.constant 0 : index
    %c0_18 = arith.constant 0 : index
    %c0_19 = arith.constant 0 : index
    %30 = vector.load %arg5[%c0_17, %c0_18, %c0_19] : memref<1x8x64xbf16, #tpu.memory_space<vmem>>, vector<1x8x64xbf16>
    %31 = vector.shape_cast %30 : vector<1x8x64xbf16> to vector<8x64xbf16>
    %32 = vector.shape_cast %29 : vector<8x64xbf16> to vector<1x8x64xbf16>
    tpu.vector_store %arg5[%c0_17, %c0_18, %c0_19], %32 {strides = array<i32>} : memref<1x8x64xbf16, #tpu.memory_space<vmem>>, vector<1x8x64xbf16>,
    return
  }
  func.func @transform_0(%arg0: i32, %arg1: i32) -> (i32, i32, i32, i32) {
    %c0_i32 = arith.constant 0 : i32
    %c0_i32_0 = arith.constant 0 : i32
    %c0_i32_1 = arith.constant 0 : i32
    return %arg0, %arg1, %c0_i32, %c0_i32_0 : i32, i32, i32, i32
  }
  func.func @transform_1(%arg0: i32, %arg1: i32) -> (i32, i32) {
    %c0_i32 = arith.constant 0 : i32
    %c0_i32_0 = arith.constant 0 : i32
    %c0_i32_1 = arith.constant 0 : i32
    return %c0_i32, %c0_i32_0 : i32, i32
  }
  func.func @transform_2(%arg0: i32, %arg1: i32) -> (i32, i32) {
    %c0_i32 = arith.constant 0 : i32
    %c0_i32_0 = arith.constant 0 : i32
    %c0_i32_1 = arith.constant 0 : i32
    return %c0_i32, %c0_i32_0 : i32, i32
  }
  func.func @transform_3(%arg0: i32, %arg1: i32) -> (i32, i32, i32) {
    %c0_i32 = arith.constant 0 : i32
    %c0_i32_0 = arith.constant 0 : i32
    return %arg0, %c0_i32, %arg1 : i32, i32, i32
  }
}

module attributes {stable_mosaic.version = 11 : i64} {
  func.func @_conv1d_kernel(%arg0: i32, %arg1: i32, %arg2: memref<1x1x8x70xbf16, #tpu.memory_space<vmem>>, %arg3: memref<2x56xbf16, #tpu.memory_space<vmem>>, %arg4: memref<2x1xf32, #tpu.memory_space<vmem>>, %arg5: memref<1x2x64xbf16, #tpu.memory_space<vmem>>) attributes {dimension_semantics = [#tpu.dimension_semantics<parallel>, #tpu.dimension_semantics<parallel>], iteration_bounds = array<i64: 2, 1>, scalar_prefetch = 0 : i64, scratch_operands = 0 : i64, tpu.core_type = #tpu.core_type<tc>, window_params = [{transform_indices = @transform_0, window_bounds = array<i64: 1, 1, 8, 70>}, {pipeline_mode = #tpu.pipeline_mode<synchronous>, transform_indices = @transform_1, window_bounds = array<i64: 2, 56>}, {pipeline_mode = #tpu.pipeline_mode<synchronous>, transform_indices = @transform_2, window_bounds = array<i64: 2, 1>}, {transform_indices = @transform_3, window_bounds = array<i64: 1, 2, 64>}]} {
    %c0 = arith.constant 0 : index
    %c0_0 = arith.constant 0 : index
    %c0_1 = arith.constant 0 : index
    %c0_2 = arith.constant 0 : index
    %0 = vector.load %arg2[%c0, %c0_0, %c0_1, %c0_2] : memref<1x1x8x70xbf16, #tpu.memory_space<vmem>>, vector<1x1x8x70xbf16>
    %1 = vector.shape_cast %0 : vector<1x1x8x70xbf16> to vector<8x70xbf16>
    %cst = arith.constant 0.000000e+00 : bf16
    %2 = vector.broadcast %cst : bf16 to vector<8x70xbf16>
    %3 = arith.cmpf oge, %1, %2 : vector<8x70xbf16>
    %cst_3 = arith.constant 1.000980e-02 : bf16
    %4 = vector.broadcast %cst_3 : bf16 to vector<8x70xbf16>
    %5 = arith.mulf %1, %4 : vector<8x70xbf16>
    %6 = arith.select %3, %1, %5 : vector<8x70xi1>, vector<8x70xbf16>
    %c0_4 = arith.constant 0 : index
    %c0_5 = arith.constant 0 : index
    %7 = vector.load %arg3[%c0_4, %c0_5] : memref<2x56xbf16, #tpu.memory_space<vmem>>, vector<2x8xbf16>
    %8 = vector.extract_strided_slice %6 {offsets = [0, 0], sizes = [8, 64], strides = [1, 1]} : vector<8x70xbf16> to vector<8x64xbf16>
    %cst_6 = arith.constant dense<0.000000e+00> : vector<2x64xf32>
    %9 = tpu.matmul %7, %8, %cst_6 {dimension_numbers = #tpu.dot_dimension_numbers<[1], [0], [0], [1], [0, 0, 1, 1], [], []>} : vector<2x8xbf16>, vector<8x64xbf16>, vector<2x64xf32> -> vector<2x64xf32>
    %c0_7 = arith.constant 0 : index
    %c8 = arith.constant 8 : index
    %10 = vector.load %arg3[%c0_7, %c8] : memref<2x56xbf16, #tpu.memory_space<vmem>>, vector<2x8xbf16>
    %11 = vector.extract_strided_slice %6 {offsets = [0, 1], sizes = [8, 64], strides = [1, 1]} : vector<8x70xbf16> to vector<8x64xbf16>
    %cst_8 = arith.constant dense<0.000000e+00> : vector<2x64xf32>
    %12 = tpu.matmul %10, %11, %cst_8 {dimension_numbers = #tpu.dot_dimension_numbers<[1], [0], [0], [1], [0, 0, 1, 1], [], []>} : vector<2x8xbf16>, vector<8x64xbf16>, vector<2x64xf32> -> vector<2x64xf32>
    %13 = arith.addf %9, %12 : vector<2x64xf32>
    %c0_9 = arith.constant 0 : index
    %c16 = arith.constant 16 : index
    %14 = vector.load %arg3[%c0_9, %c16] : memref<2x56xbf16, #tpu.memory_space<vmem>>, vector<2x8xbf16>
    %15 = vector.extract_strided_slice %6 {offsets = [0, 2], sizes = [8, 64], strides = [1, 1]} : vector<8x70xbf16> to vector<8x64xbf16>
    %cst_10 = arith.constant dense<0.000000e+00> : vector<2x64xf32>
    %16 = tpu.matmul %14, %15, %cst_10 {dimension_numbers = #tpu.dot_dimension_numbers<[1], [0], [0], [1], [0, 0, 1, 1], [], []>} : vector<2x8xbf16>, vector<8x64xbf16>, vector<2x64xf32> -> vector<2x64xf32>
    %17 = arith.addf %13, %16 : vector<2x64xf32>
    %c0_11 = arith.constant 0 : index
    %c24 = arith.constant 24 : index
    %18 = vector.load %arg3[%c0_11, %c24] : memref<2x56xbf16, #tpu.memory_space<vmem>>, vector<2x8xbf16>
    %19 = vector.extract_strided_slice %6 {offsets = [0, 3], sizes = [8, 64], strides = [1, 1]} : vector<8x70xbf16> to vector<8x64xbf16>
    %cst_12 = arith.constant dense<0.000000e+00> : vector<2x64xf32>
    %20 = tpu.matmul %18, %19, %cst_12 {dimension_numbers = #tpu.dot_dimension_numbers<[1], [0], [0], [1], [0, 0, 1, 1], [], []>} : vector<2x8xbf16>, vector<8x64xbf16>, vector<2x64xf32> -> vector<2x64xf32>
    %21 = arith.addf %17, %20 : vector<2x64xf32>
    %c0_13 = arith.constant 0 : index
    %c32 = arith.constant 32 : index
    %22 = vector.load %arg3[%c0_13, %c32] : memref<2x56xbf16, #tpu.memory_space<vmem>>, vector<2x8xbf16>
    %23 = vector.extract_strided_slice %6 {offsets = [0, 4], sizes = [8, 64], strides = [1, 1]} : vector<8x70xbf16> to vector<8x64xbf16>
    %cst_14 = arith.constant dense<0.000000e+00> : vector<2x64xf32>
    %24 = tpu.matmul %22, %23, %cst_14 {dimension_numbers = #tpu.dot_dimension_numbers<[1], [0], [0], [1], [0, 0, 1, 1], [], []>} : vector<2x8xbf16>, vector<8x64xbf16>, vector<2x64xf32> -> vector<2x64xf32>
    %25 = arith.addf %21, %24 : vector<2x64xf32>
    %c0_15 = arith.constant 0 : index
    %c40 = arith.constant 40 : index
    %26 = vector.load %arg3[%c0_15, %c40] : memref<2x56xbf16, #tpu.memory_space<vmem>>, vector<2x8xbf16>
    %27 = vector.extract_strided_slice %6 {offsets = [0, 5], sizes = [8, 64], strides = [1, 1]} : vector<8x70xbf16> to vector<8x64xbf16>
    %cst_16 = arith.constant dense<0.000000e+00> : vector<2x64xf32>
    %28 = tpu.matmul %26, %27, %cst_16 {dimension_numbers = #tpu.dot_dimension_numbers<[1], [0], [0], [1], [0, 0, 1, 1], [], []>} : vector<2x8xbf16>, vector<8x64xbf16>, vector<2x64xf32> -> vector<2x64xf32>
    %29 = arith.addf %25, %28 : vector<2x64xf32>
    %c0_17 = arith.constant 0 : index
    %c48 = arith.constant 48 : index
    %30 = vector.load %arg3[%c0_17, %c48] : memref<2x56xbf16, #tpu.memory_space<vmem>>, vector<2x8xbf16>
    %31 = vector.extract_strided_slice %6 {offsets = [0, 6], sizes = [8, 64], strides = [1, 1]} : vector<8x70xbf16> to vector<8x64xbf16>
    %cst_18 = arith.constant dense<0.000000e+00> : vector<2x64xf32>
    %32 = tpu.matmul %30, %31, %cst_18 {dimension_numbers = #tpu.dot_dimension_numbers<[1], [0], [0], [1], [0, 0, 1, 1], [], []>} : vector<2x8xbf16>, vector<8x64xbf16>, vector<2x64xf32> -> vector<2x64xf32>
    %33 = arith.addf %29, %32 : vector<2x64xf32>
    %c0_19 = arith.constant 0 : index
    %c0_20 = arith.constant 0 : index
    %34 = vector.load %arg4[%c0_19, %c0_20] : memref<2x1xf32, #tpu.memory_space<vmem>>, vector<2x1xf32>
    %35 = vector.broadcast %34 : vector<2x1xf32> to vector<2x64xf32>
    %36 = arith.addf %33, %35 : vector<2x64xf32>
    %37 = math.tanh %36 : vector<2x64xf32>
    %38 = arith.truncf %37 : vector<2x64xf32> to vector<2x64xbf16>
    %c0_21 = arith.constant 0 : index
    %c0_22 = arith.constant 0 : index
    %c0_23 = arith.constant 0 : index
    %39 = vector.load %arg5[%c0_21, %c0_22, %c0_23] : memref<1x2x64xbf16, #tpu.memory_space<vmem>>, vector<1x2x64xbf16>
    %40 = vector.shape_cast %39 : vector<1x2x64xbf16> to vector<2x64xbf16>
    %41 = vector.shape_cast %38 : vector<2x64xbf16> to vector<1x2x64xbf16>
    tpu.vector_store %arg5[%c0_21, %c0_22, %c0_23], %41 {strides = array<i32>} : memref<1x2x64xbf16, #tpu.memory_space<vmem>>, vector<1x2x64xbf16>,
    return
  }
  func.func @transform_0(%arg0: i32, %arg1: i32) -> (i32, i32, i32, i32) {
    %c0_i32 = arith.constant 0 : i32
    %c0_i32_0 = arith.constant 0 : i32
    %c0_i32_1 = arith.constant 0 : i32
    return %arg0, %arg1, %c0_i32, %c0_i32_0 : i32, i32, i32, i32
  }
  func.func @transform_1(%arg0: i32, %arg1: i32) -> (i32, i32) {
    %c0_i32 = arith.constant 0 : i32
    %c0_i32_0 = arith.constant 0 : i32
    %c0_i32_1 = arith.constant 0 : i32
    return %c0_i32, %c0_i32_0 : i32, i32
  }
  func.func @transform_2(%arg0: i32, %arg1: i32) -> (i32, i32) {
    %c0_i32 = arith.constant 0 : i32
    %c0_i32_0 = arith.constant 0 : i32
    %c0_i32_1 = arith.constant 0 : i32
    return %c0_i32, %c0_i32_0 : i32, i32
  }
  func.func @transform_3(%arg0: i32, %arg1: i32) -> (i32, i32, i32) {
    %c0_i32 = arith.constant 0 : i32
    %c0_i32_0 = arith.constant 0 : i32
    return %arg0, %c0_i32, %arg1 : i32, i32, i32
  }
}

</mosaic_0001>

<llo_original>
// kernel: generator_forward_pallas.30
$region0: #{generator_forward_pallas.30}
  #allocation0 [shape = 'u32[]', space=smem, size = 0x4, offset = 0x4, fixed_abs, tag = 'smem constant byte address 0x4 - core index']
  #allocation1 [shape = 'u32[144,128]{1,0:T(1,128)}', space=vmem, size = 0x12000, scoped, tag = 'internal scratch']
  %s0 = inlined_call_operand.vmem [shape: bf16[2,1,32,22], index: 0, kind: input, shape index: {}]
  %s1 = inlined_call_operand.vmem [shape: bf16[32,224], index: 1, kind: input, shape index: {}]
  %s2 = inlined_call_operand.vmem [shape: f32[32,1], index: 2, kind: input, shape index: {}]
  %s3 = inlined_call_operand.vmem [shape: bf16[2,32,16], index: 3, kind: output, shape index: {}]
  %s4 = sld [smem:[#allocation0]]
  $region45: #{generator_forward_pallas.30} parent=0
    _
  %s6 = ssub.s32 1, %s4
  %s7 = scalar_select 0, %s6, %s4
  loop: start=0, step=1, limit=4
  $region2: #{generator_forward_pallas.30} parent=0 // loop_pre_header
    _
  $region3: #{generator_forward_pallas.30} parent=0 // loop_header
    %s9 = sphi 0, %s13
    %p10 = scmp.ge.s32.totalorder %s9, 4
    %s16 = sphi 0, %s28
    %s17 = sphi 0, %s24
    %s18 = sphi 0, %s16
    %s19 = sphi 0, %s17
    %s20 = sphi 0, %s18
    %s21 = sphi 0, %s19
    %s33 = sphi 0, %s35
    %s36 = sphi 0, %s33
    %s37 = sphi 0, %s36
    %s53 = sphi 0, %s37
    %s57 = sphi 0, %s57
    %s59 = sphi 0, %s57
    %s60 = sphi 0, %s59
    %s74 = sphi 0, %s60
    %s78 = sphi 0, %s78
    %s80 = sphi 0, %s78
    %s81 = sphi 0, %s80
    %s95 = sphi 0, %s81
    %s103 = sphi 0, %s105
    %s106 = sphi 0, %s103
    %s107 = sphi 0, %s106
    %s123 = sphi 0, %s107
  $region4: #{generator_forward_pallas.30} parent=0 // loop_header_branch
    %12 = sbr.rel (%p10) target = $region8
  $region5: #{generator_forward_pallas.30} parent=0 // loop_body
    %s14 = ssub.s32 %s9, 1
    %s15 = ssub.s32 %s9, 2
    %s22 = sadd.s32 1, %s17
    %p23 = scmp.ge.s32.totalorder %s22, 1
    %s24 = scalar_select %p23, 0, %s22
    %s25 = sadd.s32 1, %s16
    %s26 = scalar_select %p23, %s25, %s16
    %p27 = scmp.ge.s32.totalorder %s26, 2
    %s28 = scalar_select %p27, 0, %s26
    %s29 = ssub.s32 %s16, %s28
    %s30 = ssub.s32 %s17, %s24
    %s31 = sor.u32 %s29, %s30
    %p32 = scmp.eq.s32.totalorder %s31, 0
    %s34 = sadd.s32 %s33, 1
    %s35 = scalar_select %p32, %s33, %s34
    %p38 = pneg %p32
    %p39 = scmp.eq.s32.totalorder %s9, 1
    %p40 = por %p38, %p39
    %p41 = scmp.ne.s32.totalorder %s33, %s36
    %p42 = scmp.eq.s32.totalorder %s9, 0
    %p43 = por %p41, %p42
    %p44 = scmp.ne.s32.totalorder %s33, %s36
    %p45 = scmp.eq.s32.totalorder %s14, 1
    %p46 = por %p44, %p45
    %p47 = scmp.ne.s32.totalorder %s36, %s37
    %p48 = scmp.eq.s32.totalorder %s14, 0
    %p49 = por %p47, %p48
    %p50 = scmp.ne.s32.totalorder %s36, %s37
    %p51 = scmp.eq.s32.totalorder %s15, 1
    %p52 = por %p50, %p51
    %p54 = scmp.ne.s32.totalorder %s37, %s53
    %p55 = scmp.eq.s32.totalorder %s15, 0
    %p56 = por %p54, %p55
    %s58 = sadd.s32 %s57, 1
    %p61 = scmp.eq.s32.totalorder %s9, 1
    %p62 = scmp.ne.s32.totalorder %s57, %s59
    %p63 = scmp.eq.s32.totalorder %s9, 0
    %p64 = por %p62, %p63
    %p65 = scmp.ne.s32.totalorder %s57, %s59
    %p66 = scmp.eq.s32.totalorder %s14, 1
    %p67 = por %p65, %p66
    %p68 = scmp.ne.s32.totalorder %s59, %s60
    %p69 = scmp.eq.s32.totalorder %s14, 0
    %p70 = por %p68, %p69
    %p71 = scmp.ne.s32.totalorder %s59, %s60
    %p72 = scmp.eq.s32.totalorder %s15, 1
    %p73 = por %p71, %p72
    %p75 = scmp.ne.s32.totalorder %s60, %s74
    %p76 = scmp.eq.s32.totalorder %s15, 0
    %p77 = por %p75, %p76
    %s79 = sadd.s32 %s78, 1
    %p82 = scmp.eq.s32.totalorder %s9, 1
    %p83 = scmp.ne.s32.totalorder %s78, %s80
    %p84 = scmp.eq.s32.totalorder %s9, 0
    %p85 = por %p83, %p84
    %p86 = scmp.ne.s32.totalorder %s78, %s80
    %p87 = scmp.eq.s32.totalorder %s14, 1
    %p88 = por %p86, %p87
    %p89 = scmp.ne.s32.totalorder %s80, %s81
    %p90 = scmp.eq.s32.totalorder %s14, 0
    %p91 = por %p89, %p90
    %p92 = scmp.ne.s32.totalorder %s80, %s81
    %p93 = scmp.eq.s32.totalorder %s15, 1
    %p94 = por %p92, %p93
    %p96 = scmp.ne.s32.totalorder %s81, %s95
    %p97 = scmp.eq.s32.totalorder %s15, 0
    %p98 = por %p96, %p97
    %s99 = ssub.s32 %s16, %s28
    %s100 = ssub.s32 %s17, %s24
    %s101 = sor.u32 %s99, %s100
    %p102 = scmp.eq.s32.totalorder %s101, 0
    %s104 = sadd.s32 %s103, 1
    %s105 = scalar_select %p102, %s103, %s104
    %p108 = pneg %p102
    %p109 = scmp.eq.s32.totalorder %s9, 1
    %p110 = por %p108, %p109
    %p111 = scmp.ne.s32.totalorder %s103, %s106
    %p112 = scmp.eq.s32.totalorder %s9, 0
    %p113 = por %p111, %p112
    %p114 = scmp.ne.s32.totalorder %s103, %s106
    %p115 = scmp.eq.s32.totalorder %s14, 1
    %p116 = por %p114, %p115
    %p117 = scmp.ne.s32.totalorder %s106, %s107
    %p118 = scmp.eq.s32.totalorder %s14, 0
    %p119 = por %p117, %p118
    %p120 = scmp.ne.s32.totalorder %s106, %s107
    %p121 = scmp.eq.s32.totalorder %s15, 1
    %p122 = por %p120, %p121
    %p124 = scmp.ne.s32.totalorder %s107, %s123
    %p125 = scmp.eq.s32.totalorder %s15, 0
    %p126 = por %p124, %p125
    %p127 = scmp.le.s32.totalorder 1, %s9
    %p128 = scmp.lt.s32.totalorder %s9, 3
    %p129 = pnand %p127, %p128
    %p130 = pneg %p129
    // Predicated region
    $region9: #{generator_forward_pallas.30} parent=5 // pred_check
      _
    $region10: #{generator_forward_pallas.30} parent=5 // pred_check_branch
      %132 = sbr.rel (%p129) target = $region12
    $region11: #{generator_forward_pallas.30} parent=5 // pred_region
      %s133 = ssub.s32 %s9, 1
      // Predicated region
      $region13: #{generator_forward_pallas.30} parent=11 // pred_check
        %p134 = pneg %p70
      $region14: #{generator_forward_pallas.30} parent=11 // pred_check_branch
        %136 = sbr.rel (%p134) target = $region16
      $region15: #{generator_forward_pallas.30} parent=11 // pred_region
        _
      $region16: #{generator_forward_pallas.30} parent=11 // pred_fallthru
        _
      // Predicated region
      $region17: #{generator_forward_pallas.30} parent=11 // pred_check
        %p137 = pneg %p91
      $region18: #{generator_forward_pallas.30} parent=11 // pred_check_branch
        %139 = sbr.rel (%p137) target = $region20
      $region19: #{generator_forward_pallas.30} parent=11 // pred_region
        _
      $region20: #{generator_forward_pallas.30} parent=11 // pred_fallthru
        _
    $region12: #{generator_forward_pallas.30} parent=5 // pred_fallthru
      _
    %p140 = scmp.lt.s32.totalorder %s9, 2
    // Predicated region
    $region21: #{generator_forward_pallas.30} parent=5 // pred_check
      %p141 = pneg %p140
    $region22: #{generator_forward_pallas.30} parent=5 // pred_check_branch
      %143 = sbr.rel (%p141) target = $region24
    $region23: #{generator_forward_pallas.30} parent=5 // pred_region
      // Predicated region
      $region25: #{generator_forward_pallas.30} parent=23 // pred_check
        %p144 = pneg %p43
      $region26: #{generator_forward_pallas.30} parent=23 // pred_check_branch
        %146 = sbr.rel (%p144) target = $region28
      $region27: #{generator_forward_pallas.30} parent=23 // pred_region
        %p147 = scmp.lt.s32.totalorder %s16, 1
        %s148 = scalar_select %p147, %s16, 1
        %p149 = scmp.lt.s32.totalorder %s17, 0
        %s150 = scalar_select %p149, %s17, 0
        %s151 = smul.addr %s150, 4
        %s152 = smul.addr %s148, 4
        %s153 = sadd.s32 %s151, %s152
        %s154 = smul.addr %s153, 4
        %s155 = scalar_lea.vmem %s0, %s154
      $region28: #{generator_forward_pallas.30} parent=23 // pred_fallthru
        _
    $region24: #{generator_forward_pallas.30} parent=5 // pred_fallthru
      _
    %p156 = scmp.le.s32.totalorder 1, %s9
    %p157 = scmp.lt.s32.totalorder %s9, 3
    %p158 = pnand %p156, %p157
    %p159 = pneg %p158
    // Predicated region
    $region29: #{generator_forward_pallas.30} parent=5 // pred_check
      _
    $region30: #{generator_forward_pallas.30} parent=5 // pred_check_branch
      %161 = sbr.rel (%p158) target = $region32
    $region31: #{generator_forward_pallas.30} parent=5 // pred_region
      %s162 = ssub.s32 %s9, 1
      %p163 = scmp.lt.s32.totalorder %s18, 1
      %s164 = scalar_select %p163, %s18, 1
      %p165 = scmp.lt.s32.totalorder %s19, 0
      %s166 = scalar_select %p165, %s19, 0
      %s167 = smul.addr %s166, 4
      %s168 = smul.addr %s164, 4
      %s169 = sadd.s32 %s167, %s168
      %s170 = smul.addr %s169, 4
      %s171 = scalar_lea.vmem %s0, %s170
      %p172 = pneg %p49
      %p173 = pneg %p46
      %p174 = pneg %p70
      %p175 = pneg %p67
      %p176 = pneg %p91
      %p177 = pneg %p88
      %p178 = pneg %p119
      %p179 = pneg %p116
      %p180 = scmp.lt.s32.totalorder %s18, 1
      %s181 = scalar_select %p180, %s18, 1
      %p182 = scmp.lt.s32.totalorder %s19, 0
      %s183 = scalar_select %p182, %s19, 0
      %s184 = smul.addr %s181, 4
      %s185 = sadd.s32 %s183, %s184
      %s186 = smul.addr %s185, 4
      %s187 = scalar_lea.vmem %s3, %s186
      %p188 = scmp.lt.s32.totalorder %s18, 1
      %s189 = scalar_select %p188, %s18, 1
      %p190 = scmp.lt.s32.totalorder %s19, 0
      %s191 = scalar_select %p190, %s19, 0
      %s192 = smul.addr %s191, 4
      %s193 = smul.addr %s189, 4
      %s194 = sadd.s32 %s192, %s193
      %s195 = smul.addr %s194, 4
      %s196 = scalar_lea.vmem %s0, %s195
      %p197 = scmp.lt.s32.totalorder %s18, 1
      %s198 = scalar_select %p197, %s18, 1
      %p199 = scmp.lt.s32.totalorder %s19, 0
      %s200 = scalar_select %p199, %s19, 0
      %s201 = smul.addr %s198, 4
      %s202 = sadd.s32 %s200, %s201
      %s203 = smul.addr %s202, 4
      %s204 = scalar_lea.vmem %s3, %s203
      %v206 = vld [vmem:[%s196] sm:$0xf]
      %v207 = vld [vmem:[%s196 + $0x4] sm:$0xf]
      %v208 = vld [vmem:[%s196 + $0x8] sm:$0xf]
      %v209 = vld [vmem:[%s196 + $0xc] sm:$0xf]
      %v214 = vunpack.c.l.b16 %v206
      %v215 = vunpack.c.l.b16 %v207
      %v216 = vunpack.c.l.b16 %v208
      %v217 = vunpack.c.l.b16 %v209
      %v218 = vpack.c.b16 %v215, %v214
      %v219 = vpack.c.b16 %v217, %v216
      %222 = vrot.lane.b32.xlu0 %v218, 127
      %v223 = vpop.permute.xlu0 %222
      %224 = vrot.lane.b32.xlu0 %v219, 127
      %v225 = vpop.permute.xlu0 %224
      %228 = vrot.lane.b32.xlu0 %v218, 126
      %v229 = vpop.permute.xlu0 %228
      %230 = vrot.lane.b32.xlu0 %v219, 126
      %v231 = vpop.permute.xlu0 %230
      %234 = vrot.lane.b32.xlu0 %v218, 125
      %v235 = vpop.permute.xlu0 %234
      %236 = vrot.lane.b32.xlu0 %v219, 125
      %v237 = vpop.permute.xlu0 %236
      %240 = vrot.lane.b32.xlu0 %v218, 124
      %v241 = vpop.permute.xlu0 %240
      %242 = vrot.lane.b32.xlu0 %v219, 124
      %v243 = vpop.permute.xlu0 %242
      %246 = vrot.lane.b32.xlu0 %v218, 123
      %v247 = vpop.permute.xlu0 %246
      %248 = vrot.lane.b32.xlu0 %v219, 123
      %v249 = vpop.permute.xlu0 %248
      %252 = vrot.lane.b32.xlu0 %v218, 122
      %v253 = vpop.permute.xlu0 %252
      %254 = vrot.lane.b32.xlu0 %v219, 122
      %v255 = vpop.permute.xlu0 %254
      %v258 = vld [vmem:[%s1] sm:$0xff]
      %v259 = vld [vmem:[%s1 + $0x8] sm:$0xff]
      %v260 = vld [vmem:[%s1 + $0x10] sm:$0xff]
      %v261 = vld [vmem:[%s1 + $0x18] sm:$0xff]
      %v262 = vld [vmem:[%s2] sm:$0xff]
      %v263 = vld [vmem:[%s2 + $0x8] sm:$0xff]
      %v264 = vld [vmem:[%s2 + $0x10] sm:$0xff]
      %v265 = vld [vmem:[%s2 + $0x18] sm:$0xff]
      %267 = vset.pattern.permute.xlu0 0
      %268 = vperm.xlu0 %267, %v262
      %v269 = vpop.permute.xlu0 %268
      %272 = vset.pattern.permute.xlu0 0
      %273 = vperm.xlu0 %272, %v263
      %v274 = vpop.permute.xlu0 %273
      %277 = vset.pattern.permute.xlu0 0
      %278 = vperm.xlu0 %277, %v264
      %v279 = vpop.permute.xlu0 %278
      %282 = vset.pattern.permute.xlu0 0
      %283 = vperm.xlu0 %282, %v265
      %v284 = vpop.permute.xlu0 %283
      %v290 = vunpack.c.l.b16 %v258
      %v291 = vunpack.c.h.b16 %v258
      %v292 = vunpack.c.l.b16 %v259
      %v293 = vunpack.c.h.b16 %v259
      %v294 = vunpack.c.l.b16 %v260
      %v295 = vunpack.c.h.b16 %v260
      %v296 = vunpack.c.l.b16 %v261
      %v297 = vunpack.c.h.b16 %v261
      %v298 = vpack.c.b16 %v292, %v290
      %v299 = vpack.c.b16 %v293, %v291
      %v300 = vpack.c.b16 %v296, %v294
      %v301 = vpack.c.b16 %v297, %v295
      %vm304 = vcmask 785408
      %v306 = vsel %vm304, %v299, 0
      %v309 = vsel %vm304, %v301, 0
      %311 = vmatprep.subr.bf16.mxu0 0
      %312 = vmatpush1.bf16.msra.mxu0 %v237
      %313 = vmatprep.subr.bf16.mxu0 0
      %314 = vmatpush1.bf16.msra.mxu0 %v235
      %315 = vmatprep.subr.bf16.mxu0 0
      %316 = vmatpush1.bf16.msra.mxu0 %v231
      %317 = vmatprep.subr.bf16.mxu0 0
      %318 = vmatpush1.bf16.msra.mxu0 %v229
      %319 = vmatprep.subr.bf16.mxu0 0
      %320 = vmatpush1.bf16.msra.mxu0 %v225
      %321 = vmatprep.subr.bf16.mxu0 0
      %322 = vmatpush1.bf16.msra.mxu0 %v223
      %323 = vmatprep.subr.bf16.mxu0 0
      %324 = vmatpush1.bf16.msra.mxu0 %v219
      %325 = vmatprep.subr.bf16.mxu0 0
      %326 = vmatpush1.bf16.msra.mxu0 %v218
      %327 = vmatprep.subr.bf16.mxu0 0
      %328 = vmatpush2.bf16.msra.mxu0 0
      %329 = vmatprep.subr.bf16.mxu0 0
      %330 = vmatpush2.bf16.msra.mxu0 0
      %331 = vmatprep.subr.bf16.mxu0 0
      %332 = vmatpush2.bf16.msra.mxu0 %v255
      %333 = vmatprep.subr.bf16.mxu0 0
      %334 = vmatpush2.bf16.msra.mxu0 %v253
      %335 = vmatprep.subr.bf16.mxu0 0
      %336 = vmatpush2.bf16.msra.mxu0 %v249
      %337 = vmatprep.subr.bf16.mxu0 0
      %338 = vmatpush2.bf16.msra.mxu0 %v247
      %339 = vmatprep.subr.bf16.mxu0 0
      %340 = vmatpush2.bf16.msra.mxu0 %v243
      %341 = vmatprep.subr.bf16.mxu0 0
      %342 = vmatpush2.bf16.msra.mxu0 %v241
      %343 = vmatprep.mubr.bf16.mxu0 %v306
      %344 = vmatmul.mubr.bf16.gmra.mxu0 %v298
      %v345 = vpop.f32.mrf.mxu0
      %v346 = vadd.f32 %v269, %v345
      %v347 = vpop.f32.mrf.mxu0
      %v348 = vpop.f32.mrf.mxu0
      %v349 = vadd.f32 %v274, %v348
      %v350 = vpop.f32.mrf.mxu0
      %351 = vmatprep.mubr.bf16.mxu0 %v309
      %352 = vmatmul.mubr.bf16.gmra.mxu0 %v300
      %v353 = vpop.f32.mrf.mxu0
      %v354 = vadd.f32 %v279, %v353
      %v355 = vpop.f32.mrf.mxu0
      %v356 = vpop.f32.mrf.mxu0
      %v357 = vadd.f32 %v284, %v356
      %v358 = vpop.f32.mrf.mxu0
      %359 = vdwg.mxu0
      %v360 = vpack.c.bf16 %v349, %v346
      %v361 = vpack.c.bf16 %v357, %v354
      %v364 = vunpack.c.l.b16 %v360
      %v365 = vunpack.c.h.b16 %v360
      %v366 = vunpack.c.l.b16 %v361
      %v367 = vunpack.c.h.b16 %v361
      %v368 = vpack.c.b16 %v364, %v364
      %v369 = vpack.c.b16 %v365, %v365
      %v370 = vpack.c.b16 %v366, %v366
      %v371 = vpack.c.b16 %v367, %v367
      %vm376 = vcmask 125952
      %377 = vst.msk [vmem:[%s204] sm:$0xf] %vm376, %v368
      %378 = vst.msk [vmem:[%s204 + $0x4] sm:$0xf] %vm376, %v369
      %379 = vst.msk [vmem:[%s204 + $0x8] sm:$0xf] %vm376, %v370
      %380 = vst.msk [vmem:[%s204 + $0xc] sm:$0xf] %vm376, %v371
      %p381 = scmp.lt.s32.totalorder %s18, 1
      %s382 = scalar_select %p381, %s18, 1
      %p383 = scmp.lt.s32.totalorder %s19, 0
      %s384 = scalar_select %p383, %s19, 0
      %s385 = smul.addr %s382, 4
      %s386 = sadd.s32 %s384, %s385
      %s387 = smul.addr %s386, 4
      %s388 = scalar_lea.vmem %s3, %s387
      // Predicated region
      $region33: #{generator_forward_pallas.30} parent=31 // pred_check
        %p389 = pneg %p116
      $region34: #{generator_forward_pallas.30} parent=31 // pred_check_branch
        %391 = sbr.rel (%p389) target = $region36
      $region35: #{generator_forward_pallas.30} parent=31 // pred_region
        _
      $region36: #{generator_forward_pallas.30} parent=31 // pred_fallthru
        _
    $region32: #{generator_forward_pallas.30} parent=5 // pred_fallthru
      _
    %p392 = scmp.le.s32.totalorder 2, %s9
    // Predicated region
    $region37: #{generator_forward_pallas.30} parent=5 // pred_check
      %p393 = pneg %p392
    $region38: #{generator_forward_pallas.30} parent=5 // pred_check_branch
      %395 = sbr.rel (%p393) target = $region40
    $region39: #{generator_forward_pallas.30} parent=5 // pred_region
      %s396 = ssub.s32 %s9, 2
      // Predicated region
      $region41: #{generator_forward_pallas.30} parent=39 // pred_check
        %p397 = pneg %p122
      $region42: #{generator_forward_pallas.30} parent=39 // pred_check_branch
        %399 = sbr.rel (%p397) target = $region44
      $region43: #{generator_forward_pallas.30} parent=39 // pred_region
        %p400 = scmp.lt.s32.totalorder %s20, 1
        %s401 = scalar_select %p400, %s20, 1
        %p402 = scmp.lt.s32.totalorder %s21, 0
        %s403 = scalar_select %p402, %s21, 0
        %s404 = smul.addr %s401, 4
        %s405 = sadd.s32 %s403, %s404
        %s406 = smul.addr %s405, 4
        %s407 = scalar_lea.vmem %s3, %s406
      $region44: #{generator_forward_pallas.30} parent=39 // pred_fallthru
        _
    $region40: #{generator_forward_pallas.30} parent=5 // pred_fallthru
      _
  $region6: #{generator_forward_pallas.30} parent=0 // loop_footer
    %s13 = sadd.s32 1, %s9
  $region7: #{generator_forward_pallas.30} parent=0 // loop_footer_branch
    %8 = sbr.rel target = $region3
  $region8: #{generator_forward_pallas.30} parent=0 // loop_exit
    _

// kernel: generator_forward_pallas.31
$region0: #{generator_forward_pallas.31}
  #allocation0 [shape = 'u32[]', space=smem, size = 0x4, offset = 0x4, fixed_abs, tag = 'smem constant byte address 0x4 - core index']
  #allocation1 [shape = 'u32[144,128]{1,0:T(1,128)}', space=vmem, size = 0x12000, scoped, tag = 'internal scratch']
  %s0 = inlined_call_operand.vmem [shape: bf16[2,1,32,17], index: 0, kind: input, shape index: {}]
  %s1 = inlined_call_operand.vmem [shape: bf16[16,64], index: 1, kind: input, shape index: {}]
  %s2 = inlined_call_operand.vmem [shape: f32[16,1], index: 2, kind: input, shape index: {}]
  %s3 = inlined_call_operand.vmem [shape: bf16[2,16,16], index: 3, kind: output, shape index: {}]
  %s4 = sld [smem:[#allocation0]]
  $region45: #{generator_forward_pallas.31} parent=0
    _
  %s6 = ssub.s32 1, %s4
  %s7 = scalar_select 0, %s6, %s4
  loop: start=0, step=1, limit=4
  $region2: #{generator_forward_pallas.31} parent=0 // loop_pre_header
    _
  $region3: #{generator_forward_pallas.31} parent=0 // loop_header
    %s9 = sphi 0, %s13
    %p10 = scmp.ge.s32.totalorder %s9, 4
    %s16 = sphi 0, %s28
    %s17 = sphi 0, %s24
    %s18 = sphi 0, %s16
    %s19 = sphi 0, %s17
    %s20 = sphi 0, %s18
    %s21 = sphi 0, %s19
    %s33 = sphi 0, %s35
    %s36 = sphi 0, %s33
    %s37 = sphi 0, %s36
    %s53 = sphi 0, %s37
    %s57 = sphi 0, %s57
    %s59 = sphi 0, %s57
    %s60 = sphi 0, %s59
    %s74 = sphi 0, %s60
    %s78 = sphi 0, %s78
    %s80 = sphi 0, %s78
    %s81 = sphi 0, %s80
    %s95 = sphi 0, %s81
    %s103 = sphi 0, %s105
    %s106 = sphi 0, %s103
    %s107 = sphi 0, %s106
    %s123 = sphi 0, %s107
  $region4: #{generator_forward_pallas.31} parent=0 // loop_header_branch
    %12 = sbr.rel (%p10) target = $region8
  $region5: #{generator_forward_pallas.31} parent=0 // loop_body
    %s14 = ssub.s32 %s9, 1
    %s15 = ssub.s32 %s9, 2
    %s22 = sadd.s32 1, %s17
    %p23 = scmp.ge.s32.totalorder %s22, 1
    %s24 = scalar_select %p23, 0, %s22
    %s25 = sadd.s32 1, %s16
    %s26 = scalar_select %p23, %s25, %s16
    %p27 = scmp.ge.s32.totalorder %s26, 2
    %s28 = scalar_select %p27, 0, %s26
    %s29 = ssub.s32 %s16, %s28
    %s30 = ssub.s32 %s17, %s24
    %s31 = sor.u32 %s29, %s30
    %p32 = scmp.eq.s32.totalorder %s31, 0
    %s34 = sadd.s32 %s33, 1
    %s35 = scalar_select %p32, %s33, %s34
    %p38 = pneg %p32
    %p39 = scmp.eq.s32.totalorder %s9, 1
    %p40 = por %p38, %p39
    %p41 = scmp.ne.s32.totalorder %s33, %s36
    %p42 = scmp.eq.s32.totalorder %s9, 0
    %p43 = por %p41, %p42
    %p44 = scmp.ne.s32.totalorder %s33, %s36
    %p45 = scmp.eq.s32.totalorder %s14, 1
    %p46 = por %p44, %p45
    %p47 = scmp.ne.s32.totalorder %s36, %s37
    %p48 = scmp.eq.s32.totalorder %s14, 0
    %p49 = por %p47, %p48
    %p50 = scmp.ne.s32.totalorder %s36, %s37
    %p51 = scmp.eq.s32.totalorder %s15, 1
    %p52 = por %p50, %p51
    %p54 = scmp.ne.s32.totalorder %s37, %s53
    %p55 = scmp.eq.s32.totalorder %s15, 0
    %p56 = por %p54, %p55
    %s58 = sadd.s32 %s57, 1
    %p61 = scmp.eq.s32.totalorder %s9, 1
    %p62 = scmp.ne.s32.totalorder %s57, %s59
    %p63 = scmp.eq.s32.totalorder %s9, 0
    %p64 = por %p62, %p63
    %p65 = scmp.ne.s32.totalorder %s57, %s59
    %p66 = scmp.eq.s32.totalorder %s14, 1
    %p67 = por %p65, %p66
    %p68 = scmp.ne.s32.totalorder %s59, %s60
    %p69 = scmp.eq.s32.totalorder %s14, 0
    %p70 = por %p68, %p69
    %p71 = scmp.ne.s32.totalorder %s59, %s60
    %p72 = scmp.eq.s32.totalorder %s15, 1
    %p73 = por %p71, %p72
    %p75 = scmp.ne.s32.totalorder %s60, %s74
    %p76 = scmp.eq.s32.totalorder %s15, 0
    %p77 = por %p75, %p76
    %s79 = sadd.s32 %s78, 1
    %p82 = scmp.eq.s32.totalorder %s9, 1
    %p83 = scmp.ne.s32.totalorder %s78, %s80
    %p84 = scmp.eq.s32.totalorder %s9, 0
    %p85 = por %p83, %p84
    %p86 = scmp.ne.s32.totalorder %s78, %s80
    %p87 = scmp.eq.s32.totalorder %s14, 1
    %p88 = por %p86, %p87
    %p89 = scmp.ne.s32.totalorder %s80, %s81
    %p90 = scmp.eq.s32.totalorder %s14, 0
    %p91 = por %p89, %p90
    %p92 = scmp.ne.s32.totalorder %s80, %s81
    %p93 = scmp.eq.s32.totalorder %s15, 1
    %p94 = por %p92, %p93
    %p96 = scmp.ne.s32.totalorder %s81, %s95
    %p97 = scmp.eq.s32.totalorder %s15, 0
    %p98 = por %p96, %p97
    %s99 = ssub.s32 %s16, %s28
    %s100 = ssub.s32 %s17, %s24
    %s101 = sor.u32 %s99, %s100
    %p102 = scmp.eq.s32.totalorder %s101, 0
    %s104 = sadd.s32 %s103, 1
    %s105 = scalar_select %p102, %s103, %s104
    %p108 = pneg %p102
    %p109 = scmp.eq.s32.totalorder %s9, 1
    %p110 = por %p108, %p109
    %p111 = scmp.ne.s32.totalorder %s103, %s106
    %p112 = scmp.eq.s32.totalorder %s9, 0
    %p113 = por %p111, %p112
    %p114 = scmp.ne.s32.totalorder %s103, %s106
    %p115 = scmp.eq.s32.totalorder %s14, 1
    %p116 = por %p114, %p115
    %p117 = scmp.ne.s32.totalorder %s106, %s107
    %p118 = scmp.eq.s32.totalorder %s14, 0
    %p119 = por %p117, %p118
    %p120 = scmp.ne.s32.totalorder %s106, %s107
    %p121 = scmp.eq.s32.totalorder %s15, 1
    %p122 = por %p120, %p121
    %p124 = scmp.ne.s32.totalorder %s107, %s123
    %p125 = scmp.eq.s32.totalorder %s15, 0
    %p126 = por %p124, %p125
    %p127 = scmp.le.s32.totalorder 1, %s9
    %p128 = scmp.lt.s32.totalorder %s9, 3
    %p129 = pnand %p127, %p128
    %p130 = pneg %p129
    // Predicated region
    $region9: #{generator_forward_pallas.31} parent=5 // pred_check
      _
    $region10: #{generator_forward_pallas.31} parent=5 // pred_check_branch
      %132 = sbr.rel (%p129) target = $region12
    $region11: #{generator_forward_pallas.31} parent=5 // pred_region
      %s133 = ssub.s32 %s9, 1
      // Predicated region
      $region13: #{generator_forward_pallas.31} parent=11 // pred_check
        %p134 = pneg %p70
      $region14: #{generator_forward_pallas.31} parent=11 // pred_check_branch
        %136 = sbr.rel (%p134) target = $region16
      $region15: #{generator_forward_pallas.31} parent=11 // pred_region
        _
      $region16: #{generator_forward_pallas.31} parent=11 // pred_fallthru
        _
      // Predicated region
      $region17: #{generator_forward_pallas.31} parent=11 // pred_check
        %p137 = pneg %p91
      $region18: #{generator_forward_pallas.31} parent=11 // pred_check_branch
        %139 = sbr.rel (%p137) target = $region20
      $region19: #{generator_forward_pallas.31} parent=11 // pred_region
        _
      $region20: #{generator_forward_pallas.31} parent=11 // pred_fallthru
        _
    $region12: #{generator_forward_pallas.31} parent=5 // pred_fallthru
      _
    %p140 = scmp.lt.s32.totalorder %s9, 2
    // Predicated region
    $region21: #{generator_forward_pallas.31} parent=5 // pred_check
      %p141 = pneg %p140
    $region22: #{generator_forward_pallas.31} parent=5 // pred_check_branch
      %143 = sbr.rel (%p141) target = $region24
    $region23: #{generator_forward_pallas.31} parent=5 // pred_region
      // Predicated region
      $region25: #{generator_forward_pallas.31} parent=23 // pred_check
        %p144 = pneg %p43
      $region26: #{generator_forward_pallas.31} parent=23 // pred_check_branch
        %146 = sbr.rel (%p144) target = $region28
      $region27: #{generator_forward_pallas.31} parent=23 // pred_region
        %p147 = scmp.lt.s32.totalorder %s16, 1
        %s148 = scalar_select %p147, %s16, 1
        %p149 = scmp.lt.s32.totalorder %s17, 0
        %s150 = scalar_select %p149, %s17, 0
        %s151 = smul.addr %s150, 4
        %s152 = smul.addr %s148, 4
        %s153 = sadd.s32 %s151, %s152
        %s154 = smul.addr %s153, 4
        %s155 = scalar_lea.vmem %s0, %s154
      $region28: #{generator_forward_pallas.31} parent=23 // pred_fallthru
        _
    $region24: #{generator_forward_pallas.31} parent=5 // pred_fallthru
      _
    %p156 = scmp.le.s32.totalorder 1, %s9
    %p157 = scmp.lt.s32.totalorder %s9, 3
    %p158 = pnand %p156, %p157
    %p159 = pneg %p158
    // Predicated region
    $region29: #{generator_forward_pallas.31} parent=5 // pred_check
      _
    $region30: #{generator_forward_pallas.31} parent=5 // pred_check_branch
      %161 = sbr.rel (%p158) target = $region32
    $region31: #{generator_forward_pallas.31} parent=5 // pred_region
      %s162 = ssub.s32 %s9, 1
      %p163 = scmp.lt.s32.totalorder %s18, 1
      %s164 = scalar_select %p163, %s18, 1
      %p165 = scmp.lt.s32.totalorder %s19, 0
      %s166 = scalar_select %p165, %s19, 0
      %s167 = smul.addr %s166, 4
      %s168 = smul.addr %s164, 4
      %s169 = sadd.s32 %s167, %s168
      %s170 = smul.addr %s169, 4
      %s171 = scalar_lea.vmem %s0, %s170
      %p172 = pneg %p49
      %p173 = pneg %p46
      %p174 = pneg %p70
      %p175 = pneg %p67
      %p176 = pneg %p91
      %p177 = pneg %p88
      %p178 = pneg %p119
      %p179 = pneg %p116
      %p180 = scmp.lt.s32.totalorder %s18, 1
      %s181 = scalar_select %p180, %s18, 1
      %p182 = scmp.lt.s32.totalorder %s19, 0
      %s183 = scalar_select %p182, %s19, 0
      %s184 = smul.addr %s181, 2
      %s185 = sadd.s32 %s183, %s184
      %s186 = smul.addr %s185, 4
      %s187 = scalar_lea.vmem %s3, %s186
      %p188 = scmp.lt.s32.totalorder %s18, 1
      %s189 = scalar_select %p188, %s18, 1
      %p190 = scmp.lt.s32.totalorder %s19, 0
      %s191 = scalar_select %p190, %s19, 0
      %s192 = smul.addr %s191, 4
      %s193 = smul.addr %s189, 4
      %s194 = sadd.s32 %s192, %s193
      %s195 = smul.addr %s194, 4
      %s196 = scalar_lea.vmem %s0, %s195
      %p197 = scmp.lt.s32.totalorder %s18, 1
      %s198 = scalar_select %p197, %s18, 1
      %p199 = scmp.lt.s32.totalorder %s19, 0
      %s200 = scalar_select %p199, %s19, 0
      %s201 = smul.addr %s198, 2
      %s202 = sadd.s32 %s200, %s201
      %s203 = smul.addr %s202, 4
      %s204 = scalar_lea.vmem %s3, %s203
      %v207 = vld [vmem:[%s196] sm:$0xf]
      %v208 = vld [vmem:[%s196 + $0x4] sm:$0xf]
      %v209 = vld [vmem:[%s196 + $0x8] sm:$0xf]
      %v210 = vld [vmem:[%s196 + $0xc] sm:$0xf]
      %vm211 = vcmp.ge.bf16.partialorder %v207, 0
      %vm212 = vcmp.ge.bf16.partialorder %v208, 0
      %vm213 = vcmp.ge.bf16.partialorder %v209, 0
      %vm214 = vcmp.ge.bf16.partialorder %v210, 0
      %v215 = vmul.bf16 %v207, 1036860877
      %v216 = vmul.bf16 %v208, 1036860877
      %v217 = vmul.bf16 %v209, 1036860877
      %v218 = vmul.bf16 %v210, 1036860877
      %v219 = vsel %vm211, %v207, %v215
      %v220 = vsel %vm212, %v208, %v216
      %v221 = vsel %vm213, %v209, %v217
      %v222 = vsel %vm214, %v210, %v218
      %v227 = vunpack.c.l.b16 %v219
      %v228 = vunpack.c.l.b16 %v220
      %v229 = vunpack.c.l.b16 %v221
      %v230 = vunpack.c.l.b16 %v222
      %v231 = vpack.c.b16 %v228, %v227
      %v232 = vpack.c.b16 %v230, %v229
      %235 = vrot.lane.b32.xlu0 %v231, 127
      %v236 = vpop.permute.xlu0 %235
      %237 = vrot.lane.b32.xlu0 %v232, 127
      %v238 = vpop.permute.xlu0 %237
      %v241 = vld [vmem:[%s1] sm:$0xf]
      %v242 = vld [vmem:[%s1 + $0x4] sm:$0xf]
      %v243 = vld [vmem:[%s2] sm:$0xff]
      %v244 = vld [vmem:[%s2 + $0x8] sm:$0xff]
      %246 = vset.pattern.permute.xlu0 0
      %247 = vperm.xlu0 %246, %v243
      %v248 = vpop.permute.xlu0 %247
      %251 = vset.pattern.permute.xlu0 0
      %252 = vperm.xlu0 %251, %v244
      %v253 = vpop.permute.xlu0 %252
      %v257 = vunpack.c.l.b16 %v241
      %v258 = vunpack.c.l.b16 %v242
      %v259 = vpack.c.b16 %v258, %v257
      %vm260 = vcmask 523264
      %v262 = vsel %vm260, %v259, 0
      %264 = vmatprep.subr.bf16.mxu0 0
      %265 = vmatpush1.bf16.msra.mxu0 0
      %266 = vmatprep.subr.bf16.mxu0 0
      %267 = vmatpush1.bf16.msra.mxu0 0
      %268 = vmatprep.subr.bf16.mxu0 0
      %269 = vmatpush1.bf16.msra.mxu0 0
      %270 = vmatprep.subr.bf16.mxu0 0
      %271 = vmatpush1.bf16.msra.mxu0 0
      %272 = vmatprep.subr.bf16.mxu0 0
      %273 = vmatpush1.bf16.msra.mxu0 %v238
      %274 = vmatprep.subr.bf16.mxu0 0
      %275 = vmatpush1.bf16.msra.mxu0 %v236
      %276 = vmatprep.subr.bf16.mxu0 0
      %277 = vmatpush1.bf16.msra.mxu0 %v232
      %278 = vmatprep.subr.bf16.mxu0 0
      %279 = vmatpush1.bf16.msra.mxu0 %v231
      %280 = vmatprep.subr.bf16.mxu0 0
      %281 = vmatpush2.bf16.msra.mxu0 0
      %282 = vmatprep.subr.bf16.mxu0 0
      %283 = vmatpush2.bf16.msra.mxu0 0
      %284 = vmatprep.subr.bf16.mxu0 0
      %285 = vmatpush2.bf16.msra.mxu0 0
      %286 = vmatprep.subr.bf16.mxu0 0
      %287 = vmatpush2.bf16.msra.mxu0 0
      %288 = vmatprep.subr.bf16.mxu0 0
      %289 = vmatpush2.bf16.msra.mxu0 0
      %290 = vmatprep.subr.bf16.mxu0 0
      %291 = vmatpush2.bf16.msra.mxu0 0
      %292 = vmatprep.subr.bf16.mxu0 0
      %293 = vmatpush2.bf16.msra.mxu0 0
      %294 = vmatprep.subr.bf16.mxu0 0
      %295 = vmatpush2.bf16.msra.mxu0 0
      %296 = vmatprep.mubr.bf16.mxu0 0
      %297 = vmatmul.mubr.bf16.gmra.mxu0 %v262
      %v298 = vpop.f32.mrf.mxu0
      %v299 = vadd.f32 %v248, %v298
      %v300 = vpop.f32.mrf.mxu0
      %v301 = vpop.f32.mrf.mxu0
      %v302 = vadd.f32 %v253, %v301
      %v303 = vpop.f32.mrf.mxu0
      %304 = vdwg.mxu0
      %v305 = vpack.c.bf16 %v302, %v299
      %v307 = vunpack.c.l.b16 %v305
      %v308 = vunpack.c.h.b16 %v305
      %v309 = vpack.c.b16 %v307, %v307
      %v310 = vpack.c.b16 %v308, %v308
      %vm313 = vcmask 125952
      %314 = vst.msk [vmem:[%s204] sm:$0xf] %vm313, %v309
      %315 = vst.msk [vmem:[%s204 + $0x4] sm:$0xf] %vm313, %v310
      %p316 = scmp.lt.s32.totalorder %s18, 1
      %s317 = scalar_select %p316, %s18, 1
      %p318 = scmp.lt.s32.totalorder %s19, 0
      %s319 = scalar_select %p318, %s19, 0
      %s320 = smul.addr %s317, 2
      %s321 = sadd.s32 %s319, %s320
      %s322 = smul.addr %s321, 4
      %s323 = scalar_lea.vmem %s3, %s322
      // Predicated region
      $region33: #{generator_forward_pallas.31} parent=31 // pred_check
        %p324 = pneg %p116
      $region34: #{generator_forward_pallas.31} parent=31 // pred_check_branch
        %326 = sbr.rel (%p324) target = $region36
      $region35: #{generator_forward_pallas.31} parent=31 // pred_region
        _
      $region36: #{generator_forward_pallas.31} parent=31 // pred_fallthru
        _
    $region32: #{generator_forward_pallas.31} parent=5 // pred_fallthru
      _
    %p327 = scmp.le.s32.totalorder 2, %s9
    // Predicated region
    $region37: #{generator_forward_pallas.31} parent=5 // pred_check
      %p328 = pneg %p327
    $region38: #{generator_forward_pallas.31} parent=5 // pred_check_branch
      %330 = sbr.rel (%p328) target = $region40
    $region39: #{generator_forward_pallas.31} parent=5 // pred_region
      %s331 = ssub.s32 %s9, 2
      // Predicated region
      $region41: #{generator_forward_pallas.31} parent=39 // pred_check
        %p332 = pneg %p122
      $region42: #{generator_forward_pallas.31} parent=39 // pred_check_branch
        %334 = sbr.rel (%p332) target = $region44
      $region43: #{generator_forward_pallas.31} parent=39 // pred_region
        %p335 = scmp.lt.s32.totalorder %s20, 1
        %s336 = scalar_select %p335, %s20, 1
        %p337 = scmp.lt.s32.totalorder %s21, 0
        %s338 = scalar_select %p337, %s21, 0
        %s339 = smul.addr %s336, 2
        %s340 = sadd.s32 %s338, %s339
        %s341 = smul.addr %s340, 4
        %s342 = scalar_lea.vmem %s3, %s341
      $region44: #{generator_forward_pallas.31} parent=39 // pred_fallthru
        _
    $region40: #{generator_forward_pallas.31} parent=5 // pred_fallthru
      _
  $region6: #{generator_forward_pallas.31} parent=0 // loop_footer
    %s13 = sadd.s32 1, %s9
  $region7: #{generator_forward_pallas.31} parent=0 // loop_footer_branch
    %8 = sbr.rel target = $region3
  $region8: #{generator_forward_pallas.31} parent=0 // loop_exit
    _

// kernel: generator_forward_pallas.33
$region0: #{generator_forward_pallas.33}
  #allocation0 [shape = 'u32[]', space=smem, size = 0x4, offset = 0x4, fixed_abs, tag = 'smem constant byte address 0x4 - core index']
  #allocation1 [shape = 'u32[144,128]{1,0:T(1,128)}', space=vmem, size = 0x12000, scoped, tag = 'internal scratch']
  %s0 = inlined_call_operand.vmem [shape: bf16[2,1,16,34], index: 0, kind: input, shape index: {}]
  %s1 = inlined_call_operand.vmem [shape: bf16[16,48], index: 1, kind: input, shape index: {}]
  %s2 = inlined_call_operand.vmem [shape: f32[16,1], index: 2, kind: input, shape index: {}]
  %s3 = inlined_call_operand.vmem [shape: bf16[2,16,32], index: 3, kind: output, shape index: {}]
  %s4 = sld [smem:[#allocation0]]
  $region45: #{generator_forward_pallas.33} parent=0
    _
  %s6 = ssub.s32 1, %s4
  %s7 = scalar_select 0, %s6, %s4
  loop: start=0, step=1, limit=4
  $region2: #{generator_forward_pallas.33} parent=0 // loop_pre_header
    _
  $region3: #{generator_forward_pallas.33} parent=0 // loop_header
    %s9 = sphi 0, %s13
    %p10 = scmp.ge.s32.totalorder %s9, 4
    %s16 = sphi 0, %s28
    %s17 = sphi 0, %s24
    %s18 = sphi 0, %s16
    %s19 = sphi 0, %s17
    %s20 = sphi 0, %s18
    %s21 = sphi 0, %s19
    %s33 = sphi 0, %s35
    %s36 = sphi 0, %s33
    %s37 = sphi 0, %s36
    %s53 = sphi 0, %s37
    %s57 = sphi 0, %s57
    %s59 = sphi 0, %s57
    %s60 = sphi 0, %s59
    %s74 = sphi 0, %s60
    %s78 = sphi 0, %s78
    %s80 = sphi 0, %s78
    %s81 = sphi 0, %s80
    %s95 = sphi 0, %s81
    %s103 = sphi 0, %s105
    %s106 = sphi 0, %s103
    %s107 = sphi 0, %s106
    %s123 = sphi 0, %s107
  $region4: #{generator_forward_pallas.33} parent=0 // loop_header_branch
    %12 = sbr.rel (%p10) target = $region8
  $region5: #{generator_forward_pallas.33} parent=0 // loop_body
    %s14 = ssub.s32 %s9, 1
    %s15 = ssub.s32 %s9, 2
    %s22 = sadd.s32 1, %s17
    %p23 = scmp.ge.s32.totalorder %s22, 1
    %s24 = scalar_select %p23, 0, %s22
    %s25 = sadd.s32 1, %s16
    %s26 = scalar_select %p23, %s25, %s16
    %p27 = scmp.ge.s32.totalorder %s26, 2
    %s28 = scalar_select %p27, 0, %s26
    %s29 = ssub.s32 %s16, %s28
    %s30 = ssub.s32 %s17, %s24
    %s31 = sor.u32 %s29, %s30
    %p32 = scmp.eq.s32.totalorder %s31, 0
    %s34 = sadd.s32 %s33, 1
    %s35 = scalar_select %p32, %s33, %s34
    %p38 = pneg %p32
    %p39 = scmp.eq.s32.totalorder %s9, 1
    %p40 = por %p38, %p39
    %p41 = scmp.ne.s32.totalorder %s33, %s36
    %p42 = scmp.eq.s32.totalorder %s9, 0
    %p43 = por %p41, %p42
    %p44 = scmp.ne.s32.totalorder %s33, %s36
    %p45 = scmp.eq.s32.totalorder %s14, 1
    %p46 = por %p44, %p45
    %p47 = scmp.ne.s32.totalorder %s36, %s37
    %p48 = scmp.eq.s32.totalorder %s14, 0
    %p49 = por %p47, %p48
    %p50 = scmp.ne.s32.totalorder %s36, %s37
    %p51 = scmp.eq.s32.totalorder %s15, 1
    %p52 = por %p50, %p51
    %p54 = scmp.ne.s32.totalorder %s37, %s53
    %p55 = scmp.eq.s32.totalorder %s15, 0
    %p56 = por %p54, %p55
    %s58 = sadd.s32 %s57, 1
    %p61 = scmp.eq.s32.totalorder %s9, 1
    %p62 = scmp.ne.s32.totalorder %s57, %s59
    %p63 = scmp.eq.s32.totalorder %s9, 0
    %p64 = por %p62, %p63
    %p65 = scmp.ne.s32.totalorder %s57, %s59
    %p66 = scmp.eq.s32.totalorder %s14, 1
    %p67 = por %p65, %p66
    %p68 = scmp.ne.s32.totalorder %s59, %s60
    %p69 = scmp.eq.s32.totalorder %s14, 0
    %p70 = por %p68, %p69
    %p71 = scmp.ne.s32.totalorder %s59, %s60
    %p72 = scmp.eq.s32.totalorder %s15, 1
    %p73 = por %p71, %p72
    %p75 = scmp.ne.s32.totalorder %s60, %s74
    %p76 = scmp.eq.s32.totalorder %s15, 0
    %p77 = por %p75, %p76
    %s79 = sadd.s32 %s78, 1
    %p82 = scmp.eq.s32.totalorder %s9, 1
    %p83 = scmp.ne.s32.totalorder %s78, %s80
    %p84 = scmp.eq.s32.totalorder %s9, 0
    %p85 = por %p83, %p84
    %p86 = scmp.ne.s32.totalorder %s78, %s80
    %p87 = scmp.eq.s32.totalorder %s14, 1
    %p88 = por %p86, %p87
    %p89 = scmp.ne.s32.totalorder %s80, %s81
    %p90 = scmp.eq.s32.totalorder %s14, 0
    %p91 = por %p89, %p90
    %p92 = scmp.ne.s32.totalorder %s80, %s81
    %p93 = scmp.eq.s32.totalorder %s15, 1
    %p94 = por %p92, %p93
    %p96 = scmp.ne.s32.totalorder %s81, %s95
    %p97 = scmp.eq.s32.totalorder %s15, 0
    %p98 = por %p96, %p97
    %s99 = ssub.s32 %s16, %s28
    %s100 = ssub.s32 %s17, %s24
    %s101 = sor.u32 %s99, %s100
    %p102 = scmp.eq.s32.totalorder %s101, 0
    %s104 = sadd.s32 %s103, 1
    %s105 = scalar_select %p102, %s103, %s104
    %p108 = pneg %p102
    %p109 = scmp.eq.s32.totalorder %s9, 1
    %p110 = por %p108, %p109
    %p111 = scmp.ne.s32.totalorder %s103, %s106
    %p112 = scmp.eq.s32.totalorder %s9, 0
    %p113 = por %p111, %p112
    %p114 = scmp.ne.s32.totalorder %s103, %s106
    %p115 = scmp.eq.s32.totalorder %s14, 1
    %p116 = por %p114, %p115
    %p117 = scmp.ne.s32.totalorder %s106, %s107
    %p118 = scmp.eq.s32.totalorder %s14, 0
    %p119 = por %p117, %p118
    %p120 = scmp.ne.s32.totalorder %s106, %s107
    %p121 = scmp.eq.s32.totalorder %s15, 1
    %p122 = por %p120, %p121
    %p124 = scmp.ne.s32.totalorder %s107, %s123
    %p125 = scmp.eq.s32.totalorder %s15, 0
    %p126 = por %p124, %p125
    %p127 = scmp.le.s32.totalorder 1, %s9
    %p128 = scmp.lt.s32.totalorder %s9, 3
    %p129 = pnand %p127, %p128
    %p130 = pneg %p129
    // Predicated region
    $region9: #{generator_forward_pallas.33} parent=5 // pred_check
      _
    $region10: #{generator_forward_pallas.33} parent=5 // pred_check_branch
      %132 = sbr.rel (%p129) target = $region12
    $region11: #{generator_forward_pallas.33} parent=5 // pred_region
      %s133 = ssub.s32 %s9, 1
      // Predicated region
      $region13: #{generator_forward_pallas.33} parent=11 // pred_check
        %p134 = pneg %p70
      $region14: #{generator_forward_pallas.33} parent=11 // pred_check_branch
        %136 = sbr.rel (%p134) target = $region16
      $region15: #{generator_forward_pallas.33} parent=11 // pred_region
        _
      $region16: #{generator_forward_pallas.33} parent=11 // pred_fallthru
        _
      // Predicated region
      $region17: #{generator_forward_pallas.33} parent=11 // pred_check
        %p137 = pneg %p91
      $region18: #{generator_forward_pallas.33} parent=11 // pred_check_branch
        %139 = sbr.rel (%p137) target = $region20
      $region19: #{generator_forward_pallas.33} parent=11 // pred_region
        _
      $region20: #{generator_forward_pallas.33} parent=11 // pred_fallthru
        _
    $region12: #{generator_forward_pallas.33} parent=5 // pred_fallthru
      _
    %p140 = scmp.lt.s32.totalorder %s9, 2
    // Predicated region
    $region21: #{generator_forward_pallas.33} parent=5 // pred_check
      %p141 = pneg %p140
    $region22: #{generator_forward_pallas.33} parent=5 // pred_check_branch
      %143 = sbr.rel (%p141) target = $region24
    $region23: #{generator_forward_pallas.33} parent=5 // pred_region
      // Predicated region
      $region25: #{generator_forward_pallas.33} parent=23 // pred_check
        %p144 = pneg %p43
      $region26: #{generator_forward_pallas.33} parent=23 // pred_check_branch
        %146 = sbr.rel (%p144) target = $region28
      $region27: #{generator_forward_pallas.33} parent=23 // pred_region
        %p147 = scmp.lt.s32.totalorder %s16, 1
        %s148 = scalar_select %p147, %s16, 1
        %p149 = scmp.lt.s32.totalorder %s17, 0
        %s150 = scalar_select %p149, %s17, 0
        %s151 = smul.addr %s150, 2
        %s152 = smul.addr %s148, 2
        %s153 = sadd.s32 %s151, %s152
        %s154 = smul.addr %s153, 4
        %s155 = scalar_lea.vmem %s0, %s154
      $region28: #{generator_forward_pallas.33} parent=23 // pred_fallthru
        _
    $region24: #{generator_forward_pallas.33} parent=5 // pred_fallthru
      _
    %p156 = scmp.le.s32.totalorder 1, %s9
    %p157 = scmp.lt.s32.totalorder %s9, 3
    %p158 = pnand %p156, %p157
    %p159 = pneg %p158
    // Predicated region
    $region29: #{generator_forward_pallas.33} parent=5 // pred_check
      _
    $region30: #{generator_forward_pallas.33} parent=5 // pred_check_branch
      %161 = sbr.rel (%p158) target = $region32
    $region31: #{generator_forward_pallas.33} parent=5 // pred_region
      %s162 = ssub.s32 %s9, 1
      %p163 = scmp.lt.s32.totalorder %s18, 1
      %s164 = scalar_select %p163, %s18, 1
      %p165 = scmp.lt.s32.totalorder %s19, 0
      %s166 = scalar_select %p165, %s19, 0
      %s167 = smul.addr %s166, 2
      %s168 = smul.addr %s164, 2
      %s169 = sadd.s32 %s167, %s168
      %s170 = smul.addr %s169, 4
      %s171 = scalar_lea.vmem %s0, %s170
      %p172 = pneg %p49
      %p173 = pneg %p46
      %p174 = pneg %p70
      %p175 = pneg %p67
      %p176 = pneg %p91
      %p177 = pneg %p88
      %p178 = pneg %p119
      %p179 = pneg %p116
      %p180 = scmp.lt.s32.totalorder %s18, 1
      %s181 = scalar_select %p180, %s18, 1
      %p182 = scmp.lt.s32.totalorder %s19, 0
      %s183 = scalar_select %p182, %s19, 0
      %s184 = smul.addr %s181, 2
      %s185 = sadd.s32 %s183, %s184
      %s186 = smul.addr %s185, 4
      %s187 = scalar_lea.vmem %s3, %s186
      %p188 = scmp.lt.s32.totalorder %s18, 1
      %s189 = scalar_select %p188, %s18, 1
      %p190 = scmp.lt.s32.totalorder %s19, 0
      %s191 = scalar_select %p190, %s19, 0
      %s192 = smul.addr %s191, 2
      %s193 = smul.addr %s189, 2
      %s194 = sadd.s32 %s192, %s193
      %s195 = smul.addr %s194, 4
      %s196 = scalar_lea.vmem %s0, %s195
      %p197 = scmp.lt.s32.totalorder %s18, 1
      %s198 = scalar_select %p197, %s18, 1
      %p199 = scmp.lt.s32.totalorder %s19, 0
      %s200 = scalar_select %p199, %s19, 0
      %s201 = smul.addr %s198, 2
      %s202 = sadd.s32 %s200, %s201
      %s203 = smul.addr %s202, 4
      %s204 = scalar_lea.vmem %s3, %s203
      %v207 = vld [vmem:[%s196] sm:$0xf]
      %v208 = vld [vmem:[%s196 + $0x4] sm:$0xf]
      %vm209 = vcmp.ge.bf16.partialorder %v207, 0
      %vm210 = vcmp.ge.bf16.partialorder %v208, 0
      %v211 = vmul.bf16 %v207, 1036860877
      %v212 = vmul.bf16 %v208, 1036860877
      %v213 = vsel %vm209, %v207, %v211
      %v214 = vsel %vm210, %v208, %v212
      %v217 = vunpack.c.l.b16 %v213
      %v218 = vunpack.c.l.b16 %v214
      %v219 = vpack.c.b16 %v218, %v217
      %221 = vrot.lane.b32.xlu0 %v219, 127
      %v222 = vpop.permute.xlu0 %221
      %224 = vrot.lane.b32.xlu0 %v219, 126
      %v225 = vpop.permute.xlu0 %224
      %v227 = vld [vmem:[%s1] sm:$0xf]
      %v228 = vld [vmem:[%s1 + $0x4] sm:$0xf]
      %v229 = vld [vmem:[%s2] sm:$0xff]
      %v230 = vld [vmem:[%s2 + $0x8] sm:$0xff]
      %232 = vset.pattern.permute.xlu0 0
      %233 = vperm.xlu0 %232, %v229
      %v234 = vpop.permute.xlu0 %233
      %237 = vset.pattern.permute.xlu0 0
      %238 = vperm.xlu0 %237, %v230
      %v239 = vpop.permute.xlu0 %238
      %v243 = vunpack.c.l.b16 %v227
      %v244 = vunpack.c.l.b16 %v228
      %v245 = vpack.c.b16 %v244, %v243
      %vm246 = vcmask 392192
      %v248 = vsel %vm246, %v245, 0
      %250 = vmatprep.subr.bf16.mxu0 0
      %251 = vmatpush1.bf16.msra.mxu0 0
      %252 = vmatprep.subr.bf16.mxu0 0
      %253 = vmatpush1.bf16.msra.mxu0 0
      %254 = vmatprep.subr.bf16.mxu0 0
      %255 = vmatpush1.bf16.msra.mxu0 0
      %256 = vmatprep.subr.bf16.mxu0 0
      %257 = vmatpush1.bf16.msra.mxu0 0
      %258 = vmatprep.subr.bf16.mxu0 0
      %259 = vmatpush1.bf16.msra.mxu0 0
      %260 = vmatprep.subr.bf16.mxu0 0
      %261 = vmatpush1.bf16.msra.mxu0 %v225
      %262 = vmatprep.subr.bf16.mxu0 0
      %263 = vmatpush1.bf16.msra.mxu0 %v222
      %264 = vmatprep.subr.bf16.mxu0 0
      %265 = vmatpush1.bf16.msra.mxu0 %v219
      %266 = vmatprep.subr.bf16.mxu0 0
      %267 = vmatpush2.bf16.msra.mxu0 0
      %268 = vmatprep.subr.bf16.mxu0 0
      %269 = vmatpush2.bf16.msra.mxu0 0
      %270 = vmatprep.subr.bf16.mxu0 0
      %271 = vmatpush2.bf16.msra.mxu0 0
      %272 = vmatprep.subr.bf16.mxu0 0
      %273 = vmatpush2.bf16.msra.mxu0 0
      %274 = vmatprep.subr.bf16.mxu0 0
      %275 = vmatpush2.bf16.msra.mxu0 0
      %276 = vmatprep.subr.bf16.mxu0 0
      %277 = vmatpush2.bf16.msra.mxu0 0
      %278 = vmatprep.subr.bf16.mxu0 0
      %279 = vmatpush2.bf16.msra.mxu0 0
      %280 = vmatprep.subr.bf16.mxu0 0
      %281 = vmatpush2.bf16.msra.mxu0 0
      %282 = vmatprep.mubr.bf16.mxu0 0
      %283 = vmatmul.mubr.bf16.gmra.mxu0 %v248
      %v284 = vpop.f32.mrf.mxu0
      %v285 = vadd.f32 %v234, %v284
      %v286 = vpop.f32.mrf.mxu0
      %v287 = vpop.f32.mrf.mxu0
      %v288 = vadd.f32 %v239, %v287
      %v289 = vpop.f32.mrf.mxu0
      %290 = vdwg.mxu0
      %v291 = vpack.c.bf16 %v288, %v285
      %v293 = vunpack.c.l.b16 %v291
      %v294 = vunpack.c.h.b16 %v291
      %v295 = vpack.c.b16 %v293, %v293
      %v296 = vpack.c.b16 %v294, %v294
      %vm299 = vcmask 257024
      %300 = vst.msk [vmem:[%s204] sm:$0xf] %vm299, %v295
      %301 = vst.msk [vmem:[%s204 + $0x4] sm:$0xf] %vm299, %v296
      %p302 = scmp.lt.s32.totalorder %s18, 1
      %s303 = scalar_select %p302, %s18, 1
      %p304 = scmp.lt.s32.totalorder %s19, 0
      %s305 = scalar_select %p304, %s19, 0
      %s306 = smul.addr %s303, 2
      %s307 = sadd.s32 %s305, %s306
      %s308 = smul.addr %s307, 4
      %s309 = scalar_lea.vmem %s3, %s308
      // Predicated region
      $region33: #{generator_forward_pallas.33} parent=31 // pred_check
        %p310 = pneg %p116
      $region34: #{generator_forward_pallas.33} parent=31 // pred_check_branch
        %312 = sbr.rel (%p310) target = $region36
      $region35: #{generator_forward_pallas.33} parent=31 // pred_region
        _
      $region36: #{generator_forward_pallas.33} parent=31 // pred_fallthru
        _
    $region32: #{generator_forward_pallas.33} parent=5 // pred_fallthru
      _
    %p313 = scmp.le.s32.totalorder 2, %s9
    // Predicated region
    $region37: #{generator_forward_pallas.33} parent=5 // pred_check
      %p314 = pneg %p313
    $region38: #{generator_forward_pallas.33} parent=5 // pred_check_branch
      %316 = sbr.rel (%p314) target = $region40
    $region39: #{generator_forward_pallas.33} parent=5 // pred_region
      %s317 = ssub.s32 %s9, 2
      // Predicated region
      $region41: #{generator_forward_pallas.33} parent=39 // pred_check
        %p318 = pneg %p122
      $region42: #{generator_forward_pallas.33} parent=39 // pred_check_branch
        %320 = sbr.rel (%p318) target = $region44
      $region43: #{generator_forward_pallas.33} parent=39 // pred_region
        %p321 = scmp.lt.s32.totalorder %s20, 1
        %s322 = scalar_select %p321, %s20, 1
        %p323 = scmp.lt.s32.totalorder %s21, 0
        %s324 = scalar_select %p323, %s21, 0
        %s325 = smul.addr %s322, 2
        %s326 = sadd.s32 %s324, %s325
        %s327 = smul.addr %s326, 4
        %s328 = scalar_lea.vmem %s3, %s327
      $region44: #{generator_forward_pallas.33} parent=39 // pred_fallthru
        _
    $region40: #{generator_forward_pallas.33} parent=5 // pred_fallthru
      _
  $region6: #{generator_forward_pallas.33} parent=0 // loop_footer
    %s13 = sadd.s32 1, %s9
  $region7: #{generator_forward_pallas.33} parent=0 // loop_footer_branch
    %8 = sbr.rel target = $region3
  $region8: #{generator_forward_pallas.33} parent=0 // loop_exit
    _

// kernel: generator_forward_pallas.39
$region0: #{generator_forward_pallas.39}
  #allocation0 [shape = 'u32[]', space=smem, size = 0x4, offset = 0x4, fixed_abs, tag = 'smem constant byte address 0x4 - core index']
  #allocation1 [shape = 'u32[144,128]{1,0:T(1,128)}', space=vmem, size = 0x12000, scoped, tag = 'internal scratch']
  %s0 = inlined_call_operand.vmem [shape: bf16[2,1,16,36], index: 0, kind: input, shape index: {}]
  %s1 = inlined_call_operand.vmem [shape: bf16[16,80], index: 1, kind: input, shape index: {}]
  %s2 = inlined_call_operand.vmem [shape: f32[16,1], index: 2, kind: input, shape index: {}]
  %s3 = inlined_call_operand.vmem [shape: bf16[2,16,32], index: 3, kind: output, shape index: {}]
  %s4 = sld [smem:[#allocation0]]
  $region45: #{generator_forward_pallas.39} parent=0
    _
  %s6 = ssub.s32 1, %s4
  %s7 = scalar_select 0, %s6, %s4
  loop: start=0, step=1, limit=4
  $region2: #{generator_forward_pallas.39} parent=0 // loop_pre_header
    _
  $region3: #{generator_forward_pallas.39} parent=0 // loop_header
    %s9 = sphi 0, %s13
    %p10 = scmp.ge.s32.totalorder %s9, 4
    %s16 = sphi 0, %s28
    %s17 = sphi 0, %s24
    %s18 = sphi 0, %s16
    %s19 = sphi 0, %s17
    %s20 = sphi 0, %s18
    %s21 = sphi 0, %s19
    %s33 = sphi 0, %s35
    %s36 = sphi 0, %s33
    %s37 = sphi 0, %s36
    %s53 = sphi 0, %s37
    %s57 = sphi 0, %s57
    %s59 = sphi 0, %s57
    %s60 = sphi 0, %s59
    %s74 = sphi 0, %s60
    %s78 = sphi 0, %s78
    %s80 = sphi 0, %s78
    %s81 = sphi 0, %s80
    %s95 = sphi 0, %s81
    %s103 = sphi 0, %s105
    %s106 = sphi 0, %s103
    %s107 = sphi 0, %s106
    %s123 = sphi 0, %s107
  $region4: #{generator_forward_pallas.39} parent=0 // loop_header_branch
    %12 = sbr.rel (%p10) target = $region8
  $region5: #{generator_forward_pallas.39} parent=0 // loop_body
    %s14 = ssub.s32 %s9, 1
    %s15 = ssub.s32 %s9, 2
    %s22 = sadd.s32 1, %s17
    %p23 = scmp.ge.s32.totalorder %s22, 1
    %s24 = scalar_select %p23, 0, %s22
    %s25 = sadd.s32 1, %s16
    %s26 = scalar_select %p23, %s25, %s16
    %p27 = scmp.ge.s32.totalorder %s26, 2
    %s28 = scalar_select %p27, 0, %s26
    %s29 = ssub.s32 %s16, %s28
    %s30 = ssub.s32 %s17, %s24
    %s31 = sor.u32 %s29, %s30
    %p32 = scmp.eq.s32.totalorder %s31, 0
    %s34 = sadd.s32 %s33, 1
    %s35 = scalar_select %p32, %s33, %s34
    %p38 = pneg %p32
    %p39 = scmp.eq.s32.totalorder %s9, 1
    %p40 = por %p38, %p39
    %p41 = scmp.ne.s32.totalorder %s33, %s36
    %p42 = scmp.eq.s32.totalorder %s9, 0
    %p43 = por %p41, %p42
    %p44 = scmp.ne.s32.totalorder %s33, %s36
    %p45 = scmp.eq.s32.totalorder %s14, 1
    %p46 = por %p44, %p45
    %p47 = scmp.ne.s32.totalorder %s36, %s37
    %p48 = scmp.eq.s32.totalorder %s14, 0
    %p49 = por %p47, %p48
    %p50 = scmp.ne.s32.totalorder %s36, %s37
    %p51 = scmp.eq.s32.totalorder %s15, 1
    %p52 = por %p50, %p51
    %p54 = scmp.ne.s32.totalorder %s37, %s53
    %p55 = scmp.eq.s32.totalorder %s15, 0
    %p56 = por %p54, %p55
    %s58 = sadd.s32 %s57, 1
    %p61 = scmp.eq.s32.totalorder %s9, 1
    %p62 = scmp.ne.s32.totalorder %s57, %s59
    %p63 = scmp.eq.s32.totalorder %s9, 0
    %p64 = por %p62, %p63
    %p65 = scmp.ne.s32.totalorder %s57, %s59
    %p66 = scmp.eq.s32.totalorder %s14, 1
    %p67 = por %p65, %p66
    %p68 = scmp.ne.s32.totalorder %s59, %s60
    %p69 = scmp.eq.s32.totalorder %s14, 0
    %p70 = por %p68, %p69
    %p71 = scmp.ne.s32.totalorder %s59, %s60
    %p72 = scmp.eq.s32.totalorder %s15, 1
    %p73 = por %p71, %p72
    %p75 = scmp.ne.s32.totalorder %s60, %s74
    %p76 = scmp.eq.s32.totalorder %s15, 0
    %p77 = por %p75, %p76
    %s79 = sadd.s32 %s78, 1
    %p82 = scmp.eq.s32.totalorder %s9, 1
    %p83 = scmp.ne.s32.totalorder %s78, %s80
    %p84 = scmp.eq.s32.totalorder %s9, 0
    %p85 = por %p83, %p84
    %p86 = scmp.ne.s32.totalorder %s78, %s80
    %p87 = scmp.eq.s32.totalorder %s14, 1
    %p88 = por %p86, %p87
    %p89 = scmp.ne.s32.totalorder %s80, %s81
    %p90 = scmp.eq.s32.totalorder %s14, 0
    %p91 = por %p89, %p90
    %p92 = scmp.ne.s32.totalorder %s80, %s81
    %p93 = scmp.eq.s32.totalorder %s15, 1
    %p94 = por %p92, %p93
    %p96 = scmp.ne.s32.totalorder %s81, %s95
    %p97 = scmp.eq.s32.totalorder %s15, 0
    %p98 = por %p96, %p97
    %s99 = ssub.s32 %s16, %s28
    %s100 = ssub.s32 %s17, %s24
    %s101 = sor.u32 %s99, %s100
    %p102 = scmp.eq.s32.totalorder %s101, 0
    %s104 = sadd.s32 %s103, 1
    %s105 = scalar_select %p102, %s103, %s104
    %p108 = pneg %p102
    %p109 = scmp.eq.s32.totalorder %s9, 1
    %p110 = por %p108, %p109
    %p111 = scmp.ne.s32.totalorder %s103, %s106
    %p112 = scmp.eq.s32.totalorder %s9, 0
    %p113 = por %p111, %p112
    %p114 = scmp.ne.s32.totalorder %s103, %s106
    %p115 = scmp.eq.s32.totalorder %s14, 1
    %p116 = por %p114, %p115
    %p117 = scmp.ne.s32.totalorder %s106, %s107
    %p118 = scmp.eq.s32.totalorder %s14, 0
    %p119 = por %p117, %p118
    %p120 = scmp.ne.s32.totalorder %s106, %s107
    %p121 = scmp.eq.s32.totalorder %s15, 1
    %p122 = por %p120, %p121
    %p124 = scmp.ne.s32.totalorder %s107, %s123
    %p125 = scmp.eq.s32.totalorder %s15, 0
    %p126 = por %p124, %p125
    %p127 = scmp.le.s32.totalorder 1, %s9
    %p128 = scmp.lt.s32.totalorder %s9, 3
    %p129 = pnand %p127, %p128
    %p130 = pneg %p129
    // Predicated region
    $region9: #{generator_forward_pallas.39} parent=5 // pred_check
      _
    $region10: #{generator_forward_pallas.39} parent=5 // pred_check_branch
      %132 = sbr.rel (%p129) target = $region12
    $region11: #{generator_forward_pallas.39} parent=5 // pred_region
      %s133 = ssub.s32 %s9, 1
      // Predicated region
      $region13: #{generator_forward_pallas.39} parent=11 // pred_check
        %p134 = pneg %p70
      $region14: #{generator_forward_pallas.39} parent=11 // pred_check_branch
        %136 = sbr.rel (%p134) target = $region16
      $region15: #{generator_forward_pallas.39} parent=11 // pred_region
        _
      $region16: #{generator_forward_pallas.39} parent=11 // pred_fallthru
        _
      // Predicated region
      $region17: #{generator_forward_pallas.39} parent=11 // pred_check
        %p137 = pneg %p91
      $region18: #{generator_forward_pallas.39} parent=11 // pred_check_branch
        %139 = sbr.rel (%p137) target = $region20
      $region19: #{generator_forward_pallas.39} parent=11 // pred_region
        _
      $region20: #{generator_forward_pallas.39} parent=11 // pred_fallthru
        _
    $region12: #{generator_forward_pallas.39} parent=5 // pred_fallthru
      _
    %p140 = scmp.lt.s32.totalorder %s9, 2
    // Predicated region
    $region21: #{generator_forward_pallas.39} parent=5 // pred_check
      %p141 = pneg %p140
    $region22: #{generator_forward_pallas.39} parent=5 // pred_check_branch
      %143 = sbr.rel (%p141) target = $region24
    $region23: #{generator_forward_pallas.39} parent=5 // pred_region
      // Predicated region
      $region25: #{generator_forward_pallas.39} parent=23 // pred_check
        %p144 = pneg %p43
      $region26: #{generator_forward_pallas.39} parent=23 // pred_check_branch
        %146 = sbr.rel (%p144) target = $region28
      $region27: #{generator_forward_pallas.39} parent=23 // pred_region
        %p147 = scmp.lt.s32.totalorder %s16, 1
        %s148 = scalar_select %p147, %s16, 1
        %p149 = scmp.lt.s32.totalorder %s17, 0
        %s150 = scalar_select %p149, %s17, 0
        %s151 = smul.addr %s150, 2
        %s152 = smul.addr %s148, 2
        %s153 = sadd.s32 %s151, %s152
        %s154 = smul.addr %s153, 4
        %s155 = scalar_lea.vmem %s0, %s154
      $region28: #{generator_forward_pallas.39} parent=23 // pred_fallthru
        _
    $region24: #{generator_forward_pallas.39} parent=5 // pred_fallthru
      _
    %p156 = scmp.le.s32.totalorder 1, %s9
    %p157 = scmp.lt.s32.totalorder %s9, 3
    %p158 = pnand %p156, %p157
    %p159 = pneg %p158
    // Predicated region
    $region29: #{generator_forward_pallas.39} parent=5 // pred_check
      _
    $region30: #{generator_forward_pallas.39} parent=5 // pred_check_branch
      %161 = sbr.rel (%p158) target = $region32
    $region31: #{generator_forward_pallas.39} parent=5 // pred_region
      %s162 = ssub.s32 %s9, 1
      %p163 = scmp.lt.s32.totalorder %s18, 1
      %s164 = scalar_select %p163, %s18, 1
      %p165 = scmp.lt.s32.totalorder %s19, 0
      %s166 = scalar_select %p165, %s19, 0
      %s167 = smul.addr %s166, 2
      %s168 = smul.addr %s164, 2
      %s169 = sadd.s32 %s167, %s168
      %s170 = smul.addr %s169, 4
      %s171 = scalar_lea.vmem %s0, %s170
      %p172 = pneg %p49
      %p173 = pneg %p46
      %p174 = pneg %p70
      %p175 = pneg %p67
      %p176 = pneg %p91
      %p177 = pneg %p88
      %p178 = pneg %p119
      %p179 = pneg %p116
      %p180 = scmp.lt.s32.totalorder %s18, 1
      %s181 = scalar_select %p180, %s18, 1
      %p182 = scmp.lt.s32.totalorder %s19, 0
      %s183 = scalar_select %p182, %s19, 0
      %s184 = smul.addr %s181, 2
      %s185 = sadd.s32 %s183, %s184
      %s186 = smul.addr %s185, 4
      %s187 = scalar_lea.vmem %s3, %s186
      %p188 = scmp.lt.s32.totalorder %s18, 1
      %s189 = scalar_select %p188, %s18, 1
      %p190 = scmp.lt.s32.totalorder %s19, 0
      %s191 = scalar_select %p190, %s19, 0
      %s192 = smul.addr %s191, 2
      %s193 = smul.addr %s189, 2
      %s194 = sadd.s32 %s192, %s193
      %s195 = smul.addr %s194, 4
      %s196 = scalar_lea.vmem %s0, %s195
      %p197 = scmp.lt.s32.totalorder %s18, 1
      %s198 = scalar_select %p197, %s18, 1
      %p199 = scmp.lt.s32.totalorder %s19, 0
      %s200 = scalar_select %p199, %s19, 0
      %s201 = smul.addr %s198, 2
      %s202 = sadd.s32 %s200, %s201
      %s203 = smul.addr %s202, 4
      %s204 = scalar_lea.vmem %s3, %s203
      %v207 = vld [vmem:[%s196] sm:$0xf]
      %v208 = vld [vmem:[%s196 + $0x4] sm:$0xf]
      %vm209 = vcmp.ge.bf16.partialorder %v207, 0
      %vm210 = vcmp.ge.bf16.partialorder %v208, 0
      %v211 = vmul.bf16 %v207, 1036860877
      %v212 = vmul.bf16 %v208, 1036860877
      %v213 = vsel %vm209, %v207, %v211
      %v214 = vsel %vm210, %v208, %v212
      %v217 = vunpack.c.l.b16 %v213
      %v218 = vunpack.c.l.b16 %v214
      %v219 = vpack.c.b16 %v218, %v217
      %221 = vrot.lane.b32.xlu0 %v219, 127
      %v222 = vpop.permute.xlu0 %221
      %224 = vrot.lane.b32.xlu0 %v219, 126
      %v225 = vpop.permute.xlu0 %224
      %227 = vrot.lane.b32.xlu0 %v219, 125
      %v228 = vpop.permute.xlu0 %227
      %230 = vrot.lane.b32.xlu0 %v219, 124
      %v231 = vpop.permute.xlu0 %230
      %v233 = vld [vmem:[%s1] sm:$0xf]
      %v234 = vld [vmem:[%s1 + $0x4] sm:$0xf]
      %v235 = vld [vmem:[%s2] sm:$0xff]
      %v236 = vld [vmem:[%s2 + $0x8] sm:$0xff]
      %238 = vset.pattern.permute.xlu0 0
      %239 = vperm.xlu0 %238, %v235
      %v240 = vpop.permute.xlu0 %239
      %243 = vset.pattern.permute.xlu0 0
      %244 = vperm.xlu0 %243, %v236
      %v245 = vpop.permute.xlu0 %244
      %v249 = vunpack.c.l.b16 %v233
      %v250 = vunpack.c.l.b16 %v234
      %v251 = vpack.c.b16 %v250, %v249
      %vm252 = vcmask 654336
      %v254 = vsel %vm252, %v251, 0
      %256 = vmatprep.subr.bf16.mxu0 0
      %257 = vmatpush1.bf16.msra.mxu0 0
      %258 = vmatprep.subr.bf16.mxu0 0
      %259 = vmatpush1.bf16.msra.mxu0 0
      %260 = vmatprep.subr.bf16.mxu0 0
      %261 = vmatpush1.bf16.msra.mxu0 0
      %262 = vmatprep.subr.bf16.mxu0 0
      %263 = vmatpush1.bf16.msra.mxu0 %v231
      %264 = vmatprep.subr.bf16.mxu0 0
      %265 = vmatpush1.bf16.msra.mxu0 %v228
      %266 = vmatprep.subr.bf16.mxu0 0
      %267 = vmatpush1.bf16.msra.mxu0 %v225
      %268 = vmatprep.subr.bf16.mxu0 0
      %269 = vmatpush1.bf16.msra.mxu0 %v222
      %270 = vmatprep.subr.bf16.mxu0 0
      %271 = vmatpush1.bf16.msra.mxu0 %v219
      %272 = vmatprep.subr.bf16.mxu0 0
      %273 = vmatpush2.bf16.msra.mxu0 0
      %274 = vmatprep.subr.bf16.mxu0 0
      %275 = vmatpush2.bf16.msra.mxu0 0
      %276 = vmatprep.subr.bf16.mxu0 0
      %277 = vmatpush2.bf16.msra.mxu0 0
      %278 = vmatprep.subr.bf16.mxu0 0
      %279 = vmatpush2.bf16.msra.mxu0 0
      %280 = vmatprep.subr.bf16.mxu0 0
      %281 = vmatpush2.bf16.msra.mxu0 0
      %282 = vmatprep.subr.bf16.mxu0 0
      %283 = vmatpush2.bf16.msra.mxu0 0
      %284 = vmatprep.subr.bf16.mxu0 0
      %285 = vmatpush2.bf16.msra.mxu0 0
      %286 = vmatprep.subr.bf16.mxu0 0
      %287 = vmatpush2.bf16.msra.mxu0 0
      %288 = vmatprep.mubr.bf16.mxu0 0
      %289 = vmatmul.mubr.bf16.gmra.mxu0 %v254
      %v290 = vpop.f32.mrf.mxu0
      %v291 = vadd.f32 %v240, %v290
      %v292 = vpop.f32.mrf.mxu0
      %v293 = vpop.f32.mrf.mxu0
      %v294 = vadd.f32 %v245, %v293
      %v295 = vpop.f32.mrf.mxu0
      %296 = vdwg.mxu0
      %v297 = vpack.c.bf16 %v294, %v291
      %v299 = vunpack.c.l.b16 %v297
      %v300 = vunpack.c.h.b16 %v297
      %v301 = vpack.c.b16 %v299, %v299
      %v302 = vpack.c.b16 %v300, %v300
      %vm305 = vcmask 257024
      %306 = vst.msk [vmem:[%s204] sm:$0xf] %vm305, %v301
      %307 = vst.msk [vmem:[%s204 + $0x4] sm:$0xf] %vm305, %v302
      %p308 = scmp.lt.s32.totalorder %s18, 1
      %s309 = scalar_select %p308, %s18, 1
      %p310 = scmp.lt.s32.totalorder %s19, 0
      %s311 = scalar_select %p310, %s19, 0
      %s312 = smul.addr %s309, 2
      %s313 = sadd.s32 %s311, %s312
      %s314 = smul.addr %s313, 4
      %s315 = scalar_lea.vmem %s3, %s314
      // Predicated region
      $region33: #{generator_forward_pallas.39} parent=31 // pred_check
        %p316 = pneg %p116
      $region34: #{generator_forward_pallas.39} parent=31 // pred_check_branch
        %318 = sbr.rel (%p316) target = $region36
      $region35: #{generator_forward_pallas.39} parent=31 // pred_region
        _
      $region36: #{generator_forward_pallas.39} parent=31 // pred_fallthru
        _
    $region32: #{generator_forward_pallas.39} parent=5 // pred_fallthru
      _
    %p319 = scmp.le.s32.totalorder 2, %s9
    // Predicated region
    $region37: #{generator_forward_pallas.39} parent=5 // pred_check
      %p320 = pneg %p319
    $region38: #{generator_forward_pallas.39} parent=5 // pred_check_branch
      %322 = sbr.rel (%p320) target = $region40
    $region39: #{generator_forward_pallas.39} parent=5 // pred_region
      %s323 = ssub.s32 %s9, 2
      // Predicated region
      $region41: #{generator_forward_pallas.39} parent=39 // pred_check
        %p324 = pneg %p122
      $region42: #{generator_forward_pallas.39} parent=39 // pred_check_branch
        %326 = sbr.rel (%p324) target = $region44
      $region43: #{generator_forward_pallas.39} parent=39 // pred_region
        %p327 = scmp.lt.s32.totalorder %s20, 1
        %s328 = scalar_select %p327, %s20, 1
        %p329 = scmp.lt.s32.totalorder %s21, 0
        %s330 = scalar_select %p329, %s21, 0
        %s331 = smul.addr %s328, 2
        %s332 = sadd.s32 %s330, %s331
        %s333 = smul.addr %s332, 4
        %s334 = scalar_lea.vmem %s3, %s333
      $region44: #{generator_forward_pallas.39} parent=39 // pred_fallthru
        _
    $region40: #{generator_forward_pallas.39} parent=5 // pred_fallthru
      _
  $region6: #{generator_forward_pallas.39} parent=0 // loop_footer
    %s13 = sadd.s32 1, %s9
  $region7: #{generator_forward_pallas.39} parent=0 // loop_footer_branch
    %8 = sbr.rel target = $region3
  $region8: #{generator_forward_pallas.39} parent=0 // loop_exit
    _

// kernel: generator_forward_pallas.35
$region0: #{generator_forward_pallas.35}
  #allocation0 [shape = 'u32[]', space=smem, size = 0x4, offset = 0x4, fixed_abs, tag = 'smem constant byte address 0x4 - core index']
  #allocation1 [shape = 'u32[144,128]{1,0:T(1,128)}', space=vmem, size = 0x12000, scoped, tag = 'internal scratch']
  %s0 = inlined_call_operand.vmem [shape: bf16[2,1,16,38], index: 0, kind: input, shape index: {}]
  %s1 = inlined_call_operand.vmem [shape: bf16[16,48], index: 1, kind: input, shape index: {}]
  %s2 = inlined_call_operand.vmem [shape: f32[16,1], index: 2, kind: input, shape index: {}]
  %s3 = inlined_call_operand.vmem [shape: bf16[2,16,32], index: 3, kind: output, shape index: {}]
  %s4 = sld [smem:[#allocation0]]
  $region45: #{generator_forward_pallas.35} parent=0
    _
  %s6 = ssub.s32 1, %s4
  %s7 = scalar_select 0, %s6, %s4
  loop: start=0, step=1, limit=4
  $region2: #{generator_forward_pallas.35} parent=0 // loop_pre_header
    _
  $region3: #{generator_forward_pallas.35} parent=0 // loop_header
    %s9 = sphi 0, %s13
    %p10 = scmp.ge.s32.totalorder %s9, 4
    %s16 = sphi 0, %s28
    %s17 = sphi 0, %s24
    %s18 = sphi 0, %s16
    %s19 = sphi 0, %s17
    %s20 = sphi 0, %s18
    %s21 = sphi 0, %s19
    %s33 = sphi 0, %s35
    %s36 = sphi 0, %s33
    %s37 = sphi 0, %s36
    %s53 = sphi 0, %s37
    %s57 = sphi 0, %s57
    %s59 = sphi 0, %s57
    %s60 = sphi 0, %s59
    %s74 = sphi 0, %s60
    %s78 = sphi 0, %s78
    %s80 = sphi 0, %s78
    %s81 = sphi 0, %s80
    %s95 = sphi 0, %s81
    %s103 = sphi 0, %s105
    %s106 = sphi 0, %s103
    %s107 = sphi 0, %s106
    %s123 = sphi 0, %s107
  $region4: #{generator_forward_pallas.35} parent=0 // loop_header_branch
    %12 = sbr.rel (%p10) target = $region8
  $region5: #{generator_forward_pallas.35} parent=0 // loop_body
    %s14 = ssub.s32 %s9, 1
    %s15 = ssub.s32 %s9, 2
    %s22 = sadd.s32 1, %s17
    %p23 = scmp.ge.s32.totalorder %s22, 1
    %s24 = scalar_select %p23, 0, %s22
    %s25 = sadd.s32 1, %s16
    %s26 = scalar_select %p23, %s25, %s16
    %p27 = scmp.ge.s32.totalorder %s26, 2
    %s28 = scalar_select %p27, 0, %s26
    %s29 = ssub.s32 %s16, %s28
    %s30 = ssub.s32 %s17, %s24
    %s31 = sor.u32 %s29, %s30
    %p32 = scmp.eq.s32.totalorder %s31, 0
    %s34 = sadd.s32 %s33, 1
    %s35 = scalar_select %p32, %s33, %s34
    %p38 = pneg %p32
    %p39 = scmp.eq.s32.totalorder %s9, 1
    %p40 = por %p38, %p39
    %p41 = scmp.ne.s32.totalorder %s33, %s36
    %p42 = scmp.eq.s32.totalorder %s9, 0
    %p43 = por %p41, %p42
    %p44 = scmp.ne.s32.totalorder %s33, %s36
    %p45 = scmp.eq.s32.totalorder %s14, 1
    %p46 = por %p44, %p45
    %p47 = scmp.ne.s32.totalorder %s36, %s37
    %p48 = scmp.eq.s32.totalorder %s14, 0
    %p49 = por %p47, %p48
    %p50 = scmp.ne.s32.totalorder %s36, %s37
    %p51 = scmp.eq.s32.totalorder %s15, 1
    %p52 = por %p50, %p51
    %p54 = scmp.ne.s32.totalorder %s37, %s53
    %p55 = scmp.eq.s32.totalorder %s15, 0
    %p56 = por %p54, %p55
    %s58 = sadd.s32 %s57, 1
    %p61 = scmp.eq.s32.totalorder %s9, 1
    %p62 = scmp.ne.s32.totalorder %s57, %s59
    %p63 = scmp.eq.s32.totalorder %s9, 0
    %p64 = por %p62, %p63
    %p65 = scmp.ne.s32.totalorder %s57, %s59
    %p66 = scmp.eq.s32.totalorder %s14, 1
    %p67 = por %p65, %p66
    %p68 = scmp.ne.s32.totalorder %s59, %s60
    %p69 = scmp.eq.s32.totalorder %s14, 0
    %p70 = por %p68, %p69
    %p71 = scmp.ne.s32.totalorder %s59, %s60
    %p72 = scmp.eq.s32.totalorder %s15, 1
    %p73 = por %p71, %p72
    %p75 = scmp.ne.s32.totalorder %s60, %s74
    %p76 = scmp.eq.s32.totalorder %s15, 0
    %p77 = por %p75, %p76
    %s79 = sadd.s32 %s78, 1
    %p82 = scmp.eq.s32.totalorder %s9, 1
    %p83 = scmp.ne.s32.totalorder %s78, %s80
    %p84 = scmp.eq.s32.totalorder %s9, 0
    %p85 = por %p83, %p84
    %p86 = scmp.ne.s32.totalorder %s78, %s80
    %p87 = scmp.eq.s32.totalorder %s14, 1
    %p88 = por %p86, %p87
    %p89 = scmp.ne.s32.totalorder %s80, %s81
    %p90 = scmp.eq.s32.totalorder %s14, 0
    %p91 = por %p89, %p90
    %p92 = scmp.ne.s32.totalorder %s80, %s81
    %p93 = scmp.eq.s32.totalorder %s15, 1
    %p94 = por %p92, %p93
    %p96 = scmp.ne.s32.totalorder %s81, %s95
    %p97 = scmp.eq.s32.totalorder %s15, 0
    %p98 = por %p96, %p97
    %s99 = ssub.s32 %s16, %s28
    %s100 = ssub.s32 %s17, %s24
    %s101 = sor.u32 %s99, %s100
    %p102 = scmp.eq.s32.totalorder %s101, 0
    %s104 = sadd.s32 %s103, 1
    %s105 = scalar_select %p102, %s103, %s104
    %p108 = pneg %p102
    %p109 = scmp.eq.s32.totalorder %s9, 1
    %p110 = por %p108, %p109
    %p111 = scmp.ne.s32.totalorder %s103, %s106
    %p112 = scmp.eq.s32.totalorder %s9, 0
    %p113 = por %p111, %p112
    %p114 = scmp.ne.s32.totalorder %s103, %s106
    %p115 = scmp.eq.s32.totalorder %s14, 1
    %p116 = por %p114, %p115
    %p117 = scmp.ne.s32.totalorder %s106, %s107
    %p118 = scmp.eq.s32.totalorder %s14, 0
    %p119 = por %p117, %p118
    %p120 = scmp.ne.s32.totalorder %s106, %s107
    %p121 = scmp.eq.s32.totalorder %s15, 1
    %p122 = por %p120, %p121
    %p124 = scmp.ne.s32.totalorder %s107, %s123
    %p125 = scmp.eq.s32.totalorder %s15, 0
    %p126 = por %p124, %p125
    %p127 = scmp.le.s32.totalorder 1, %s9
    %p128 = scmp.lt.s32.totalorder %s9, 3
    %p129 = pnand %p127, %p128
    %p130 = pneg %p129
    // Predicated region
    $region9: #{generator_forward_pallas.35} parent=5 // pred_check
      _
    $region10: #{generator_forward_pallas.35} parent=5 // pred_check_branch
      %132 = sbr.rel (%p129) target = $region12
    $region11: #{generator_forward_pallas.35} parent=5 // pred_region
      %s133 = ssub.s32 %s9, 1
      // Predicated region
      $region13: #{generator_forward_pallas.35} parent=11 // pred_check
        %p134 = pneg %p70
      $region14: #{generator_forward_pallas.35} parent=11 // pred_check_branch
        %136 = sbr.rel (%p134) target = $region16
      $region15: #{generator_forward_pallas.35} parent=11 // pred_region
        _
      $region16: #{generator_forward_pallas.35} parent=11 // pred_fallthru
        _
      // Predicated region
      $region17: #{generator_forward_pallas.35} parent=11 // pred_check
        %p137 = pneg %p91
      $region18: #{generator_forward_pallas.35} parent=11 // pred_check_branch
        %139 = sbr.rel (%p137) target = $region20
      $region19: #{generator_forward_pallas.35} parent=11 // pred_region
        _
      $region20: #{generator_forward_pallas.35} parent=11 // pred_fallthru
        _
    $region12: #{generator_forward_pallas.35} parent=5 // pred_fallthru
      _
    %p140 = scmp.lt.s32.totalorder %s9, 2
    // Predicated region
    $region21: #{generator_forward_pallas.35} parent=5 // pred_check
      %p141 = pneg %p140
    $region22: #{generator_forward_pallas.35} parent=5 // pred_check_branch
      %143 = sbr.rel (%p141) target = $region24
    $region23: #{generator_forward_pallas.35} parent=5 // pred_region
      // Predicated region
      $region25: #{generator_forward_pallas.35} parent=23 // pred_check
        %p144 = pneg %p43
      $region26: #{generator_forward_pallas.35} parent=23 // pred_check_branch
        %146 = sbr.rel (%p144) target = $region28
      $region27: #{generator_forward_pallas.35} parent=23 // pred_region
        %p147 = scmp.lt.s32.totalorder %s16, 1
        %s148 = scalar_select %p147, %s16, 1
        %p149 = scmp.lt.s32.totalorder %s17, 0
        %s150 = scalar_select %p149, %s17, 0
        %s151 = smul.addr %s150, 2
        %s152 = smul.addr %s148, 2
        %s153 = sadd.s32 %s151, %s152
        %s154 = smul.addr %s153, 4
        %s155 = scalar_lea.vmem %s0, %s154
      $region28: #{generator_forward_pallas.35} parent=23 // pred_fallthru
        _
    $region24: #{generator_forward_pallas.35} parent=5 // pred_fallthru
      _
    %p156 = scmp.le.s32.totalorder 1, %s9
    %p157 = scmp.lt.s32.totalorder %s9, 3
    %p158 = pnand %p156, %p157
    %p159 = pneg %p158
    // Predicated region
    $region29: #{generator_forward_pallas.35} parent=5 // pred_check
      _
    $region30: #{generator_forward_pallas.35} parent=5 // pred_check_branch
      %161 = sbr.rel (%p158) target = $region32
    $region31: #{generator_forward_pallas.35} parent=5 // pred_region
      %s162 = ssub.s32 %s9, 1
      %p163 = scmp.lt.s32.totalorder %s18, 1
      %s164 = scalar_select %p163, %s18, 1
      %p165 = scmp.lt.s32.totalorder %s19, 0
      %s166 = scalar_select %p165, %s19, 0
      %s167 = smul.addr %s166, 2
      %s168 = smul.addr %s164, 2
      %s169 = sadd.s32 %s167, %s168
      %s170 = smul.addr %s169, 4
      %s171 = scalar_lea.vmem %s0, %s170
      %p172 = pneg %p49
      %p173 = pneg %p46
      %p174 = pneg %p70
      %p175 = pneg %p67
      %p176 = pneg %p91
      %p177 = pneg %p88
      %p178 = pneg %p119
      %p179 = pneg %p116
      %p180 = scmp.lt.s32.totalorder %s18, 1
      %s181 = scalar_select %p180, %s18, 1
      %p182 = scmp.lt.s32.totalorder %s19, 0
      %s183 = scalar_select %p182, %s19, 0
      %s184 = smul.addr %s181, 2
      %s185 = sadd.s32 %s183, %s184
      %s186 = smul.addr %s185, 4
      %s187 = scalar_lea.vmem %s3, %s186
      %p188 = scmp.lt.s32.totalorder %s18, 1
      %s189 = scalar_select %p188, %s18, 1
      %p190 = scmp.lt.s32.totalorder %s19, 0
      %s191 = scalar_select %p190, %s19, 0
      %s192 = smul.addr %s191, 2
      %s193 = smul.addr %s189, 2
      %s194 = sadd.s32 %s192, %s193
      %s195 = smul.addr %s194, 4
      %s196 = scalar_lea.vmem %s0, %s195
      %p197 = scmp.lt.s32.totalorder %s18, 1
      %s198 = scalar_select %p197, %s18, 1
      %p199 = scmp.lt.s32.totalorder %s19, 0
      %s200 = scalar_select %p199, %s19, 0
      %s201 = smul.addr %s198, 2
      %s202 = sadd.s32 %s200, %s201
      %s203 = smul.addr %s202, 4
      %s204 = scalar_lea.vmem %s3, %s203
      %v207 = vld [vmem:[%s196] sm:$0xf]
      %v208 = vld [vmem:[%s196 + $0x4] sm:$0xf]
      %vm209 = vcmp.ge.bf16.partialorder %v207, 0
      %vm210 = vcmp.ge.bf16.partialorder %v208, 0
      %v211 = vmul.bf16 %v207, 1036860877
      %v212 = vmul.bf16 %v208, 1036860877
      %v213 = vsel %vm209, %v207, %v211
      %v214 = vsel %vm210, %v208, %v212
      %v217 = vunpack.c.l.b16 %v213
      %v218 = vunpack.c.l.b16 %v214
      %v219 = vpack.c.b16 %v218, %v217
      %221 = vrot.lane.b32.xlu0 %v219, 125
      %v222 = vpop.permute.xlu0 %221
      %224 = vrot.lane.b32.xlu0 %v219, 122
      %v225 = vpop.permute.xlu0 %224
      %v227 = vld [vmem:[%s1] sm:$0xf]
      %v228 = vld [vmem:[%s1 + $0x4] sm:$0xf]
      %v229 = vld [vmem:[%s2] sm:$0xff]
      %v230 = vld [vmem:[%s2 + $0x8] sm:$0xff]
      %232 = vset.pattern.permute.xlu0 0
      %233 = vperm.xlu0 %232, %v229
      %v234 = vpop.permute.xlu0 %233
      %237 = vset.pattern.permute.xlu0 0
      %238 = vperm.xlu0 %237, %v230
      %v239 = vpop.permute.xlu0 %238
      %v243 = vunpack.c.l.b16 %v227
      %v244 = vunpack.c.l.b16 %v228
      %v245 = vpack.c.b16 %v244, %v243
      %vm246 = vcmask 392192
      %v248 = vsel %vm246, %v245, 0
      %250 = vmatprep.subr.bf16.mxu0 0
      %251 = vmatpush1.bf16.msra.mxu0 0
      %252 = vmatprep.subr.bf16.mxu0 0
      %253 = vmatpush1.bf16.msra.mxu0 0
      %254 = vmatprep.subr.bf16.mxu0 0
      %255 = vmatpush1.bf16.msra.mxu0 0
      %256 = vmatprep.subr.bf16.mxu0 0
      %257 = vmatpush1.bf16.msra.mxu0 0
      %258 = vmatprep.subr.bf16.mxu0 0
      %259 = vmatpush1.bf16.msra.mxu0 0
      %260 = vmatprep.subr.bf16.mxu0 0
      %261 = vmatpush1.bf16.msra.mxu0 %v225
      %262 = vmatprep.subr.bf16.mxu0 0
      %263 = vmatpush1.bf16.msra.mxu0 %v222
      %264 = vmatprep.subr.bf16.mxu0 0
      %265 = vmatpush1.bf16.msra.mxu0 %v219
      %266 = vmatprep.subr.bf16.mxu0 0
      %267 = vmatpush2.bf16.msra.mxu0 0
      %268 = vmatprep.subr.bf16.mxu0 0
      %269 = vmatpush2.bf16.msra.mxu0 0
      %270 = vmatprep.subr.bf16.mxu0 0
      %271 = vmatpush2.bf16.msra.mxu0 0
      %272 = vmatprep.subr.bf16.mxu0 0
      %273 = vmatpush2.bf16.msra.mxu0 0
      %274 = vmatprep.subr.bf16.mxu0 0
      %275 = vmatpush2.bf16.msra.mxu0 0
      %276 = vmatprep.subr.bf16.mxu0 0
      %277 = vmatpush2.bf16.msra.mxu0 0
      %278 = vmatprep.subr.bf16.mxu0 0
      %279 = vmatpush2.bf16.msra.mxu0 0
      %280 = vmatprep.subr.bf16.mxu0 0
      %281 = vmatpush2.bf16.msra.mxu0 0
      %282 = vmatprep.mubr.bf16.mxu0 0
      %283 = vmatmul.mubr.bf16.gmra.mxu0 %v248
      %v284 = vpop.f32.mrf.mxu0
      %v285 = vadd.f32 %v234, %v284
      %v286 = vpop.f32.mrf.mxu0
      %v287 = vpop.f32.mrf.mxu0
      %v288 = vadd.f32 %v239, %v287
      %v289 = vpop.f32.mrf.mxu0
      %290 = vdwg.mxu0
      %v291 = vpack.c.bf16 %v288, %v285
      %v293 = vunpack.c.l.b16 %v291
      %v294 = vunpack.c.h.b16 %v291
      %v295 = vpack.c.b16 %v293, %v293
      %v296 = vpack.c.b16 %v294, %v294
      %vm299 = vcmask 257024
      %300 = vst.msk [vmem:[%s204] sm:$0xf] %vm299, %v295
      %301 = vst.msk [vmem:[%s204 + $0x4] sm:$0xf] %vm299, %v296
      %p302 = scmp.lt.s32.totalorder %s18, 1
      %s303 = scalar_select %p302, %s18, 1
      %p304 = scmp.lt.s32.totalorder %s19, 0
      %s305 = scalar_select %p304, %s19, 0
      %s306 = smul.addr %s303, 2
      %s307 = sadd.s32 %s305, %s306
      %s308 = smul.addr %s307, 4
      %s309 = scalar_lea.vmem %s3, %s308
      // Predicated region
      $region33: #{generator_forward_pallas.35} parent=31 // pred_check
        %p310 = pneg %p116
      $region34: #{generator_forward_pallas.35} parent=31 // pred_check_branch
        %312 = sbr.rel (%p310) target = $region36
      $region35: #{generator_forward_pallas.35} parent=31 // pred_region
        _
      $region36: #{generator_forward_pallas.35} parent=31 // pred_fallthru
        _
    $region32: #{generator_forward_pallas.35} parent=5 // pred_fallthru
      _
    %p313 = scmp.le.s32.totalorder 2, %s9
    // Predicated region
    $region37: #{generator_forward_pallas.35} parent=5 // pred_check
      %p314 = pneg %p313
    $region38: #{generator_forward_pallas.35} parent=5 // pred_check_branch
      %316 = sbr.rel (%p314) target = $region40
    $region39: #{generator_forward_pallas.35} parent=5 // pred_region
      %s317 = ssub.s32 %s9, 2
      // Predicated region
      $region41: #{generator_forward_pallas.35} parent=39 // pred_check
        %p318 = pneg %p122
      $region42: #{generator_forward_pallas.35} parent=39 // pred_check_branch
        %320 = sbr.rel (%p318) target = $region44
      $region43: #{generator_forward_pallas.35} parent=39 // pred_region
        %p321 = scmp.lt.s32.totalorder %s20, 1
        %s322 = scalar_select %p321, %s20, 1
        %p323 = scmp.lt.s32.totalorder %s21, 0
        %s324 = scalar_select %p323, %s21, 0
        %s325 = smul.addr %s322, 2
        %s326 = sadd.s32 %s324, %s325
        %s327 = smul.addr %s326, 4
        %s328 = scalar_lea.vmem %s3, %s327
      $region44: #{generator_forward_pallas.35} parent=39 // pred_fallthru
        _
    $region40: #{generator_forward_pallas.35} parent=5 // pred_fallthru
      _
  $region6: #{generator_forward_pallas.35} parent=0 // loop_footer
    %s13 = sadd.s32 1, %s9
  $region7: #{generator_forward_pallas.35} parent=0 // loop_footer_branch
    %8 = sbr.rel target = $region3
  $region8: #{generator_forward_pallas.35} parent=0 // loop_exit
    _

// kernel: generator_forward_pallas.37
$region0: #{generator_forward_pallas.37}
  #allocation0 [shape = 'u32[]', space=smem, size = 0x4, offset = 0x4, fixed_abs, tag = 'smem constant byte address 0x4 - core index']
  #allocation1 [shape = 'u32[144,128]{1,0:T(1,128)}', space=vmem, size = 0x12000, scoped, tag = 'internal scratch']
  %s0 = inlined_call_operand.vmem [shape: bf16[2,1,16,42], index: 0, kind: input, shape index: {}]
  %s1 = inlined_call_operand.vmem [shape: bf16[16,48], index: 1, kind: input, shape index: {}]
  %s2 = inlined_call_operand.vmem [shape: f32[16,1], index: 2, kind: input, shape index: {}]
  %s3 = inlined_call_operand.vmem [shape: bf16[2,16,32], index: 3, kind: output, shape index: {}]
  %s4 = sld [smem:[#allocation0]]
  $region45: #{generator_forward_pallas.37} parent=0
    _
  %s6 = ssub.s32 1, %s4
  %s7 = scalar_select 0, %s6, %s4
  loop: start=0, step=1, limit=4
  $region2: #{generator_forward_pallas.37} parent=0 // loop_pre_header
    _
  $region3: #{generator_forward_pallas.37} parent=0 // loop_header
    %s9 = sphi 0, %s13
    %p10 = scmp.ge.s32.totalorder %s9, 4
    %s16 = sphi 0, %s28
    %s17 = sphi 0, %s24
    %s18 = sphi 0, %s16
    %s19 = sphi 0, %s17
    %s20 = sphi 0, %s18
    %s21 = sphi 0, %s19
    %s33 = sphi 0, %s35
    %s36 = sphi 0, %s33
    %s37 = sphi 0, %s36
    %s53 = sphi 0, %s37
    %s57 = sphi 0, %s57
    %s59 = sphi 0, %s57
    %s60 = sphi 0, %s59
    %s74 = sphi 0, %s60
    %s78 = sphi 0, %s78
    %s80 = sphi 0, %s78
    %s81 = sphi 0, %s80
    %s95 = sphi 0, %s81
    %s103 = sphi 0, %s105
    %s106 = sphi 0, %s103
    %s107 = sphi 0, %s106
    %s123 = sphi 0, %s107
  $region4: #{generator_forward_pallas.37} parent=0 // loop_header_branch
    %12 = sbr.rel (%p10) target = $region8
  $region5: #{generator_forward_pallas.37} parent=0 // loop_body
    %s14 = ssub.s32 %s9, 1
    %s15 = ssub.s32 %s9, 2
    %s22 = sadd.s32 1, %s17
    %p23 = scmp.ge.s32.totalorder %s22, 1
    %s24 = scalar_select %p23, 0, %s22
    %s25 = sadd.s32 1, %s16
    %s26 = scalar_select %p23, %s25, %s16
    %p27 = scmp.ge.s32.totalorder %s26, 2
    %s28 = scalar_select %p27, 0, %s26
    %s29 = ssub.s32 %s16, %s28
    %s30 = ssub.s32 %s17, %s24
    %s31 = sor.u32 %s29, %s30
    %p32 = scmp.eq.s32.totalorder %s31, 0
    %s34 = sadd.s32 %s33, 1
    %s35 = scalar_select %p32, %s33, %s34
    %p38 = pneg %p32
    %p39 = scmp.eq.s32.totalorder %s9, 1
    %p40 = por %p38, %p39
    %p41 = scmp.ne.s32.totalorder %s33, %s36
    %p42 = scmp.eq.s32.totalorder %s9, 0
    %p43 = por %p41, %p42
    %p44 = scmp.ne.s32.totalorder %s33, %s36
    %p45 = scmp.eq.s32.totalorder %s14, 1
    %p46 = por %p44, %p45
    %p47 = scmp.ne.s32.totalorder %s36, %s37
    %p48 = scmp.eq.s32.totalorder %s14, 0
    %p49 = por %p47, %p48
    %p50 = scmp.ne.s32.totalorder %s36, %s37
    %p51 = scmp.eq.s32.totalorder %s15, 1
    %p52 = por %p50, %p51
    %p54 = scmp.ne.s32.totalorder %s37, %s53
    %p55 = scmp.eq.s32.totalorder %s15, 0
    %p56 = por %p54, %p55
    %s58 = sadd.s32 %s57, 1
    %p61 = scmp.eq.s32.totalorder %s9, 1
    %p62 = scmp.ne.s32.totalorder %s57, %s59
    %p63 = scmp.eq.s32.totalorder %s9, 0
    %p64 = por %p62, %p63
    %p65 = scmp.ne.s32.totalorder %s57, %s59
    %p66 = scmp.eq.s32.totalorder %s14, 1
    %p67 = por %p65, %p66
    %p68 = scmp.ne.s32.totalorder %s59, %s60
    %p69 = scmp.eq.s32.totalorder %s14, 0
    %p70 = por %p68, %p69
    %p71 = scmp.ne.s32.totalorder %s59, %s60
    %p72 = scmp.eq.s32.totalorder %s15, 1
    %p73 = por %p71, %p72
    %p75 = scmp.ne.s32.totalorder %s60, %s74
    %p76 = scmp.eq.s32.totalorder %s15, 0
    %p77 = por %p75, %p76
    %s79 = sadd.s32 %s78, 1
    %p82 = scmp.eq.s32.totalorder %s9, 1
    %p83 = scmp.ne.s32.totalorder %s78, %s80
    %p84 = scmp.eq.s32.totalorder %s9, 0
    %p85 = por %p83, %p84
    %p86 = scmp.ne.s32.totalorder %s78, %s80
    %p87 = scmp.eq.s32.totalorder %s14, 1
    %p88 = por %p86, %p87
    %p89 = scmp.ne.s32.totalorder %s80, %s81
    %p90 = scmp.eq.s32.totalorder %s14, 0
    %p91 = por %p89, %p90
    %p92 = scmp.ne.s32.totalorder %s80, %s81
    %p93 = scmp.eq.s32.totalorder %s15, 1
    %p94 = por %p92, %p93
    %p96 = scmp.ne.s32.totalorder %s81, %s95
    %p97 = scmp.eq.s32.totalorder %s15, 0
    %p98 = por %p96, %p97
    %s99 = ssub.s32 %s16, %s28
    %s100 = ssub.s32 %s17, %s24
    %s101 = sor.u32 %s99, %s100
    %p102 = scmp.eq.s32.totalorder %s101, 0
    %s104 = sadd.s32 %s103, 1
    %s105 = scalar_select %p102, %s103, %s104
    %p108 = pneg %p102
    %p109 = scmp.eq.s32.totalorder %s9, 1
    %p110 = por %p108, %p109
    %p111 = scmp.ne.s32.totalorder %s103, %s106
    %p112 = scmp.eq.s32.totalorder %s9, 0
    %p113 = por %p111, %p112
    %p114 = scmp.ne.s32.totalorder %s103, %s106
    %p115 = scmp.eq.s32.totalorder %s14, 1
    %p116 = por %p114, %p115
    %p117 = scmp.ne.s32.totalorder %s106, %s107
    %p118 = scmp.eq.s32.totalorder %s14, 0
    %p119 = por %p117, %p118
    %p120 = scmp.ne.s32.totalorder %s106, %s107
    %p121 = scmp.eq.s32.totalorder %s15, 1
    %p122 = por %p120, %p121
    %p124 = scmp.ne.s32.totalorder %s107, %s123
    %p125 = scmp.eq.s32.totalorder %s15, 0
    %p126 = por %p124, %p125
    %p127 = scmp.le.s32.totalorder 1, %s9
    %p128 = scmp.lt.s32.totalorder %s9, 3
    %p129 = pnand %p127, %p128
    %p130 = pneg %p129
    // Predicated region
    $region9: #{generator_forward_pallas.37} parent=5 // pred_check
      _
    $region10: #{generator_forward_pallas.37} parent=5 // pred_check_branch
      %132 = sbr.rel (%p129) target = $region12
    $region11: #{generator_forward_pallas.37} parent=5 // pred_region
      %s133 = ssub.s32 %s9, 1
      // Predicated region
      $region13: #{generator_forward_pallas.37} parent=11 // pred_check
        %p134 = pneg %p70
      $region14: #{generator_forward_pallas.37} parent=11 // pred_check_branch
        %136 = sbr.rel (%p134) target = $region16
      $region15: #{generator_forward_pallas.37} parent=11 // pred_region
        _
      $region16: #{generator_forward_pallas.37} parent=11 // pred_fallthru
        _
      // Predicated region
      $region17: #{generator_forward_pallas.37} parent=11 // pred_check
        %p137 = pneg %p91
      $region18: #{generator_forward_pallas.37} parent=11 // pred_check_branch
        %139 = sbr.rel (%p137) target = $region20
      $region19: #{generator_forward_pallas.37} parent=11 // pred_region
        _
      $region20: #{generator_forward_pallas.37} parent=11 // pred_fallthru
        _
    $region12: #{generator_forward_pallas.37} parent=5 // pred_fallthru
      _
    %p140 = scmp.lt.s32.totalorder %s9, 2
    // Predicated region
    $region21: #{generator_forward_pallas.37} parent=5 // pred_check
      %p141 = pneg %p140
    $region22: #{generator_forward_pallas.37} parent=5 // pred_check_branch
      %143 = sbr.rel (%p141) target = $region24
    $region23: #{generator_forward_pallas.37} parent=5 // pred_region
      // Predicated region
      $region25: #{generator_forward_pallas.37} parent=23 // pred_check
        %p144 = pneg %p43
      $region26: #{generator_forward_pallas.37} parent=23 // pred_check_branch
        %146 = sbr.rel (%p144) target = $region28
      $region27: #{generator_forward_pallas.37} parent=23 // pred_region
        %p147 = scmp.lt.s32.totalorder %s16, 1
        %s148 = scalar_select %p147, %s16, 1
        %p149 = scmp.lt.s32.totalorder %s17, 0
        %s150 = scalar_select %p149, %s17, 0
        %s151 = smul.addr %s150, 2
        %s152 = smul.addr %s148, 2
        %s153 = sadd.s32 %s151, %s152
        %s154 = smul.addr %s153, 4
        %s155 = scalar_lea.vmem %s0, %s154
      $region28: #{generator_forward_pallas.37} parent=23 // pred_fallthru
        _
    $region24: #{generator_forward_pallas.37} parent=5 // pred_fallthru
      _
    %p156 = scmp.le.s32.totalorder 1, %s9
    %p157 = scmp.lt.s32.totalorder %s9, 3
    %p158 = pnand %p156, %p157
    %p159 = pneg %p158
    // Predicated region
    $region29: #{generator_forward_pallas.37} parent=5 // pred_check
      _
    $region30: #{generator_forward_pallas.37} parent=5 // pred_check_branch
      %161 = sbr.rel (%p158) target = $region32
    $region31: #{generator_forward_pallas.37} parent=5 // pred_region
      %s162 = ssub.s32 %s9, 1
      %p163 = scmp.lt.s32.totalorder %s18, 1
      %s164 = scalar_select %p163, %s18, 1
      %p165 = scmp.lt.s32.totalorder %s19, 0
      %s166 = scalar_select %p165, %s19, 0
      %s167 = smul.addr %s166, 2
      %s168 = smul.addr %s164, 2
      %s169 = sadd.s32 %s167, %s168
      %s170 = smul.addr %s169, 4
      %s171 = scalar_lea.vmem %s0, %s170
      %p172 = pneg %p49
      %p173 = pneg %p46
      %p174 = pneg %p70
      %p175 = pneg %p67
      %p176 = pneg %p91
      %p177 = pneg %p88
      %p178 = pneg %p119
      %p179 = pneg %p116
      %p180 = scmp.lt.s32.totalorder %s18, 1
      %s181 = scalar_select %p180, %s18, 1
      %p182 = scmp.lt.s32.totalorder %s19, 0
      %s183 = scalar_select %p182, %s19, 0
      %s184 = smul.addr %s181, 2
      %s185 = sadd.s32 %s183, %s184
      %s186 = smul.addr %s185, 4
      %s187 = scalar_lea.vmem %s3, %s186
      %p188 = scmp.lt.s32.totalorder %s18, 1
      %s189 = scalar_select %p188, %s18, 1
      %p190 = scmp.lt.s32.totalorder %s19, 0
      %s191 = scalar_select %p190, %s19, 0
      %s192 = smul.addr %s191, 2
      %s193 = smul.addr %s189, 2
      %s194 = sadd.s32 %s192, %s193
      %s195 = smul.addr %s194, 4
      %s196 = scalar_lea.vmem %s0, %s195
      %p197 = scmp.lt.s32.totalorder %s18, 1
      %s198 = scalar_select %p197, %s18, 1
      %p199 = scmp.lt.s32.totalorder %s19, 0
      %s200 = scalar_select %p199, %s19, 0
      %s201 = smul.addr %s198, 2
      %s202 = sadd.s32 %s200, %s201
      %s203 = smul.addr %s202, 4
      %s204 = scalar_lea.vmem %s3, %s203
      %v207 = vld [vmem:[%s196] sm:$0xf]
      %v208 = vld [vmem:[%s196 + $0x4] sm:$0xf]
      %vm209 = vcmp.ge.bf16.partialorder %v207, 0
      %vm210 = vcmp.ge.bf16.partialorder %v208, 0
      %v211 = vmul.bf16 %v207, 1036860877
      %v212 = vmul.bf16 %v208, 1036860877
      %v213 = vsel %vm209, %v207, %v211
      %v214 = vsel %vm210, %v208, %v212
      %v217 = vunpack.c.l.b16 %v213
      %v218 = vunpack.c.l.b16 %v214
      %v219 = vpack.c.b16 %v218, %v217
      %221 = vrot.lane.b32.xlu0 %v219, 123
      %v222 = vpop.permute.xlu0 %221
      %224 = vrot.lane.b32.xlu0 %v219, 118
      %v225 = vpop.permute.xlu0 %224
      %v227 = vld [vmem:[%s1] sm:$0xf]
      %v228 = vld [vmem:[%s1 + $0x4] sm:$0xf]
      %v229 = vld [vmem:[%s2] sm:$0xff]
      %v230 = vld [vmem:[%s2 + $0x8] sm:$0xff]
      %232 = vset.pattern.permute.xlu0 0
      %233 = vperm.xlu0 %232, %v229
      %v234 = vpop.permute.xlu0 %233
      %237 = vset.pattern.permute.xlu0 0
      %238 = vperm.xlu0 %237, %v230
      %v239 = vpop.permute.xlu0 %238
      %v243 = vunpack.c.l.b16 %v227
      %v244 = vunpack.c.l.b16 %v228
      %v245 = vpack.c.b16 %v244, %v243
      %vm246 = vcmask 392192
      %v248 = vsel %vm246, %v245, 0
      %250 = vmatprep.subr.bf16.mxu0 0
      %251 = vmatpush1.bf16.msra.mxu0 0
      %252 = vmatprep.subr.bf16.mxu0 0
      %253 = vmatpush1.bf16.msra.mxu0 0
      %254 = vmatprep.subr.bf16.mxu0 0
      %255 = vmatpush1.bf16.msra.mxu0 0
      %256 = vmatprep.subr.bf16.mxu0 0
      %257 = vmatpush1.bf16.msra.mxu0 0
      %258 = vmatprep.subr.bf16.mxu0 0
      %259 = vmatpush1.bf16.msra.mxu0 0
      %260 = vmatprep.subr.bf16.mxu0 0
      %261 = vmatpush1.bf16.msra.mxu0 %v225
      %262 = vmatprep.subr.bf16.mxu0 0
      %263 = vmatpush1.bf16.msra.mxu0 %v222
      %264 = vmatprep.subr.bf16.mxu0 0
      %265 = vmatpush1.bf16.msra.mxu0 %v219
      %266 = vmatprep.subr.bf16.mxu0 0
      %267 = vmatpush2.bf16.msra.mxu0 0
      %268 = vmatprep.subr.bf16.mxu0 0
      %269 = vmatpush2.bf16.msra.mxu0 0
      %270 = vmatprep.subr.bf16.mxu0 0
      %271 = vmatpush2.bf16.msra.mxu0 0
      %272 = vmatprep.subr.bf16.mxu0 0
      %273 = vmatpush2.bf16.msra.mxu0 0
      %274 = vmatprep.subr.bf16.mxu0 0
      %275 = vmatpush2.bf16.msra.mxu0 0
      %276 = vmatprep.subr.bf16.mxu0 0
      %277 = vmatpush2.bf16.msra.mxu0 0
      %278 = vmatprep.subr.bf16.mxu0 0
      %279 = vmatpush2.bf16.msra.mxu0 0
      %280 = vmatprep.subr.bf16.mxu0 0
      %281 = vmatpush2.bf16.msra.mxu0 0
      %282 = vmatprep.mubr.bf16.mxu0 0
      %283 = vmatmul.mubr.bf16.gmra.mxu0 %v248
      %v284 = vpop.f32.mrf.mxu0
      %v285 = vadd.f32 %v234, %v284
      %v286 = vpop.f32.mrf.mxu0
      %v287 = vpop.f32.mrf.mxu0
      %v288 = vadd.f32 %v239, %v287
      %v289 = vpop.f32.mrf.mxu0
      %290 = vdwg.mxu0
      %v291 = vpack.c.bf16 %v288, %v285
      %v293 = vunpack.c.l.b16 %v291
      %v294 = vunpack.c.h.b16 %v291
      %v295 = vpack.c.b16 %v293, %v293
      %v296 = vpack.c.b16 %v294, %v294
      %vm299 = vcmask 257024
      %300 = vst.msk [vmem:[%s204] sm:$0xf] %vm299, %v295
      %301 = vst.msk [vmem:[%s204 + $0x4] sm:$0xf] %vm299, %v296
      %p302 = scmp.lt.s32.totalorder %s18, 1
      %s303 = scalar_select %p302, %s18, 1
      %p304 = scmp.lt.s32.totalorder %s19, 0
      %s305 = scalar_select %p304, %s19, 0
      %s306 = smul.addr %s303, 2
      %s307 = sadd.s32 %s305, %s306
      %s308 = smul.addr %s307, 4
      %s309 = scalar_lea.vmem %s3, %s308
      // Predicated region
      $region33: #{generator_forward_pallas.37} parent=31 // pred_check
        %p310 = pneg %p116
      $region34: #{generator_forward_pallas.37} parent=31 // pred_check_branch
        %312 = sbr.rel (%p310) target = $region36
      $region35: #{generator_forward_pallas.37} parent=31 // pred_region
        _
      $region36: #{generator_forward_pallas.37} parent=31 // pred_fallthru
        _
    $region32: #{generator_forward_pallas.37} parent=5 // pred_fallthru
      _
    %p313 = scmp.le.s32.totalorder 2, %s9
    // Predicated region
    $region37: #{generator_forward_pallas.37} parent=5 // pred_check
      %p314 = pneg %p313
    $region38: #{generator_forward_pallas.37} parent=5 // pred_check_branch
      %316 = sbr.rel (%p314) target = $region40
    $region39: #{generator_forward_pallas.37} parent=5 // pred_region
      %s317 = ssub.s32 %s9, 2
      // Predicated region
      $region41: #{generator_forward_pallas.37} parent=39 // pred_check
        %p318 = pneg %p122
      $region42: #{generator_forward_pallas.37} parent=39 // pred_check_branch
        %320 = sbr.rel (%p318) target = $region44
      $region43: #{generator_forward_pallas.37} parent=39 // pred_region
        %p321 = scmp.lt.s32.totalorder %s20, 1
        %s322 = scalar_select %p321, %s20, 1
        %p323 = scmp.lt.s32.totalorder %s21, 0
        %s324 = scalar_select %p323, %s21, 0
        %s325 = smul.addr %s322, 2
        %s326 = sadd.s32 %s324, %s325
        %s327 = smul.addr %s326, 4
        %s328 = scalar_lea.vmem %s3, %s327
      $region44: #{generator_forward_pallas.37} parent=39 // pred_fallthru
        _
    $region40: #{generator_forward_pallas.37} parent=5 // pred_fallthru
      _
  $region6: #{generator_forward_pallas.37} parent=0 // loop_footer
    %s13 = sadd.s32 1, %s9
  $region7: #{generator_forward_pallas.37} parent=0 // loop_footer_branch
    %8 = sbr.rel target = $region3
  $region8: #{generator_forward_pallas.37} parent=0 // loop_exit
    _

// kernel: generator_forward_pallas.41
$region0: #{generator_forward_pallas.41}
  #allocation0 [shape = 'u32[]', space=smem, size = 0x4, offset = 0x4, fixed_abs, tag = 'smem constant byte address 0x4 - core index']
  #allocation1 [shape = 'u32[144,128]{1,0:T(1,128)}', space=vmem, size = 0x12000, scoped, tag = 'internal scratch']
  %s0 = inlined_call_operand.vmem [shape: bf16[2,1,16,44], index: 0, kind: input, shape index: {}]
  %s1 = inlined_call_operand.vmem [shape: bf16[16,80], index: 1, kind: input, shape index: {}]
  %s2 = inlined_call_operand.vmem [shape: f32[16,1], index: 2, kind: input, shape index: {}]
  %s3 = inlined_call_operand.vmem [shape: bf16[2,16,32], index: 3, kind: output, shape index: {}]
  %s4 = sld [smem:[#allocation0]]
  $region45: #{generator_forward_pallas.41} parent=0
    _
  %s6 = ssub.s32 1, %s4
  %s7 = scalar_select 0, %s6, %s4
  loop: start=0, step=1, limit=4
  $region2: #{generator_forward_pallas.41} parent=0 // loop_pre_header
    _
  $region3: #{generator_forward_pallas.41} parent=0 // loop_header
    %s9 = sphi 0, %s13
    %p10 = scmp.ge.s32.totalorder %s9, 4
    %s16 = sphi 0, %s28
    %s17 = sphi 0, %s24
    %s18 = sphi 0, %s16
    %s19 = sphi 0, %s17
    %s20 = sphi 0, %s18
    %s21 = sphi 0, %s19
    %s33 = sphi 0, %s35
    %s36 = sphi 0, %s33
    %s37 = sphi 0, %s36
    %s53 = sphi 0, %s37
    %s57 = sphi 0, %s57
    %s59 = sphi 0, %s57
    %s60 = sphi 0, %s59
    %s74 = sphi 0, %s60
    %s78 = sphi 0, %s78
    %s80 = sphi 0, %s78
    %s81 = sphi 0, %s80
    %s95 = sphi 0, %s81
    %s103 = sphi 0, %s105
    %s106 = sphi 0, %s103
    %s107 = sphi 0, %s106
    %s123 = sphi 0, %s107
  $region4: #{generator_forward_pallas.41} parent=0 // loop_header_branch
    %12 = sbr.rel (%p10) target = $region8
  $region5: #{generator_forward_pallas.41} parent=0 // loop_body
    %s14 = ssub.s32 %s9, 1
    %s15 = ssub.s32 %s9, 2
    %s22 = sadd.s32 1, %s17
    %p23 = scmp.ge.s32.totalorder %s22, 1
    %s24 = scalar_select %p23, 0, %s22
    %s25 = sadd.s32 1, %s16
    %s26 = scalar_select %p23, %s25, %s16
    %p27 = scmp.ge.s32.totalorder %s26, 2
    %s28 = scalar_select %p27, 0, %s26
    %s29 = ssub.s32 %s16, %s28
    %s30 = ssub.s32 %s17, %s24
    %s31 = sor.u32 %s29, %s30
    %p32 = scmp.eq.s32.totalorder %s31, 0
    %s34 = sadd.s32 %s33, 1
    %s35 = scalar_select %p32, %s33, %s34
    %p38 = pneg %p32
    %p39 = scmp.eq.s32.totalorder %s9, 1
    %p40 = por %p38, %p39
    %p41 = scmp.ne.s32.totalorder %s33, %s36
    %p42 = scmp.eq.s32.totalorder %s9, 0
    %p43 = por %p41, %p42
    %p44 = scmp.ne.s32.totalorder %s33, %s36
    %p45 = scmp.eq.s32.totalorder %s14, 1
    %p46 = por %p44, %p45
    %p47 = scmp.ne.s32.totalorder %s36, %s37
    %p48 = scmp.eq.s32.totalorder %s14, 0
    %p49 = por %p47, %p48
    %p50 = scmp.ne.s32.totalorder %s36, %s37
    %p51 = scmp.eq.s32.totalorder %s15, 1
    %p52 = por %p50, %p51
    %p54 = scmp.ne.s32.totalorder %s37, %s53
    %p55 = scmp.eq.s32.totalorder %s15, 0
    %p56 = por %p54, %p55
    %s58 = sadd.s32 %s57, 1
    %p61 = scmp.eq.s32.totalorder %s9, 1
    %p62 = scmp.ne.s32.totalorder %s57, %s59
    %p63 = scmp.eq.s32.totalorder %s9, 0
    %p64 = por %p62, %p63
    %p65 = scmp.ne.s32.totalorder %s57, %s59
    %p66 = scmp.eq.s32.totalorder %s14, 1
    %p67 = por %p65, %p66
    %p68 = scmp.ne.s32.totalorder %s59, %s60
    %p69 = scmp.eq.s32.totalorder %s14, 0
    %p70 = por %p68, %p69
    %p71 = scmp.ne.s32.totalorder %s59, %s60
    %p72 = scmp.eq.s32.totalorder %s15, 1
    %p73 = por %p71, %p72
    %p75 = scmp.ne.s32.totalorder %s60, %s74
    %p76 = scmp.eq.s32.totalorder %s15, 0
    %p77 = por %p75, %p76
    %s79 = sadd.s32 %s78, 1
    %p82 = scmp.eq.s32.totalorder %s9, 1
    %p83 = scmp.ne.s32.totalorder %s78, %s80
    %p84 = scmp.eq.s32.totalorder %s9, 0
    %p85 = por %p83, %p84
    %p86 = scmp.ne.s32.totalorder %s78, %s80
    %p87 = scmp.eq.s32.totalorder %s14, 1
    %p88 = por %p86, %p87
    %p89 = scmp.ne.s32.totalorder %s80, %s81
    %p90 = scmp.eq.s32.totalorder %s14, 0
    %p91 = por %p89, %p90
    %p92 = scmp.ne.s32.totalorder %s80, %s81
    %p93 = scmp.eq.s32.totalorder %s15, 1
    %p94 = por %p92, %p93
    %p96 = scmp.ne.s32.totalorder %s81, %s95
    %p97 = scmp.eq.s32.totalorder %s15, 0
    %p98 = por %p96, %p97
    %s99 = ssub.s32 %s16, %s28
    %s100 = ssub.s32 %s17, %s24
    %s101 = sor.u32 %s99, %s100
    %p102 = scmp.eq.s32.totalorder %s101, 0
    %s104 = sadd.s32 %s103, 1
    %s105 = scalar_select %p102, %s103, %s104
    %p108 = pneg %p102
    %p109 = scmp.eq.s32.totalorder %s9, 1
    %p110 = por %p108, %p109
    %p111 = scmp.ne.s32.totalorder %s103, %s106
    %p112 = scmp.eq.s32.totalorder %s9, 0
    %p113 = por %p111, %p112
    %p114 = scmp.ne.s32.totalorder %s103, %s106
    %p115 = scmp.eq.s32.totalorder %s14, 1
    %p116 = por %p114, %p115
    %p117 = scmp.ne.s32.totalorder %s106, %s107
    %p118 = scmp.eq.s32.totalorder %s14, 0
    %p119 = por %p117, %p118
    %p120 = scmp.ne.s32.totalorder %s106, %s107
    %p121 = scmp.eq.s32.totalorder %s15, 1
    %p122 = por %p120, %p121
    %p124 = scmp.ne.s32.totalorder %s107, %s123
    %p125 = scmp.eq.s32.totalorder %s15, 0
    %p126 = por %p124, %p125
    %p127 = scmp.le.s32.totalorder 1, %s9
    %p128 = scmp.lt.s32.totalorder %s9, 3
    %p129 = pnand %p127, %p128
    %p130 = pneg %p129
    // Predicated region
    $region9: #{generator_forward_pallas.41} parent=5 // pred_check
      _
    $region10: #{generator_forward_pallas.41} parent=5 // pred_check_branch
      %132 = sbr.rel (%p129) target = $region12
    $region11: #{generator_forward_pallas.41} parent=5 // pred_region
      %s133 = ssub.s32 %s9, 1
      // Predicated region
      $region13: #{generator_forward_pallas.41} parent=11 // pred_check
        %p134 = pneg %p70
      $region14: #{generator_forward_pallas.41} parent=11 // pred_check_branch
        %136 = sbr.rel (%p134) target = $region16
      $region15: #{generator_forward_pallas.41} parent=11 // pred_region
        _
      $region16: #{generator_forward_pallas.41} parent=11 // pred_fallthru
        _
      // Predicated region
      $region17: #{generator_forward_pallas.41} parent=11 // pred_check
        %p137 = pneg %p91
      $region18: #{generator_forward_pallas.41} parent=11 // pred_check_branch
        %139 = sbr.rel (%p137) target = $region20
      $region19: #{generator_forward_pallas.41} parent=11 // pred_region
        _
      $region20: #{generator_forward_pallas.41} parent=11 // pred_fallthru
        _
    $region12: #{generator_forward_pallas.41} parent=5 // pred_fallthru
      _
    %p140 = scmp.lt.s32.totalorder %s9, 2
    // Predicated region
    $region21: #{generator_forward_pallas.41} parent=5 // pred_check
      %p141 = pneg %p140
    $region22: #{generator_forward_pallas.41} parent=5 // pred_check_branch
      %143 = sbr.rel (%p141) target = $region24
    $region23: #{generator_forward_pallas.41} parent=5 // pred_region
      // Predicated region
      $region25: #{generator_forward_pallas.41} parent=23 // pred_check
        %p144 = pneg %p43
      $region26: #{generator_forward_pallas.41} parent=23 // pred_check_branch
        %146 = sbr.rel (%p144) target = $region28
      $region27: #{generator_forward_pallas.41} parent=23 // pred_region
        %p147 = scmp.lt.s32.totalorder %s16, 1
        %s148 = scalar_select %p147, %s16, 1
        %p149 = scmp.lt.s32.totalorder %s17, 0
        %s150 = scalar_select %p149, %s17, 0
        %s151 = smul.addr %s150, 2
        %s152 = smul.addr %s148, 2
        %s153 = sadd.s32 %s151, %s152
        %s154 = smul.addr %s153, 4
        %s155 = scalar_lea.vmem %s0, %s154
      $region28: #{generator_forward_pallas.41} parent=23 // pred_fallthru
        _
    $region24: #{generator_forward_pallas.41} parent=5 // pred_fallthru
      _
    %p156 = scmp.le.s32.totalorder 1, %s9
    %p157 = scmp.lt.s32.totalorder %s9, 3
    %p158 = pnand %p156, %p157
    %p159 = pneg %p158
    // Predicated region
    $region29: #{generator_forward_pallas.41} parent=5 // pred_check
      _
    $region30: #{generator_forward_pallas.41} parent=5 // pred_check_branch
      %161 = sbr.rel (%p158) target = $region32
    $region31: #{generator_forward_pallas.41} parent=5 // pred_region
      %s162 = ssub.s32 %s9, 1
      %p163 = scmp.lt.s32.totalorder %s18, 1
      %s164 = scalar_select %p163, %s18, 1
      %p165 = scmp.lt.s32.totalorder %s19, 0
      %s166 = scalar_select %p165, %s19, 0
      %s167 = smul.addr %s166, 2
      %s168 = smul.addr %s164, 2
      %s169 = sadd.s32 %s167, %s168
      %s170 = smul.addr %s169, 4
      %s171 = scalar_lea.vmem %s0, %s170
      %p172 = pneg %p49
      %p173 = pneg %p46
      %p174 = pneg %p70
      %p175 = pneg %p67
      %p176 = pneg %p91
      %p177 = pneg %p88
      %p178 = pneg %p119
      %p179 = pneg %p116
      %p180 = scmp.lt.s32.totalorder %s18, 1
      %s181 = scalar_select %p180, %s18, 1
      %p182 = scmp.lt.s32.totalorder %s19, 0
      %s183 = scalar_select %p182, %s19, 0
      %s184 = smul.addr %s181, 2
      %s185 = sadd.s32 %s183, %s184
      %s186 = smul.addr %s185, 4
      %s187 = scalar_lea.vmem %s3, %s186
      %p188 = scmp.lt.s32.totalorder %s18, 1
      %s189 = scalar_select %p188, %s18, 1
      %p190 = scmp.lt.s32.totalorder %s19, 0
      %s191 = scalar_select %p190, %s19, 0
      %s192 = smul.addr %s191, 2
      %s193 = smul.addr %s189, 2
      %s194 = sadd.s32 %s192, %s193
      %s195 = smul.addr %s194, 4
      %s196 = scalar_lea.vmem %s0, %s195
      %p197 = scmp.lt.s32.totalorder %s18, 1
      %s198 = scalar_select %p197, %s18, 1
      %p199 = scmp.lt.s32.totalorder %s19, 0
      %s200 = scalar_select %p199, %s19, 0
      %s201 = smul.addr %s198, 2
      %s202 = sadd.s32 %s200, %s201
      %s203 = smul.addr %s202, 4
      %s204 = scalar_lea.vmem %s3, %s203
      %v207 = vld [vmem:[%s196] sm:$0xf]
      %v208 = vld [vmem:[%s196 + $0x4] sm:$0xf]
      %vm209 = vcmp.ge.bf16.partialorder %v207, 0
      %vm210 = vcmp.ge.bf16.partialorder %v208, 0
      %v211 = vmul.bf16 %v207, 1036860877
      %v212 = vmul.bf16 %v208, 1036860877
      %v213 = vsel %vm209, %v207, %v211
      %v214 = vsel %vm210, %v208, %v212
      %v217 = vunpack.c.l.b16 %v213
      %v218 = vunpack.c.l.b16 %v214
      %v219 = vpack.c.b16 %v218, %v217
      %221 = vrot.lane.b32.xlu0 %v219, 125
      %v222 = vpop.permute.xlu0 %221
      %224 = vrot.lane.b32.xlu0 %v219, 122
      %v225 = vpop.permute.xlu0 %224
      %227 = vrot.lane.b32.xlu0 %v219, 119
      %v228 = vpop.permute.xlu0 %227
      %230 = vrot.lane.b32.xlu0 %v219, 116
      %v231 = vpop.permute.xlu0 %230
      %v233 = vld [vmem:[%s1] sm:$0xf]
      %v234 = vld [vmem:[%s1 + $0x4] sm:$0xf]
      %v235 = vld [vmem:[%s2] sm:$0xff]
      %v236 = vld [vmem:[%s2 + $0x8] sm:$0xff]
      %238 = vset.pattern.permute.xlu0 0
      %239 = vperm.xlu0 %238, %v235
      %v240 = vpop.permute.xlu0 %239
      %243 = vset.pattern.permute.xlu0 0
      %244 = vperm.xlu0 %243, %v236
      %v245 = vpop.permute.xlu0 %244
      %v249 = vunpack.c.l.b16 %v233
      %v250 = vunpack.c.l.b16 %v234
      %v251 = vpack.c.b16 %v250, %v249
      %vm252 = vcmask 654336
      %v254 = vsel %vm252, %v251, 0
      %256 = vmatprep.subr.bf16.mxu0 0
      %257 = vmatpush1.bf16.msra.mxu0 0
      %258 = vmatprep.subr.bf16.mxu0 0
      %259 = vmatpush1.bf16.msra.mxu0 0
      %260 = vmatprep.subr.bf16.mxu0 0
      %261 = vmatpush1.bf16.msra.mxu0 0
      %262 = vmatprep.subr.bf16.mxu0 0
      %263 = vmatpush1.bf16.msra.mxu0 %v231
      %264 = vmatprep.subr.bf16.mxu0 0
      %265 = vmatpush1.bf16.msra.mxu0 %v228
      %266 = vmatprep.subr.bf16.mxu0 0
      %267 = vmatpush1.bf16.msra.mxu0 %v225
      %268 = vmatprep.subr.bf16.mxu0 0
      %269 = vmatpush1.bf16.msra.mxu0 %v222
      %270 = vmatprep.subr.bf16.mxu0 0
      %271 = vmatpush1.bf16.msra.mxu0 %v219
      %272 = vmatprep.subr.bf16.mxu0 0
      %273 = vmatpush2.bf16.msra.mxu0 0
      %274 = vmatprep.subr.bf16.mxu0 0
      %275 = vmatpush2.bf16.msra.mxu0 0
      %276 = vmatprep.subr.bf16.mxu0 0
      %277 = vmatpush2.bf16.msra.mxu0 0
      %278 = vmatprep.subr.bf16.mxu0 0
      %279 = vmatpush2.bf16.msra.mxu0 0
      %280 = vmatprep.subr.bf16.mxu0 0
      %281 = vmatpush2.bf16.msra.mxu0 0
      %282 = vmatprep.subr.bf16.mxu0 0
      %283 = vmatpush2.bf16.msra.mxu0 0
      %284 = vmatprep.subr.bf16.mxu0 0
      %285 = vmatpush2.bf16.msra.mxu0 0
      %286 = vmatprep.subr.bf16.mxu0 0
      %287 = vmatpush2.bf16.msra.mxu0 0
      %288 = vmatprep.mubr.bf16.mxu0 0
      %289 = vmatmul.mubr.bf16.gmra.mxu0 %v254
      %v290 = vpop.f32.mrf.mxu0
      %v291 = vadd.f32 %v240, %v290
      %v292 = vpop.f32.mrf.mxu0
      %v293 = vpop.f32.mrf.mxu0
      %v294 = vadd.f32 %v245, %v293
      %v295 = vpop.f32.mrf.mxu0
      %296 = vdwg.mxu0
      %v297 = vpack.c.bf16 %v294, %v291
      %v299 = vunpack.c.l.b16 %v297
      %v300 = vunpack.c.h.b16 %v297
      %v301 = vpack.c.b16 %v299, %v299
      %v302 = vpack.c.b16 %v300, %v300
      %vm305 = vcmask 257024
      %306 = vst.msk [vmem:[%s204] sm:$0xf] %vm305, %v301
      %307 = vst.msk [vmem:[%s204 + $0x4] sm:$0xf] %vm305, %v302
      %p308 = scmp.lt.s32.totalorder %s18, 1
      %s309 = scalar_select %p308, %s18, 1
      %p310 = scmp.lt.s32.totalorder %s19, 0
      %s311 = scalar_select %p310, %s19, 0
      %s312 = smul.addr %s309, 2
      %s313 = sadd.s32 %s311, %s312
      %s314 = smul.addr %s313, 4
      %s315 = scalar_lea.vmem %s3, %s314
      // Predicated region
      $region33: #{generator_forward_pallas.41} parent=31 // pred_check
        %p316 = pneg %p116
      $region34: #{generator_forward_pallas.41} parent=31 // pred_check_branch
        %318 = sbr.rel (%p316) target = $region36
      $region35: #{generator_forward_pallas.41} parent=31 // pred_region
        _
      $region36: #{generator_forward_pallas.41} parent=31 // pred_fallthru
        _
    $region32: #{generator_forward_pallas.41} parent=5 // pred_fallthru
      _
    %p319 = scmp.le.s32.totalorder 2, %s9
    // Predicated region
    $region37: #{generator_forward_pallas.41} parent=5 // pred_check
      %p320 = pneg %p319
    $region38: #{generator_forward_pallas.41} parent=5 // pred_check_branch
      %322 = sbr.rel (%p320) target = $region40
    $region39: #{generator_forward_pallas.41} parent=5 // pred_region
      %s323 = ssub.s32 %s9, 2
      // Predicated region
      $region41: #{generator_forward_pallas.41} parent=39 // pred_check
        %p324 = pneg %p122
      $region42: #{generator_forward_pallas.41} parent=39 // pred_check_branch
        %326 = sbr.rel (%p324) target = $region44
      $region43: #{generator_forward_pallas.41} parent=39 // pred_region
        %p327 = scmp.lt.s32.totalorder %s20, 1
        %s328 = scalar_select %p327, %s20, 1
        %p329 = scmp.lt.s32.totalorder %s21, 0
        %s330 = scalar_select %p329, %s21, 0
        %s331 = smul.addr %s328, 2
        %s332 = sadd.s32 %s330, %s331
        %s333 = smul.addr %s332, 4
        %s334 = scalar_lea.vmem %s3, %s333
      $region44: #{generator_forward_pallas.41} parent=39 // pred_fallthru
        _
    $region40: #{generator_forward_pallas.41} parent=5 // pred_fallthru
      _
  $region6: #{generator_forward_pallas.41} parent=0 // loop_footer
    %s13 = sadd.s32 1, %s9
  $region7: #{generator_forward_pallas.41} parent=0 // loop_footer_branch
    %8 = sbr.rel target = $region3
  $region8: #{generator_forward_pallas.41} parent=0 // loop_exit
    _

// kernel: generator_forward_pallas.43
$region0: #{generator_forward_pallas.43}
  #allocation0 [shape = 'u32[]', space=smem, size = 0x4, offset = 0x4, fixed_abs, tag = 'smem constant byte address 0x4 - core index']
  #allocation1 [shape = 'u32[144,128]{1,0:T(1,128)}', space=vmem, size = 0x12000, scoped, tag = 'internal scratch']
  %s0 = inlined_call_operand.vmem [shape: bf16[2,1,16,52], index: 0, kind: input, shape index: {}]
  %s1 = inlined_call_operand.vmem [shape: bf16[16,80], index: 1, kind: input, shape index: {}]
  %s2 = inlined_call_operand.vmem [shape: f32[16,1], index: 2, kind: input, shape index: {}]
  %s3 = inlined_call_operand.vmem [shape: bf16[2,16,32], index: 3, kind: output, shape index: {}]
  %s4 = sld [smem:[#allocation0]]
  $region45: #{generator_forward_pallas.43} parent=0
    _
  %s6 = ssub.s32 1, %s4
  %s7 = scalar_select 0, %s6, %s4
  loop: start=0, step=1, limit=4
  $region2: #{generator_forward_pallas.43} parent=0 // loop_pre_header
    _
  $region3: #{generator_forward_pallas.43} parent=0 // loop_header
    %s9 = sphi 0, %s13
    %p10 = scmp.ge.s32.totalorder %s9, 4
    %s16 = sphi 0, %s28
    %s17 = sphi 0, %s24
    %s18 = sphi 0, %s16
    %s19 = sphi 0, %s17
    %s20 = sphi 0, %s18
    %s21 = sphi 0, %s19
    %s33 = sphi 0, %s35
    %s36 = sphi 0, %s33
    %s37 = sphi 0, %s36
    %s53 = sphi 0, %s37
    %s57 = sphi 0, %s57
    %s59 = sphi 0, %s57
    %s60 = sphi 0, %s59
    %s74 = sphi 0, %s60
    %s78 = sphi 0, %s78
    %s80 = sphi 0, %s78
    %s81 = sphi 0, %s80
    %s95 = sphi 0, %s81
    %s103 = sphi 0, %s105
    %s106 = sphi 0, %s103
    %s107 = sphi 0, %s106
    %s123 = sphi 0, %s107
  $region4: #{generator_forward_pallas.43} parent=0 // loop_header_branch
    %12 = sbr.rel (%p10) target = $region8
  $region5: #{generator_forward_pallas.43} parent=0 // loop_body
    %s14 = ssub.s32 %s9, 1
    %s15 = ssub.s32 %s9, 2
    %s22 = sadd.s32 1, %s17
    %p23 = scmp.ge.s32.totalorder %s22, 1
    %s24 = scalar_select %p23, 0, %s22
    %s25 = sadd.s32 1, %s16
    %s26 = scalar_select %p23, %s25, %s16
    %p27 = scmp.ge.s32.totalorder %s26, 2
    %s28 = scalar_select %p27, 0, %s26
    %s29 = ssub.s32 %s16, %s28
    %s30 = ssub.s32 %s17, %s24
    %s31 = sor.u32 %s29, %s30
    %p32 = scmp.eq.s32.totalorder %s31, 0
    %s34 = sadd.s32 %s33, 1
    %s35 = scalar_select %p32, %s33, %s34
    %p38 = pneg %p32
    %p39 = scmp.eq.s32.totalorder %s9, 1
    %p40 = por %p38, %p39
    %p41 = scmp.ne.s32.totalorder %s33, %s36
    %p42 = scmp.eq.s32.totalorder %s9, 0
    %p43 = por %p41, %p42
    %p44 = scmp.ne.s32.totalorder %s33, %s36
    %p45 = scmp.eq.s32.totalorder %s14, 1
    %p46 = por %p44, %p45
    %p47 = scmp.ne.s32.totalorder %s36, %s37
    %p48 = scmp.eq.s32.totalorder %s14, 0
    %p49 = por %p47, %p48
    %p50 = scmp.ne.s32.totalorder %s36, %s37
    %p51 = scmp.eq.s32.totalorder %s15, 1
    %p52 = por %p50, %p51
    %p54 = scmp.ne.s32.totalorder %s37, %s53
    %p55 = scmp.eq.s32.totalorder %s15, 0
    %p56 = por %p54, %p55
    %s58 = sadd.s32 %s57, 1
    %p61 = scmp.eq.s32.totalorder %s9, 1
    %p62 = scmp.ne.s32.totalorder %s57, %s59
    %p63 = scmp.eq.s32.totalorder %s9, 0
    %p64 = por %p62, %p63
    %p65 = scmp.ne.s32.totalorder %s57, %s59
    %p66 = scmp.eq.s32.totalorder %s14, 1
    %p67 = por %p65, %p66
    %p68 = scmp.ne.s32.totalorder %s59, %s60
    %p69 = scmp.eq.s32.totalorder %s14, 0
    %p70 = por %p68, %p69
    %p71 = scmp.ne.s32.totalorder %s59, %s60
    %p72 = scmp.eq.s32.totalorder %s15, 1
    %p73 = por %p71, %p72
    %p75 = scmp.ne.s32.totalorder %s60, %s74
    %p76 = scmp.eq.s32.totalorder %s15, 0
    %p77 = por %p75, %p76
    %s79 = sadd.s32 %s78, 1
    %p82 = scmp.eq.s32.totalorder %s9, 1
    %p83 = scmp.ne.s32.totalorder %s78, %s80
    %p84 = scmp.eq.s32.totalorder %s9, 0
    %p85 = por %p83, %p84
    %p86 = scmp.ne.s32.totalorder %s78, %s80
    %p87 = scmp.eq.s32.totalorder %s14, 1
    %p88 = por %p86, %p87
    %p89 = scmp.ne.s32.totalorder %s80, %s81
    %p90 = scmp.eq.s32.totalorder %s14, 0
    %p91 = por %p89, %p90
    %p92 = scmp.ne.s32.totalorder %s80, %s81
    %p93 = scmp.eq.s32.totalorder %s15, 1
    %p94 = por %p92, %p93
    %p96 = scmp.ne.s32.totalorder %s81, %s95
    %p97 = scmp.eq.s32.totalorder %s15, 0
    %p98 = por %p96, %p97
    %s99 = ssub.s32 %s16, %s28
    %s100 = ssub.s32 %s17, %s24
    %s101 = sor.u32 %s99, %s100
    %p102 = scmp.eq.s32.totalorder %s101, 0
    %s104 = sadd.s32 %s103, 1
    %s105 = scalar_select %p102, %s103, %s104
    %p108 = pneg %p102
    %p109 = scmp.eq.s32.totalorder %s9, 1
    %p110 = por %p108, %p109
    %p111 = scmp.ne.s32.totalorder %s103, %s106
    %p112 = scmp.eq.s32.totalorder %s9, 0
    %p113 = por %p111, %p112
    %p114 = scmp.ne.s32.totalorder %s103, %s106
    %p115 = scmp.eq.s32.totalorder %s14, 1
    %p116 = por %p114, %p115
    %p117 = scmp.ne.s32.totalorder %s106, %s107
    %p118 = scmp.eq.s32.totalorder %s14, 0
    %p119 = por %p117, %p118
    %p120 = scmp.ne.s32.totalorder %s106, %s107
    %p121 = scmp.eq.s32.totalorder %s15, 1
    %p122 = por %p120, %p121
    %p124 = scmp.ne.s32.totalorder %s107, %s123
    %p125 = scmp.eq.s32.totalorder %s15, 0
    %p126 = por %p124, %p125
    %p127 = scmp.le.s32.totalorder 1, %s9
    %p128 = scmp.lt.s32.totalorder %s9, 3
    %p129 = pnand %p127, %p128
    %p130 = pneg %p129
    // Predicated region
    $region9: #{generator_forward_pallas.43} parent=5 // pred_check
      _
    $region10: #{generator_forward_pallas.43} parent=5 // pred_check_branch
      %132 = sbr.rel (%p129) target = $region12
    $region11: #{generator_forward_pallas.43} parent=5 // pred_region
      %s133 = ssub.s32 %s9, 1
      // Predicated region
      $region13: #{generator_forward_pallas.43} parent=11 // pred_check
        %p134 = pneg %p70
      $region14: #{generator_forward_pallas.43} parent=11 // pred_check_branch
        %136 = sbr.rel (%p134) target = $region16
      $region15: #{generator_forward_pallas.43} parent=11 // pred_region
        _
      $region16: #{generator_forward_pallas.43} parent=11 // pred_fallthru
        _
      // Predicated region
      $region17: #{generator_forward_pallas.43} parent=11 // pred_check
        %p137 = pneg %p91
      $region18: #{generator_forward_pallas.43} parent=11 // pred_check_branch
        %139 = sbr.rel (%p137) target = $region20
      $region19: #{generator_forward_pallas.43} parent=11 // pred_region
        _
      $region20: #{generator_forward_pallas.43} parent=11 // pred_fallthru
        _
    $region12: #{generator_forward_pallas.43} parent=5 // pred_fallthru
      _
    %p140 = scmp.lt.s32.totalorder %s9, 2
    // Predicated region
    $region21: #{generator_forward_pallas.43} parent=5 // pred_check
      %p141 = pneg %p140
    $region22: #{generator_forward_pallas.43} parent=5 // pred_check_branch
      %143 = sbr.rel (%p141) target = $region24
    $region23: #{generator_forward_pallas.43} parent=5 // pred_region
      // Predicated region
      $region25: #{generator_forward_pallas.43} parent=23 // pred_check
        %p144 = pneg %p43
      $region26: #{generator_forward_pallas.43} parent=23 // pred_check_branch
        %146 = sbr.rel (%p144) target = $region28
      $region27: #{generator_forward_pallas.43} parent=23 // pred_region
        %p147 = scmp.lt.s32.totalorder %s16, 1
        %s148 = scalar_select %p147, %s16, 1
        %p149 = scmp.lt.s32.totalorder %s17, 0
        %s150 = scalar_select %p149, %s17, 0
        %s151 = smul.addr %s150, 2
        %s152 = smul.addr %s148, 2
        %s153 = sadd.s32 %s151, %s152
        %s154 = smul.addr %s153, 4
        %s155 = scalar_lea.vmem %s0, %s154
      $region28: #{generator_forward_pallas.43} parent=23 // pred_fallthru
        _
    $region24: #{generator_forward_pallas.43} parent=5 // pred_fallthru
      _
    %p156 = scmp.le.s32.totalorder 1, %s9
    %p157 = scmp.lt.s32.totalorder %s9, 3
    %p158 = pnand %p156, %p157
    %p159 = pneg %p158
    // Predicated region
    $region29: #{generator_forward_pallas.43} parent=5 // pred_check
      _
    $region30: #{generator_forward_pallas.43} parent=5 // pred_check_branch
      %161 = sbr.rel (%p158) target = $region32
    $region31: #{generator_forward_pallas.43} parent=5 // pred_region
      %s162 = ssub.s32 %s9, 1
      %p163 = scmp.lt.s32.totalorder %s18, 1
      %s164 = scalar_select %p163, %s18, 1
      %p165 = scmp.lt.s32.totalorder %s19, 0
      %s166 = scalar_select %p165, %s19, 0
      %s167 = smul.addr %s166, 2
      %s168 = smul.addr %s164, 2
      %s169 = sadd.s32 %s167, %s168
      %s170 = smul.addr %s169, 4
      %s171 = scalar_lea.vmem %s0, %s170
      %p172 = pneg %p49
      %p173 = pneg %p46
      %p174 = pneg %p70
      %p175 = pneg %p67
      %p176 = pneg %p91
      %p177 = pneg %p88
      %p178 = pneg %p119
      %p179 = pneg %p116
      %p180 = scmp.lt.s32.totalorder %s18, 1
      %s181 = scalar_select %p180, %s18, 1
      %p182 = scmp.lt.s32.totalorder %s19, 0
      %s183 = scalar_select %p182, %s19, 0
      %s184 = smul.addr %s181, 2
      %s185 = sadd.s32 %s183, %s184
      %s186 = smul.addr %s185, 4
      %s187 = scalar_lea.vmem %s3, %s186
      %p188 = scmp.lt.s32.totalorder %s18, 1
      %s189 = scalar_select %p188, %s18, 1
      %p190 = scmp.lt.s32.totalorder %s19, 0
      %s191 = scalar_select %p190, %s19, 0
      %s192 = smul.addr %s191, 2
      %s193 = smul.addr %s189, 2
      %s194 = sadd.s32 %s192, %s193
      %s195 = smul.addr %s194, 4
      %s196 = scalar_lea.vmem %s0, %s195
      %p197 = scmp.lt.s32.totalorder %s18, 1
      %s198 = scalar_select %p197, %s18, 1
      %p199 = scmp.lt.s32.totalorder %s19, 0
      %s200 = scalar_select %p199, %s19, 0
      %s201 = smul.addr %s198, 2
      %s202 = sadd.s32 %s200, %s201
      %s203 = smul.addr %s202, 4
      %s204 = scalar_lea.vmem %s3, %s203
      %v207 = vld [vmem:[%s196] sm:$0xf]
      %v208 = vld [vmem:[%s196 + $0x4] sm:$0xf]
      %vm209 = vcmp.ge.bf16.partialorder %v207, 0
      %vm210 = vcmp.ge.bf16.partialorder %v208, 0
      %v211 = vmul.bf16 %v207, 1036860877
      %v212 = vmul.bf16 %v208, 1036860877
      %v213 = vsel %vm209, %v207, %v211
      %v214 = vsel %vm210, %v208, %v212
      %v217 = vunpack.c.l.b16 %v213
      %v218 = vunpack.c.l.b16 %v214
      %v219 = vpack.c.b16 %v218, %v217
      %221 = vrot.lane.b32.xlu0 %v219, 123
      %v222 = vpop.permute.xlu0 %221
      %224 = vrot.lane.b32.xlu0 %v219, 118
      %v225 = vpop.permute.xlu0 %224
      %227 = vrot.lane.b32.xlu0 %v219, 113
      %v228 = vpop.permute.xlu0 %227
      %230 = vrot.lane.b32.xlu0 %v219, 108
      %v231 = vpop.permute.xlu0 %230
      %v233 = vld [vmem:[%s1] sm:$0xf]
      %v234 = vld [vmem:[%s1 + $0x4] sm:$0xf]
      %v235 = vld [vmem:[%s2] sm:$0xff]
      %v236 = vld [vmem:[%s2 + $0x8] sm:$0xff]
      %238 = vset.pattern.permute.xlu0 0
      %239 = vperm.xlu0 %238, %v235
      %v240 = vpop.permute.xlu0 %239
      %243 = vset.pattern.permute.xlu0 0
      %244 = vperm.xlu0 %243, %v236
      %v245 = vpop.permute.xlu0 %244
      %v249 = vunpack.c.l.b16 %v233
      %v250 = vunpack.c.l.b16 %v234
      %v251 = vpack.c.b16 %v250, %v249
      %vm252 = vcmask 654336
      %v254 = vsel %vm252, %v251, 0
      %256 = vmatprep.subr.bf16.mxu0 0
      %257 = vmatpush1.bf16.msra.mxu0 0
      %258 = vmatprep.subr.bf16.mxu0 0
      %259 = vmatpush1.bf16.msra.mxu0 0
      %260 = vmatprep.subr.bf16.mxu0 0
      %261 = vmatpush1.bf16.msra.mxu0 0
      %262 = vmatprep.subr.bf16.mxu0 0
      %263 = vmatpush1.bf16.msra.mxu0 %v231
      %264 = vmatprep.subr.bf16.mxu0 0
      %265 = vmatpush1.bf16.msra.mxu0 %v228
      %266 = vmatprep.subr.bf16.mxu0 0
      %267 = vmatpush1.bf16.msra.mxu0 %v225
      %268 = vmatprep.subr.bf16.mxu0 0
      %269 = vmatpush1.bf16.msra.mxu0 %v222
      %270 = vmatprep.subr.bf16.mxu0 0
      %271 = vmatpush1.bf16.msra.mxu0 %v219
      %272 = vmatprep.subr.bf16.mxu0 0
      %273 = vmatpush2.bf16.msra.mxu0 0
      %274 = vmatprep.subr.bf16.mxu0 0
      %275 = vmatpush2.bf16.msra.mxu0 0
      %276 = vmatprep.subr.bf16.mxu0 0
      %277 = vmatpush2.bf16.msra.mxu0 0
      %278 = vmatprep.subr.bf16.mxu0 0
      %279 = vmatpush2.bf16.msra.mxu0 0
      %280 = vmatprep.subr.bf16.mxu0 0
      %281 = vmatpush2.bf16.msra.mxu0 0
      %282 = vmatprep.subr.bf16.mxu0 0
      %283 = vmatpush2.bf16.msra.mxu0 0
      %284 = vmatprep.subr.bf16.mxu0 0
      %285 = vmatpush2.bf16.msra.mxu0 0
      %286 = vmatprep.subr.bf16.mxu0 0
      %287 = vmatpush2.bf16.msra.mxu0 0
      %288 = vmatprep.mubr.bf16.mxu0 0
      %289 = vmatmul.mubr.bf16.gmra.mxu0 %v254
      %v290 = vpop.f32.mrf.mxu0
      %v291 = vadd.f32 %v240, %v290
      %v292 = vpop.f32.mrf.mxu0
      %v293 = vpop.f32.mrf.mxu0
      %v294 = vadd.f32 %v245, %v293
      %v295 = vpop.f32.mrf.mxu0
      %296 = vdwg.mxu0
      %v297 = vpack.c.bf16 %v294, %v291
      %v299 = vunpack.c.l.b16 %v297
      %v300 = vunpack.c.h.b16 %v297
      %v301 = vpack.c.b16 %v299, %v299
      %v302 = vpack.c.b16 %v300, %v300
      %vm305 = vcmask 257024
      %306 = vst.msk [vmem:[%s204] sm:$0xf] %vm305, %v301
      %307 = vst.msk [vmem:[%s204 + $0x4] sm:$0xf] %vm305, %v302
      %p308 = scmp.lt.s32.totalorder %s18, 1
      %s309 = scalar_select %p308, %s18, 1
      %p310 = scmp.lt.s32.totalorder %s19, 0
      %s311 = scalar_select %p310, %s19, 0
      %s312 = smul.addr %s309, 2
      %s313 = sadd.s32 %s311, %s312
      %s314 = smul.addr %s313, 4
      %s315 = scalar_lea.vmem %s3, %s314
      // Predicated region
      $region33: #{generator_forward_pallas.43} parent=31 // pred_check
        %p316 = pneg %p116
      $region34: #{generator_forward_pallas.43} parent=31 // pred_check_branch
        %318 = sbr.rel (%p316) target = $region36
      $region35: #{generator_forward_pallas.43} parent=31 // pred_region
        _
      $region36: #{generator_forward_pallas.43} parent=31 // pred_fallthru
        _
    $region32: #{generator_forward_pallas.43} parent=5 // pred_fallthru
      _
    %p319 = scmp.le.s32.totalorder 2, %s9
    // Predicated region
    $region37: #{generator_forward_pallas.43} parent=5 // pred_check
      %p320 = pneg %p319
    $region38: #{generator_forward_pallas.43} parent=5 // pred_check_branch
      %322 = sbr.rel (%p320) target = $region40
    $region39: #{generator_forward_pallas.43} parent=5 // pred_region
      %s323 = ssub.s32 %s9, 2
      // Predicated region
      $region41: #{generator_forward_pallas.43} parent=39 // pred_check
        %p324 = pneg %p122
      $region42: #{generator_forward_pallas.43} parent=39 // pred_check_branch
        %326 = sbr.rel (%p324) target = $region44
      $region43: #{generator_forward_pallas.43} parent=39 // pred_region
        %p327 = scmp.lt.s32.totalorder %s20, 1
        %s328 = scalar_select %p327, %s20, 1
        %p329 = scmp.lt.s32.totalorder %s21, 0
        %s330 = scalar_select %p329, %s21, 0
        %s331 = smul.addr %s328, 2
        %s332 = sadd.s32 %s330, %s331
        %s333 = smul.addr %s332, 4
        %s334 = scalar_lea.vmem %s3, %s333
      $region44: #{generator_forward_pallas.43} parent=39 // pred_fallthru
        _
    $region40: #{generator_forward_pallas.43} parent=5 // pred_fallthru
      _
  $region6: #{generator_forward_pallas.43} parent=0 // loop_footer
    %s13 = sadd.s32 1, %s9
  $region7: #{generator_forward_pallas.43} parent=0 // loop_footer_branch
    %8 = sbr.rel target = $region3
  $region8: #{generator_forward_pallas.43} parent=0 // loop_exit
    _

// kernel: generator_forward_pallas.45
$region0: #{generator_forward_pallas.45}
  #allocation0 [shape = 'u32[]', space=smem, size = 0x4, offset = 0x4, fixed_abs, tag = 'smem constant byte address 0x4 - core index']
  #allocation1 [shape = 'u32[144,128]{1,0:T(1,128)}', space=vmem, size = 0x12000, scoped, tag = 'internal scratch']
  %s0 = inlined_call_operand.vmem [shape: bf16[2,1,16,33], index: 0, kind: input, shape index: {}]
  %s1 = inlined_call_operand.vmem [shape: bf16[8,32], index: 1, kind: input, shape index: {}]
  %s2 = inlined_call_operand.vmem [shape: f32[8,1], index: 2, kind: input, shape index: {}]
  %s3 = inlined_call_operand.vmem [shape: bf16[2,8,32], index: 3, kind: output, shape index: {}]
  %s4 = sld [smem:[#allocation0]]
  $region45: #{generator_forward_pallas.45} parent=0
    _
  %s6 = ssub.s32 1, %s4
  %s7 = scalar_select 0, %s6, %s4
  loop: start=0, step=1, limit=4
  $region2: #{generator_forward_pallas.45} parent=0 // loop_pre_header
    _
  $region3: #{generator_forward_pallas.45} parent=0 // loop_header
    %s9 = sphi 0, %s13
    %p10 = scmp.ge.s32.totalorder %s9, 4
    %s16 = sphi 0, %s28
    %s17 = sphi 0, %s24
    %s18 = sphi 0, %s16
    %s19 = sphi 0, %s17
    %s20 = sphi 0, %s18
    %s21 = sphi 0, %s19
    %s33 = sphi 0, %s35
    %s36 = sphi 0, %s33
    %s37 = sphi 0, %s36
    %s53 = sphi 0, %s37
    %s57 = sphi 0, %s57
    %s59 = sphi 0, %s57
    %s60 = sphi 0, %s59
    %s74 = sphi 0, %s60
    %s78 = sphi 0, %s78
    %s80 = sphi 0, %s78
    %s81 = sphi 0, %s80
    %s95 = sphi 0, %s81
    %s103 = sphi 0, %s105
    %s106 = sphi 0, %s103
    %s107 = sphi 0, %s106
    %s123 = sphi 0, %s107
  $region4: #{generator_forward_pallas.45} parent=0 // loop_header_branch
    %12 = sbr.rel (%p10) target = $region8
  $region5: #{generator_forward_pallas.45} parent=0 // loop_body
    %s14 = ssub.s32 %s9, 1
    %s15 = ssub.s32 %s9, 2
    %s22 = sadd.s32 1, %s17
    %p23 = scmp.ge.s32.totalorder %s22, 1
    %s24 = scalar_select %p23, 0, %s22
    %s25 = sadd.s32 1, %s16
    %s26 = scalar_select %p23, %s25, %s16
    %p27 = scmp.ge.s32.totalorder %s26, 2
    %s28 = scalar_select %p27, 0, %s26
    %s29 = ssub.s32 %s16, %s28
    %s30 = ssub.s32 %s17, %s24
    %s31 = sor.u32 %s29, %s30
    %p32 = scmp.eq.s32.totalorder %s31, 0
    %s34 = sadd.s32 %s33, 1
    %s35 = scalar_select %p32, %s33, %s34
    %p38 = pneg %p32
    %p39 = scmp.eq.s32.totalorder %s9, 1
    %p40 = por %p38, %p39
    %p41 = scmp.ne.s32.totalorder %s33, %s36
    %p42 = scmp.eq.s32.totalorder %s9, 0
    %p43 = por %p41, %p42
    %p44 = scmp.ne.s32.totalorder %s33, %s36
    %p45 = scmp.eq.s32.totalorder %s14, 1
    %p46 = por %p44, %p45
    %p47 = scmp.ne.s32.totalorder %s36, %s37
    %p48 = scmp.eq.s32.totalorder %s14, 0
    %p49 = por %p47, %p48
    %p50 = scmp.ne.s32.totalorder %s36, %s37
    %p51 = scmp.eq.s32.totalorder %s15, 1
    %p52 = por %p50, %p51
    %p54 = scmp.ne.s32.totalorder %s37, %s53
    %p55 = scmp.eq.s32.totalorder %s15, 0
    %p56 = por %p54, %p55
    %s58 = sadd.s32 %s57, 1
    %p61 = scmp.eq.s32.totalorder %s9, 1
    %p62 = scmp.ne.s32.totalorder %s57, %s59
    %p63 = scmp.eq.s32.totalorder %s9, 0
    %p64 = por %p62, %p63
    %p65 = scmp.ne.s32.totalorder %s57, %s59
    %p66 = scmp.eq.s32.totalorder %s14, 1
    %p67 = por %p65, %p66
    %p68 = scmp.ne.s32.totalorder %s59, %s60
    %p69 = scmp.eq.s32.totalorder %s14, 0
    %p70 = por %p68, %p69
    %p71 = scmp.ne.s32.totalorder %s59, %s60
    %p72 = scmp.eq.s32.totalorder %s15, 1
    %p73 = por %p71, %p72
    %p75 = scmp.ne.s32.totalorder %s60, %s74
    %p76 = scmp.eq.s32.totalorder %s15, 0
    %p77 = por %p75, %p76
    %s79 = sadd.s32 %s78, 1
    %p82 = scmp.eq.s32.totalorder %s9, 1
    %p83 = scmp.ne.s32.totalorder %s78, %s80
    %p84 = scmp.eq.s32.totalorder %s9, 0
    %p85 = por %p83, %p84
    %p86 = scmp.ne.s32.totalorder %s78, %s80
    %p87 = scmp.eq.s32.totalorder %s14, 1
    %p88 = por %p86, %p87
    %p89 = scmp.ne.s32.totalorder %s80, %s81
    %p90 = scmp.eq.s32.totalorder %s14, 0
    %p91 = por %p89, %p90
    %p92 = scmp.ne.s32.totalorder %s80, %s81
    %p93 = scmp.eq.s32.totalorder %s15, 1
    %p94 = por %p92, %p93
    %p96 = scmp.ne.s32.totalorder %s81, %s95
    %p97 = scmp.eq.s32.totalorder %s15, 0
    %p98 = por %p96, %p97
    %s99 = ssub.s32 %s16, %s28
    %s100 = ssub.s32 %s17, %s24
    %s101 = sor.u32 %s99, %s100
    %p102 = scmp.eq.s32.totalorder %s101, 0
    %s104 = sadd.s32 %s103, 1
    %s105 = scalar_select %p102, %s103, %s104
    %p108 = pneg %p102
    %p109 = scmp.eq.s32.totalorder %s9, 1
    %p110 = por %p108, %p109
    %p111 = scmp.ne.s32.totalorder %s103, %s106
    %p112 = scmp.eq.s32.totalorder %s9, 0
    %p113 = por %p111, %p112
    %p114 = scmp.ne.s32.totalorder %s103, %s106
    %p115 = scmp.eq.s32.totalorder %s14, 1
    %p116 = por %p114, %p115
    %p117 = scmp.ne.s32.totalorder %s106, %s107
    %p118 = scmp.eq.s32.totalorder %s14, 0
    %p119 = por %p117, %p118
    %p120 = scmp.ne.s32.totalorder %s106, %s107
    %p121 = scmp.eq.s32.totalorder %s15, 1
    %p122 = por %p120, %p121
    %p124 = scmp.ne.s32.totalorder %s107, %s123
    %p125 = scmp.eq.s32.totalorder %s15, 0
    %p126 = por %p124, %p125
    %p127 = scmp.le.s32.totalorder 1, %s9
    %p128 = scmp.lt.s32.totalorder %s9, 3
    %p129 = pnand %p127, %p128
    %p130 = pneg %p129
    // Predicated region
    $region9: #{generator_forward_pallas.45} parent=5 // pred_check
      _
    $region10: #{generator_forward_pallas.45} parent=5 // pred_check_branch
      %132 = sbr.rel (%p129) target = $region12
    $region11: #{generator_forward_pallas.45} parent=5 // pred_region
      %s133 = ssub.s32 %s9, 1
      // Predicated region
      $region13: #{generator_forward_pallas.45} parent=11 // pred_check
        %p134 = pneg %p70
      $region14: #{generator_forward_pallas.45} parent=11 // pred_check_branch
        %136 = sbr.rel (%p134) target = $region16
      $region15: #{generator_forward_pallas.45} parent=11 // pred_region
        _
      $region16: #{generator_forward_pallas.45} parent=11 // pred_fallthru
        _
      // Predicated region
      $region17: #{generator_forward_pallas.45} parent=11 // pred_check
        %p137 = pneg %p91
      $region18: #{generator_forward_pallas.45} parent=11 // pred_check_branch
        %139 = sbr.rel (%p137) target = $region20
      $region19: #{generator_forward_pallas.45} parent=11 // pred_region
        _
      $region20: #{generator_forward_pallas.45} parent=11 // pred_fallthru
        _
    $region12: #{generator_forward_pallas.45} parent=5 // pred_fallthru
      _
    %p140 = scmp.lt.s32.totalorder %s9, 2
    // Predicated region
    $region21: #{generator_forward_pallas.45} parent=5 // pred_check
      %p141 = pneg %p140
    $region22: #{generator_forward_pallas.45} parent=5 // pred_check_branch
      %143 = sbr.rel (%p141) target = $region24
    $region23: #{generator_forward_pallas.45} parent=5 // pred_region
      // Predicated region
      $region25: #{generator_forward_pallas.45} parent=23 // pred_check
        %p144 = pneg %p43
      $region26: #{generator_forward_pallas.45} parent=23 // pred_check_branch
        %146 = sbr.rel (%p144) target = $region28
      $region27: #{generator_forward_pallas.45} parent=23 // pred_region
        %p147 = scmp.lt.s32.totalorder %s16, 1
        %s148 = scalar_select %p147, %s16, 1
        %p149 = scmp.lt.s32.totalorder %s17, 0
        %s150 = scalar_select %p149, %s17, 0
        %s151 = smul.addr %s150, 2
        %s152 = smul.addr %s148, 2
        %s153 = sadd.s32 %s151, %s152
        %s154 = smul.addr %s153, 4
        %s155 = scalar_lea.vmem %s0, %s154
      $region28: #{generator_forward_pallas.45} parent=23 // pred_fallthru
        _
    $region24: #{generator_forward_pallas.45} parent=5 // pred_fallthru
      _
    %p156 = scmp.le.s32.totalorder 1, %s9
    %p157 = scmp.lt.s32.totalorder %s9, 3
    %p158 = pnand %p156, %p157
    %p159 = pneg %p158
    // Predicated region
    $region29: #{generator_forward_pallas.45} parent=5 // pred_check
      _
    $region30: #{generator_forward_pallas.45} parent=5 // pred_check_branch
      %161 = sbr.rel (%p158) target = $region32
    $region31: #{generator_forward_pallas.45} parent=5 // pred_region
      %s162 = ssub.s32 %s9, 1
      %p163 = scmp.lt.s32.totalorder %s18, 1
      %s164 = scalar_select %p163, %s18, 1
      %p165 = scmp.lt.s32.totalorder %s19, 0
      %s166 = scalar_select %p165, %s19, 0
      %s167 = smul.addr %s166, 2
      %s168 = smul.addr %s164, 2
      %s169 = sadd.s32 %s167, %s168
      %s170 = smul.addr %s169, 4
      %s171 = scalar_lea.vmem %s0, %s170
      %p172 = pneg %p49
      %p173 = pneg %p46
      %p174 = pneg %p70
      %p175 = pneg %p67
      %p176 = pneg %p91
      %p177 = pneg %p88
      %p178 = pneg %p119
      %p179 = pneg %p116
      %p180 = scmp.lt.s32.totalorder %s18, 1
      %s181 = scalar_select %p180, %s18, 1
      %p182 = scmp.lt.s32.totalorder %s19, 0
      %s183 = scalar_select %p182, %s19, 0
      %s184 = sadd.s32 %s183, %s181
      %s185 = smul.addr %s184, 4
      %s186 = scalar_lea.vmem %s3, %s185
      %p187 = scmp.lt.s32.totalorder %s18, 1
      %s188 = scalar_select %p187, %s18, 1
      %p189 = scmp.lt.s32.totalorder %s19, 0
      %s190 = scalar_select %p189, %s19, 0
      %s191 = smul.addr %s190, 2
      %s192 = smul.addr %s188, 2
      %s193 = sadd.s32 %s191, %s192
      %s194 = smul.addr %s193, 4
      %s195 = scalar_lea.vmem %s0, %s194
      %p196 = scmp.lt.s32.totalorder %s18, 1
      %s197 = scalar_select %p196, %s18, 1
      %p198 = scmp.lt.s32.totalorder %s19, 0
      %s199 = scalar_select %p198, %s19, 0
      %s200 = sadd.s32 %s199, %s197
      %s201 = smul.addr %s200, 4
      %s202 = scalar_lea.vmem %s3, %s201
      %v205 = vld [vmem:[%s195] sm:$0xf]
      %v206 = vld [vmem:[%s195 + $0x4] sm:$0xf]
      %vm207 = vcmp.ge.bf16.partialorder %v205, 0
      %vm208 = vcmp.ge.bf16.partialorder %v206, 0
      %v209 = vmul.bf16 %v205, 1036860877
      %v210 = vmul.bf16 %v206, 1036860877
      %v211 = vsel %vm207, %v205, %v209
      %v212 = vsel %vm208, %v206, %v210
      %v215 = vunpack.c.l.b16 %v211
      %v216 = vunpack.c.l.b16 %v212
      %v217 = vpack.c.b16 %v216, %v215
      %219 = vrot.lane.b32.xlu0 %v217, 127
      %v220 = vpop.permute.xlu0 %219
      %v222 = vld [vmem:[%s1] sm:$0xf]
      %v223 = vld [vmem:[%s2] sm:$0xff]
      %225 = vset.pattern.permute.xlu0 0
      %226 = vperm.xlu0 %225, %v223
      %v227 = vpop.permute.xlu0 %226
      %vm229 = vcmask 261120
      %v231 = vsel %vm229, %v222, 0
      %233 = vmatprep.subr.bf16.mxu0 0
      %234 = vmatpush1.bf16.msra.mxu0 0
      %235 = vmatprep.subr.bf16.mxu0 0
      %236 = vmatpush1.bf16.msra.mxu0 0
      %237 = vmatprep.subr.bf16.mxu0 0
      %238 = vmatpush1.bf16.msra.mxu0 0
      %239 = vmatprep.subr.bf16.mxu0 0
      %240 = vmatpush1.bf16.msra.mxu0 0
      %241 = vmatprep.subr.bf16.mxu0 0
      %242 = vmatpush1.bf16.msra.mxu0 0
      %243 = vmatprep.subr.bf16.mxu0 0
      %244 = vmatpush1.bf16.msra.mxu0 0
      %245 = vmatprep.subr.bf16.mxu0 0
      %246 = vmatpush1.bf16.msra.mxu0 %v220
      %247 = vmatprep.subr.bf16.mxu0 0
      %248 = vmatpush1.bf16.msra.mxu0 %v217
      %249 = vmatprep.subr.bf16.mxu0 0
      %250 = vmatpush2.bf16.msra.mxu0 0
      %251 = vmatprep.subr.bf16.mxu0 0
      %252 = vmatpush2.bf16.msra.mxu0 0
      %253 = vmatprep.subr.bf16.mxu0 0
      %254 = vmatpush2.bf16.msra.mxu0 0
      %255 = vmatprep.subr.bf16.mxu0 0
      %256 = vmatpush2.bf16.msra.mxu0 0
      %257 = vmatprep.subr.bf16.mxu0 0
      %258 = vmatpush2.bf16.msra.mxu0 0
      %259 = vmatprep.subr.bf16.mxu0 0
      %260 = vmatpush2.bf16.msra.mxu0 0
      %261 = vmatprep.subr.bf16.mxu0 0
      %262 = vmatpush2.bf16.msra.mxu0 0
      %263 = vmatprep.subr.bf16.mxu0 0
      %264 = vmatpush2.bf16.msra.mxu0 0
      %265 = vmatprep.mubr.bf16.mxu0 0
      %266 = vmatmul.mubr.bf16.gmra.mxu0 %v231
      %v267 = vpop.f32.mrf.mxu0
      %v268 = vadd.f32 %v227, %v267
      %v269 = vpop.f32.mrf.mxu0
      %v270 = vpop.f32.mrf.mxu0
      %v271 = vpop.f32.mrf.mxu0
      %272 = vdwg.mxu0
      %v273 = vpack.c.bf16 %v268, %v268
      %vm274 = vcmask 257024
      %275 = vst.msk [vmem:[%s202] sm:$0xf] %vm274, %v273
      %p276 = scmp.lt.s32.totalorder %s18, 1
      %s277 = scalar_select %p276, %s18, 1
      %p278 = scmp.lt.s32.totalorder %s19, 0
      %s279 = scalar_select %p278, %s19, 0
      %s280 = sadd.s32 %s279, %s277
      %s281 = smul.addr %s280, 4
      %s282 = scalar_lea.vmem %s3, %s281
      // Predicated region
      $region33: #{generator_forward_pallas.45} parent=31 // pred_check
        %p283 = pneg %p116
      $region34: #{generator_forward_pallas.45} parent=31 // pred_check_branch
        %285 = sbr.rel (%p283) target = $region36
      $region35: #{generator_forward_pallas.45} parent=31 // pred_region
        _
      $region36: #{generator_forward_pallas.45} parent=31 // pred_fallthru
        _
    $region32: #{generator_forward_pallas.45} parent=5 // pred_fallthru
      _
    %p286 = scmp.le.s32.totalorder 2, %s9
    // Predicated region
    $region37: #{generator_forward_pallas.45} parent=5 // pred_check
      %p287 = pneg %p286
    $region38: #{generator_forward_pallas.45} parent=5 // pred_check_branch
      %289 = sbr.rel (%p287) target = $region40
    $region39: #{generator_forward_pallas.45} parent=5 // pred_region
      %s290 = ssub.s32 %s9, 2
      // Predicated region
      $region41: #{generator_forward_pallas.45} parent=39 // pred_check
        %p291 = pneg %p122
      $region42: #{generator_forward_pallas.45} parent=39 // pred_check_branch
        %293 = sbr.rel (%p291) target = $region44
      $region43: #{generator_forward_pallas.45} parent=39 // pred_region
        %p294 = scmp.lt.s32.totalorder %s20, 1
        %s295 = scalar_select %p294, %s20, 1
        %p296 = scmp.lt.s32.totalorder %s21, 0
        %s297 = scalar_select %p296, %s21, 0
        %s298 = sadd.s32 %s297, %s295
        %s299 = smul.addr %s298, 4
        %s300 = scalar_lea.vmem %s3, %s299
      $region44: #{generator_forward_pallas.45} parent=39 // pred_fallthru
        _
    $region40: #{generator_forward_pallas.45} parent=5 // pred_fallthru
      _
  $region6: #{generator_forward_pallas.45} parent=0 // loop_footer
    %s13 = sadd.s32 1, %s9
  $region7: #{generator_forward_pallas.45} parent=0 // loop_footer_branch
    %8 = sbr.rel target = $region3
  $region8: #{generator_forward_pallas.45} parent=0 // loop_exit
    _

// kernel: generator_forward_pallas.47
$region0: #{generator_forward_pallas.47}
  #allocation0 [shape = 'u32[]', space=smem, size = 0x4, offset = 0x4, fixed_abs, tag = 'smem constant byte address 0x4 - core index']
  #allocation1 [shape = 'u32[144,128]{1,0:T(1,128)}', space=vmem, size = 0x12000, scoped, tag = 'internal scratch']
  %s0 = inlined_call_operand.vmem [shape: bf16[2,1,8,66], index: 0, kind: input, shape index: {}]
  %s1 = inlined_call_operand.vmem [shape: bf16[8,24], index: 1, kind: input, shape index: {}]
  %s2 = inlined_call_operand.vmem [shape: f32[8,1], index: 2, kind: input, shape index: {}]
  %s3 = inlined_call_operand.vmem [shape: bf16[2,8,64], index: 3, kind: output, shape index: {}]
  %s4 = sld [smem:[#allocation0]]
  $region45: #{generator_forward_pallas.47} parent=0
    _
  %s6 = ssub.s32 1, %s4
  %s7 = scalar_select 0, %s6, %s4
  loop: start=0, step=1, limit=4
  $region2: #{generator_forward_pallas.47} parent=0 // loop_pre_header
    _
  $region3: #{generator_forward_pallas.47} parent=0 // loop_header
    %s9 = sphi 0, %s13
    %p10 = scmp.ge.s32.totalorder %s9, 4
    %s16 = sphi 0, %s28
    %s17 = sphi 0, %s24
    %s18 = sphi 0, %s16
    %s19 = sphi 0, %s17
    %s20 = sphi 0, %s18
    %s21 = sphi 0, %s19
    %s33 = sphi 0, %s35
    %s36 = sphi 0, %s33
    %s37 = sphi 0, %s36
    %s53 = sphi 0, %s37
    %s57 = sphi 0, %s57
    %s59 = sphi 0, %s57
    %s60 = sphi 0, %s59
    %s74 = sphi 0, %s60
    %s78 = sphi 0, %s78
    %s80 = sphi 0, %s78
    %s81 = sphi 0, %s80
    %s95 = sphi 0, %s81
    %s103 = sphi 0, %s105
    %s106 = sphi 0, %s103
    %s107 = sphi 0, %s106
    %s123 = sphi 0, %s107
  $region4: #{generator_forward_pallas.47} parent=0 // loop_header_branch
    %12 = sbr.rel (%p10) target = $region8
  $region5: #{generator_forward_pallas.47} parent=0 // loop_body
    %s14 = ssub.s32 %s9, 1
    %s15 = ssub.s32 %s9, 2
    %s22 = sadd.s32 1, %s17
    %p23 = scmp.ge.s32.totalorder %s22, 1
    %s24 = scalar_select %p23, 0, %s22
    %s25 = sadd.s32 1, %s16
    %s26 = scalar_select %p23, %s25, %s16
    %p27 = scmp.ge.s32.totalorder %s26, 2
    %s28 = scalar_select %p27, 0, %s26
    %s29 = ssub.s32 %s16, %s28
    %s30 = ssub.s32 %s17, %s24
    %s31 = sor.u32 %s29, %s30
    %p32 = scmp.eq.s32.totalorder %s31, 0
    %s34 = sadd.s32 %s33, 1
    %s35 = scalar_select %p32, %s33, %s34
    %p38 = pneg %p32
    %p39 = scmp.eq.s32.totalorder %s9, 1
    %p40 = por %p38, %p39
    %p41 = scmp.ne.s32.totalorder %s33, %s36
    %p42 = scmp.eq.s32.totalorder %s9, 0
    %p43 = por %p41, %p42
    %p44 = scmp.ne.s32.totalorder %s33, %s36
    %p45 = scmp.eq.s32.totalorder %s14, 1
    %p46 = por %p44, %p45
    %p47 = scmp.ne.s32.totalorder %s36, %s37
    %p48 = scmp.eq.s32.totalorder %s14, 0
    %p49 = por %p47, %p48
    %p50 = scmp.ne.s32.totalorder %s36, %s37
    %p51 = scmp.eq.s32.totalorder %s15, 1
    %p52 = por %p50, %p51
    %p54 = scmp.ne.s32.totalorder %s37, %s53
    %p55 = scmp.eq.s32.totalorder %s15, 0
    %p56 = por %p54, %p55
    %s58 = sadd.s32 %s57, 1
    %p61 = scmp.eq.s32.totalorder %s9, 1
    %p62 = scmp.ne.s32.totalorder %s57, %s59
    %p63 = scmp.eq.s32.totalorder %s9, 0
    %p64 = por %p62, %p63
    %p65 = scmp.ne.s32.totalorder %s57, %s59
    %p66 = scmp.eq.s32.totalorder %s14, 1
    %p67 = por %p65, %p66
    %p68 = scmp.ne.s32.totalorder %s59, %s60
    %p69 = scmp.eq.s32.totalorder %s14, 0
    %p70 = por %p68, %p69
    %p71 = scmp.ne.s32.totalorder %s59, %s60
    %p72 = scmp.eq.s32.totalorder %s15, 1
    %p73 = por %p71, %p72
    %p75 = scmp.ne.s32.totalorder %s60, %s74
    %p76 = scmp.eq.s32.totalorder %s15, 0
    %p77 = por %p75, %p76
    %s79 = sadd.s32 %s78, 1
    %p82 = scmp.eq.s32.totalorder %s9, 1
    %p83 = scmp.ne.s32.totalorder %s78, %s80
    %p84 = scmp.eq.s32.totalorder %s9, 0
    %p85 = por %p83, %p84
    %p86 = scmp.ne.s32.totalorder %s78, %s80
    %p87 = scmp.eq.s32.totalorder %s14, 1
    %p88 = por %p86, %p87
    %p89 = scmp.ne.s32.totalorder %s80, %s81
    %p90 = scmp.eq.s32.totalorder %s14, 0
    %p91 = por %p89, %p90
    %p92 = scmp.ne.s32.totalorder %s80, %s81
    %p93 = scmp.eq.s32.totalorder %s15, 1
    %p94 = por %p92, %p93
    %p96 = scmp.ne.s32.totalorder %s81, %s95
    %p97 = scmp.eq.s32.totalorder %s15, 0
    %p98 = por %p96, %p97
    %s99 = ssub.s32 %s16, %s28
    %s100 = ssub.s32 %s17, %s24
    %s101 = sor.u32 %s99, %s100
    %p102 = scmp.eq.s32.totalorder %s101, 0
    %s104 = sadd.s32 %s103, 1
    %s105 = scalar_select %p102, %s103, %s104
    %p108 = pneg %p102
    %p109 = scmp.eq.s32.totalorder %s9, 1
    %p110 = por %p108, %p109
    %p111 = scmp.ne.s32.totalorder %s103, %s106
    %p112 = scmp.eq.s32.totalorder %s9, 0
    %p113 = por %p111, %p112
    %p114 = scmp.ne.s32.totalorder %s103, %s106
    %p115 = scmp.eq.s32.totalorder %s14, 1
    %p116 = por %p114, %p115
    %p117 = scmp.ne.s32.totalorder %s106, %s107
    %p118 = scmp.eq.s32.totalorder %s14, 0
    %p119 = por %p117, %p118
    %p120 = scmp.ne.s32.totalorder %s106, %s107
    %p121 = scmp.eq.s32.totalorder %s15, 1
    %p122 = por %p120, %p121
    %p124 = scmp.ne.s32.totalorder %s107, %s123
    %p125 = scmp.eq.s32.totalorder %s15, 0
    %p126 = por %p124, %p125
    %p127 = scmp.le.s32.totalorder 1, %s9
    %p128 = scmp.lt.s32.totalorder %s9, 3
    %p129 = pnand %p127, %p128
    %p130 = pneg %p129
    // Predicated region
    $region9: #{generator_forward_pallas.47} parent=5 // pred_check
      _
    $region10: #{generator_forward_pallas.47} parent=5 // pred_check_branch
      %132 = sbr.rel (%p129) target = $region12
    $region11: #{generator_forward_pallas.47} parent=5 // pred_region
      %s133 = ssub.s32 %s9, 1
      // Predicated region
      $region13: #{generator_forward_pallas.47} parent=11 // pred_check
        %p134 = pneg %p70
      $region14: #{generator_forward_pallas.47} parent=11 // pred_check_branch
        %136 = sbr.rel (%p134) target = $region16
      $region15: #{generator_forward_pallas.47} parent=11 // pred_region
        _
      $region16: #{generator_forward_pallas.47} parent=11 // pred_fallthru
        _
      // Predicated region
      $region17: #{generator_forward_pallas.47} parent=11 // pred_check
        %p137 = pneg %p91
      $region18: #{generator_forward_pallas.47} parent=11 // pred_check_branch
        %139 = sbr.rel (%p137) target = $region20
      $region19: #{generator_forward_pallas.47} parent=11 // pred_region
        _
      $region20: #{generator_forward_pallas.47} parent=11 // pred_fallthru
        _
    $region12: #{generator_forward_pallas.47} parent=5 // pred_fallthru
      _
    %p140 = scmp.lt.s32.totalorder %s9, 2
    // Predicated region
    $region21: #{generator_forward_pallas.47} parent=5 // pred_check
      %p141 = pneg %p140
    $region22: #{generator_forward_pallas.47} parent=5 // pred_check_branch
      %143 = sbr.rel (%p141) target = $region24
    $region23: #{generator_forward_pallas.47} parent=5 // pred_region
      // Predicated region
      $region25: #{generator_forward_pallas.47} parent=23 // pred_check
        %p144 = pneg %p43
      $region26: #{generator_forward_pallas.47} parent=23 // pred_check_branch
        %146 = sbr.rel (%p144) target = $region28
      $region27: #{generator_forward_pallas.47} parent=23 // pred_region
        %p147 = scmp.lt.s32.totalorder %s16, 1
        %s148 = scalar_select %p147, %s16, 1
        %p149 = scmp.lt.s32.totalorder %s17, 0
        %s150 = scalar_select %p149, %s17, 0
        %s151 = sadd.s32 %s150, %s148
        %s152 = smul.addr %s151, 4
        %s153 = scalar_lea.vmem %s0, %s152
      $region28: #{generator_forward_pallas.47} parent=23 // pred_fallthru
        _
    $region24: #{generator_forward_pallas.47} parent=5 // pred_fallthru
      _
    %p154 = scmp.le.s32.totalorder 1, %s9
    %p155 = scmp.lt.s32.totalorder %s9, 3
    %p156 = pnand %p154, %p155
    %p157 = pneg %p156
    // Predicated region
    $region29: #{generator_forward_pallas.47} parent=5 // pred_check
      _
    $region30: #{generator_forward_pallas.47} parent=5 // pred_check_branch
      %159 = sbr.rel (%p156) target = $region32
    $region31: #{generator_forward_pallas.47} parent=5 // pred_region
      %s160 = ssub.s32 %s9, 1
      %p161 = scmp.lt.s32.totalorder %s18, 1
      %s162 = scalar_select %p161, %s18, 1
      %p163 = scmp.lt.s32.totalorder %s19, 0
      %s164 = scalar_select %p163, %s19, 0
      %s165 = sadd.s32 %s164, %s162
      %s166 = smul.addr %s165, 4
      %s167 = scalar_lea.vmem %s0, %s166
      %p168 = pneg %p49
      %p169 = pneg %p46
      %p170 = pneg %p70
      %p171 = pneg %p67
      %p172 = pneg %p91
      %p173 = pneg %p88
      %p174 = pneg %p119
      %p175 = pneg %p116
      %p176 = scmp.lt.s32.totalorder %s18, 1
      %s177 = scalar_select %p176, %s18, 1
      %p178 = scmp.lt.s32.totalorder %s19, 0
      %s179 = scalar_select %p178, %s19, 0
      %s180 = sadd.s32 %s179, %s177
      %s181 = smul.addr %s180, 4
      %s182 = scalar_lea.vmem %s3, %s181
      %p183 = scmp.lt.s32.totalorder %s18, 1
      %s184 = scalar_select %p183, %s18, 1
      %p185 = scmp.lt.s32.totalorder %s19, 0
      %s186 = scalar_select %p185, %s19, 0
      %s187 = sadd.s32 %s186, %s184
      %s188 = smul.addr %s187, 4
      %s189 = scalar_lea.vmem %s0, %s188
      %p190 = scmp.lt.s32.totalorder %s18, 1
      %s191 = scalar_select %p190, %s18, 1
      %p192 = scmp.lt.s32.totalorder %s19, 0
      %s193 = scalar_select %p192, %s19, 0
      %s194 = sadd.s32 %s193, %s191
      %s195 = smul.addr %s194, 4
      %s196 = scalar_lea.vmem %s3, %s195
      %v199 = vld [vmem:[%s189] sm:$0xf]
      %vm200 = vcmp.ge.bf16.partialorder %v199, 0
      %v201 = vmul.bf16 %v199, 1036860877
      %v202 = vsel %vm200, %v199, %v201
      %v203 = vld [vmem:[%s1] sm:$0xf]
      %v205 = vunpack.c.l.b16 %v203
      %v206 = vpack.c.b16 %v205, %v205
      %207 = vrot.lane.b32.xlu0 %v206, 120
      %v208 = vpop.permute.xlu0 %207
      %v210 = vunpack.c.l.b16 %v202
      %v211 = vpack.c.b16 %v210, %v210
      %212 = vrot.lane.b32.xlu0 %v211, 127
      %v213 = vpop.permute.xlu0 %212
      %vm214 = vcmask 64512
      %v216 = vsel %vm214, %v208, 0
      %vm218 = vcmask 1043456
      %v220 = vsel %vm218, %v213, 0
      %222 = vmatprep.subr.bf16.mxu0 0
      %223 = vmatpush1.bf16.msra.mxu0 0
      %224 = vmatprep.subr.bf16.mxu0 0
      %225 = vmatpush1.bf16.msra.mxu0 0
      %226 = vmatprep.subr.bf16.mxu0 0
      %227 = vmatpush1.bf16.msra.mxu0 0
      %228 = vmatprep.subr.bf16.mxu0 0
      %229 = vmatpush1.bf16.msra.mxu0 0
      %230 = vmatprep.subr.bf16.mxu0 0
      %231 = vmatpush1.bf16.msra.mxu0 0
      %232 = vmatprep.subr.bf16.mxu0 0
      %233 = vmatpush1.bf16.msra.mxu0 0
      %234 = vmatprep.subr.bf16.mxu0 0
      %235 = vmatpush1.bf16.msra.mxu0 0
      %236 = vmatprep.subr.bf16.mxu0 0
      %237 = vmatpush1.bf16.msra.mxu0 %v220
      %238 = vmatprep.subr.bf16.mxu0 0
      %239 = vmatpush2.bf16.msra.mxu0 0
      %240 = vmatprep.subr.bf16.mxu0 0
      %241 = vmatpush2.bf16.msra.mxu0 0
      %242 = vmatprep.subr.bf16.mxu0 0
      %243 = vmatpush2.bf16.msra.mxu0 0
      %244 = vmatprep.subr.bf16.mxu0 0
      %245 = vmatpush2.bf16.msra.mxu0 0
      %246 = vmatprep.subr.bf16.mxu0 0
      %247 = vmatpush2.bf16.msra.mxu0 0
      %248 = vmatprep.subr.bf16.mxu0 0
      %249 = vmatpush2.bf16.msra.mxu0 0
      %250 = vmatprep.subr.bf16.mxu0 0
      %251 = vmatpush2.bf16.msra.mxu0 0
      %252 = vmatprep.subr.bf16.mxu0 0
      %253 = vmatpush2.bf16.msra.mxu0 0
      %254 = vmatprep.mubr.bf16.mxu0 0
      %255 = vmatmul.mubr.bf16.gmra.mxu0 %v216
      %v256 = vpop.f32.mrf.mxu0
      %v257 = vadd.f32 0.0, %v256
      %v258 = vpop.f32.mrf.mxu0
      %v259 = vpop.f32.mrf.mxu0
      %v260 = vpop.f32.mrf.mxu0
      %261 = vdwg.mxu0
      %v263 = vsel %vm214, %v203, 0
      %v266 = vsel %vm218, %v202, 0
      %268 = vmatprep.subr.bf16.mxu0 0
      %269 = vmatpush1.bf16.msra.mxu0 0
      %270 = vmatprep.subr.bf16.mxu0 0
      %271 = vmatpush1.bf16.msra.mxu0 0
      %272 = vmatprep.subr.bf16.mxu0 0
      %273 = vmatpush1.bf16.msra.mxu0 0
      %274 = vmatprep.subr.bf16.mxu0 0
      %275 = vmatpush1.bf16.msra.mxu0 0
      %276 = vmatprep.subr.bf16.mxu0 0
      %277 = vmatpush1.bf16.msra.mxu0 0
      %278 = vmatprep.subr.bf16.mxu0 0
      %279 = vmatpush1.bf16.msra.mxu0 0
      %280 = vmatprep.subr.bf16.mxu0 0
      %281 = vmatpush1.bf16.msra.mxu0 0
      %282 = vmatprep.subr.bf16.mxu0 0
      %283 = vmatpush1.bf16.msra.mxu0 %v266
      %284 = vmatprep.subr.bf16.mxu0 0
      %285 = vmatpush2.bf16.msra.mxu0 0
      %286 = vmatprep.subr.bf16.mxu0 0
      %287 = vmatpush2.bf16.msra.mxu0 0
      %288 = vmatprep.subr.bf16.mxu0 0
      %289 = vmatpush2.bf16.msra.mxu0 0
      %290 = vmatprep.subr.bf16.mxu0 0
      %291 = vmatpush2.bf16.msra.mxu0 0
      %292 = vmatprep.subr.bf16.mxu0 0
      %293 = vmatpush2.bf16.msra.mxu0 0
      %294 = vmatprep.subr.bf16.mxu0 0
      %295 = vmatpush2.bf16.msra.mxu0 0
      %296 = vmatprep.subr.bf16.mxu0 0
      %297 = vmatpush2.bf16.msra.mxu0 0
      %298 = vmatprep.subr.bf16.mxu0 0
      %299 = vmatpush2.bf16.msra.mxu0 0
      %300 = vmatprep.mubr.bf16.mxu0 0
      %301 = vmatmul.mubr.bf16.gmra.mxu0 %v263
      %v302 = vpop.f32.mrf.mxu0
      %v303 = vadd.f32 %v257, %v302
      %v304 = vpop.f32.mrf.mxu0
      %v305 = vpop.f32.mrf.mxu0
      %v306 = vpop.f32.mrf.mxu0
      %307 = vdwg.mxu0
      %308 = vrot.lane.b32.xlu0 %v206, 112
      %v309 = vpop.permute.xlu0 %308
      %310 = vrot.lane.b32.xlu0 %v211, 126
      %v311 = vpop.permute.xlu0 %310
      %v313 = vsel %vm214, %v309, 0
      %v316 = vsel %vm218, %v311, 0
      %318 = vmatprep.subr.bf16.mxu0 0
      %319 = vmatpush1.bf16.msra.mxu0 0
      %320 = vmatprep.subr.bf16.mxu0 0
      %321 = vmatpush1.bf16.msra.mxu0 0
      %322 = vmatprep.subr.bf16.mxu0 0
      %323 = vmatpush1.bf16.msra.mxu0 0
      %324 = vmatprep.subr.bf16.mxu0 0
      %325 = vmatpush1.bf16.msra.mxu0 0
      %326 = vmatprep.subr.bf16.mxu0 0
      %327 = vmatpush1.bf16.msra.mxu0 0
      %328 = vmatprep.subr.bf16.mxu0 0
      %329 = vmatpush1.bf16.msra.mxu0 0
      %330 = vmatprep.subr.bf16.mxu0 0
      %331 = vmatpush1.bf16.msra.mxu0 0
      %332 = vmatprep.subr.bf16.mxu0 0
      %333 = vmatpush1.bf16.msra.mxu0 %v316
      %334 = vmatprep.subr.bf16.mxu0 0
      %335 = vmatpush2.bf16.msra.mxu0 0
      %336 = vmatprep.subr.bf16.mxu0 0
      %337 = vmatpush2.bf16.msra.mxu0 0
      %338 = vmatprep.subr.bf16.mxu0 0
      %339 = vmatpush2.bf16.msra.mxu0 0
      %340 = vmatprep.subr.bf16.mxu0 0
      %341 = vmatpush2.bf16.msra.mxu0 0
      %342 = vmatprep.subr.bf16.mxu0 0
      %343 = vmatpush2.bf16.msra.mxu0 0
      %344 = vmatprep.subr.bf16.mxu0 0
      %345 = vmatpush2.bf16.msra.mxu0 0
      %346 = vmatprep.subr.bf16.mxu0 0
      %347 = vmatpush2.bf16.msra.mxu0 0
      %348 = vmatprep.subr.bf16.mxu0 0
      %349 = vmatpush2.bf16.msra.mxu0 0
      %350 = vmatprep.mubr.bf16.mxu0 0
      %351 = vmatmul.mubr.bf16.gmra.mxu0 %v313
      %v352 = vpop.f32.mrf.mxu0
      %v353 = vadd.f32 0.0, %v352
      %v354 = vpop.f32.mrf.mxu0
      %v355 = vpop.f32.mrf.mxu0
      %v356 = vpop.f32.mrf.mxu0
      %357 = vdwg.mxu0
      %v358 = vadd.f32 %v303, %v353
      %v359 = vld [vmem:[%s2] sm:$0xff]
      %361 = vset.pattern.permute.xlu0 0
      %362 = vperm.xlu0 %361, %v359
      %v363 = vpop.permute.xlu0 %362
      %v365 = vadd.f32 %v358, %v363
      %v366 = vpack.c.bf16 %v365, %v365
      %vm367 = vcmask 519168
      %368 = vst.msk [vmem:[%s196] sm:$0xf] %vm367, %v366
      %p369 = scmp.lt.s32.totalorder %s18, 1
      %s370 = scalar_select %p369, %s18, 1
      %p371 = scmp.lt.s32.totalorder %s19, 0
      %s372 = scalar_select %p371, %s19, 0
      %s373 = sadd.s32 %s372, %s370
      %s374 = smul.addr %s373, 4
      %s375 = scalar_lea.vmem %s3, %s374
      // Predicated region
      $region33: #{generator_forward_pallas.47} parent=31 // pred_check
        %p376 = pneg %p116
      $region34: #{generator_forward_pallas.47} parent=31 // pred_check_branch
        %378 = sbr.rel (%p376) target = $region36
      $region35: #{generator_forward_pallas.47} parent=31 // pred_region
        _
      $region36: #{generator_forward_pallas.47} parent=31 // pred_fallthru
        _
    $region32: #{generator_forward_pallas.47} parent=5 // pred_fallthru
      _
    %p379 = scmp.le.s32.totalorder 2, %s9
    // Predicated region
    $region37: #{generator_forward_pallas.47} parent=5 // pred_check
      %p380 = pneg %p379
    $region38: #{generator_forward_pallas.47} parent=5 // pred_check_branch
      %382 = sbr.rel (%p380) target = $region40
    $region39: #{generator_forward_pallas.47} parent=5 // pred_region
      %s383 = ssub.s32 %s9, 2
      // Predicated region
      $region41: #{generator_forward_pallas.47} parent=39 // pred_check
        %p384 = pneg %p122
      $region42: #{generator_forward_pallas.47} parent=39 // pred_check_branch
        %386 = sbr.rel (%p384) target = $region44
      $region43: #{generator_forward_pallas.47} parent=39 // pred_region
        %p387 = scmp.lt.s32.totalorder %s20, 1
        %s388 = scalar_select %p387, %s20, 1
        %p389 = scmp.lt.s32.totalorder %s21, 0
        %s390 = scalar_select %p389, %s21, 0
        %s391 = sadd.s32 %s390, %s388
        %s392 = smul.addr %s391, 4
        %s393 = scalar_lea.vmem %s3, %s392
      $region44: #{generator_forward_pallas.47} parent=39 // pred_fallthru
        _
    $region40: #{generator_forward_pallas.47} parent=5 // pred_fallthru
      _
  $region6: #{generator_forward_pallas.47} parent=0 // loop_footer
    %s13 = sadd.s32 1, %s9
  $region7: #{generator_forward_pallas.47} parent=0 // loop_footer_branch
    %8 = sbr.rel target = $region3
  $region8: #{generator_forward_pallas.47} parent=0 // loop_exit
    _

// kernel: generator_forward_pallas.53
$region0: #{generator_forward_pallas.53}
  #allocation0 [shape = 'u32[]', space=smem, size = 0x4, offset = 0x4, fixed_abs, tag = 'smem constant byte address 0x4 - core index']
  #allocation1 [shape = 'u32[144,128]{1,0:T(1,128)}', space=vmem, size = 0x12000, scoped, tag = 'internal scratch']
  %s0 = inlined_call_operand.vmem [shape: bf16[2,1,8,68], index: 0, kind: input, shape index: {}]
  %s1 = inlined_call_operand.vmem [shape: bf16[8,40], index: 1, kind: input, shape index: {}]
  %s2 = inlined_call_operand.vmem [shape: f32[8,1], index: 2, kind: input, shape index: {}]
  %s3 = inlined_call_operand.vmem [shape: bf16[2,8,64], index: 3, kind: output, shape index: {}]
  %s4 = sld [smem:[#allocation0]]
  $region45: #{generator_forward_pallas.53} parent=0
    _
  %s6 = ssub.s32 1, %s4
  %s7 = scalar_select 0, %s6, %s4
  loop: start=0, step=1, limit=4
  $region2: #{generator_forward_pallas.53} parent=0 // loop_pre_header
    _
  $region3: #{generator_forward_pallas.53} parent=0 // loop_header
    %s9 = sphi 0, %s13
    %p10 = scmp.ge.s32.totalorder %s9, 4
    %s16 = sphi 0, %s28
    %s17 = sphi 0, %s24
    %s18 = sphi 0, %s16
    %s19 = sphi 0, %s17
    %s20 = sphi 0, %s18
    %s21 = sphi 0, %s19
    %s33 = sphi 0, %s35
    %s36 = sphi 0, %s33
    %s37 = sphi 0, %s36
    %s53 = sphi 0, %s37
    %s57 = sphi 0, %s57
    %s59 = sphi 0, %s57
    %s60 = sphi 0, %s59
    %s74 = sphi 0, %s60
    %s78 = sphi 0, %s78
    %s80 = sphi 0, %s78
    %s81 = sphi 0, %s80
    %s95 = sphi 0, %s81
    %s103 = sphi 0, %s105
    %s106 = sphi 0, %s103
    %s107 = sphi 0, %s106
    %s123 = sphi 0, %s107
  $region4: #{generator_forward_pallas.53} parent=0 // loop_header_branch
    %12 = sbr.rel (%p10) target = $region8
  $region5: #{generator_forward_pallas.53} parent=0 // loop_body
    %s14 = ssub.s32 %s9, 1
    %s15 = ssub.s32 %s9, 2
    %s22 = sadd.s32 1, %s17
    %p23 = scmp.ge.s32.totalorder %s22, 1
    %s24 = scalar_select %p23, 0, %s22
    %s25 = sadd.s32 1, %s16
    %s26 = scalar_select %p23, %s25, %s16
    %p27 = scmp.ge.s32.totalorder %s26, 2
    %s28 = scalar_select %p27, 0, %s26
    %s29 = ssub.s32 %s16, %s28
    %s30 = ssub.s32 %s17, %s24
    %s31 = sor.u32 %s29, %s30
    %p32 = scmp.eq.s32.totalorder %s31, 0
    %s34 = sadd.s32 %s33, 1
    %s35 = scalar_select %p32, %s33, %s34
    %p38 = pneg %p32
    %p39 = scmp.eq.s32.totalorder %s9, 1
    %p40 = por %p38, %p39
    %p41 = scmp.ne.s32.totalorder %s33, %s36
    %p42 = scmp.eq.s32.totalorder %s9, 0
    %p43 = por %p41, %p42
    %p44 = scmp.ne.s32.totalorder %s33, %s36
    %p45 = scmp.eq.s32.totalorder %s14, 1
    %p46 = por %p44, %p45
    %p47 = scmp.ne.s32.totalorder %s36, %s37
    %p48 = scmp.eq.s32.totalorder %s14, 0
    %p49 = por %p47, %p48
    %p50 = scmp.ne.s32.totalorder %s36, %s37
    %p51 = scmp.eq.s32.totalorder %s15, 1
    %p52 = por %p50, %p51
    %p54 = scmp.ne.s32.totalorder %s37, %s53
    %p55 = scmp.eq.s32.totalorder %s15, 0
    %p56 = por %p54, %p55
    %s58 = sadd.s32 %s57, 1
    %p61 = scmp.eq.s32.totalorder %s9, 1
    %p62 = scmp.ne.s32.totalorder %s57, %s59
    %p63 = scmp.eq.s32.totalorder %s9, 0
    %p64 = por %p62, %p63
    %p65 = scmp.ne.s32.totalorder %s57, %s59
    %p66 = scmp.eq.s32.totalorder %s14, 1
    %p67 = por %p65, %p66
    %p68 = scmp.ne.s32.totalorder %s59, %s60
    %p69 = scmp.eq.s32.totalorder %s14, 0
    %p70 = por %p68, %p69
    %p71 = scmp.ne.s32.totalorder %s59, %s60
    %p72 = scmp.eq.s32.totalorder %s15, 1
    %p73 = por %p71, %p72
    %p75 = scmp.ne.s32.totalorder %s60, %s74
    %p76 = scmp.eq.s32.totalorder %s15, 0
    %p77 = por %p75, %p76
    %s79 = sadd.s32 %s78, 1
    %p82 = scmp.eq.s32.totalorder %s9, 1
    %p83 = scmp.ne.s32.totalorder %s78, %s80
    %p84 = scmp.eq.s32.totalorder %s9, 0
    %p85 = por %p83, %p84
    %p86 = scmp.ne.s32.totalorder %s78, %s80
    %p87 = scmp.eq.s32.totalorder %s14, 1
    %p88 = por %p86, %p87
    %p89 = scmp.ne.s32.totalorder %s80, %s81
    %p90 = scmp.eq.s32.totalorder %s14, 0
    %p91 = por %p89, %p90
    %p92 = scmp.ne.s32.totalorder %s80, %s81
    %p93 = scmp.eq.s32.totalorder %s15, 1
    %p94 = por %p92, %p93
    %p96 = scmp.ne.s32.totalorder %s81, %s95
    %p97 = scmp.eq.s32.totalorder %s15, 0
    %p98 = por %p96, %p97
    %s99 = ssub.s32 %s16, %s28
    %s100 = ssub.s32 %s17, %s24
    %s101 = sor.u32 %s99, %s100
    %p102 = scmp.eq.s32.totalorder %s101, 0
    %s104 = sadd.s32 %s103, 1
    %s105 = scalar_select %p102, %s103, %s104
    %p108 = pneg %p102
    %p109 = scmp.eq.s32.totalorder %s9, 1
    %p110 = por %p108, %p109
    %p111 = scmp.ne.s32.totalorder %s103, %s106
    %p112 = scmp.eq.s32.totalorder %s9, 0
    %p113 = por %p111, %p112
    %p114 = scmp.ne.s32.totalorder %s103, %s106
    %p115 = scmp.eq.s32.totalorder %s14, 1
    %p116 = por %p114, %p115
    %p117 = scmp.ne.s32.totalorder %s106, %s107
    %p118 = scmp.eq.s32.totalorder %s14, 0
    %p119 = por %p117, %p118
    %p120 = scmp.ne.s32.totalorder %s106, %s107
    %p121 = scmp.eq.s32.totalorder %s15, 1
    %p122 = por %p120, %p121
    %p124 = scmp.ne.s32.totalorder %s107, %s123
    %p125 = scmp.eq.s32.totalorder %s15, 0
    %p126 = por %p124, %p125
    %p127 = scmp.le.s32.totalorder 1, %s9
    %p128 = scmp.lt.s32.totalorder %s9, 3
    %p129 = pnand %p127, %p128
    %p130 = pneg %p129
    // Predicated region
    $region9: #{generator_forward_pallas.53} parent=5 // pred_check
      _
    $region10: #{generator_forward_pallas.53} parent=5 // pred_check_branch
      %132 = sbr.rel (%p129) target = $region12
    $region11: #{generator_forward_pallas.53} parent=5 // pred_region
      %s133 = ssub.s32 %s9, 1
      // Predicated region
      $region13: #{generator_forward_pallas.53} parent=11 // pred_check
        %p134 = pneg %p70
      $region14: #{generator_forward_pallas.53} parent=11 // pred_check_branch
        %136 = sbr.rel (%p134) target = $region16
      $region15: #{generator_forward_pallas.53} parent=11 // pred_region
        _
      $region16: #{generator_forward_pallas.53} parent=11 // pred_fallthru
        _
      // Predicated region
      $region17: #{generator_forward_pallas.53} parent=11 // pred_check
        %p137 = pneg %p91
      $region18: #{generator_forward_pallas.53} parent=11 // pred_check_branch
        %139 = sbr.rel (%p137) target = $region20
      $region19: #{generator_forward_pallas.53} parent=11 // pred_region
        _
      $region20: #{generator_forward_pallas.53} parent=11 // pred_fallthru
        _
    $region12: #{generator_forward_pallas.53} parent=5 // pred_fallthru
      _
    %p140 = scmp.lt.s32.totalorder %s9, 2
    // Predicated region
    $region21: #{generator_forward_pallas.53} parent=5 // pred_check
      %p141 = pneg %p140
    $region22: #{generator_forward_pallas.53} parent=5 // pred_check_branch
      %143 = sbr.rel (%p141) target = $region24
    $region23: #{generator_forward_pallas.53} parent=5 // pred_region
      // Predicated region
      $region25: #{generator_forward_pallas.53} parent=23 // pred_check
        %p144 = pneg %p43
      $region26: #{generator_forward_pallas.53} parent=23 // pred_check_branch
        %146 = sbr.rel (%p144) target = $region28
      $region27: #{generator_forward_pallas.53} parent=23 // pred_region
        %p147 = scmp.lt.s32.totalorder %s16, 1
        %s148 = scalar_select %p147, %s16, 1
        %p149 = scmp.lt.s32.totalorder %s17, 0
        %s150 = scalar_select %p149, %s17, 0
        %s151 = sadd.s32 %s150, %s148
        %s152 = smul.addr %s151, 4
        %s153 = scalar_lea.vmem %s0, %s152
      $region28: #{generator_forward_pallas.53} parent=23 // pred_fallthru
        _
    $region24: #{generator_forward_pallas.53} parent=5 // pred_fallthru
      _
    %p154 = scmp.le.s32.totalorder 1, %s9
    %p155 = scmp.lt.s32.totalorder %s9, 3
    %p156 = pnand %p154, %p155
    %p157 = pneg %p156
    // Predicated region
    $region29: #{generator_forward_pallas.53} parent=5 // pred_check
      _
    $region30: #{generator_forward_pallas.53} parent=5 // pred_check_branch
      %159 = sbr.rel (%p156) target = $region32
    $region31: #{generator_forward_pallas.53} parent=5 // pred_region
      %s160 = ssub.s32 %s9, 1
      %p161 = scmp.lt.s32.totalorder %s18, 1
      %s162 = scalar_select %p161, %s18, 1
      %p163 = scmp.lt.s32.totalorder %s19, 0
      %s164 = scalar_select %p163, %s19, 0
      %s165 = sadd.s32 %s164, %s162
      %s166 = smul.addr %s165, 4
      %s167 = scalar_lea.vmem %s0, %s166
      %p168 = pneg %p49
      %p169 = pneg %p46
      %p170 = pneg %p70
      %p171 = pneg %p67
      %p172 = pneg %p91
      %p173 = pneg %p88
      %p174 = pneg %p119
      %p175 = pneg %p116
      %p176 = scmp.lt.s32.totalorder %s18, 1
      %s177 = scalar_select %p176, %s18, 1
      %p178 = scmp.lt.s32.totalorder %s19, 0
      %s179 = scalar_select %p178, %s19, 0
      %s180 = sadd.s32 %s179, %s177
      %s181 = smul.addr %s180, 4
      %s182 = scalar_lea.vmem %s3, %s181
      %p183 = scmp.lt.s32.totalorder %s18, 1
      %s184 = scalar_select %p183, %s18, 1
      %p185 = scmp.lt.s32.totalorder %s19, 0
      %s186 = scalar_select %p185, %s19, 0
      %s187 = sadd.s32 %s186, %s184
      %s188 = smul.addr %s187, 4
      %s189 = scalar_lea.vmem %s0, %s188
      %p190 = scmp.lt.s32.totalorder %s18, 1
      %s191 = scalar_select %p190, %s18, 1
      %p192 = scmp.lt.s32.totalorder %s19, 0
      %s193 = scalar_select %p192, %s19, 0
      %s194 = sadd.s32 %s193, %s191
      %s195 = smul.addr %s194, 4
      %s196 = scalar_lea.vmem %s3, %s195
      %v199 = vld [vmem:[%s189] sm:$0xf]
      %vm200 = vcmp.ge.bf16.partialorder %v199, 0
      %v201 = vmul.bf16 %v199, 1036860877
      %v202 = vsel %vm200, %v199, %v201
      %v203 = vld [vmem:[%s1] sm:$0xf]
      %v205 = vunpack.c.l.b16 %v203
      %v206 = vpack.c.b16 %v205, %v205
      %207 = vrot.lane.b32.xlu0 %v206, 120
      %v208 = vpop.permute.xlu0 %207
      %v210 = vunpack.c.l.b16 %v202
      %v211 = vpack.c.b16 %v210, %v210
      %212 = vrot.lane.b32.xlu0 %v211, 127
      %v213 = vpop.permute.xlu0 %212
      %vm214 = vcmask 64512
      %v216 = vsel %vm214, %v208, 0
      %vm218 = vcmask 1043456
      %v220 = vsel %vm218, %v213, 0
      %222 = vmatprep.subr.bf16.mxu0 0
      %223 = vmatpush1.bf16.msra.mxu0 0
      %224 = vmatprep.subr.bf16.mxu0 0
      %225 = vmatpush1.bf16.msra.mxu0 0
      %226 = vmatprep.subr.bf16.mxu0 0
      %227 = vmatpush1.bf16.msra.mxu0 0
      %228 = vmatprep.subr.bf16.mxu0 0
      %229 = vmatpush1.bf16.msra.mxu0 0
      %230 = vmatprep.subr.bf16.mxu0 0
      %231 = vmatpush1.bf16.msra.mxu0 0
      %232 = vmatprep.subr.bf16.mxu0 0
      %233 = vmatpush1.bf16.msra.mxu0 0
      %234 = vmatprep.subr.bf16.mxu0 0
      %235 = vmatpush1.bf16.msra.mxu0 0
      %236 = vmatprep.subr.bf16.mxu0 0
      %237 = vmatpush1.bf16.msra.mxu0 %v220
      %238 = vmatprep.subr.bf16.mxu0 0
      %239 = vmatpush2.bf16.msra.mxu0 0
      %240 = vmatprep.subr.bf16.mxu0 0
      %241 = vmatpush2.bf16.msra.mxu0 0
      %242 = vmatprep.subr.bf16.mxu0 0
      %243 = vmatpush2.bf16.msra.mxu0 0
      %244 = vmatprep.subr.bf16.mxu0 0
      %245 = vmatpush2.bf16.msra.mxu0 0
      %246 = vmatprep.subr.bf16.mxu0 0
      %247 = vmatpush2.bf16.msra.mxu0 0
      %248 = vmatprep.subr.bf16.mxu0 0
      %249 = vmatpush2.bf16.msra.mxu0 0
      %250 = vmatprep.subr.bf16.mxu0 0
      %251 = vmatpush2.bf16.msra.mxu0 0
      %252 = vmatprep.subr.bf16.mxu0 0
      %253 = vmatpush2.bf16.msra.mxu0 0
      %254 = vmatprep.mubr.bf16.mxu0 0
      %255 = vmatmul.mubr.bf16.gmra.mxu0 %v216
      %v256 = vpop.f32.mrf.mxu0
      %v257 = vadd.f32 0.0, %v256
      %v258 = vpop.f32.mrf.mxu0
      %v259 = vpop.f32.mrf.mxu0
      %v260 = vpop.f32.mrf.mxu0
      %261 = vdwg.mxu0
      %v263 = vsel %vm214, %v203, 0
      %v266 = vsel %vm218, %v202, 0
      %268 = vmatprep.subr.bf16.mxu0 0
      %269 = vmatpush1.bf16.msra.mxu0 0
      %270 = vmatprep.subr.bf16.mxu0 0
      %271 = vmatpush1.bf16.msra.mxu0 0
      %272 = vmatprep.subr.bf16.mxu0 0
      %273 = vmatpush1.bf16.msra.mxu0 0
      %274 = vmatprep.subr.bf16.mxu0 0
      %275 = vmatpush1.bf16.msra.mxu0 0
      %276 = vmatprep.subr.bf16.mxu0 0
      %277 = vmatpush1.bf16.msra.mxu0 0
      %278 = vmatprep.subr.bf16.mxu0 0
      %279 = vmatpush1.bf16.msra.mxu0 0
      %280 = vmatprep.subr.bf16.mxu0 0
      %281 = vmatpush1.bf16.msra.mxu0 0
      %282 = vmatprep.subr.bf16.mxu0 0
      %283 = vmatpush1.bf16.msra.mxu0 %v266
      %284 = vmatprep.subr.bf16.mxu0 0
      %285 = vmatpush2.bf16.msra.mxu0 0
      %286 = vmatprep.subr.bf16.mxu0 0
      %287 = vmatpush2.bf16.msra.mxu0 0
      %288 = vmatprep.subr.bf16.mxu0 0
      %289 = vmatpush2.bf16.msra.mxu0 0
      %290 = vmatprep.subr.bf16.mxu0 0
      %291 = vmatpush2.bf16.msra.mxu0 0
      %292 = vmatprep.subr.bf16.mxu0 0
      %293 = vmatpush2.bf16.msra.mxu0 0
      %294 = vmatprep.subr.bf16.mxu0 0
      %295 = vmatpush2.bf16.msra.mxu0 0
      %296 = vmatprep.subr.bf16.mxu0 0
      %297 = vmatpush2.bf16.msra.mxu0 0
      %298 = vmatprep.subr.bf16.mxu0 0
      %299 = vmatpush2.bf16.msra.mxu0 0
      %300 = vmatprep.mubr.bf16.mxu0 0
      %301 = vmatmul.mubr.bf16.gmra.mxu0 %v263
      %v302 = vpop.f32.mrf.mxu0
      %v303 = vadd.f32 %v257, %v302
      %v304 = vpop.f32.mrf.mxu0
      %v305 = vpop.f32.mrf.mxu0
      %v306 = vpop.f32.mrf.mxu0
      %307 = vdwg.mxu0
      %308 = vrot.lane.b32.xlu0 %v206, 112
      %v309 = vpop.permute.xlu0 %308
      %310 = vrot.lane.b32.xlu0 %v211, 126
      %v311 = vpop.permute.xlu0 %310
      %v313 = vsel %vm214, %v309, 0
      %v316 = vsel %vm218, %v311, 0
      %318 = vmatprep.subr.bf16.mxu0 0
      %319 = vmatpush1.bf16.msra.mxu0 0
      %320 = vmatprep.subr.bf16.mxu0 0
      %321 = vmatpush1.bf16.msra.mxu0 0
      %322 = vmatprep.subr.bf16.mxu0 0
      %323 = vmatpush1.bf16.msra.mxu0 0
      %324 = vmatprep.subr.bf16.mxu0 0
      %325 = vmatpush1.bf16.msra.mxu0 0
      %326 = vmatprep.subr.bf16.mxu0 0
      %327 = vmatpush1.bf16.msra.mxu0 0
      %328 = vmatprep.subr.bf16.mxu0 0
      %329 = vmatpush1.bf16.msra.mxu0 0
      %330 = vmatprep.subr.bf16.mxu0 0
      %331 = vmatpush1.bf16.msra.mxu0 0
      %332 = vmatprep.subr.bf16.mxu0 0
      %333 = vmatpush1.bf16.msra.mxu0 %v316
      %334 = vmatprep.subr.bf16.mxu0 0
      %335 = vmatpush2.bf16.msra.mxu0 0
      %336 = vmatprep.subr.bf16.mxu0 0
      %337 = vmatpush2.bf16.msra.mxu0 0
      %338 = vmatprep.subr.bf16.mxu0 0
      %339 = vmatpush2.bf16.msra.mxu0 0
      %340 = vmatprep.subr.bf16.mxu0 0
      %341 = vmatpush2.bf16.msra.mxu0 0
      %342 = vmatprep.subr.bf16.mxu0 0
      %343 = vmatpush2.bf16.msra.mxu0 0
      %344 = vmatprep.subr.bf16.mxu0 0
      %345 = vmatpush2.bf16.msra.mxu0 0
      %346 = vmatprep.subr.bf16.mxu0 0
      %347 = vmatpush2.bf16.msra.mxu0 0
      %348 = vmatprep.subr.bf16.mxu0 0
      %349 = vmatpush2.bf16.msra.mxu0 0
      %350 = vmatprep.mubr.bf16.mxu0 0
      %351 = vmatmul.mubr.bf16.gmra.mxu0 %v313
      %v352 = vpop.f32.mrf.mxu0
      %v353 = vadd.f32 0.0, %v352
      %v354 = vpop.f32.mrf.mxu0
      %v355 = vpop.f32.mrf.mxu0
      %v356 = vpop.f32.mrf.mxu0
      %357 = vdwg.mxu0
      %v358 = vadd.f32 %v303, %v353
      %359 = vrot.lane.b32.xlu0 %v206, 104
      %v360 = vpop.permute.xlu0 %359
      %361 = vrot.lane.b32.xlu0 %v211, 125
      %v362 = vpop.permute.xlu0 %361
      %v364 = vsel %vm214, %v360, 0
      %v367 = vsel %vm218, %v362, 0
      %369 = vmatprep.subr.bf16.mxu0 0
      %370 = vmatpush1.bf16.msra.mxu0 0
      %371 = vmatprep.subr.bf16.mxu0 0
      %372 = vmatpush1.bf16.msra.mxu0 0
      %373 = vmatprep.subr.bf16.mxu0 0
      %374 = vmatpush1.bf16.msra.mxu0 0
      %375 = vmatprep.subr.bf16.mxu0 0
      %376 = vmatpush1.bf16.msra.mxu0 0
      %377 = vmatprep.subr.bf16.mxu0 0
      %378 = vmatpush1.bf16.msra.mxu0 0
      %379 = vmatprep.subr.bf16.mxu0 0
      %380 = vmatpush1.bf16.msra.mxu0 0
      %381 = vmatprep.subr.bf16.mxu0 0
      %382 = vmatpush1.bf16.msra.mxu0 0
      %383 = vmatprep.subr.bf16.mxu0 0
      %384 = vmatpush1.bf16.msra.mxu0 %v367
      %385 = vmatprep.subr.bf16.mxu0 0
      %386 = vmatpush2.bf16.msra.mxu0 0
      %387 = vmatprep.subr.bf16.mxu0 0
      %388 = vmatpush2.bf16.msra.mxu0 0
      %389 = vmatprep.subr.bf16.mxu0 0
      %390 = vmatpush2.bf16.msra.mxu0 0
      %391 = vmatprep.subr.bf16.mxu0 0
      %392 = vmatpush2.bf16.msra.mxu0 0
      %393 = vmatprep.subr.bf16.mxu0 0
      %394 = vmatpush2.bf16.msra.mxu0 0
      %395 = vmatprep.subr.bf16.mxu0 0
      %396 = vmatpush2.bf16.msra.mxu0 0
      %397 = vmatprep.subr.bf16.mxu0 0
      %398 = vmatpush2.bf16.msra.mxu0 0
      %399 = vmatprep.subr.bf16.mxu0 0
      %400 = vmatpush2.bf16.msra.mxu0 0
      %401 = vmatprep.mubr.bf16.mxu0 0
      %402 = vmatmul.mubr.bf16.gmra.mxu0 %v364
      %v403 = vpop.f32.mrf.mxu0
      %v404 = vadd.f32 0.0, %v403
      %v405 = vpop.f32.mrf.mxu0
      %v406 = vpop.f32.mrf.mxu0
      %v407 = vpop.f32.mrf.mxu0
      %408 = vdwg.mxu0
      %v409 = vadd.f32 %v358, %v404
      %410 = vrot.lane.b32.xlu0 %v206, 96
      %v411 = vpop.permute.xlu0 %410
      %412 = vrot.lane.b32.xlu0 %v211, 124
      %v413 = vpop.permute.xlu0 %412
      %v415 = vsel %vm214, %v411, 0
      %v418 = vsel %vm218, %v413, 0
      %420 = vmatprep.subr.bf16.mxu0 0
      %421 = vmatpush1.bf16.msra.mxu0 0
      %422 = vmatprep.subr.bf16.mxu0 0
      %423 = vmatpush1.bf16.msra.mxu0 0
      %424 = vmatprep.subr.bf16.mxu0 0
      %425 = vmatpush1.bf16.msra.mxu0 0
      %426 = vmatprep.subr.bf16.mxu0 0
      %427 = vmatpush1.bf16.msra.mxu0 0
      %428 = vmatprep.subr.bf16.mxu0 0
      %429 = vmatpush1.bf16.msra.mxu0 0
      %430 = vmatprep.subr.bf16.mxu0 0
      %431 = vmatpush1.bf16.msra.mxu0 0
      %432 = vmatprep.subr.bf16.mxu0 0
      %433 = vmatpush1.bf16.msra.mxu0 0
      %434 = vmatprep.subr.bf16.mxu0 0
      %435 = vmatpush1.bf16.msra.mxu0 %v418
      %436 = vmatprep.subr.bf16.mxu0 0
      %437 = vmatpush2.bf16.msra.mxu0 0
      %438 = vmatprep.subr.bf16.mxu0 0
      %439 = vmatpush2.bf16.msra.mxu0 0
      %440 = vmatprep.subr.bf16.mxu0 0
      %441 = vmatpush2.bf16.msra.mxu0 0
      %442 = vmatprep.subr.bf16.mxu0 0
      %443 = vmatpush2.bf16.msra.mxu0 0
      %444 = vmatprep.subr.bf16.mxu0 0
      %445 = vmatpush2.bf16.msra.mxu0 0
      %446 = vmatprep.subr.bf16.mxu0 0
      %447 = vmatpush2.bf16.msra.mxu0 0
      %448 = vmatprep.subr.bf16.mxu0 0
      %449 = vmatpush2.bf16.msra.mxu0 0
      %450 = vmatprep.subr.bf16.mxu0 0
      %451 = vmatpush2.bf16.msra.mxu0 0
      %452 = vmatprep.mubr.bf16.mxu0 0
      %453 = vmatmul.mubr.bf16.gmra.mxu0 %v415
      %v454 = vpop.f32.mrf.mxu0
      %v455 = vadd.f32 0.0, %v454
      %v456 = vpop.f32.mrf.mxu0
      %v457 = vpop.f32.mrf.mxu0
      %v458 = vpop.f32.mrf.mxu0
      %459 = vdwg.mxu0
      %v460 = vadd.f32 %v409, %v455
      %v461 = vld [vmem:[%s2] sm:$0xff]
      %463 = vset.pattern.permute.xlu0 0
      %464 = vperm.xlu0 %463, %v461
      %v465 = vpop.permute.xlu0 %464
      %v467 = vadd.f32 %v460, %v465
      %v468 = vpack.c.bf16 %v467, %v467
      %vm469 = vcmask 519168
      %470 = vst.msk [vmem:[%s196] sm:$0xf] %vm469, %v468
      %p471 = scmp.lt.s32.totalorder %s18, 1
      %s472 = scalar_select %p471, %s18, 1
      %p473 = scmp.lt.s32.totalorder %s19, 0
      %s474 = scalar_select %p473, %s19, 0
      %s475 = sadd.s32 %s474, %s472
      %s476 = smul.addr %s475, 4
      %s477 = scalar_lea.vmem %s3, %s476
      // Predicated region
      $region33: #{generator_forward_pallas.53} parent=31 // pred_check
        %p478 = pneg %p116
      $region34: #{generator_forward_pallas.53} parent=31 // pred_check_branch
        %480 = sbr.rel (%p478) target = $region36
      $region35: #{generator_forward_pallas.53} parent=31 // pred_region
        _
      $region36: #{generator_forward_pallas.53} parent=31 // pred_fallthru
        _
    $region32: #{generator_forward_pallas.53} parent=5 // pred_fallthru
      _
    %p481 = scmp.le.s32.totalorder 2, %s9
    // Predicated region
    $region37: #{generator_forward_pallas.53} parent=5 // pred_check
      %p482 = pneg %p481
    $region38: #{generator_forward_pallas.53} parent=5 // pred_check_branch
      %484 = sbr.rel (%p482) target = $region40
    $region39: #{generator_forward_pallas.53} parent=5 // pred_region
      %s485 = ssub.s32 %s9, 2
      // Predicated region
      $region41: #{generator_forward_pallas.53} parent=39 // pred_check
        %p486 = pneg %p122
      $region42: #{generator_forward_pallas.53} parent=39 // pred_check_branch
        %488 = sbr.rel (%p486) target = $region44
      $region43: #{generator_forward_pallas.53} parent=39 // pred_region
        %p489 = scmp.lt.s32.totalorder %s20, 1
        %s490 = scalar_select %p489, %s20, 1
        %p491 = scmp.lt.s32.totalorder %s21, 0
        %s492 = scalar_select %p491, %s21, 0
        %s493 = sadd.s32 %s492, %s490
        %s494 = smul.addr %s493, 4
        %s495 = scalar_lea.vmem %s3, %s494
      $region44: #{generator_forward_pallas.53} parent=39 // pred_fallthru
        _
    $region40: #{generator_forward_pallas.53} parent=5 // pred_fallthru
      _
  $region6: #{generator_forward_pallas.53} parent=0 // loop_footer
    %s13 = sadd.s32 1, %s9
  $region7: #{generator_forward_pallas.53} parent=0 // loop_footer_branch
    %8 = sbr.rel target = $region3
  $region8: #{generator_forward_pallas.53} parent=0 // loop_exit
    _

// kernel: generator_forward_pallas.51
$region0: #{generator_forward_pallas.51}
  #allocation0 [shape = 'u32[]', space=smem, size = 0x4, offset = 0x4, fixed_abs, tag = 'smem constant byte address 0x4 - core index']
  #allocation1 [shape = 'u32[144,128]{1,0:T(1,128)}', space=vmem, size = 0x12000, scoped, tag = 'internal scratch']
  %s0 = inlined_call_operand.vmem [shape: bf16[2,1,8,74], index: 0, kind: input, shape index: {}]
  %s1 = inlined_call_operand.vmem [shape: bf16[8,24], index: 1, kind: input, shape index: {}]
  %s2 = inlined_call_operand.vmem [shape: f32[8,1], index: 2, kind: input, shape index: {}]
  %s3 = inlined_call_operand.vmem [shape: bf16[2,8,64], index: 3, kind: output, shape index: {}]
  %s4 = sld [smem:[#allocation0]]
  $region45: #{generator_forward_pallas.51} parent=0
    _
  %s6 = ssub.s32 1, %s4
  %s7 = scalar_select 0, %s6, %s4
  loop: start=0, step=1, limit=4
  $region2: #{generator_forward_pallas.51} parent=0 // loop_pre_header
    _
  $region3: #{generator_forward_pallas.51} parent=0 // loop_header
    %s9 = sphi 0, %s13
    %p10 = scmp.ge.s32.totalorder %s9, 4
    %s16 = sphi 0, %s28
    %s17 = sphi 0, %s24
    %s18 = sphi 0, %s16
    %s19 = sphi 0, %s17
    %s20 = sphi 0, %s18
    %s21 = sphi 0, %s19
    %s33 = sphi 0, %s35
    %s36 = sphi 0, %s33
    %s37 = sphi 0, %s36
    %s53 = sphi 0, %s37
    %s57 = sphi 0, %s57
    %s59 = sphi 0, %s57
    %s60 = sphi 0, %s59
    %s74 = sphi 0, %s60
    %s78 = sphi 0, %s78
    %s80 = sphi 0, %s78
    %s81 = sphi 0, %s80
    %s95 = sphi 0, %s81
    %s103 = sphi 0, %s105
    %s106 = sphi 0, %s103
    %s107 = sphi 0, %s106
    %s123 = sphi 0, %s107
  $region4: #{generator_forward_pallas.51} parent=0 // loop_header_branch
    %12 = sbr.rel (%p10) target = $region8
  $region5: #{generator_forward_pallas.51} parent=0 // loop_body
    %s14 = ssub.s32 %s9, 1
    %s15 = ssub.s32 %s9, 2
    %s22 = sadd.s32 1, %s17
    %p23 = scmp.ge.s32.totalorder %s22, 1
    %s24 = scalar_select %p23, 0, %s22
    %s25 = sadd.s32 1, %s16
    %s26 = scalar_select %p23, %s25, %s16
    %p27 = scmp.ge.s32.totalorder %s26, 2
    %s28 = scalar_select %p27, 0, %s26
    %s29 = ssub.s32 %s16, %s28
    %s30 = ssub.s32 %s17, %s24
    %s31 = sor.u32 %s29, %s30
    %p32 = scmp.eq.s32.totalorder %s31, 0
    %s34 = sadd.s32 %s33, 1
    %s35 = scalar_select %p32, %s33, %s34
    %p38 = pneg %p32
    %p39 = scmp.eq.s32.totalorder %s9, 1
    %p40 = por %p38, %p39
    %p41 = scmp.ne.s32.totalorder %s33, %s36
    %p42 = scmp.eq.s32.totalorder %s9, 0
    %p43 = por %p41, %p42
    %p44 = scmp.ne.s32.totalorder %s33, %s36
    %p45 = scmp.eq.s32.totalorder %s14, 1
    %p46 = por %p44, %p45
    %p47 = scmp.ne.s32.totalorder %s36, %s37
    %p48 = scmp.eq.s32.totalorder %s14, 0
    %p49 = por %p47, %p48
    %p50 = scmp.ne.s32.totalorder %s36, %s37
    %p51 = scmp.eq.s32.totalorder %s15, 1
    %p52 = por %p50, %p51
    %p54 = scmp.ne.s32.totalorder %s37, %s53
    %p55 = scmp.eq.s32.totalorder %s15, 0
    %p56 = por %p54, %p55
    %s58 = sadd.s32 %s57, 1
    %p61 = scmp.eq.s32.totalorder %s9, 1
    %p62 = scmp.ne.s32.totalorder %s57, %s59
    %p63 = scmp.eq.s32.totalorder %s9, 0
    %p64 = por %p62, %p63
    %p65 = scmp.ne.s32.totalorder %s57, %s59
    %p66 = scmp.eq.s32.totalorder %s14, 1
    %p67 = por %p65, %p66
    %p68 = scmp.ne.s32.totalorder %s59, %s60
    %p69 = scmp.eq.s32.totalorder %s14, 0
    %p70 = por %p68, %p69
    %p71 = scmp.ne.s32.totalorder %s59, %s60
    %p72 = scmp.eq.s32.totalorder %s15, 1
    %p73 = por %p71, %p72
    %p75 = scmp.ne.s32.totalorder %s60, %s74
    %p76 = scmp.eq.s32.totalorder %s15, 0
    %p77 = por %p75, %p76
    %s79 = sadd.s32 %s78, 1
    %p82 = scmp.eq.s32.totalorder %s9, 1
    %p83 = scmp.ne.s32.totalorder %s78, %s80
    %p84 = scmp.eq.s32.totalorder %s9, 0
    %p85 = por %p83, %p84
    %p86 = scmp.ne.s32.totalorder %s78, %s80
    %p87 = scmp.eq.s32.totalorder %s14, 1
    %p88 = por %p86, %p87
    %p89 = scmp.ne.s32.totalorder %s80, %s81
    %p90 = scmp.eq.s32.totalorder %s14, 0
    %p91 = por %p89, %p90
    %p92 = scmp.ne.s32.totalorder %s80, %s81
    %p93 = scmp.eq.s32.totalorder %s15, 1
    %p94 = por %p92, %p93
    %p96 = scmp.ne.s32.totalorder %s81, %s95
    %p97 = scmp.eq.s32.totalorder %s15, 0
    %p98 = por %p96, %p97
    %s99 = ssub.s32 %s16, %s28
    %s100 = ssub.s32 %s17, %s24
    %s101 = sor.u32 %s99, %s100
    %p102 = scmp.eq.s32.totalorder %s101, 0
    %s104 = sadd.s32 %s103, 1
    %s105 = scalar_select %p102, %s103, %s104
    %p108 = pneg %p102
    %p109 = scmp.eq.s32.totalorder %s9, 1
    %p110 = por %p108, %p109
    %p111 = scmp.ne.s32.totalorder %s103, %s106
    %p112 = scmp.eq.s32.totalorder %s9, 0
    %p113 = por %p111, %p112
    %p114 = scmp.ne.s32.totalorder %s103, %s106
    %p115 = scmp.eq.s32.totalorder %s14, 1
    %p116 = por %p114, %p115
    %p117 = scmp.ne.s32.totalorder %s106, %s107
    %p118 = scmp.eq.s32.totalorder %s14, 0
    %p119 = por %p117, %p118
    %p120 = scmp.ne.s32.totalorder %s106, %s107
    %p121 = scmp.eq.s32.totalorder %s15, 1
    %p122 = por %p120, %p121
    %p124 = scmp.ne.s32.totalorder %s107, %s123
    %p125 = scmp.eq.s32.totalorder %s15, 0
    %p126 = por %p124, %p125
    %p127 = scmp.le.s32.totalorder 1, %s9
    %p128 = scmp.lt.s32.totalorder %s9, 3
    %p129 = pnand %p127, %p128
    %p130 = pneg %p129
    // Predicated region
    $region9: #{generator_forward_pallas.51} parent=5 // pred_check
      _
    $region10: #{generator_forward_pallas.51} parent=5 // pred_check_branch
      %132 = sbr.rel (%p129) target = $region12
    $region11: #{generator_forward_pallas.51} parent=5 // pred_region
      %s133 = ssub.s32 %s9, 1
      // Predicated region
      $region13: #{generator_forward_pallas.51} parent=11 // pred_check
        %p134 = pneg %p70
      $region14: #{generator_forward_pallas.51} parent=11 // pred_check_branch
        %136 = sbr.rel (%p134) target = $region16
      $region15: #{generator_forward_pallas.51} parent=11 // pred_region
        _
      $region16: #{generator_forward_pallas.51} parent=11 // pred_fallthru
        _
      // Predicated region
      $region17: #{generator_forward_pallas.51} parent=11 // pred_check
        %p137 = pneg %p91
      $region18: #{generator_forward_pallas.51} parent=11 // pred_check_branch
        %139 = sbr.rel (%p137) target = $region20
      $region19: #{generator_forward_pallas.51} parent=11 // pred_region
        _
      $region20: #{generator_forward_pallas.51} parent=11 // pred_fallthru
        _
    $region12: #{generator_forward_pallas.51} parent=5 // pred_fallthru
      _
    %p140 = scmp.lt.s32.totalorder %s9, 2
    // Predicated region
    $region21: #{generator_forward_pallas.51} parent=5 // pred_check
      %p141 = pneg %p140
    $region22: #{generator_forward_pallas.51} parent=5 // pred_check_branch
      %143 = sbr.rel (%p141) target = $region24
    $region23: #{generator_forward_pallas.51} parent=5 // pred_region
      // Predicated region
      $region25: #{generator_forward_pallas.51} parent=23 // pred_check
        %p144 = pneg %p43
      $region26: #{generator_forward_pallas.51} parent=23 // pred_check_branch
        %146 = sbr.rel (%p144) target = $region28
      $region27: #{generator_forward_pallas.51} parent=23 // pred_region
        %p147 = scmp.lt.s32.totalorder %s16, 1
        %s148 = scalar_select %p147, %s16, 1
        %p149 = scmp.lt.s32.totalorder %s17, 0
        %s150 = scalar_select %p149, %s17, 0
        %s151 = sadd.s32 %s150, %s148
        %s152 = smul.addr %s151, 4
        %s153 = scalar_lea.vmem %s0, %s152
      $region28: #{generator_forward_pallas.51} parent=23 // pred_fallthru
        _
    $region24: #{generator_forward_pallas.51} parent=5 // pred_fallthru
      _
    %p154 = scmp.le.s32.totalorder 1, %s9
    %p155 = scmp.lt.s32.totalorder %s9, 3
    %p156 = pnand %p154, %p155
    %p157 = pneg %p156
    // Predicated region
    $region29: #{generator_forward_pallas.51} parent=5 // pred_check
      _
    $region30: #{generator_forward_pallas.51} parent=5 // pred_check_branch
      %159 = sbr.rel (%p156) target = $region32
    $region31: #{generator_forward_pallas.51} parent=5 // pred_region
      %s160 = ssub.s32 %s9, 1
      %p161 = scmp.lt.s32.totalorder %s18, 1
      %s162 = scalar_select %p161, %s18, 1
      %p163 = scmp.lt.s32.totalorder %s19, 0
      %s164 = scalar_select %p163, %s19, 0
      %s165 = sadd.s32 %s164, %s162
      %s166 = smul.addr %s165, 4
      %s167 = scalar_lea.vmem %s0, %s166
      %p168 = pneg %p49
      %p169 = pneg %p46
      %p170 = pneg %p70
      %p171 = pneg %p67
      %p172 = pneg %p91
      %p173 = pneg %p88
      %p174 = pneg %p119
      %p175 = pneg %p116
      %p176 = scmp.lt.s32.totalorder %s18, 1
      %s177 = scalar_select %p176, %s18, 1
      %p178 = scmp.lt.s32.totalorder %s19, 0
      %s179 = scalar_select %p178, %s19, 0
      %s180 = sadd.s32 %s179, %s177
      %s181 = smul.addr %s180, 4
      %s182 = scalar_lea.vmem %s3, %s181
      %p183 = scmp.lt.s32.totalorder %s18, 1
      %s184 = scalar_select %p183, %s18, 1
      %p185 = scmp.lt.s32.totalorder %s19, 0
      %s186 = scalar_select %p185, %s19, 0
      %s187 = sadd.s32 %s186, %s184
      %s188 = smul.addr %s187, 4
      %s189 = scalar_lea.vmem %s0, %s188
      %p190 = scmp.lt.s32.totalorder %s18, 1
      %s191 = scalar_select %p190, %s18, 1
      %p192 = scmp.lt.s32.totalorder %s19, 0
      %s193 = scalar_select %p192, %s19, 0
      %s194 = sadd.s32 %s193, %s191
      %s195 = smul.addr %s194, 4
      %s196 = scalar_lea.vmem %s3, %s195
      %v199 = vld [vmem:[%s189] sm:$0xf]
      %vm200 = vcmp.ge.bf16.partialorder %v199, 0
      %v201 = vmul.bf16 %v199, 1036860877
      %v202 = vsel %vm200, %v199, %v201
      %v203 = vld [vmem:[%s1] sm:$0xf]
      %v205 = vunpack.c.l.b16 %v203
      %v206 = vpack.c.b16 %v205, %v205
      %207 = vrot.lane.b32.xlu0 %v206, 120
      %v208 = vpop.permute.xlu0 %207
      %v210 = vunpack.c.l.b16 %v202
      %v211 = vpack.c.b16 %v210, %v210
      %212 = vrot.lane.b32.xlu0 %v211, 123
      %v213 = vpop.permute.xlu0 %212
      %vm214 = vcmask 64512
      %v216 = vsel %vm214, %v208, 0
      %vm218 = vcmask 1043456
      %v220 = vsel %vm218, %v213, 0
      %222 = vmatprep.subr.bf16.mxu0 0
      %223 = vmatpush1.bf16.msra.mxu0 0
      %224 = vmatprep.subr.bf16.mxu0 0
      %225 = vmatpush1.bf16.msra.mxu0 0
      %226 = vmatprep.subr.bf16.mxu0 0
      %227 = vmatpush1.bf16.msra.mxu0 0
      %228 = vmatprep.subr.bf16.mxu0 0
      %229 = vmatpush1.bf16.msra.mxu0 0
      %230 = vmatprep.subr.bf16.mxu0 0
      %231 = vmatpush1.bf16.msra.mxu0 0
      %232 = vmatprep.subr.bf16.mxu0 0
      %233 = vmatpush1.bf16.msra.mxu0 0
      %234 = vmatprep.subr.bf16.mxu0 0
      %235 = vmatpush1.bf16.msra.mxu0 0
      %236 = vmatprep.subr.bf16.mxu0 0
      %237 = vmatpush1.bf16.msra.mxu0 %v220
      %238 = vmatprep.subr.bf16.mxu0 0
      %239 = vmatpush2.bf16.msra.mxu0 0
      %240 = vmatprep.subr.bf16.mxu0 0
      %241 = vmatpush2.bf16.msra.mxu0 0
      %242 = vmatprep.subr.bf16.mxu0 0
      %243 = vmatpush2.bf16.msra.mxu0 0
      %244 = vmatprep.subr.bf16.mxu0 0
      %245 = vmatpush2.bf16.msra.mxu0 0
      %246 = vmatprep.subr.bf16.mxu0 0
      %247 = vmatpush2.bf16.msra.mxu0 0
      %248 = vmatprep.subr.bf16.mxu0 0
      %249 = vmatpush2.bf16.msra.mxu0 0
      %250 = vmatprep.subr.bf16.mxu0 0
      %251 = vmatpush2.bf16.msra.mxu0 0
      %252 = vmatprep.subr.bf16.mxu0 0
      %253 = vmatpush2.bf16.msra.mxu0 0
      %254 = vmatprep.mubr.bf16.mxu0 0
      %255 = vmatmul.mubr.bf16.gmra.mxu0 %v216
      %v256 = vpop.f32.mrf.mxu0
      %v257 = vadd.f32 0.0, %v256
      %v258 = vpop.f32.mrf.mxu0
      %v259 = vpop.f32.mrf.mxu0
      %v260 = vpop.f32.mrf.mxu0
      %261 = vdwg.mxu0
      %v263 = vsel %vm214, %v203, 0
      %v266 = vsel %vm218, %v202, 0
      %268 = vmatprep.subr.bf16.mxu0 0
      %269 = vmatpush1.bf16.msra.mxu0 0
      %270 = vmatprep.subr.bf16.mxu0 0
      %271 = vmatpush1.bf16.msra.mxu0 0
      %272 = vmatprep.subr.bf16.mxu0 0
      %273 = vmatpush1.bf16.msra.mxu0 0
      %274 = vmatprep.subr.bf16.mxu0 0
      %275 = vmatpush1.bf16.msra.mxu0 0
      %276 = vmatprep.subr.bf16.mxu0 0
      %277 = vmatpush1.bf16.msra.mxu0 0
      %278 = vmatprep.subr.bf16.mxu0 0
      %279 = vmatpush1.bf16.msra.mxu0 0
      %280 = vmatprep.subr.bf16.mxu0 0
      %281 = vmatpush1.bf16.msra.mxu0 0
      %282 = vmatprep.subr.bf16.mxu0 0
      %283 = vmatpush1.bf16.msra.mxu0 %v266
      %284 = vmatprep.subr.bf16.mxu0 0
      %285 = vmatpush2.bf16.msra.mxu0 0
      %286 = vmatprep.subr.bf16.mxu0 0
      %287 = vmatpush2.bf16.msra.mxu0 0
      %288 = vmatprep.subr.bf16.mxu0 0
      %289 = vmatpush2.bf16.msra.mxu0 0
      %290 = vmatprep.subr.bf16.mxu0 0
      %291 = vmatpush2.bf16.msra.mxu0 0
      %292 = vmatprep.subr.bf16.mxu0 0
      %293 = vmatpush2.bf16.msra.mxu0 0
      %294 = vmatprep.subr.bf16.mxu0 0
      %295 = vmatpush2.bf16.msra.mxu0 0
      %296 = vmatprep.subr.bf16.mxu0 0
      %297 = vmatpush2.bf16.msra.mxu0 0
      %298 = vmatprep.subr.bf16.mxu0 0
      %299 = vmatpush2.bf16.msra.mxu0 0
      %300 = vmatprep.mubr.bf16.mxu0 0
      %301 = vmatmul.mubr.bf16.gmra.mxu0 %v263
      %v302 = vpop.f32.mrf.mxu0
      %v303 = vadd.f32 %v257, %v302
      %v304 = vpop.f32.mrf.mxu0
      %v305 = vpop.f32.mrf.mxu0
      %v306 = vpop.f32.mrf.mxu0
      %307 = vdwg.mxu0
      %308 = vrot.lane.b32.xlu0 %v206, 112
      %v309 = vpop.permute.xlu0 %308
      %310 = vrot.lane.b32.xlu0 %v211, 118
      %v311 = vpop.permute.xlu0 %310
      %v313 = vsel %vm214, %v309, 0
      %v316 = vsel %vm218, %v311, 0
      %318 = vmatprep.subr.bf16.mxu0 0
      %319 = vmatpush1.bf16.msra.mxu0 0
      %320 = vmatprep.subr.bf16.mxu0 0
      %321 = vmatpush1.bf16.msra.mxu0 0
      %322 = vmatprep.subr.bf16.mxu0 0
      %323 = vmatpush1.bf16.msra.mxu0 0
      %324 = vmatprep.subr.bf16.mxu0 0
      %325 = vmatpush1.bf16.msra.mxu0 0
      %326 = vmatprep.subr.bf16.mxu0 0
      %327 = vmatpush1.bf16.msra.mxu0 0
      %328 = vmatprep.subr.bf16.mxu0 0
      %329 = vmatpush1.bf16.msra.mxu0 0
      %330 = vmatprep.subr.bf16.mxu0 0
      %331 = vmatpush1.bf16.msra.mxu0 0
      %332 = vmatprep.subr.bf16.mxu0 0
      %333 = vmatpush1.bf16.msra.mxu0 %v316
      %334 = vmatprep.subr.bf16.mxu0 0
      %335 = vmatpush2.bf16.msra.mxu0 0
      %336 = vmatprep.subr.bf16.mxu0 0
      %337 = vmatpush2.bf16.msra.mxu0 0
      %338 = vmatprep.subr.bf16.mxu0 0
      %339 = vmatpush2.bf16.msra.mxu0 0
      %340 = vmatprep.subr.bf16.mxu0 0
      %341 = vmatpush2.bf16.msra.mxu0 0
      %342 = vmatprep.subr.bf16.mxu0 0
      %343 = vmatpush2.bf16.msra.mxu0 0
      %344 = vmatprep.subr.bf16.mxu0 0
      %345 = vmatpush2.bf16.msra.mxu0 0
      %346 = vmatprep.subr.bf16.mxu0 0
      %347 = vmatpush2.bf16.msra.mxu0 0
      %348 = vmatprep.subr.bf16.mxu0 0
      %349 = vmatpush2.bf16.msra.mxu0 0
      %350 = vmatprep.mubr.bf16.mxu0 0
      %351 = vmatmul.mubr.bf16.gmra.mxu0 %v313
      %v352 = vpop.f32.mrf.mxu0
      %v353 = vadd.f32 0.0, %v352
      %v354 = vpop.f32.mrf.mxu0
      %v355 = vpop.f32.mrf.mxu0
      %v356 = vpop.f32.mrf.mxu0
      %357 = vdwg.mxu0
      %v358 = vadd.f32 %v303, %v353
      %v359 = vld [vmem:[%s2] sm:$0xff]
      %361 = vset.pattern.permute.xlu0 0
      %362 = vperm.xlu0 %361, %v359
      %v363 = vpop.permute.xlu0 %362
      %v365 = vadd.f32 %v358, %v363
      %v366 = vpack.c.bf16 %v365, %v365
      %vm367 = vcmask 519168
      %368 = vst.msk [vmem:[%s196] sm:$0xf] %vm367, %v366
      %p369 = scmp.lt.s32.totalorder %s18, 1
      %s370 = scalar_select %p369, %s18, 1
      %p371 = scmp.lt.s32.totalorder %s19, 0
      %s372 = scalar_select %p371, %s19, 0
      %s373 = sadd.s32 %s372, %s370
      %s374 = smul.addr %s373, 4
      %s375 = scalar_lea.vmem %s3, %s374
      // Predicated region
      $region33: #{generator_forward_pallas.51} parent=31 // pred_check
        %p376 = pneg %p116
      $region34: #{generator_forward_pallas.51} parent=31 // pred_check_branch
        %378 = sbr.rel (%p376) target = $region36
      $region35: #{generator_forward_pallas.51} parent=31 // pred_region
        _
      $region36: #{generator_forward_pallas.51} parent=31 // pred_fallthru
        _
    $region32: #{generator_forward_pallas.51} parent=5 // pred_fallthru
      _
    %p379 = scmp.le.s32.totalorder 2, %s9
    // Predicated region
    $region37: #{generator_forward_pallas.51} parent=5 // pred_check
      %p380 = pneg %p379
    $region38: #{generator_forward_pallas.51} parent=5 // pred_check_branch
      %382 = sbr.rel (%p380) target = $region40
    $region39: #{generator_forward_pallas.51} parent=5 // pred_region
      %s383 = ssub.s32 %s9, 2
      // Predicated region
      $region41: #{generator_forward_pallas.51} parent=39 // pred_check
        %p384 = pneg %p122
      $region42: #{generator_forward_pallas.51} parent=39 // pred_check_branch
        %386 = sbr.rel (%p384) target = $region44
      $region43: #{generator_forward_pallas.51} parent=39 // pred_region
        %p387 = scmp.lt.s32.totalorder %s20, 1
        %s388 = scalar_select %p387, %s20, 1
        %p389 = scmp.lt.s32.totalorder %s21, 0
        %s390 = scalar_select %p389, %s21, 0
        %s391 = sadd.s32 %s390, %s388
        %s392 = smul.addr %s391, 4
        %s393 = scalar_lea.vmem %s3, %s392
      $region44: #{generator_forward_pallas.51} parent=39 // pred_fallthru
        _
    $region40: #{generator_forward_pallas.51} parent=5 // pred_fallthru
      _
  $region6: #{generator_forward_pallas.51} parent=0 // loop_footer
    %s13 = sadd.s32 1, %s9
  $region7: #{generator_forward_pallas.51} parent=0 // loop_footer_branch
    %8 = sbr.rel target = $region3
  $region8: #{generator_forward_pallas.51} parent=0 // loop_exit
    _

// kernel: generator_forward_pallas.49
$region0: #{generator_forward_pallas.49}
  #allocation0 [shape = 'u32[]', space=smem, size = 0x4, offset = 0x4, fixed_abs, tag = 'smem constant byte address 0x4 - core index']
  #allocation1 [shape = 'u32[144,128]{1,0:T(1,128)}', space=vmem, size = 0x12000, scoped, tag = 'internal scratch']
  %s0 = inlined_call_operand.vmem [shape: bf16[2,1,8,70], index: 0, kind: input, shape index: {}]
  %s1 = inlined_call_operand.vmem [shape: bf16[8,24], index: 1, kind: input, shape index: {}]
  %s2 = inlined_call_operand.vmem [shape: f32[8,1], index: 2, kind: input, shape index: {}]
  %s3 = inlined_call_operand.vmem [shape: bf16[2,8,64], index: 3, kind: output, shape index: {}]
  %s4 = sld [smem:[#allocation0]]
  $region45: #{generator_forward_pallas.49} parent=0
    _
  %s6 = ssub.s32 1, %s4
  %s7 = scalar_select 0, %s6, %s4
  loop: start=0, step=1, limit=4
  $region2: #{generator_forward_pallas.49} parent=0 // loop_pre_header
    _
  $region3: #{generator_forward_pallas.49} parent=0 // loop_header
    %s9 = sphi 0, %s13
    %p10 = scmp.ge.s32.totalorder %s9, 4
    %s16 = sphi 0, %s28
    %s17 = sphi 0, %s24
    %s18 = sphi 0, %s16
    %s19 = sphi 0, %s17
    %s20 = sphi 0, %s18
    %s21 = sphi 0, %s19
    %s33 = sphi 0, %s35
    %s36 = sphi 0, %s33
    %s37 = sphi 0, %s36
    %s53 = sphi 0, %s37
    %s57 = sphi 0, %s57
    %s59 = sphi 0, %s57
    %s60 = sphi 0, %s59
    %s74 = sphi 0, %s60
    %s78 = sphi 0, %s78
    %s80 = sphi 0, %s78
    %s81 = sphi 0, %s80
    %s95 = sphi 0, %s81
    %s103 = sphi 0, %s105
    %s106 = sphi 0, %s103
    %s107 = sphi 0, %s106
    %s123 = sphi 0, %s107
  $region4: #{generator_forward_pallas.49} parent=0 // loop_header_branch
    %12 = sbr.rel (%p10) target = $region8
  $region5: #{generator_forward_pallas.49} parent=0 // loop_body
    %s14 = ssub.s32 %s9, 1
    %s15 = ssub.s32 %s9, 2
    %s22 = sadd.s32 1, %s17
    %p23 = scmp.ge.s32.totalorder %s22, 1
    %s24 = scalar_select %p23, 0, %s22
    %s25 = sadd.s32 1, %s16
    %s26 = scalar_select %p23, %s25, %s16
    %p27 = scmp.ge.s32.totalorder %s26, 2
    %s28 = scalar_select %p27, 0, %s26
    %s29 = ssub.s32 %s16, %s28
    %s30 = ssub.s32 %s17, %s24
    %s31 = sor.u32 %s29, %s30
    %p32 = scmp.eq.s32.totalorder %s31, 0
    %s34 = sadd.s32 %s33, 1
    %s35 = scalar_select %p32, %s33, %s34
    %p38 = pneg %p32
    %p39 = scmp.eq.s32.totalorder %s9, 1
    %p40 = por %p38, %p39
    %p41 = scmp.ne.s32.totalorder %s33, %s36
    %p42 = scmp.eq.s32.totalorder %s9, 0
    %p43 = por %p41, %p42
    %p44 = scmp.ne.s32.totalorder %s33, %s36
    %p45 = scmp.eq.s32.totalorder %s14, 1
    %p46 = por %p44, %p45
    %p47 = scmp.ne.s32.totalorder %s36, %s37
    %p48 = scmp.eq.s32.totalorder %s14, 0
    %p49 = por %p47, %p48
    %p50 = scmp.ne.s32.totalorder %s36, %s37
    %p51 = scmp.eq.s32.totalorder %s15, 1
    %p52 = por %p50, %p51
    %p54 = scmp.ne.s32.totalorder %s37, %s53
    %p55 = scmp.eq.s32.totalorder %s15, 0
    %p56 = por %p54, %p55
    %s58 = sadd.s32 %s57, 1
    %p61 = scmp.eq.s32.totalorder %s9, 1
    %p62 = scmp.ne.s32.totalorder %s57, %s59
    %p63 = scmp.eq.s32.totalorder %s9, 0
    %p64 = por %p62, %p63
    %p65 = scmp.ne.s32.totalorder %s57, %s59
    %p66 = scmp.eq.s32.totalorder %s14, 1
    %p67 = por %p65, %p66
    %p68 = scmp.ne.s32.totalorder %s59, %s60
    %p69 = scmp.eq.s32.totalorder %s14, 0
    %p70 = por %p68, %p69
    %p71 = scmp.ne.s32.totalorder %s59, %s60
    %p72 = scmp.eq.s32.totalorder %s15, 1
    %p73 = por %p71, %p72
    %p75 = scmp.ne.s32.totalorder %s60, %s74
    %p76 = scmp.eq.s32.totalorder %s15, 0
    %p77 = por %p75, %p76
    %s79 = sadd.s32 %s78, 1
    %p82 = scmp.eq.s32.totalorder %s9, 1
    %p83 = scmp.ne.s32.totalorder %s78, %s80
    %p84 = scmp.eq.s32.totalorder %s9, 0
    %p85 = por %p83, %p84
    %p86 = scmp.ne.s32.totalorder %s78, %s80
    %p87 = scmp.eq.s32.totalorder %s14, 1
    %p88 = por %p86, %p87
    %p89 = scmp.ne.s32.totalorder %s80, %s81
    %p90 = scmp.eq.s32.totalorder %s14, 0
    %p91 = por %p89, %p90
    %p92 = scmp.ne.s32.totalorder %s80, %s81
    %p93 = scmp.eq.s32.totalorder %s15, 1
    %p94 = por %p92, %p93
    %p96 = scmp.ne.s32.totalorder %s81, %s95
    %p97 = scmp.eq.s32.totalorder %s15, 0
    %p98 = por %p96, %p97
    %s99 = ssub.s32 %s16, %s28
    %s100 = ssub.s32 %s17, %s24
    %s101 = sor.u32 %s99, %s100
    %p102 = scmp.eq.s32.totalorder %s101, 0
    %s104 = sadd.s32 %s103, 1
    %s105 = scalar_select %p102, %s103, %s104
    %p108 = pneg %p102
    %p109 = scmp.eq.s32.totalorder %s9, 1
    %p110 = por %p108, %p109
    %p111 = scmp.ne.s32.totalorder %s103, %s106
    %p112 = scmp.eq.s32.totalorder %s9, 0
    %p113 = por %p111, %p112
    %p114 = scmp.ne.s32.totalorder %s103, %s106
    %p115 = scmp.eq.s32.totalorder %s14, 1
    %p116 = por %p114, %p115
    %p117 = scmp.ne.s32.totalorder %s106, %s107
    %p118 = scmp.eq.s32.totalorder %s14, 0
    %p119 = por %p117, %p118
    %p120 = scmp.ne.s32.totalorder %s106, %s107
    %p121 = scmp.eq.s32.totalorder %s15, 1
    %p122 = por %p120, %p121
    %p124 = scmp.ne.s32.totalorder %s107, %s123
    %p125 = scmp.eq.s32.totalorder %s15, 0
    %p126 = por %p124, %p125
    %p127 = scmp.le.s32.totalorder 1, %s9
    %p128 = scmp.lt.s32.totalorder %s9, 3
    %p129 = pnand %p127, %p128
    %p130 = pneg %p129
    // Predicated region
    $region9: #{generator_forward_pallas.49} parent=5 // pred_check
      _
    $region10: #{generator_forward_pallas.49} parent=5 // pred_check_branch
      %132 = sbr.rel (%p129) target = $region12
    $region11: #{generator_forward_pallas.49} parent=5 // pred_region
      %s133 = ssub.s32 %s9, 1
      // Predicated region
      $region13: #{generator_forward_pallas.49} parent=11 // pred_check
        %p134 = pneg %p70
      $region14: #{generator_forward_pallas.49} parent=11 // pred_check_branch
        %136 = sbr.rel (%p134) target = $region16
      $region15: #{generator_forward_pallas.49} parent=11 // pred_region
        _
      $region16: #{generator_forward_pallas.49} parent=11 // pred_fallthru
        _
      // Predicated region
      $region17: #{generator_forward_pallas.49} parent=11 // pred_check
        %p137 = pneg %p91
      $region18: #{generator_forward_pallas.49} parent=11 // pred_check_branch
        %139 = sbr.rel (%p137) target = $region20
      $region19: #{generator_forward_pallas.49} parent=11 // pred_region
        _
      $region20: #{generator_forward_pallas.49} parent=11 // pred_fallthru
        _
    $region12: #{generator_forward_pallas.49} parent=5 // pred_fallthru
      _
    %p140 = scmp.lt.s32.totalorder %s9, 2
    // Predicated region
    $region21: #{generator_forward_pallas.49} parent=5 // pred_check
      %p141 = pneg %p140
    $region22: #{generator_forward_pallas.49} parent=5 // pred_check_branch
      %143 = sbr.rel (%p141) target = $region24
    $region23: #{generator_forward_pallas.49} parent=5 // pred_region
      // Predicated region
      $region25: #{generator_forward_pallas.49} parent=23 // pred_check
        %p144 = pneg %p43
      $region26: #{generator_forward_pallas.49} parent=23 // pred_check_branch
        %146 = sbr.rel (%p144) target = $region28
      $region27: #{generator_forward_pallas.49} parent=23 // pred_region
        %p147 = scmp.lt.s32.totalorder %s16, 1
        %s148 = scalar_select %p147, %s16, 1
        %p149 = scmp.lt.s32.totalorder %s17, 0
        %s150 = scalar_select %p149, %s17, 0
        %s151 = sadd.s32 %s150, %s148
        %s152 = smul.addr %s151, 4
        %s153 = scalar_lea.vmem %s0, %s152
      $region28: #{generator_forward_pallas.49} parent=23 // pred_fallthru
        _
    $region24: #{generator_forward_pallas.49} parent=5 // pred_fallthru
      _
    %p154 = scmp.le.s32.totalorder 1, %s9
    %p155 = scmp.lt.s32.totalorder %s9, 3
    %p156 = pnand %p154, %p155
    %p157 = pneg %p156
    // Predicated region
    $region29: #{generator_forward_pallas.49} parent=5 // pred_check
      _
    $region30: #{generator_forward_pallas.49} parent=5 // pred_check_branch
      %159 = sbr.rel (%p156) target = $region32
    $region31: #{generator_forward_pallas.49} parent=5 // pred_region
      %s160 = ssub.s32 %s9, 1
      %p161 = scmp.lt.s32.totalorder %s18, 1
      %s162 = scalar_select %p161, %s18, 1
      %p163 = scmp.lt.s32.totalorder %s19, 0
      %s164 = scalar_select %p163, %s19, 0
      %s165 = sadd.s32 %s164, %s162
      %s166 = smul.addr %s165, 4
      %s167 = scalar_lea.vmem %s0, %s166
      %p168 = pneg %p49
      %p169 = pneg %p46
      %p170 = pneg %p70
      %p171 = pneg %p67
      %p172 = pneg %p91
      %p173 = pneg %p88
      %p174 = pneg %p119
      %p175 = pneg %p116
      %p176 = scmp.lt.s32.totalorder %s18, 1
      %s177 = scalar_select %p176, %s18, 1
      %p178 = scmp.lt.s32.totalorder %s19, 0
      %s179 = scalar_select %p178, %s19, 0
      %s180 = sadd.s32 %s179, %s177
      %s181 = smul.addr %s180, 4
      %s182 = scalar_lea.vmem %s3, %s181
      %p183 = scmp.lt.s32.totalorder %s18, 1
      %s184 = scalar_select %p183, %s18, 1
      %p185 = scmp.lt.s32.totalorder %s19, 0
      %s186 = scalar_select %p185, %s19, 0
      %s187 = sadd.s32 %s186, %s184
      %s188 = smul.addr %s187, 4
      %s189 = scalar_lea.vmem %s0, %s188
      %p190 = scmp.lt.s32.totalorder %s18, 1
      %s191 = scalar_select %p190, %s18, 1
      %p192 = scmp.lt.s32.totalorder %s19, 0
      %s193 = scalar_select %p192, %s19, 0
      %s194 = sadd.s32 %s193, %s191
      %s195 = smul.addr %s194, 4
      %s196 = scalar_lea.vmem %s3, %s195
      %v199 = vld [vmem:[%s189] sm:$0xf]
      %vm200 = vcmp.ge.bf16.partialorder %v199, 0
      %v201 = vmul.bf16 %v199, 1036860877
      %v202 = vsel %vm200, %v199, %v201
      %v203 = vld [vmem:[%s1] sm:$0xf]
      %v205 = vunpack.c.l.b16 %v203
      %v206 = vpack.c.b16 %v205, %v205
      %207 = vrot.lane.b32.xlu0 %v206, 120
      %v208 = vpop.permute.xlu0 %207
      %v210 = vunpack.c.l.b16 %v202
      %v211 = vpack.c.b16 %v210, %v210
      %212 = vrot.lane.b32.xlu0 %v211, 125
      %v213 = vpop.permute.xlu0 %212
      %vm214 = vcmask 64512
      %v216 = vsel %vm214, %v208, 0
      %vm218 = vcmask 1043456
      %v220 = vsel %vm218, %v213, 0
      %222 = vmatprep.subr.bf16.mxu0 0
      %223 = vmatpush1.bf16.msra.mxu0 0
      %224 = vmatprep.subr.bf16.mxu0 0
      %225 = vmatpush1.bf16.msra.mxu0 0
      %226 = vmatprep.subr.bf16.mxu0 0
      %227 = vmatpush1.bf16.msra.mxu0 0
      %228 = vmatprep.subr.bf16.mxu0 0
      %229 = vmatpush1.bf16.msra.mxu0 0
      %230 = vmatprep.subr.bf16.mxu0 0
      %231 = vmatpush1.bf16.msra.mxu0 0
      %232 = vmatprep.subr.bf16.mxu0 0
      %233 = vmatpush1.bf16.msra.mxu0 0
      %234 = vmatprep.subr.bf16.mxu0 0
      %235 = vmatpush1.bf16.msra.mxu0 0
      %236 = vmatprep.subr.bf16.mxu0 0
      %237 = vmatpush1.bf16.msra.mxu0 %v220
      %238 = vmatprep.subr.bf16.mxu0 0
      %239 = vmatpush2.bf16.msra.mxu0 0
      %240 = vmatprep.subr.bf16.mxu0 0
      %241 = vmatpush2.bf16.msra.mxu0 0
      %242 = vmatprep.subr.bf16.mxu0 0
      %243 = vmatpush2.bf16.msra.mxu0 0
      %244 = vmatprep.subr.bf16.mxu0 0
      %245 = vmatpush2.bf16.msra.mxu0 0
      %246 = vmatprep.subr.bf16.mxu0 0
      %247 = vmatpush2.bf16.msra.mxu0 0
      %248 = vmatprep.subr.bf16.mxu0 0
      %249 = vmatpush2.bf16.msra.mxu0 0
      %250 = vmatprep.subr.bf16.mxu0 0
      %251 = vmatpush2.bf16.msra.mxu0 0
      %252 = vmatprep.subr.bf16.mxu0 0
      %253 = vmatpush2.bf16.msra.mxu0 0
      %254 = vmatprep.mubr.bf16.mxu0 0
      %255 = vmatmul.mubr.bf16.gmra.mxu0 %v216
      %v256 = vpop.f32.mrf.mxu0
      %v257 = vadd.f32 0.0, %v256
      %v258 = vpop.f32.mrf.mxu0
      %v259 = vpop.f32.mrf.mxu0
      %v260 = vpop.f32.mrf.mxu0
      %261 = vdwg.mxu0
      %v263 = vsel %vm214, %v203, 0
      %v266 = vsel %vm218, %v202, 0
      %268 = vmatprep.subr.bf16.mxu0 0
      %269 = vmatpush1.bf16.msra.mxu0 0
      %270 = vmatprep.subr.bf16.mxu0 0
      %271 = vmatpush1.bf16.msra.mxu0 0
      %272 = vmatprep.subr.bf16.mxu0 0
      %273 = vmatpush1.bf16.msra.mxu0 0
      %274 = vmatprep.subr.bf16.mxu0 0
      %275 = vmatpush1.bf16.msra.mxu0 0
      %276 = vmatprep.subr.bf16.mxu0 0
      %277 = vmatpush1.bf16.msra.mxu0 0
      %278 = vmatprep.subr.bf16.mxu0 0
      %279 = vmatpush1.bf16.msra.mxu0 0
      %280 = vmatprep.subr.bf16.mxu0 0
      %281 = vmatpush1.bf16.msra.mxu0 0
      %282 = vmatprep.subr.bf16.mxu0 0
      %283 = vmatpush1.bf16.msra.mxu0 %v266
      %284 = vmatprep.subr.bf16.mxu0 0
      %285 = vmatpush2.bf16.msra.mxu0 0
      %286 = vmatprep.subr.bf16.mxu0 0
      %287 = vmatpush2.bf16.msra.mxu0 0
      %288 = vmatprep.subr.bf16.mxu0 0
      %289 = vmatpush2.bf16.msra.mxu0 0
      %290 = vmatprep.subr.bf16.mxu0 0
      %291 = vmatpush2.bf16.msra.mxu0 0
      %292 = vmatprep.subr.bf16.mxu0 0
      %293 = vmatpush2.bf16.msra.mxu0 0
      %294 = vmatprep.subr.bf16.mxu0 0
      %295 = vmatpush2.bf16.msra.mxu0 0
      %296 = vmatprep.subr.bf16.mxu0 0
      %297 = vmatpush2.bf16.msra.mxu0 0
      %298 = vmatprep.subr.bf16.mxu0 0
      %299 = vmatpush2.bf16.msra.mxu0 0
      %300 = vmatprep.mubr.bf16.mxu0 0
      %301 = vmatmul.mubr.bf16.gmra.mxu0 %v263
      %v302 = vpop.f32.mrf.mxu0
      %v303 = vadd.f32 %v257, %v302
      %v304 = vpop.f32.mrf.mxu0
      %v305 = vpop.f32.mrf.mxu0
      %v306 = vpop.f32.mrf.mxu0
      %307 = vdwg.mxu0
      %308 = vrot.lane.b32.xlu0 %v206, 112
      %v309 = vpop.permute.xlu0 %308
      %310 = vrot.lane.b32.xlu0 %v211, 122
      %v311 = vpop.permute.xlu0 %310
      %v313 = vsel %vm214, %v309, 0
      %v316 = vsel %vm218, %v311, 0
      %318 = vmatprep.subr.bf16.mxu0 0
      %319 = vmatpush1.bf16.msra.mxu0 0
      %320 = vmatprep.subr.bf16.mxu0 0
      %321 = vmatpush1.bf16.msra.mxu0 0
      %322 = vmatprep.subr.bf16.mxu0 0
      %323 = vmatpush1.bf16.msra.mxu0 0
      %324 = vmatprep.subr.bf16.mxu0 0
      %325 = vmatpush1.bf16.msra.mxu0 0
      %326 = vmatprep.subr.bf16.mxu0 0
      %327 = vmatpush1.bf16.msra.mxu0 0
      %328 = vmatprep.subr.bf16.mxu0 0
      %329 = vmatpush1.bf16.msra.mxu0 0
      %330 = vmatprep.subr.bf16.mxu0 0
      %331 = vmatpush1.bf16.msra.mxu0 0
      %332 = vmatprep.subr.bf16.mxu0 0
      %333 = vmatpush1.bf16.msra.mxu0 %v316
      %334 = vmatprep.subr.bf16.mxu0 0
      %335 = vmatpush2.bf16.msra.mxu0 0
      %336 = vmatprep.subr.bf16.mxu0 0
      %337 = vmatpush2.bf16.msra.mxu0 0
      %338 = vmatprep.subr.bf16.mxu0 0
      %339 = vmatpush2.bf16.msra.mxu0 0
      %340 = vmatprep.subr.bf16.mxu0 0
      %341 = vmatpush2.bf16.msra.mxu0 0
      %342 = vmatprep.subr.bf16.mxu0 0
      %343 = vmatpush2.bf16.msra.mxu0 0
      %344 = vmatprep.subr.bf16.mxu0 0
      %345 = vmatpush2.bf16.msra.mxu0 0
      %346 = vmatprep.subr.bf16.mxu0 0
      %347 = vmatpush2.bf16.msra.mxu0 0
      %348 = vmatprep.subr.bf16.mxu0 0
      %349 = vmatpush2.bf16.msra.mxu0 0
      %350 = vmatprep.mubr.bf16.mxu0 0
      %351 = vmatmul.mubr.bf16.gmra.mxu0 %v313
      %v352 = vpop.f32.mrf.mxu0
      %v353 = vadd.f32 0.0, %v352
      %v354 = vpop.f32.mrf.mxu0
      %v355 = vpop.f32.mrf.mxu0
      %v356 = vpop.f32.mrf.mxu0
      %357 = vdwg.mxu0
      %v358 = vadd.f32 %v303, %v353
      %v359 = vld [vmem:[%s2] sm:$0xff]
      %361 = vset.pattern.permute.xlu0 0
      %362 = vperm.xlu0 %361, %v359
      %v363 = vpop.permute.xlu0 %362
      %v365 = vadd.f32 %v358, %v363
      %v366 = vpack.c.bf16 %v365, %v365
      %vm367 = vcmask 519168
      %368 = vst.msk [vmem:[%s196] sm:$0xf] %vm367, %v366
      %p369 = scmp.lt.s32.totalorder %s18, 1
      %s370 = scalar_select %p369, %s18, 1
      %p371 = scmp.lt.s32.totalorder %s19, 0
      %s372 = scalar_select %p371, %s19, 0
      %s373 = sadd.s32 %s372, %s370
      %s374 = smul.addr %s373, 4
      %s375 = scalar_lea.vmem %s3, %s374
      // Predicated region
      $region33: #{generator_forward_pallas.49} parent=31 // pred_check
        %p376 = pneg %p116
      $region34: #{generator_forward_pallas.49} parent=31 // pred_check_branch
        %378 = sbr.rel (%p376) target = $region36
      $region35: #{generator_forward_pallas.49} parent=31 // pred_region
        _
      $region36: #{generator_forward_pallas.49} parent=31 // pred_fallthru
        _
    $region32: #{generator_forward_pallas.49} parent=5 // pred_fallthru
      _
    %p379 = scmp.le.s32.totalorder 2, %s9
    // Predicated region
    $region37: #{generator_forward_pallas.49} parent=5 // pred_check
      %p380 = pneg %p379
    $region38: #{generator_forward_pallas.49} parent=5 // pred_check_branch
      %382 = sbr.rel (%p380) target = $region40
    $region39: #{generator_forward_pallas.49} parent=5 // pred_region
      %s383 = ssub.s32 %s9, 2
      // Predicated region
      $region41: #{generator_forward_pallas.49} parent=39 // pred_check
        %p384 = pneg %p122
      $region42: #{generator_forward_pallas.49} parent=39 // pred_check_branch
        %386 = sbr.rel (%p384) target = $region44
      $region43: #{generator_forward_pallas.49} parent=39 // pred_region
        %p387 = scmp.lt.s32.totalorder %s20, 1
        %s388 = scalar_select %p387, %s20, 1
        %p389 = scmp.lt.s32.totalorder %s21, 0
        %s390 = scalar_select %p389, %s21, 0
        %s391 = sadd.s32 %s390, %s388
        %s392 = smul.addr %s391, 4
        %s393 = scalar_lea.vmem %s3, %s392
      $region44: #{generator_forward_pallas.49} parent=39 // pred_fallthru
        _
    $region40: #{generator_forward_pallas.49} parent=5 // pred_fallthru
      _
  $region6: #{generator_forward_pallas.49} parent=0 // loop_footer
    %s13 = sadd.s32 1, %s9
  $region7: #{generator_forward_pallas.49} parent=0 // loop_footer_branch
    %8 = sbr.rel target = $region3
  $region8: #{generator_forward_pallas.49} parent=0 // loop_exit
    _

// kernel: generator_forward_pallas.55
$region0: #{generator_forward_pallas.55}
  #allocation0 [shape = 'u32[]', space=smem, size = 0x4, offset = 0x4, fixed_abs, tag = 'smem constant byte address 0x4 - core index']
  #allocation1 [shape = 'u32[144,128]{1,0:T(1,128)}', space=vmem, size = 0x12000, scoped, tag = 'internal scratch']
  %s0 = inlined_call_operand.vmem [shape: bf16[2,1,8,76], index: 0, kind: input, shape index: {}]
  %s1 = inlined_call_operand.vmem [shape: bf16[8,40], index: 1, kind: input, shape index: {}]
  %s2 = inlined_call_operand.vmem [shape: f32[8,1], index: 2, kind: input, shape index: {}]
  %s3 = inlined_call_operand.vmem [shape: bf16[2,8,64], index: 3, kind: output, shape index: {}]
  %s4 = sld [smem:[#allocation0]]
  $region45: #{generator_forward_pallas.55} parent=0
    _
  %s6 = ssub.s32 1, %s4
  %s7 = scalar_select 0, %s6, %s4
  loop: start=0, step=1, limit=4
  $region2: #{generator_forward_pallas.55} parent=0 // loop_pre_header
    _
  $region3: #{generator_forward_pallas.55} parent=0 // loop_header
    %s9 = sphi 0, %s13
    %p10 = scmp.ge.s32.totalorder %s9, 4
    %s16 = sphi 0, %s28
    %s17 = sphi 0, %s24
    %s18 = sphi 0, %s16
    %s19 = sphi 0, %s17
    %s20 = sphi 0, %s18
    %s21 = sphi 0, %s19
    %s33 = sphi 0, %s35
    %s36 = sphi 0, %s33
    %s37 = sphi 0, %s36
    %s53 = sphi 0, %s37
    %s57 = sphi 0, %s57
    %s59 = sphi 0, %s57
    %s60 = sphi 0, %s59
    %s74 = sphi 0, %s60
    %s78 = sphi 0, %s78
    %s80 = sphi 0, %s78
    %s81 = sphi 0, %s80
    %s95 = sphi 0, %s81
    %s103 = sphi 0, %s105
    %s106 = sphi 0, %s103
    %s107 = sphi 0, %s106
    %s123 = sphi 0, %s107
  $region4: #{generator_forward_pallas.55} parent=0 // loop_header_branch
    %12 = sbr.rel (%p10) target = $region8
  $region5: #{generator_forward_pallas.55} parent=0 // loop_body
    %s14 = ssub.s32 %s9, 1
    %s15 = ssub.s32 %s9, 2
    %s22 = sadd.s32 1, %s17
    %p23 = scmp.ge.s32.totalorder %s22, 1
    %s24 = scalar_select %p23, 0, %s22
    %s25 = sadd.s32 1, %s16
    %s26 = scalar_select %p23, %s25, %s16
    %p27 = scmp.ge.s32.totalorder %s26, 2
    %s28 = scalar_select %p27, 0, %s26
    %s29 = ssub.s32 %s16, %s28
    %s30 = ssub.s32 %s17, %s24
    %s31 = sor.u32 %s29, %s30
    %p32 = scmp.eq.s32.totalorder %s31, 0
    %s34 = sadd.s32 %s33, 1
    %s35 = scalar_select %p32, %s33, %s34
    %p38 = pneg %p32
    %p39 = scmp.eq.s32.totalorder %s9, 1
    %p40 = por %p38, %p39
    %p41 = scmp.ne.s32.totalorder %s33, %s36
    %p42 = scmp.eq.s32.totalorder %s9, 0
    %p43 = por %p41, %p42
    %p44 = scmp.ne.s32.totalorder %s33, %s36
    %p45 = scmp.eq.s32.totalorder %s14, 1
    %p46 = por %p44, %p45
    %p47 = scmp.ne.s32.totalorder %s36, %s37
    %p48 = scmp.eq.s32.totalorder %s14, 0
    %p49 = por %p47, %p48
    %p50 = scmp.ne.s32.totalorder %s36, %s37
    %p51 = scmp.eq.s32.totalorder %s15, 1
    %p52 = por %p50, %p51
    %p54 = scmp.ne.s32.totalorder %s37, %s53
    %p55 = scmp.eq.s32.totalorder %s15, 0
    %p56 = por %p54, %p55
    %s58 = sadd.s32 %s57, 1
    %p61 = scmp.eq.s32.totalorder %s9, 1
    %p62 = scmp.ne.s32.totalorder %s57, %s59
    %p63 = scmp.eq.s32.totalorder %s9, 0
    %p64 = por %p62, %p63
    %p65 = scmp.ne.s32.totalorder %s57, %s59
    %p66 = scmp.eq.s32.totalorder %s14, 1
    %p67 = por %p65, %p66
    %p68 = scmp.ne.s32.totalorder %s59, %s60
    %p69 = scmp.eq.s32.totalorder %s14, 0
    %p70 = por %p68, %p69
    %p71 = scmp.ne.s32.totalorder %s59, %s60
    %p72 = scmp.eq.s32.totalorder %s15, 1
    %p73 = por %p71, %p72
    %p75 = scmp.ne.s32.totalorder %s60, %s74
    %p76 = scmp.eq.s32.totalorder %s15, 0
    %p77 = por %p75, %p76
    %s79 = sadd.s32 %s78, 1
    %p82 = scmp.eq.s32.totalorder %s9, 1
    %p83 = scmp.ne.s32.totalorder %s78, %s80
    %p84 = scmp.eq.s32.totalorder %s9, 0
    %p85 = por %p83, %p84
    %p86 = scmp.ne.s32.totalorder %s78, %s80
    %p87 = scmp.eq.s32.totalorder %s14, 1
    %p88 = por %p86, %p87
    %p89 = scmp.ne.s32.totalorder %s80, %s81
    %p90 = scmp.eq.s32.totalorder %s14, 0
    %p91 = por %p89, %p90
    %p92 = scmp.ne.s32.totalorder %s80, %s81
    %p93 = scmp.eq.s32.totalorder %s15, 1
    %p94 = por %p92, %p93
    %p96 = scmp.ne.s32.totalorder %s81, %s95
    %p97 = scmp.eq.s32.totalorder %s15, 0
    %p98 = por %p96, %p97
    %s99 = ssub.s32 %s16, %s28
    %s100 = ssub.s32 %s17, %s24
    %s101 = sor.u32 %s99, %s100
    %p102 = scmp.eq.s32.totalorder %s101, 0
    %s104 = sadd.s32 %s103, 1
    %s105 = scalar_select %p102, %s103, %s104
    %p108 = pneg %p102
    %p109 = scmp.eq.s32.totalorder %s9, 1
    %p110 = por %p108, %p109
    %p111 = scmp.ne.s32.totalorder %s103, %s106
    %p112 = scmp.eq.s32.totalorder %s9, 0
    %p113 = por %p111, %p112
    %p114 = scmp.ne.s32.totalorder %s103, %s106
    %p115 = scmp.eq.s32.totalorder %s14, 1
    %p116 = por %p114, %p115
    %p117 = scmp.ne.s32.totalorder %s106, %s107
    %p118 = scmp.eq.s32.totalorder %s14, 0
    %p119 = por %p117, %p118
    %p120 = scmp.ne.s32.totalorder %s106, %s107
    %p121 = scmp.eq.s32.totalorder %s15, 1
    %p122 = por %p120, %p121
    %p124 = scmp.ne.s32.totalorder %s107, %s123
    %p125 = scmp.eq.s32.totalorder %s15, 0
    %p126 = por %p124, %p125
    %p127 = scmp.le.s32.totalorder 1, %s9
    %p128 = scmp.lt.s32.totalorder %s9, 3
    %p129 = pnand %p127, %p128
    %p130 = pneg %p129
    // Predicated region
    $region9: #{generator_forward_pallas.55} parent=5 // pred_check
      _
    $region10: #{generator_forward_pallas.55} parent=5 // pred_check_branch
      %132 = sbr.rel (%p129) target = $region12
    $region11: #{generator_forward_pallas.55} parent=5 // pred_region
      %s133 = ssub.s32 %s9, 1
      // Predicated region
      $region13: #{generator_forward_pallas.55} parent=11 // pred_check
        %p134 = pneg %p70
      $region14: #{generator_forward_pallas.55} parent=11 // pred_check_branch
        %136 = sbr.rel (%p134) target = $region16
      $region15: #{generator_forward_pallas.55} parent=11 // pred_region
        _
      $region16: #{generator_forward_pallas.55} parent=11 // pred_fallthru
        _
      // Predicated region
      $region17: #{generator_forward_pallas.55} parent=11 // pred_check
        %p137 = pneg %p91
      $region18: #{generator_forward_pallas.55} parent=11 // pred_check_branch
        %139 = sbr.rel (%p137) target = $region20
      $region19: #{generator_forward_pallas.55} parent=11 // pred_region
        _
      $region20: #{generator_forward_pallas.55} parent=11 // pred_fallthru
        _
    $region12: #{generator_forward_pallas.55} parent=5 // pred_fallthru
      _
    %p140 = scmp.lt.s32.totalorder %s9, 2
    // Predicated region
    $region21: #{generator_forward_pallas.55} parent=5 // pred_check
      %p141 = pneg %p140
    $region22: #{generator_forward_pallas.55} parent=5 // pred_check_branch
      %143 = sbr.rel (%p141) target = $region24
    $region23: #{generator_forward_pallas.55} parent=5 // pred_region
      // Predicated region
      $region25: #{generator_forward_pallas.55} parent=23 // pred_check
        %p144 = pneg %p43
      $region26: #{generator_forward_pallas.55} parent=23 // pred_check_branch
        %146 = sbr.rel (%p144) target = $region28
      $region27: #{generator_forward_pallas.55} parent=23 // pred_region
        %p147 = scmp.lt.s32.totalorder %s16, 1
        %s148 = scalar_select %p147, %s16, 1
        %p149 = scmp.lt.s32.totalorder %s17, 0
        %s150 = scalar_select %p149, %s17, 0
        %s151 = sadd.s32 %s150, %s148
        %s152 = smul.addr %s151, 4
        %s153 = scalar_lea.vmem %s0, %s152
      $region28: #{generator_forward_pallas.55} parent=23 // pred_fallthru
        _
    $region24: #{generator_forward_pallas.55} parent=5 // pred_fallthru
      _
    %p154 = scmp.le.s32.totalorder 1, %s9
    %p155 = scmp.lt.s32.totalorder %s9, 3
    %p156 = pnand %p154, %p155
    %p157 = pneg %p156
    // Predicated region
    $region29: #{generator_forward_pallas.55} parent=5 // pred_check
      _
    $region30: #{generator_forward_pallas.55} parent=5 // pred_check_branch
      %159 = sbr.rel (%p156) target = $region32
    $region31: #{generator_forward_pallas.55} parent=5 // pred_region
      %s160 = ssub.s32 %s9, 1
      %p161 = scmp.lt.s32.totalorder %s18, 1
      %s162 = scalar_select %p161, %s18, 1
      %p163 = scmp.lt.s32.totalorder %s19, 0
      %s164 = scalar_select %p163, %s19, 0
      %s165 = sadd.s32 %s164, %s162
      %s166 = smul.addr %s165, 4
      %s167 = scalar_lea.vmem %s0, %s166
      %p168 = pneg %p49
      %p169 = pneg %p46
      %p170 = pneg %p70
      %p171 = pneg %p67
      %p172 = pneg %p91
      %p173 = pneg %p88
      %p174 = pneg %p119
      %p175 = pneg %p116
      %p176 = scmp.lt.s32.totalorder %s18, 1
      %s177 = scalar_select %p176, %s18, 1
      %p178 = scmp.lt.s32.totalorder %s19, 0
      %s179 = scalar_select %p178, %s19, 0
      %s180 = sadd.s32 %s179, %s177
      %s181 = smul.addr %s180, 4
      %s182 = scalar_lea.vmem %s3, %s181
      %p183 = scmp.lt.s32.totalorder %s18, 1
      %s184 = scalar_select %p183, %s18, 1
      %p185 = scmp.lt.s32.totalorder %s19, 0
      %s186 = scalar_select %p185, %s19, 0
      %s187 = sadd.s32 %s186, %s184
      %s188 = smul.addr %s187, 4
      %s189 = scalar_lea.vmem %s0, %s188
      %p190 = scmp.lt.s32.totalorder %s18, 1
      %s191 = scalar_select %p190, %s18, 1
      %p192 = scmp.lt.s32.totalorder %s19, 0
      %s193 = scalar_select %p192, %s19, 0
      %s194 = sadd.s32 %s193, %s191
      %s195 = smul.addr %s194, 4
      %s196 = scalar_lea.vmem %s3, %s195
      %v199 = vld [vmem:[%s189] sm:$0xf]
      %vm200 = vcmp.ge.bf16.partialorder %v199, 0
      %v201 = vmul.bf16 %v199, 1036860877
      %v202 = vsel %vm200, %v199, %v201
      %v203 = vld [vmem:[%s1] sm:$0xf]
      %v205 = vunpack.c.l.b16 %v203
      %v206 = vpack.c.b16 %v205, %v205
      %207 = vrot.lane.b32.xlu0 %v206, 120
      %v208 = vpop.permute.xlu0 %207
      %v210 = vunpack.c.l.b16 %v202
      %v211 = vpack.c.b16 %v210, %v210
      %212 = vrot.lane.b32.xlu0 %v211, 125
      %v213 = vpop.permute.xlu0 %212
      %vm214 = vcmask 64512
      %v216 = vsel %vm214, %v208, 0
      %vm218 = vcmask 1043456
      %v220 = vsel %vm218, %v213, 0
      %222 = vmatprep.subr.bf16.mxu0 0
      %223 = vmatpush1.bf16.msra.mxu0 0
      %224 = vmatprep.subr.bf16.mxu0 0
      %225 = vmatpush1.bf16.msra.mxu0 0
      %226 = vmatprep.subr.bf16.mxu0 0
      %227 = vmatpush1.bf16.msra.mxu0 0
      %228 = vmatprep.subr.bf16.mxu0 0
      %229 = vmatpush1.bf16.msra.mxu0 0
      %230 = vmatprep.subr.bf16.mxu0 0
      %231 = vmatpush1.bf16.msra.mxu0 0
      %232 = vmatprep.subr.bf16.mxu0 0
      %233 = vmatpush1.bf16.msra.mxu0 0
      %234 = vmatprep.subr.bf16.mxu0 0
      %235 = vmatpush1.bf16.msra.mxu0 0
      %236 = vmatprep.subr.bf16.mxu0 0
      %237 = vmatpush1.bf16.msra.mxu0 %v220
      %238 = vmatprep.subr.bf16.mxu0 0
      %239 = vmatpush2.bf16.msra.mxu0 0
      %240 = vmatprep.subr.bf16.mxu0 0
      %241 = vmatpush2.bf16.msra.mxu0 0
      %242 = vmatprep.subr.bf16.mxu0 0
      %243 = vmatpush2.bf16.msra.mxu0 0
      %244 = vmatprep.subr.bf16.mxu0 0
      %245 = vmatpush2.bf16.msra.mxu0 0
      %246 = vmatprep.subr.bf16.mxu0 0
      %247 = vmatpush2.bf16.msra.mxu0 0
      %248 = vmatprep.subr.bf16.mxu0 0
      %249 = vmatpush2.bf16.msra.mxu0 0
      %250 = vmatprep.subr.bf16.mxu0 0
      %251 = vmatpush2.bf16.msra.mxu0 0
      %252 = vmatprep.subr.bf16.mxu0 0
      %253 = vmatpush2.bf16.msra.mxu0 0
      %254 = vmatprep.mubr.bf16.mxu0 0
      %255 = vmatmul.mubr.bf16.gmra.mxu0 %v216
      %v256 = vpop.f32.mrf.mxu0
      %v257 = vadd.f32 0.0, %v256
      %v258 = vpop.f32.mrf.mxu0
      %v259 = vpop.f32.mrf.mxu0
      %v260 = vpop.f32.mrf.mxu0
      %261 = vdwg.mxu0
      %v263 = vsel %vm214, %v203, 0
      %v266 = vsel %vm218, %v202, 0
      %268 = vmatprep.subr.bf16.mxu0 0
      %269 = vmatpush1.bf16.msra.mxu0 0
      %270 = vmatprep.subr.bf16.mxu0 0
      %271 = vmatpush1.bf16.msra.mxu0 0
      %272 = vmatprep.subr.bf16.mxu0 0
      %273 = vmatpush1.bf16.msra.mxu0 0
      %274 = vmatprep.subr.bf16.mxu0 0
      %275 = vmatpush1.bf16.msra.mxu0 0
      %276 = vmatprep.subr.bf16.mxu0 0
      %277 = vmatpush1.bf16.msra.mxu0 0
      %278 = vmatprep.subr.bf16.mxu0 0
      %279 = vmatpush1.bf16.msra.mxu0 0
      %280 = vmatprep.subr.bf16.mxu0 0
      %281 = vmatpush1.bf16.msra.mxu0 0
      %282 = vmatprep.subr.bf16.mxu0 0
      %283 = vmatpush1.bf16.msra.mxu0 %v266
      %284 = vmatprep.subr.bf16.mxu0 0
      %285 = vmatpush2.bf16.msra.mxu0 0
      %286 = vmatprep.subr.bf16.mxu0 0
      %287 = vmatpush2.bf16.msra.mxu0 0
      %288 = vmatprep.subr.bf16.mxu0 0
      %289 = vmatpush2.bf16.msra.mxu0 0
      %290 = vmatprep.subr.bf16.mxu0 0
      %291 = vmatpush2.bf16.msra.mxu0 0
      %292 = vmatprep.subr.bf16.mxu0 0
      %293 = vmatpush2.bf16.msra.mxu0 0
      %294 = vmatprep.subr.bf16.mxu0 0
      %295 = vmatpush2.bf16.msra.mxu0 0
      %296 = vmatprep.subr.bf16.mxu0 0
      %297 = vmatpush2.bf16.msra.mxu0 0
      %298 = vmatprep.subr.bf16.mxu0 0
      %299 = vmatpush2.bf16.msra.mxu0 0
      %300 = vmatprep.mubr.bf16.mxu0 0
      %301 = vmatmul.mubr.bf16.gmra.mxu0 %v263
      %v302 = vpop.f32.mrf.mxu0
      %v303 = vadd.f32 %v257, %v302
      %v304 = vpop.f32.mrf.mxu0
      %v305 = vpop.f32.mrf.mxu0
      %v306 = vpop.f32.mrf.mxu0
      %307 = vdwg.mxu0
      %308 = vrot.lane.b32.xlu0 %v206, 112
      %v309 = vpop.permute.xlu0 %308
      %310 = vrot.lane.b32.xlu0 %v211, 122
      %v311 = vpop.permute.xlu0 %310
      %v313 = vsel %vm214, %v309, 0
      %v316 = vsel %vm218, %v311, 0
      %318 = vmatprep.subr.bf16.mxu0 0
      %319 = vmatpush1.bf16.msra.mxu0 0
      %320 = vmatprep.subr.bf16.mxu0 0
      %321 = vmatpush1.bf16.msra.mxu0 0
      %322 = vmatprep.subr.bf16.mxu0 0
      %323 = vmatpush1.bf16.msra.mxu0 0
      %324 = vmatprep.subr.bf16.mxu0 0
      %325 = vmatpush1.bf16.msra.mxu0 0
      %326 = vmatprep.subr.bf16.mxu0 0
      %327 = vmatpush1.bf16.msra.mxu0 0
      %328 = vmatprep.subr.bf16.mxu0 0
      %329 = vmatpush1.bf16.msra.mxu0 0
      %330 = vmatprep.subr.bf16.mxu0 0
      %331 = vmatpush1.bf16.msra.mxu0 0
      %332 = vmatprep.subr.bf16.mxu0 0
      %333 = vmatpush1.bf16.msra.mxu0 %v316
      %334 = vmatprep.subr.bf16.mxu0 0
      %335 = vmatpush2.bf16.msra.mxu0 0
      %336 = vmatprep.subr.bf16.mxu0 0
      %337 = vmatpush2.bf16.msra.mxu0 0
      %338 = vmatprep.subr.bf16.mxu0 0
      %339 = vmatpush2.bf16.msra.mxu0 0
      %340 = vmatprep.subr.bf16.mxu0 0
      %341 = vmatpush2.bf16.msra.mxu0 0
      %342 = vmatprep.subr.bf16.mxu0 0
      %343 = vmatpush2.bf16.msra.mxu0 0
      %344 = vmatprep.subr.bf16.mxu0 0
      %345 = vmatpush2.bf16.msra.mxu0 0
      %346 = vmatprep.subr.bf16.mxu0 0
      %347 = vmatpush2.bf16.msra.mxu0 0
      %348 = vmatprep.subr.bf16.mxu0 0
      %349 = vmatpush2.bf16.msra.mxu0 0
      %350 = vmatprep.mubr.bf16.mxu0 0
      %351 = vmatmul.mubr.bf16.gmra.mxu0 %v313
      %v352 = vpop.f32.mrf.mxu0
      %v353 = vadd.f32 0.0, %v352
      %v354 = vpop.f32.mrf.mxu0
      %v355 = vpop.f32.mrf.mxu0
      %v356 = vpop.f32.mrf.mxu0
      %357 = vdwg.mxu0
      %v358 = vadd.f32 %v303, %v353
      %359 = vrot.lane.b32.xlu0 %v206, 104
      %v360 = vpop.permute.xlu0 %359
      %361 = vrot.lane.b32.xlu0 %v211, 119
      %v362 = vpop.permute.xlu0 %361
      %v364 = vsel %vm214, %v360, 0
      %v367 = vsel %vm218, %v362, 0
      %369 = vmatprep.subr.bf16.mxu0 0
      %370 = vmatpush1.bf16.msra.mxu0 0
      %371 = vmatprep.subr.bf16.mxu0 0
      %372 = vmatpush1.bf16.msra.mxu0 0
      %373 = vmatprep.subr.bf16.mxu0 0
      %374 = vmatpush1.bf16.msra.mxu0 0
      %375 = vmatprep.subr.bf16.mxu0 0
      %376 = vmatpush1.bf16.msra.mxu0 0
      %377 = vmatprep.subr.bf16.mxu0 0
      %378 = vmatpush1.bf16.msra.mxu0 0
      %379 = vmatprep.subr.bf16.mxu0 0
      %380 = vmatpush1.bf16.msra.mxu0 0
      %381 = vmatprep.subr.bf16.mxu0 0
      %382 = vmatpush1.bf16.msra.mxu0 0
      %383 = vmatprep.subr.bf16.mxu0 0
      %384 = vmatpush1.bf16.msra.mxu0 %v367
      %385 = vmatprep.subr.bf16.mxu0 0
      %386 = vmatpush2.bf16.msra.mxu0 0
      %387 = vmatprep.subr.bf16.mxu0 0
      %388 = vmatpush2.bf16.msra.mxu0 0
      %389 = vmatprep.subr.bf16.mxu0 0
      %390 = vmatpush2.bf16.msra.mxu0 0
      %391 = vmatprep.subr.bf16.mxu0 0
      %392 = vmatpush2.bf16.msra.mxu0 0
      %393 = vmatprep.subr.bf16.mxu0 0
      %394 = vmatpush2.bf16.msra.mxu0 0
      %395 = vmatprep.subr.bf16.mxu0 0
      %396 = vmatpush2.bf16.msra.mxu0 0
      %397 = vmatprep.subr.bf16.mxu0 0
      %398 = vmatpush2.bf16.msra.mxu0 0
      %399 = vmatprep.subr.bf16.mxu0 0
      %400 = vmatpush2.bf16.msra.mxu0 0
      %401 = vmatprep.mubr.bf16.mxu0 0
      %402 = vmatmul.mubr.bf16.gmra.mxu0 %v364
      %v403 = vpop.f32.mrf.mxu0
      %v404 = vadd.f32 0.0, %v403
      %v405 = vpop.f32.mrf.mxu0
      %v406 = vpop.f32.mrf.mxu0
      %v407 = vpop.f32.mrf.mxu0
      %408 = vdwg.mxu0
      %v409 = vadd.f32 %v358, %v404
      %410 = vrot.lane.b32.xlu0 %v206, 96
      %v411 = vpop.permute.xlu0 %410
      %412 = vrot.lane.b32.xlu0 %v211, 116
      %v413 = vpop.permute.xlu0 %412
      %v415 = vsel %vm214, %v411, 0
      %v418 = vsel %vm218, %v413, 0
      %420 = vmatprep.subr.bf16.mxu0 0
      %421 = vmatpush1.bf16.msra.mxu0 0
      %422 = vmatprep.subr.bf16.mxu0 0
      %423 = vmatpush1.bf16.msra.mxu0 0
      %424 = vmatprep.subr.bf16.mxu0 0
      %425 = vmatpush1.bf16.msra.mxu0 0
      %426 = vmatprep.subr.bf16.mxu0 0
      %427 = vmatpush1.bf16.msra.mxu0 0
      %428 = vmatprep.subr.bf16.mxu0 0
      %429 = vmatpush1.bf16.msra.mxu0 0
      %430 = vmatprep.subr.bf16.mxu0 0
      %431 = vmatpush1.bf16.msra.mxu0 0
      %432 = vmatprep.subr.bf16.mxu0 0
      %433 = vmatpush1.bf16.msra.mxu0 0
      %434 = vmatprep.subr.bf16.mxu0 0
      %435 = vmatpush1.bf16.msra.mxu0 %v418
      %436 = vmatprep.subr.bf16.mxu0 0
      %437 = vmatpush2.bf16.msra.mxu0 0
      %438 = vmatprep.subr.bf16.mxu0 0
      %439 = vmatpush2.bf16.msra.mxu0 0
      %440 = vmatprep.subr.bf16.mxu0 0
      %441 = vmatpush2.bf16.msra.mxu0 0
      %442 = vmatprep.subr.bf16.mxu0 0
      %443 = vmatpush2.bf16.msra.mxu0 0
      %444 = vmatprep.subr.bf16.mxu0 0
      %445 = vmatpush2.bf16.msra.mxu0 0
      %446 = vmatprep.subr.bf16.mxu0 0
      %447 = vmatpush2.bf16.msra.mxu0 0
      %448 = vmatprep.subr.bf16.mxu0 0
      %449 = vmatpush2.bf16.msra.mxu0 0
      %450 = vmatprep.subr.bf16.mxu0 0
      %451 = vmatpush2.bf16.msra.mxu0 0
      %452 = vmatprep.mubr.bf16.mxu0 0
      %453 = vmatmul.mubr.bf16.gmra.mxu0 %v415
      %v454 = vpop.f32.mrf.mxu0
      %v455 = vadd.f32 0.0, %v454
      %v456 = vpop.f32.mrf.mxu0
      %v457 = vpop.f32.mrf.mxu0
      %v458 = vpop.f32.mrf.mxu0
      %459 = vdwg.mxu0
      %v460 = vadd.f32 %v409, %v455
      %v461 = vld [vmem:[%s2] sm:$0xff]
      %463 = vset.pattern.permute.xlu0 0
      %464 = vperm.xlu0 %463, %v461
      %v465 = vpop.permute.xlu0 %464
      %v467 = vadd.f32 %v460, %v465
      %v468 = vpack.c.bf16 %v467, %v467
      %vm469 = vcmask 519168
      %470 = vst.msk [vmem:[%s196] sm:$0xf] %vm469, %v468
      %p471 = scmp.lt.s32.totalorder %s18, 1
      %s472 = scalar_select %p471, %s18, 1
      %p473 = scmp.lt.s32.totalorder %s19, 0
      %s474 = scalar_select %p473, %s19, 0
      %s475 = sadd.s32 %s474, %s472
      %s476 = smul.addr %s475, 4
      %s477 = scalar_lea.vmem %s3, %s476
      // Predicated region
      $region33: #{generator_forward_pallas.55} parent=31 // pred_check
        %p478 = pneg %p116
      $region34: #{generator_forward_pallas.55} parent=31 // pred_check_branch
        %480 = sbr.rel (%p478) target = $region36
      $region35: #{generator_forward_pallas.55} parent=31 // pred_region
        _
      $region36: #{generator_forward_pallas.55} parent=31 // pred_fallthru
        _
    $region32: #{generator_forward_pallas.55} parent=5 // pred_fallthru
      _
    %p481 = scmp.le.s32.totalorder 2, %s9
    // Predicated region
    $region37: #{generator_forward_pallas.55} parent=5 // pred_check
      %p482 = pneg %p481
    $region38: #{generator_forward_pallas.55} parent=5 // pred_check_branch
      %484 = sbr.rel (%p482) target = $region40
    $region39: #{generator_forward_pallas.55} parent=5 // pred_region
      %s485 = ssub.s32 %s9, 2
      // Predicated region
      $region41: #{generator_forward_pallas.55} parent=39 // pred_check
        %p486 = pneg %p122
      $region42: #{generator_forward_pallas.55} parent=39 // pred_check_branch
        %488 = sbr.rel (%p486) target = $region44
      $region43: #{generator_forward_pallas.55} parent=39 // pred_region
        %p489 = scmp.lt.s32.totalorder %s20, 1
        %s490 = scalar_select %p489, %s20, 1
        %p491 = scmp.lt.s32.totalorder %s21, 0
        %s492 = scalar_select %p491, %s21, 0
        %s493 = sadd.s32 %s492, %s490
        %s494 = smul.addr %s493, 4
        %s495 = scalar_lea.vmem %s3, %s494
      $region44: #{generator_forward_pallas.55} parent=39 // pred_fallthru
        _
    $region40: #{generator_forward_pallas.55} parent=5 // pred_fallthru
      _
  $region6: #{generator_forward_pallas.55} parent=0 // loop_footer
    %s13 = sadd.s32 1, %s9
  $region7: #{generator_forward_pallas.55} parent=0 // loop_footer_branch
    %8 = sbr.rel target = $region3
  $region8: #{generator_forward_pallas.55} parent=0 // loop_exit
    _

// kernel: generator_forward_pallas.57
$region0: #{generator_forward_pallas.57}
  #allocation0 [shape = 'u32[]', space=smem, size = 0x4, offset = 0x4, fixed_abs, tag = 'smem constant byte address 0x4 - core index']
  #allocation1 [shape = 'u32[144,128]{1,0:T(1,128)}', space=vmem, size = 0x12000, scoped, tag = 'internal scratch']
  %s0 = inlined_call_operand.vmem [shape: bf16[2,1,8,84], index: 0, kind: input, shape index: {}]
  %s1 = inlined_call_operand.vmem [shape: bf16[8,40], index: 1, kind: input, shape index: {}]
  %s2 = inlined_call_operand.vmem [shape: f32[8,1], index: 2, kind: input, shape index: {}]
  %s3 = inlined_call_operand.vmem [shape: bf16[2,8,64], index: 3, kind: output, shape index: {}]
  %s4 = sld [smem:[#allocation0]]
  $region45: #{generator_forward_pallas.57} parent=0
    _
  %s6 = ssub.s32 1, %s4
  %s7 = scalar_select 0, %s6, %s4
  loop: start=0, step=1, limit=4
  $region2: #{generator_forward_pallas.57} parent=0 // loop_pre_header
    _
  $region3: #{generator_forward_pallas.57} parent=0 // loop_header
    %s9 = sphi 0, %s13
    %p10 = scmp.ge.s32.totalorder %s9, 4
    %s16 = sphi 0, %s28
    %s17 = sphi 0, %s24
    %s18 = sphi 0, %s16
    %s19 = sphi 0, %s17
    %s20 = sphi 0, %s18
    %s21 = sphi 0, %s19
    %s33 = sphi 0, %s35
    %s36 = sphi 0, %s33
    %s37 = sphi 0, %s36
    %s53 = sphi 0, %s37
    %s57 = sphi 0, %s57
    %s59 = sphi 0, %s57
    %s60 = sphi 0, %s59
    %s74 = sphi 0, %s60
    %s78 = sphi 0, %s78
    %s80 = sphi 0, %s78
    %s81 = sphi 0, %s80
    %s95 = sphi 0, %s81
    %s103 = sphi 0, %s105
    %s106 = sphi 0, %s103
    %s107 = sphi 0, %s106
    %s123 = sphi 0, %s107
  $region4: #{generator_forward_pallas.57} parent=0 // loop_header_branch
    %12 = sbr.rel (%p10) target = $region8
  $region5: #{generator_forward_pallas.57} parent=0 // loop_body
    %s14 = ssub.s32 %s9, 1
    %s15 = ssub.s32 %s9, 2
    %s22 = sadd.s32 1, %s17
    %p23 = scmp.ge.s32.totalorder %s22, 1
    %s24 = scalar_select %p23, 0, %s22
    %s25 = sadd.s32 1, %s16
    %s26 = scalar_select %p23, %s25, %s16
    %p27 = scmp.ge.s32.totalorder %s26, 2
    %s28 = scalar_select %p27, 0, %s26
    %s29 = ssub.s32 %s16, %s28
    %s30 = ssub.s32 %s17, %s24
    %s31 = sor.u32 %s29, %s30
    %p32 = scmp.eq.s32.totalorder %s31, 0
    %s34 = sadd.s32 %s33, 1
    %s35 = scalar_select %p32, %s33, %s34
    %p38 = pneg %p32
    %p39 = scmp.eq.s32.totalorder %s9, 1
    %p40 = por %p38, %p39
    %p41 = scmp.ne.s32.totalorder %s33, %s36
    %p42 = scmp.eq.s32.totalorder %s9, 0
    %p43 = por %p41, %p42
    %p44 = scmp.ne.s32.totalorder %s33, %s36
    %p45 = scmp.eq.s32.totalorder %s14, 1
    %p46 = por %p44, %p45
    %p47 = scmp.ne.s32.totalorder %s36, %s37
    %p48 = scmp.eq.s32.totalorder %s14, 0
    %p49 = por %p47, %p48
    %p50 = scmp.ne.s32.totalorder %s36, %s37
    %p51 = scmp.eq.s32.totalorder %s15, 1
    %p52 = por %p50, %p51
    %p54 = scmp.ne.s32.totalorder %s37, %s53
    %p55 = scmp.eq.s32.totalorder %s15, 0
    %p56 = por %p54, %p55
    %s58 = sadd.s32 %s57, 1
    %p61 = scmp.eq.s32.totalorder %s9, 1
    %p62 = scmp.ne.s32.totalorder %s57, %s59
    %p63 = scmp.eq.s32.totalorder %s9, 0
    %p64 = por %p62, %p63
    %p65 = scmp.ne.s32.totalorder %s57, %s59
    %p66 = scmp.eq.s32.totalorder %s14, 1
    %p67 = por %p65, %p66
    %p68 = scmp.ne.s32.totalorder %s59, %s60
    %p69 = scmp.eq.s32.totalorder %s14, 0
    %p70 = por %p68, %p69
    %p71 = scmp.ne.s32.totalorder %s59, %s60
    %p72 = scmp.eq.s32.totalorder %s15, 1
    %p73 = por %p71, %p72
    %p75 = scmp.ne.s32.totalorder %s60, %s74
    %p76 = scmp.eq.s32.totalorder %s15, 0
    %p77 = por %p75, %p76
    %s79 = sadd.s32 %s78, 1
    %p82 = scmp.eq.s32.totalorder %s9, 1
    %p83 = scmp.ne.s32.totalorder %s78, %s80
    %p84 = scmp.eq.s32.totalorder %s9, 0
    %p85 = por %p83, %p84
    %p86 = scmp.ne.s32.totalorder %s78, %s80
    %p87 = scmp.eq.s32.totalorder %s14, 1
    %p88 = por %p86, %p87
    %p89 = scmp.ne.s32.totalorder %s80, %s81
    %p90 = scmp.eq.s32.totalorder %s14, 0
    %p91 = por %p89, %p90
    %p92 = scmp.ne.s32.totalorder %s80, %s81
    %p93 = scmp.eq.s32.totalorder %s15, 1
    %p94 = por %p92, %p93
    %p96 = scmp.ne.s32.totalorder %s81, %s95
    %p97 = scmp.eq.s32.totalorder %s15, 0
    %p98 = por %p96, %p97
    %s99 = ssub.s32 %s16, %s28
    %s100 = ssub.s32 %s17, %s24
    %s101 = sor.u32 %s99, %s100
    %p102 = scmp.eq.s32.totalorder %s101, 0
    %s104 = sadd.s32 %s103, 1
    %s105 = scalar_select %p102, %s103, %s104
    %p108 = pneg %p102
    %p109 = scmp.eq.s32.totalorder %s9, 1
    %p110 = por %p108, %p109
    %p111 = scmp.ne.s32.totalorder %s103, %s106
    %p112 = scmp.eq.s32.totalorder %s9, 0
    %p113 = por %p111, %p112
    %p114 = scmp.ne.s32.totalorder %s103, %s106
    %p115 = scmp.eq.s32.totalorder %s14, 1
    %p116 = por %p114, %p115
    %p117 = scmp.ne.s32.totalorder %s106, %s107
    %p118 = scmp.eq.s32.totalorder %s14, 0
    %p119 = por %p117, %p118
    %p120 = scmp.ne.s32.totalorder %s106, %s107
    %p121 = scmp.eq.s32.totalorder %s15, 1
    %p122 = por %p120, %p121
    %p124 = scmp.ne.s32.totalorder %s107, %s123
    %p125 = scmp.eq.s32.totalorder %s15, 0
    %p126 = por %p124, %p125
    %p127 = scmp.le.s32.totalorder 1, %s9
    %p128 = scmp.lt.s32.totalorder %s9, 3
    %p129 = pnand %p127, %p128
    %p130 = pneg %p129
    // Predicated region
    $region9: #{generator_forward_pallas.57} parent=5 // pred_check
      _
    $region10: #{generator_forward_pallas.57} parent=5 // pred_check_branch
      %132 = sbr.rel (%p129) target = $region12
    $region11: #{generator_forward_pallas.57} parent=5 // pred_region
      %s133 = ssub.s32 %s9, 1
      // Predicated region
      $region13: #{generator_forward_pallas.57} parent=11 // pred_check
        %p134 = pneg %p70
      $region14: #{generator_forward_pallas.57} parent=11 // pred_check_branch
        %136 = sbr.rel (%p134) target = $region16
      $region15: #{generator_forward_pallas.57} parent=11 // pred_region
        _
      $region16: #{generator_forward_pallas.57} parent=11 // pred_fallthru
        _
      // Predicated region
      $region17: #{generator_forward_pallas.57} parent=11 // pred_check
        %p137 = pneg %p91
      $region18: #{generator_forward_pallas.57} parent=11 // pred_check_branch
        %139 = sbr.rel (%p137) target = $region20
      $region19: #{generator_forward_pallas.57} parent=11 // pred_region
        _
      $region20: #{generator_forward_pallas.57} parent=11 // pred_fallthru
        _
    $region12: #{generator_forward_pallas.57} parent=5 // pred_fallthru
      _
    %p140 = scmp.lt.s32.totalorder %s9, 2
    // Predicated region
    $region21: #{generator_forward_pallas.57} parent=5 // pred_check
      %p141 = pneg %p140
    $region22: #{generator_forward_pallas.57} parent=5 // pred_check_branch
      %143 = sbr.rel (%p141) target = $region24
    $region23: #{generator_forward_pallas.57} parent=5 // pred_region
      // Predicated region
      $region25: #{generator_forward_pallas.57} parent=23 // pred_check
        %p144 = pneg %p43
      $region26: #{generator_forward_pallas.57} parent=23 // pred_check_branch
        %146 = sbr.rel (%p144) target = $region28
      $region27: #{generator_forward_pallas.57} parent=23 // pred_region
        %p147 = scmp.lt.s32.totalorder %s16, 1
        %s148 = scalar_select %p147, %s16, 1
        %p149 = scmp.lt.s32.totalorder %s17, 0
        %s150 = scalar_select %p149, %s17, 0
        %s151 = sadd.s32 %s150, %s148
        %s152 = smul.addr %s151, 4
        %s153 = scalar_lea.vmem %s0, %s152
      $region28: #{generator_forward_pallas.57} parent=23 // pred_fallthru
        _
    $region24: #{generator_forward_pallas.57} parent=5 // pred_fallthru
      _
    %p154 = scmp.le.s32.totalorder 1, %s9
    %p155 = scmp.lt.s32.totalorder %s9, 3
    %p156 = pnand %p154, %p155
    %p157 = pneg %p156
    // Predicated region
    $region29: #{generator_forward_pallas.57} parent=5 // pred_check
      _
    $region30: #{generator_forward_pallas.57} parent=5 // pred_check_branch
      %159 = sbr.rel (%p156) target = $region32
    $region31: #{generator_forward_pallas.57} parent=5 // pred_region
      %s160 = ssub.s32 %s9, 1
      %p161 = scmp.lt.s32.totalorder %s18, 1
      %s162 = scalar_select %p161, %s18, 1
      %p163 = scmp.lt.s32.totalorder %s19, 0
      %s164 = scalar_select %p163, %s19, 0
      %s165 = sadd.s32 %s164, %s162
      %s166 = smul.addr %s165, 4
      %s167 = scalar_lea.vmem %s0, %s166
      %p168 = pneg %p49
      %p169 = pneg %p46
      %p170 = pneg %p70
      %p171 = pneg %p67
      %p172 = pneg %p91
      %p173 = pneg %p88
      %p174 = pneg %p119
      %p175 = pneg %p116
      %p176 = scmp.lt.s32.totalorder %s18, 1
      %s177 = scalar_select %p176, %s18, 1
      %p178 = scmp.lt.s32.totalorder %s19, 0
      %s179 = scalar_select %p178, %s19, 0
      %s180 = sadd.s32 %s179, %s177
      %s181 = smul.addr %s180, 4
      %s182 = scalar_lea.vmem %s3, %s181
      %p183 = scmp.lt.s32.totalorder %s18, 1
      %s184 = scalar_select %p183, %s18, 1
      %p185 = scmp.lt.s32.totalorder %s19, 0
      %s186 = scalar_select %p185, %s19, 0
      %s187 = sadd.s32 %s186, %s184
      %s188 = smul.addr %s187, 4
      %s189 = scalar_lea.vmem %s0, %s188
      %p190 = scmp.lt.s32.totalorder %s18, 1
      %s191 = scalar_select %p190, %s18, 1
      %p192 = scmp.lt.s32.totalorder %s19, 0
      %s193 = scalar_select %p192, %s19, 0
      %s194 = sadd.s32 %s193, %s191
      %s195 = smul.addr %s194, 4
      %s196 = scalar_lea.vmem %s3, %s195
      %v199 = vld [vmem:[%s189] sm:$0xf]
      %vm200 = vcmp.ge.bf16.partialorder %v199, 0
      %v201 = vmul.bf16 %v199, 1036860877
      %v202 = vsel %vm200, %v199, %v201
      %v203 = vld [vmem:[%s1] sm:$0xf]
      %v205 = vunpack.c.l.b16 %v203
      %v206 = vpack.c.b16 %v205, %v205
      %207 = vrot.lane.b32.xlu0 %v206, 120
      %v208 = vpop.permute.xlu0 %207
      %v210 = vunpack.c.l.b16 %v202
      %v211 = vpack.c.b16 %v210, %v210
      %212 = vrot.lane.b32.xlu0 %v211, 123
      %v213 = vpop.permute.xlu0 %212
      %vm214 = vcmask 64512
      %v216 = vsel %vm214, %v208, 0
      %vm218 = vcmask 1043456
      %v220 = vsel %vm218, %v213, 0
      %222 = vmatprep.subr.bf16.mxu0 0
      %223 = vmatpush1.bf16.msra.mxu0 0
      %224 = vmatprep.subr.bf16.mxu0 0
      %225 = vmatpush1.bf16.msra.mxu0 0
      %226 = vmatprep.subr.bf16.mxu0 0
      %227 = vmatpush1.bf16.msra.mxu0 0
      %228 = vmatprep.subr.bf16.mxu0 0
      %229 = vmatpush1.bf16.msra.mxu0 0
      %230 = vmatprep.subr.bf16.mxu0 0
      %231 = vmatpush1.bf16.msra.mxu0 0
      %232 = vmatprep.subr.bf16.mxu0 0
      %233 = vmatpush1.bf16.msra.mxu0 0
      %234 = vmatprep.subr.bf16.mxu0 0
      %235 = vmatpush1.bf16.msra.mxu0 0
      %236 = vmatprep.subr.bf16.mxu0 0
      %237 = vmatpush1.bf16.msra.mxu0 %v220
      %238 = vmatprep.subr.bf16.mxu0 0
      %239 = vmatpush2.bf16.msra.mxu0 0
      %240 = vmatprep.subr.bf16.mxu0 0
      %241 = vmatpush2.bf16.msra.mxu0 0
      %242 = vmatprep.subr.bf16.mxu0 0
      %243 = vmatpush2.bf16.msra.mxu0 0
      %244 = vmatprep.subr.bf16.mxu0 0
      %245 = vmatpush2.bf16.msra.mxu0 0
      %246 = vmatprep.subr.bf16.mxu0 0
      %247 = vmatpush2.bf16.msra.mxu0 0
      %248 = vmatprep.subr.bf16.mxu0 0
      %249 = vmatpush2.bf16.msra.mxu0 0
      %250 = vmatprep.subr.bf16.mxu0 0
      %251 = vmatpush2.bf16.msra.mxu0 0
      %252 = vmatprep.subr.bf16.mxu0 0
      %253 = vmatpush2.bf16.msra.mxu0 0
      %254 = vmatprep.mubr.bf16.mxu0 0
      %255 = vmatmul.mubr.bf16.gmra.mxu0 %v216
      %v256 = vpop.f32.mrf.mxu0
      %v257 = vadd.f32 0.0, %v256
      %v258 = vpop.f32.mrf.mxu0
      %v259 = vpop.f32.mrf.mxu0
      %v260 = vpop.f32.mrf.mxu0
      %261 = vdwg.mxu0
      %v263 = vsel %vm214, %v203, 0
      %v266 = vsel %vm218, %v202, 0
      %268 = vmatprep.subr.bf16.mxu0 0
      %269 = vmatpush1.bf16.msra.mxu0 0
      %270 = vmatprep.subr.bf16.mxu0 0
      %271 = vmatpush1.bf16.msra.mxu0 0
      %272 = vmatprep.subr.bf16.mxu0 0
      %273 = vmatpush1.bf16.msra.mxu0 0
      %274 = vmatprep.subr.bf16.mxu0 0
      %275 = vmatpush1.bf16.msra.mxu0 0
      %276 = vmatprep.subr.bf16.mxu0 0
      %277 = vmatpush1.bf16.msra.mxu0 0
      %278 = vmatprep.subr.bf16.mxu0 0
      %279 = vmatpush1.bf16.msra.mxu0 0
      %280 = vmatprep.subr.bf16.mxu0 0
      %281 = vmatpush1.bf16.msra.mxu0 0
      %282 = vmatprep.subr.bf16.mxu0 0
      %283 = vmatpush1.bf16.msra.mxu0 %v266
      %284 = vmatprep.subr.bf16.mxu0 0
      %285 = vmatpush2.bf16.msra.mxu0 0
      %286 = vmatprep.subr.bf16.mxu0 0
      %287 = vmatpush2.bf16.msra.mxu0 0
      %288 = vmatprep.subr.bf16.mxu0 0
      %289 = vmatpush2.bf16.msra.mxu0 0
      %290 = vmatprep.subr.bf16.mxu0 0
      %291 = vmatpush2.bf16.msra.mxu0 0
      %292 = vmatprep.subr.bf16.mxu0 0
      %293 = vmatpush2.bf16.msra.mxu0 0
      %294 = vmatprep.subr.bf16.mxu0 0
      %295 = vmatpush2.bf16.msra.mxu0 0
      %296 = vmatprep.subr.bf16.mxu0 0
      %297 = vmatpush2.bf16.msra.mxu0 0
      %298 = vmatprep.subr.bf16.mxu0 0
      %299 = vmatpush2.bf16.msra.mxu0 0
      %300 = vmatprep.mubr.bf16.mxu0 0
      %301 = vmatmul.mubr.bf16.gmra.mxu0 %v263
      %v302 = vpop.f32.mrf.mxu0
      %v303 = vadd.f32 %v257, %v302
      %v304 = vpop.f32.mrf.mxu0
      %v305 = vpop.f32.mrf.mxu0
      %v306 = vpop.f32.mrf.mxu0
      %307 = vdwg.mxu0
      %308 = vrot.lane.b32.xlu0 %v206, 112
      %v309 = vpop.permute.xlu0 %308
      %310 = vrot.lane.b32.xlu0 %v211, 118
      %v311 = vpop.permute.xlu0 %310
      %v313 = vsel %vm214, %v309, 0
      %v316 = vsel %vm218, %v311, 0
      %318 = vmatprep.subr.bf16.mxu0 0
      %319 = vmatpush1.bf16.msra.mxu0 0
      %320 = vmatprep.subr.bf16.mxu0 0
      %321 = vmatpush1.bf16.msra.mxu0 0
      %322 = vmatprep.subr.bf16.mxu0 0
      %323 = vmatpush1.bf16.msra.mxu0 0
      %324 = vmatprep.subr.bf16.mxu0 0
      %325 = vmatpush1.bf16.msra.mxu0 0
      %326 = vmatprep.subr.bf16.mxu0 0
      %327 = vmatpush1.bf16.msra.mxu0 0
      %328 = vmatprep.subr.bf16.mxu0 0
      %329 = vmatpush1.bf16.msra.mxu0 0
      %330 = vmatprep.subr.bf16.mxu0 0
      %331 = vmatpush1.bf16.msra.mxu0 0
      %332 = vmatprep.subr.bf16.mxu0 0
      %333 = vmatpush1.bf16.msra.mxu0 %v316
      %334 = vmatprep.subr.bf16.mxu0 0
      %335 = vmatpush2.bf16.msra.mxu0 0
      %336 = vmatprep.subr.bf16.mxu0 0
      %337 = vmatpush2.bf16.msra.mxu0 0
      %338 = vmatprep.subr.bf16.mxu0 0
      %339 = vmatpush2.bf16.msra.mxu0 0
      %340 = vmatprep.subr.bf16.mxu0 0
      %341 = vmatpush2.bf16.msra.mxu0 0
      %342 = vmatprep.subr.bf16.mxu0 0
      %343 = vmatpush2.bf16.msra.mxu0 0
      %344 = vmatprep.subr.bf16.mxu0 0
      %345 = vmatpush2.bf16.msra.mxu0 0
      %346 = vmatprep.subr.bf16.mxu0 0
      %347 = vmatpush2.bf16.msra.mxu0 0
      %348 = vmatprep.subr.bf16.mxu0 0
      %349 = vmatpush2.bf16.msra.mxu0 0
      %350 = vmatprep.mubr.bf16.mxu0 0
      %351 = vmatmul.mubr.bf16.gmra.mxu0 %v313
      %v352 = vpop.f32.mrf.mxu0
      %v353 = vadd.f32 0.0, %v352
      %v354 = vpop.f32.mrf.mxu0
      %v355 = vpop.f32.mrf.mxu0
      %v356 = vpop.f32.mrf.mxu0
      %357 = vdwg.mxu0
      %v358 = vadd.f32 %v303, %v353
      %359 = vrot.lane.b32.xlu0 %v206, 104
      %v360 = vpop.permute.xlu0 %359
      %361 = vrot.lane.b32.xlu0 %v211, 113
      %v362 = vpop.permute.xlu0 %361
      %v364 = vsel %vm214, %v360, 0
      %v367 = vsel %vm218, %v362, 0
      %369 = vmatprep.subr.bf16.mxu0 0
      %370 = vmatpush1.bf16.msra.mxu0 0
      %371 = vmatprep.subr.bf16.mxu0 0
      %372 = vmatpush1.bf16.msra.mxu0 0
      %373 = vmatprep.subr.bf16.mxu0 0
      %374 = vmatpush1.bf16.msra.mxu0 0
      %375 = vmatprep.subr.bf16.mxu0 0
      %376 = vmatpush1.bf16.msra.mxu0 0
      %377 = vmatprep.subr.bf16.mxu0 0
      %378 = vmatpush1.bf16.msra.mxu0 0
      %379 = vmatprep.subr.bf16.mxu0 0
      %380 = vmatpush1.bf16.msra.mxu0 0
      %381 = vmatprep.subr.bf16.mxu0 0
      %382 = vmatpush1.bf16.msra.mxu0 0
      %383 = vmatprep.subr.bf16.mxu0 0
      %384 = vmatpush1.bf16.msra.mxu0 %v367
      %385 = vmatprep.subr.bf16.mxu0 0
      %386 = vmatpush2.bf16.msra.mxu0 0
      %387 = vmatprep.subr.bf16.mxu0 0
      %388 = vmatpush2.bf16.msra.mxu0 0
      %389 = vmatprep.subr.bf16.mxu0 0
      %390 = vmatpush2.bf16.msra.mxu0 0
      %391 = vmatprep.subr.bf16.mxu0 0
      %392 = vmatpush2.bf16.msra.mxu0 0
      %393 = vmatprep.subr.bf16.mxu0 0
      %394 = vmatpush2.bf16.msra.mxu0 0
      %395 = vmatprep.subr.bf16.mxu0 0
      %396 = vmatpush2.bf16.msra.mxu0 0
      %397 = vmatprep.subr.bf16.mxu0 0
      %398 = vmatpush2.bf16.msra.mxu0 0
      %399 = vmatprep.subr.bf16.mxu0 0
      %400 = vmatpush2.bf16.msra.mxu0 0
      %401 = vmatprep.mubr.bf16.mxu0 0
      %402 = vmatmul.mubr.bf16.gmra.mxu0 %v364
      %v403 = vpop.f32.mrf.mxu0
      %v404 = vadd.f32 0.0, %v403
      %v405 = vpop.f32.mrf.mxu0
      %v406 = vpop.f32.mrf.mxu0
      %v407 = vpop.f32.mrf.mxu0
      %408 = vdwg.mxu0
      %v409 = vadd.f32 %v358, %v404
      %410 = vrot.lane.b32.xlu0 %v206, 96
      %v411 = vpop.permute.xlu0 %410
      %412 = vrot.lane.b32.xlu0 %v211, 108
      %v413 = vpop.permute.xlu0 %412
      %v415 = vsel %vm214, %v411, 0
      %v418 = vsel %vm218, %v413, 0
      %420 = vmatprep.subr.bf16.mxu0 0
      %421 = vmatpush1.bf16.msra.mxu0 0
      %422 = vmatprep.subr.bf16.mxu0 0
      %423 = vmatpush1.bf16.msra.mxu0 0
      %424 = vmatprep.subr.bf16.mxu0 0
      %425 = vmatpush1.bf16.msra.mxu0 0
      %426 = vmatprep.subr.bf16.mxu0 0
      %427 = vmatpush1.bf16.msra.mxu0 0
      %428 = vmatprep.subr.bf16.mxu0 0
      %429 = vmatpush1.bf16.msra.mxu0 0
      %430 = vmatprep.subr.bf16.mxu0 0
      %431 = vmatpush1.bf16.msra.mxu0 0
      %432 = vmatprep.subr.bf16.mxu0 0
      %433 = vmatpush1.bf16.msra.mxu0 0
      %434 = vmatprep.subr.bf16.mxu0 0
      %435 = vmatpush1.bf16.msra.mxu0 %v418
      %436 = vmatprep.subr.bf16.mxu0 0
      %437 = vmatpush2.bf16.msra.mxu0 0
      %438 = vmatprep.subr.bf16.mxu0 0
      %439 = vmatpush2.bf16.msra.mxu0 0
      %440 = vmatprep.subr.bf16.mxu0 0
      %441 = vmatpush2.bf16.msra.mxu0 0
      %442 = vmatprep.subr.bf16.mxu0 0
      %443 = vmatpush2.bf16.msra.mxu0 0
      %444 = vmatprep.subr.bf16.mxu0 0
      %445 = vmatpush2.bf16.msra.mxu0 0
      %446 = vmatprep.subr.bf16.mxu0 0
      %447 = vmatpush2.bf16.msra.mxu0 0
      %448 = vmatprep.subr.bf16.mxu0 0
      %449 = vmatpush2.bf16.msra.mxu0 0
      %450 = vmatprep.subr.bf16.mxu0 0
      %451 = vmatpush2.bf16.msra.mxu0 0
      %452 = vmatprep.mubr.bf16.mxu0 0
      %453 = vmatmul.mubr.bf16.gmra.mxu0 %v415
      %v454 = vpop.f32.mrf.mxu0
      %v455 = vadd.f32 0.0, %v454
      %v456 = vpop.f32.mrf.mxu0
      %v457 = vpop.f32.mrf.mxu0
      %v458 = vpop.f32.mrf.mxu0
      %459 = vdwg.mxu0
      %v460 = vadd.f32 %v409, %v455
      %v461 = vld [vmem:[%s2] sm:$0xff]
      %463 = vset.pattern.permute.xlu0 0
      %464 = vperm.xlu0 %463, %v461
      %v465 = vpop.permute.xlu0 %464
      %v467 = vadd.f32 %v460, %v465
      %v468 = vpack.c.bf16 %v467, %v467
      %vm469 = vcmask 519168
      %470 = vst.msk [vmem:[%s196] sm:$0xf] %vm469, %v468
      %p471 = scmp.lt.s32.totalorder %s18, 1
      %s472 = scalar_select %p471, %s18, 1
      %p473 = scmp.lt.s32.totalorder %s19, 0
      %s474 = scalar_select %p473, %s19, 0
      %s475 = sadd.s32 %s474, %s472
      %s476 = smul.addr %s475, 4
      %s477 = scalar_lea.vmem %s3, %s476
      // Predicated region
      $region33: #{generator_forward_pallas.57} parent=31 // pred_check
        %p478 = pneg %p116
      $region34: #{generator_forward_pallas.57} parent=31 // pred_check_branch
        %480 = sbr.rel (%p478) target = $region36
      $region35: #{generator_forward_pallas.57} parent=31 // pred_region
        _
      $region36: #{generator_forward_pallas.57} parent=31 // pred_fallthru
        _
    $region32: #{generator_forward_pallas.57} parent=5 // pred_fallthru
      _
    %p481 = scmp.le.s32.totalorder 2, %s9
    // Predicated region
    $region37: #{generator_forward_pallas.57} parent=5 // pred_check
      %p482 = pneg %p481
    $region38: #{generator_forward_pallas.57} parent=5 // pred_check_branch
      %484 = sbr.rel (%p482) target = $region40
    $region39: #{generator_forward_pallas.57} parent=5 // pred_region
      %s485 = ssub.s32 %s9, 2
      // Predicated region
      $region41: #{generator_forward_pallas.57} parent=39 // pred_check
        %p486 = pneg %p122
      $region42: #{generator_forward_pallas.57} parent=39 // pred_check_branch
        %488 = sbr.rel (%p486) target = $region44
      $region43: #{generator_forward_pallas.57} parent=39 // pred_region
        %p489 = scmp.lt.s32.totalorder %s20, 1
        %s490 = scalar_select %p489, %s20, 1
        %p491 = scmp.lt.s32.totalorder %s21, 0
        %s492 = scalar_select %p491, %s21, 0
        %s493 = sadd.s32 %s492, %s490
        %s494 = smul.addr %s493, 4
        %s495 = scalar_lea.vmem %s3, %s494
      $region44: #{generator_forward_pallas.57} parent=39 // pred_fallthru
        _
    $region40: #{generator_forward_pallas.57} parent=5 // pred_fallthru
      _
  $region6: #{generator_forward_pallas.57} parent=0 // loop_footer
    %s13 = sadd.s32 1, %s9
  $region7: #{generator_forward_pallas.57} parent=0 // loop_footer_branch
    %8 = sbr.rel target = $region3
  $region8: #{generator_forward_pallas.57} parent=0 // loop_exit
    _

// kernel: generator_forward_pallas.59
$region0: #{generator_forward_pallas.59}
  #allocation0 [shape = 'u32[]', space=smem, size = 0x4, offset = 0x4, fixed_abs, tag = 'smem constant byte address 0x4 - core index']
  #allocation1 [shape = 'u32[144,128]{1,0:T(1,128)}', space=vmem, size = 0x12000, scoped, tag = 'internal scratch']
  %s0 = inlined_call_operand.vmem [shape: bf16[2,1,8,70], index: 0, kind: input, shape index: {}]
  %s1 = inlined_call_operand.vmem [shape: bf16[2,56], index: 1, kind: input, shape index: {}]
  %s2 = inlined_call_operand.vmem [shape: f32[2,1], index: 2, kind: input, shape index: {}]
  %s3 = inlined_call_operand.vmem [shape: bf16[2,2,64], index: 3, kind: output, shape index: {}]
  %s4 = sld [smem:[#allocation0]]
  $region45: #{generator_forward_pallas.59} parent=0
    _
  %s6 = ssub.s32 1, %s4
  %s7 = scalar_select 0, %s6, %s4
  loop: start=0, step=1, limit=4
  $region2: #{generator_forward_pallas.59} parent=0 // loop_pre_header
    _
  $region3: #{generator_forward_pallas.59} parent=0 // loop_header
    %s9 = sphi 0, %s13
    %p10 = scmp.ge.s32.totalorder %s9, 4
    %s16 = sphi 0, %s28
    %s17 = sphi 0, %s24
    %s18 = sphi 0, %s16
    %s19 = sphi 0, %s17
    %s20 = sphi 0, %s18
    %s21 = sphi 0, %s19
    %s33 = sphi 0, %s35
    %s36 = sphi 0, %s33
    %s37 = sphi 0, %s36
    %s53 = sphi 0, %s37
    %s57 = sphi 0, %s57
    %s59 = sphi 0, %s57
    %s60 = sphi 0, %s59
    %s74 = sphi 0, %s60
    %s78 = sphi 0, %s78
    %s80 = sphi 0, %s78
    %s81 = sphi 0, %s80
    %s95 = sphi 0, %s81
    %s103 = sphi 0, %s105
    %s106 = sphi 0, %s103
    %s107 = sphi 0, %s106
    %s123 = sphi 0, %s107
  $region4: #{generator_forward_pallas.59} parent=0 // loop_header_branch
    %12 = sbr.rel (%p10) target = $region8
  $region5: #{generator_forward_pallas.59} parent=0 // loop_body
    %s14 = ssub.s32 %s9, 1
    %s15 = ssub.s32 %s9, 2
    %s22 = sadd.s32 1, %s17
    %p23 = scmp.ge.s32.totalorder %s22, 1
    %s24 = scalar_select %p23, 0, %s22
    %s25 = sadd.s32 1, %s16
    %s26 = scalar_select %p23, %s25, %s16
    %p27 = scmp.ge.s32.totalorder %s26, 2
    %s28 = scalar_select %p27, 0, %s26
    %s29 = ssub.s32 %s16, %s28
    %s30 = ssub.s32 %s17, %s24
    %s31 = sor.u32 %s29, %s30
    %p32 = scmp.eq.s32.totalorder %s31, 0
    %s34 = sadd.s32 %s33, 1
    %s35 = scalar_select %p32, %s33, %s34
    %p38 = pneg %p32
    %p39 = scmp.eq.s32.totalorder %s9, 1
    %p40 = por %p38, %p39
    %p41 = scmp.ne.s32.totalorder %s33, %s36
    %p42 = scmp.eq.s32.totalorder %s9, 0
    %p43 = por %p41, %p42
    %p44 = scmp.ne.s32.totalorder %s33, %s36
    %p45 = scmp.eq.s32.totalorder %s14, 1
    %p46 = por %p44, %p45
    %p47 = scmp.ne.s32.totalorder %s36, %s37
    %p48 = scmp.eq.s32.totalorder %s14, 0
    %p49 = por %p47, %p48
    %p50 = scmp.ne.s32.totalorder %s36, %s37
    %p51 = scmp.eq.s32.totalorder %s15, 1
    %p52 = por %p50, %p51
    %p54 = scmp.ne.s32.totalorder %s37, %s53
    %p55 = scmp.eq.s32.totalorder %s15, 0
    %p56 = por %p54, %p55
    %s58 = sadd.s32 %s57, 1
    %p61 = scmp.eq.s32.totalorder %s9, 1
    %p62 = scmp.ne.s32.totalorder %s57, %s59
    %p63 = scmp.eq.s32.totalorder %s9, 0
    %p64 = por %p62, %p63
    %p65 = scmp.ne.s32.totalorder %s57, %s59
    %p66 = scmp.eq.s32.totalorder %s14, 1
    %p67 = por %p65, %p66
    %p68 = scmp.ne.s32.totalorder %s59, %s60
    %p69 = scmp.eq.s32.totalorder %s14, 0
    %p70 = por %p68, %p69
    %p71 = scmp.ne.s32.totalorder %s59, %s60
    %p72 = scmp.eq.s32.totalorder %s15, 1
    %p73 = por %p71, %p72
    %p75 = scmp.ne.s32.totalorder %s60, %s74
    %p76 = scmp.eq.s32.totalorder %s15, 0
    %p77 = por %p75, %p76
    %s79 = sadd.s32 %s78, 1
    %p82 = scmp.eq.s32.totalorder %s9, 1
    %p83 = scmp.ne.s32.totalorder %s78, %s80
    %p84 = scmp.eq.s32.totalorder %s9, 0
    %p85 = por %p83, %p84
    %p86 = scmp.ne.s32.totalorder %s78, %s80
    %p87 = scmp.eq.s32.totalorder %s14, 1
    %p88 = por %p86, %p87
    %p89 = scmp.ne.s32.totalorder %s80, %s81
    %p90 = scmp.eq.s32.totalorder %s14, 0
    %p91 = por %p89, %p90
    %p92 = scmp.ne.s32.totalorder %s80, %s81
    %p93 = scmp.eq.s32.totalorder %s15, 1
    %p94 = por %p92, %p93
    %p96 = scmp.ne.s32.totalorder %s81, %s95
    %p97 = scmp.eq.s32.totalorder %s15, 0
    %p98 = por %p96, %p97
    %s99 = ssub.s32 %s16, %s28
    %s100 = ssub.s32 %s17, %s24
    %s101 = sor.u32 %s99, %s100
    %p102 = scmp.eq.s32.totalorder %s101, 0
    %s104 = sadd.s32 %s103, 1
    %s105 = scalar_select %p102, %s103, %s104
    %p108 = pneg %p102
    %p109 = scmp.eq.s32.totalorder %s9, 1
    %p110 = por %p108, %p109
    %p111 = scmp.ne.s32.totalorder %s103, %s106
    %p112 = scmp.eq.s32.totalorder %s9, 0
    %p113 = por %p111, %p112
    %p114 = scmp.ne.s32.totalorder %s103, %s106
    %p115 = scmp.eq.s32.totalorder %s14, 1
    %p116 = por %p114, %p115
    %p117 = scmp.ne.s32.totalorder %s106, %s107
    %p118 = scmp.eq.s32.totalorder %s14, 0
    %p119 = por %p117, %p118
    %p120 = scmp.ne.s32.totalorder %s106, %s107
    %p121 = scmp.eq.s32.totalorder %s15, 1
    %p122 = por %p120, %p121
    %p124 = scmp.ne.s32.totalorder %s107, %s123
    %p125 = scmp.eq.s32.totalorder %s15, 0
    %p126 = por %p124, %p125
    %p127 = scmp.le.s32.totalorder 1, %s9
    %p128 = scmp.lt.s32.totalorder %s9, 3
    %p129 = pnand %p127, %p128
    %p130 = pneg %p129
    // Predicated region
    $region9: #{generator_forward_pallas.59} parent=5 // pred_check
      _
    $region10: #{generator_forward_pallas.59} parent=5 // pred_check_branch
      %132 = sbr.rel (%p129) target = $region12
    $region11: #{generator_forward_pallas.59} parent=5 // pred_region
      %s133 = ssub.s32 %s9, 1
      // Predicated region
      $region13: #{generator_forward_pallas.59} parent=11 // pred_check
        %p134 = pneg %p70
      $region14: #{generator_forward_pallas.59} parent=11 // pred_check_branch
        %136 = sbr.rel (%p134) target = $region16
      $region15: #{generator_forward_pallas.59} parent=11 // pred_region
        _
      $region16: #{generator_forward_pallas.59} parent=11 // pred_fallthru
        _
      // Predicated region
      $region17: #{generator_forward_pallas.59} parent=11 // pred_check
        %p137 = pneg %p91
      $region18: #{generator_forward_pallas.59} parent=11 // pred_check_branch
        %139 = sbr.rel (%p137) target = $region20
      $region19: #{generator_forward_pallas.59} parent=11 // pred_region
        _
      $region20: #{generator_forward_pallas.59} parent=11 // pred_fallthru
        _
    $region12: #{generator_forward_pallas.59} parent=5 // pred_fallthru
      _
    %p140 = scmp.lt.s32.totalorder %s9, 2
    // Predicated region
    $region21: #{generator_forward_pallas.59} parent=5 // pred_check
      %p141 = pneg %p140
    $region22: #{generator_forward_pallas.59} parent=5 // pred_check_branch
      %143 = sbr.rel (%p141) target = $region24
    $region23: #{generator_forward_pallas.59} parent=5 // pred_region
      // Predicated region
      $region25: #{generator_forward_pallas.59} parent=23 // pred_check
        %p144 = pneg %p43
      $region26: #{generator_forward_pallas.59} parent=23 // pred_check_branch
        %146 = sbr.rel (%p144) target = $region28
      $region27: #{generator_forward_pallas.59} parent=23 // pred_region
        %p147 = scmp.lt.s32.totalorder %s16, 1
        %s148 = scalar_select %p147, %s16, 1
        %p149 = scmp.lt.s32.totalorder %s17, 0
        %s150 = scalar_select %p149, %s17, 0
        %s151 = sadd.s32 %s150, %s148
        %s152 = smul.addr %s151, 4
        %s153 = scalar_lea.vmem %s0, %s152
      $region28: #{generator_forward_pallas.59} parent=23 // pred_fallthru
        _
    $region24: #{generator_forward_pallas.59} parent=5 // pred_fallthru
      _
    %p154 = scmp.le.s32.totalorder 1, %s9
    %p155 = scmp.lt.s32.totalorder %s9, 3
    %p156 = pnand %p154, %p155
    %p157 = pneg %p156
    // Predicated region
    $region29: #{generator_forward_pallas.59} parent=5 // pred_check
      _
    $region30: #{generator_forward_pallas.59} parent=5 // pred_check_branch
      %159 = sbr.rel (%p156) target = $region32
    $region31: #{generator_forward_pallas.59} parent=5 // pred_region
      %s160 = ssub.s32 %s9, 1
      %p161 = scmp.lt.s32.totalorder %s18, 1
      %s162 = scalar_select %p161, %s18, 1
      %p163 = scmp.lt.s32.totalorder %s19, 0
      %s164 = scalar_select %p163, %s19, 0
      %s165 = sadd.s32 %s164, %s162
      %s166 = smul.addr %s165, 4
      %s167 = scalar_lea.vmem %s0, %s166
      %p168 = pneg %p49
      %p169 = pneg %p46
      %p170 = pneg %p70
      %p171 = pneg %p67
      %p172 = pneg %p91
      %p173 = pneg %p88
      %p174 = pneg %p119
      %p175 = pneg %p116
      %p176 = scmp.lt.s32.totalorder %s18, 1
      %s177 = scalar_select %p176, %s18, 1
      %p178 = scmp.lt.s32.totalorder %s19, 0
      %s179 = scalar_select %p178, %s19, 0
      %s180 = sadd.s32 %s179, %s177
      %s181 = scalar_lea.vmem %s3, %s180
      %p182 = scmp.lt.s32.totalorder %s18, 1
      %s183 = scalar_select %p182, %s18, 1
      %p184 = scmp.lt.s32.totalorder %s19, 0
      %s185 = scalar_select %p184, %s19, 0
      %s186 = sadd.s32 %s185, %s183
      %s187 = smul.addr %s186, 4
      %s188 = scalar_lea.vmem %s0, %s187
      %p189 = scmp.lt.s32.totalorder %s18, 1
      %s190 = scalar_select %p189, %s18, 1
      %p191 = scmp.lt.s32.totalorder %s19, 0
      %s192 = scalar_select %p191, %s19, 0
      %s193 = sadd.s32 %s192, %s190
      %s194 = scalar_lea.vmem %s3, %s193
      %v197 = vld [vmem:[%s188] sm:$0xf]
      %vm198 = vcmp.ge.bf16.partialorder %v197, 0
      %v199 = vmul.bf16 %v197, 1009007652
      %v200 = vsel %vm198, %v197, %v199
      %v201 = vld [vmem:[%s1] sm:$0x1]
      %v204 = vunpack.c.l.s4 1966171168
      %v205 = vunpack.c.0.s8 %v204
      %v206 = vlaneseq
      %v207 = vshrl.u32 %v206, 7
      %v208 = vsub.s32 %v205, %v207
      %v209 = vrot.slane %v201, %v208
      %v211 = vunpack.c.l.s4 1966171168
      %v212 = vunpack.c.0.s8 %v211
      %v213 = vlaneseq
      %v214 = vshrl.u32 %v213, 7
      %v215 = vsub.s32 %v212, %v214
      %v216 = vrot.slane %v209, %v215
      %217 = vrot.lane.b32.xlu0 %v216, 120
      %v218 = vpop.permute.xlu0 %217
      %v220 = vunpack.c.l.b16 %v200
      %v221 = vpack.c.b16 %v220, %v220
      %222 = vrot.lane.b32.xlu0 %v221, 127
      %v223 = vpop.permute.xlu0 %222
      %vm224 = vcmask 64512
      %v226 = vsel %vm224, %v218, 0
      %vm228 = vcmask 1043456
      %v230 = vsel %vm228, %v223, 0
      %232 = vmatprep.subr.bf16.mxu0 0
      %233 = vmatpush1.bf16.msra.mxu0 0
      %234 = vmatprep.subr.bf16.mxu0 0
      %235 = vmatpush1.bf16.msra.mxu0 0
      %236 = vmatprep.subr.bf16.mxu0 0
      %237 = vmatpush1.bf16.msra.mxu0 0
      %238 = vmatprep.subr.bf16.mxu0 0
      %239 = vmatpush1.bf16.msra.mxu0 0
      %240 = vmatprep.subr.bf16.mxu0 0
      %241 = vmatpush1.bf16.msra.mxu0 0
      %242 = vmatprep.subr.bf16.mxu0 0
      %243 = vmatpush1.bf16.msra.mxu0 0
      %244 = vmatprep.subr.bf16.mxu0 0
      %245 = vmatpush1.bf16.msra.mxu0 0
      %246 = vmatprep.subr.bf16.mxu0 0
      %247 = vmatpush1.bf16.msra.mxu0 %v230
      %248 = vmatprep.subr.bf16.mxu0 0
      %249 = vmatpush2.bf16.msra.mxu0 0
      %250 = vmatprep.subr.bf16.mxu0 0
      %251 = vmatpush2.bf16.msra.mxu0 0
      %252 = vmatprep.subr.bf16.mxu0 0
      %253 = vmatpush2.bf16.msra.mxu0 0
      %254 = vmatprep.subr.bf16.mxu0 0
      %255 = vmatpush2.bf16.msra.mxu0 0
      %256 = vmatprep.subr.bf16.mxu0 0
      %257 = vmatpush2.bf16.msra.mxu0 0
      %258 = vmatprep.subr.bf16.mxu0 0
      %259 = vmatpush2.bf16.msra.mxu0 0
      %260 = vmatprep.subr.bf16.mxu0 0
      %261 = vmatpush2.bf16.msra.mxu0 0
      %262 = vmatprep.subr.bf16.mxu0 0
      %263 = vmatpush2.bf16.msra.mxu0 0
      %264 = vmatprep.mubr.bf16.mxu0 0
      %265 = vmatmul.mubr.bf16.gmra.mxu0 %v226
      %v266 = vpop.f32.mrf.mxu0
      %v267 = vadd.f32 0.0, %v266
      %v268 = vpop.f32.mrf.mxu0
      %v269 = vpop.f32.mrf.mxu0
      %v270 = vpop.f32.mrf.mxu0
      %271 = vdwg.mxu0
      %v273 = vsel %vm224, %v201, 0
      %v276 = vsel %vm228, %v200, 0
      %278 = vmatprep.subr.bf16.mxu0 0
      %279 = vmatpush1.bf16.msra.mxu0 0
      %280 = vmatprep.subr.bf16.mxu0 0
      %281 = vmatpush1.bf16.msra.mxu0 0
      %282 = vmatprep.subr.bf16.mxu0 0
      %283 = vmatpush1.bf16.msra.mxu0 0
      %284 = vmatprep.subr.bf16.mxu0 0
      %285 = vmatpush1.bf16.msra.mxu0 0
      %286 = vmatprep.subr.bf16.mxu0 0
      %287 = vmatpush1.bf16.msra.mxu0 0
      %288 = vmatprep.subr.bf16.mxu0 0
      %289 = vmatpush1.bf16.msra.mxu0 0
      %290 = vmatprep.subr.bf16.mxu0 0
      %291 = vmatpush1.bf16.msra.mxu0 0
      %292 = vmatprep.subr.bf16.mxu0 0
      %293 = vmatpush1.bf16.msra.mxu0 %v276
      %294 = vmatprep.subr.bf16.mxu0 0
      %295 = vmatpush2.bf16.msra.mxu0 0
      %296 = vmatprep.subr.bf16.mxu0 0
      %297 = vmatpush2.bf16.msra.mxu0 0
      %298 = vmatprep.subr.bf16.mxu0 0
      %299 = vmatpush2.bf16.msra.mxu0 0
      %300 = vmatprep.subr.bf16.mxu0 0
      %301 = vmatpush2.bf16.msra.mxu0 0
      %302 = vmatprep.subr.bf16.mxu0 0
      %303 = vmatpush2.bf16.msra.mxu0 0
      %304 = vmatprep.subr.bf16.mxu0 0
      %305 = vmatpush2.bf16.msra.mxu0 0
      %306 = vmatprep.subr.bf16.mxu0 0
      %307 = vmatpush2.bf16.msra.mxu0 0
      %308 = vmatprep.subr.bf16.mxu0 0
      %309 = vmatpush2.bf16.msra.mxu0 0
      %310 = vmatprep.mubr.bf16.mxu0 0
      %311 = vmatmul.mubr.bf16.gmra.mxu0 %v273
      %v312 = vpop.f32.mrf.mxu0
      %v313 = vadd.f32 %v267, %v312
      %v314 = vpop.f32.mrf.mxu0
      %v315 = vpop.f32.mrf.mxu0
      %v316 = vpop.f32.mrf.mxu0
      %317 = vdwg.mxu0
      %v318 = vld [vmem:[%s1] sm:$0x1]
      %v321 = vunpack.c.l.s4 1966171168
      %v322 = vunpack.c.0.s8 %v321
      %v323 = vlaneseq
      %v324 = vshrl.u32 %v323, 7
      %v325 = vsub.s32 %v322, %v324
      %v326 = vrot.slane %v318, %v325
      %v328 = vunpack.c.l.s4 1966171168
      %v329 = vunpack.c.0.s8 %v328
      %v330 = vlaneseq
      %v331 = vshrl.u32 %v330, 7
      %v332 = vsub.s32 %v329, %v331
      %v333 = vrot.slane %v326, %v332
      %334 = vrot.lane.b32.xlu0 %v333, 112
      %v335 = vpop.permute.xlu0 %334
      %336 = vrot.lane.b32.xlu0 %v221, 126
      %v337 = vpop.permute.xlu0 %336
      %v339 = vsel %vm224, %v335, 0
      %v342 = vsel %vm228, %v337, 0
      %344 = vmatprep.subr.bf16.mxu0 0
      %345 = vmatpush1.bf16.msra.mxu0 0
      %346 = vmatprep.subr.bf16.mxu0 0
      %347 = vmatpush1.bf16.msra.mxu0 0
      %348 = vmatprep.subr.bf16.mxu0 0
      %349 = vmatpush1.bf16.msra.mxu0 0
      %350 = vmatprep.subr.bf16.mxu0 0
      %351 = vmatpush1.bf16.msra.mxu0 0
      %352 = vmatprep.subr.bf16.mxu0 0
      %353 = vmatpush1.bf16.msra.mxu0 0
      %354 = vmatprep.subr.bf16.mxu0 0
      %355 = vmatpush1.bf16.msra.mxu0 0
      %356 = vmatprep.subr.bf16.mxu0 0
      %357 = vmatpush1.bf16.msra.mxu0 0
      %358 = vmatprep.subr.bf16.mxu0 0
      %359 = vmatpush1.bf16.msra.mxu0 %v342
      %360 = vmatprep.subr.bf16.mxu0 0
      %361 = vmatpush2.bf16.msra.mxu0 0
      %362 = vmatprep.subr.bf16.mxu0 0
      %363 = vmatpush2.bf16.msra.mxu0 0
      %364 = vmatprep.subr.bf16.mxu0 0
      %365 = vmatpush2.bf16.msra.mxu0 0
      %366 = vmatprep.subr.bf16.mxu0 0
      %367 = vmatpush2.bf16.msra.mxu0 0
      %368 = vmatprep.subr.bf16.mxu0 0
      %369 = vmatpush2.bf16.msra.mxu0 0
      %370 = vmatprep.subr.bf16.mxu0 0
      %371 = vmatpush2.bf16.msra.mxu0 0
      %372 = vmatprep.subr.bf16.mxu0 0
      %373 = vmatpush2.bf16.msra.mxu0 0
      %374 = vmatprep.subr.bf16.mxu0 0
      %375 = vmatpush2.bf16.msra.mxu0 0
      %376 = vmatprep.mubr.bf16.mxu0 0
      %377 = vmatmul.mubr.bf16.gmra.mxu0 %v339
      %v378 = vpop.f32.mrf.mxu0
      %v379 = vadd.f32 0.0, %v378
      %v380 = vpop.f32.mrf.mxu0
      %v381 = vpop.f32.mrf.mxu0
      %v382 = vpop.f32.mrf.mxu0
      %383 = vdwg.mxu0
      %v384 = vadd.f32 %v313, %v379
      %v385 = vld [vmem:[%s1] sm:$0x1]
      %v388 = vunpack.c.l.s4 1966171168
      %v389 = vunpack.c.0.s8 %v388
      %v390 = vlaneseq
      %v391 = vshrl.u32 %v390, 7
      %v392 = vsub.s32 %v389, %v391
      %v393 = vrot.slane %v385, %v392
      %v395 = vunpack.c.l.s4 1966171168
      %v396 = vunpack.c.0.s8 %v395
      %v397 = vlaneseq
      %v398 = vshrl.u32 %v397, 7
      %v399 = vsub.s32 %v396, %v398
      %v400 = vrot.slane %v393, %v399
      %401 = vrot.lane.b32.xlu0 %v400, 104
      %v402 = vpop.permute.xlu0 %401
      %403 = vrot.lane.b32.xlu0 %v221, 125
      %v404 = vpop.permute.xlu0 %403
      %v406 = vsel %vm224, %v402, 0
      %v409 = vsel %vm228, %v404, 0
      %411 = vmatprep.subr.bf16.mxu0 0
      %412 = vmatpush1.bf16.msra.mxu0 0
      %413 = vmatprep.subr.bf16.mxu0 0
      %414 = vmatpush1.bf16.msra.mxu0 0
      %415 = vmatprep.subr.bf16.mxu0 0
      %416 = vmatpush1.bf16.msra.mxu0 0
      %417 = vmatprep.subr.bf16.mxu0 0
      %418 = vmatpush1.bf16.msra.mxu0 0
      %419 = vmatprep.subr.bf16.mxu0 0
      %420 = vmatpush1.bf16.msra.mxu0 0
      %421 = vmatprep.subr.bf16.mxu0 0
      %422 = vmatpush1.bf16.msra.mxu0 0
      %423 = vmatprep.subr.bf16.mxu0 0
      %424 = vmatpush1.bf16.msra.mxu0 0
      %425 = vmatprep.subr.bf16.mxu0 0
      %426 = vmatpush1.bf16.msra.mxu0 %v409
      %427 = vmatprep.subr.bf16.mxu0 0
      %428 = vmatpush2.bf16.msra.mxu0 0
      %429 = vmatprep.subr.bf16.mxu0 0
      %430 = vmatpush2.bf16.msra.mxu0 0
      %431 = vmatprep.subr.bf16.mxu0 0
      %432 = vmatpush2.bf16.msra.mxu0 0
      %433 = vmatprep.subr.bf16.mxu0 0
      %434 = vmatpush2.bf16.msra.mxu0 0
      %435 = vmatprep.subr.bf16.mxu0 0
      %436 = vmatpush2.bf16.msra.mxu0 0
      %437 = vmatprep.subr.bf16.mxu0 0
      %438 = vmatpush2.bf16.msra.mxu0 0
      %439 = vmatprep.subr.bf16.mxu0 0
      %440 = vmatpush2.bf16.msra.mxu0 0
      %441 = vmatprep.subr.bf16.mxu0 0
      %442 = vmatpush2.bf16.msra.mxu0 0
      %443 = vmatprep.mubr.bf16.mxu0 0
      %444 = vmatmul.mubr.bf16.gmra.mxu0 %v406
      %v445 = vpop.f32.mrf.mxu0
      %v446 = vadd.f32 0.0, %v445
      %v447 = vpop.f32.mrf.mxu0
      %v448 = vpop.f32.mrf.mxu0
      %v449 = vpop.f32.mrf.mxu0
      %450 = vdwg.mxu0
      %v451 = vadd.f32 %v384, %v446
      %v452 = vld [vmem:[%s1] sm:$0x1]
      %v455 = vunpack.c.l.s4 1966171168
      %v456 = vunpack.c.0.s8 %v455
      %v457 = vlaneseq
      %v458 = vshrl.u32 %v457, 7
      %v459 = vsub.s32 %v456, %v458
      %v460 = vrot.slane %v452, %v459
      %v462 = vunpack.c.l.s4 1966171168
      %v463 = vunpack.c.0.s8 %v462
      %v464 = vlaneseq
      %v465 = vshrl.u32 %v464, 7
      %v466 = vsub.s32 %v463, %v465
      %v467 = vrot.slane %v460, %v466
      %468 = vrot.lane.b32.xlu0 %v467, 96
      %v469 = vpop.permute.xlu0 %468
      %470 = vrot.lane.b32.xlu0 %v221, 124
      %v471 = vpop.permute.xlu0 %470
      %v473 = vsel %vm224, %v469, 0
      %v476 = vsel %vm228, %v471, 0
      %478 = vmatprep.subr.bf16.mxu0 0
      %479 = vmatpush1.bf16.msra.mxu0 0
      %480 = vmatprep.subr.bf16.mxu0 0
      %481 = vmatpush1.bf16.msra.mxu0 0
      %482 = vmatprep.subr.bf16.mxu0 0
      %483 = vmatpush1.bf16.msra.mxu0 0
      %484 = vmatprep.subr.bf16.mxu0 0
      %485 = vmatpush1.bf16.msra.mxu0 0
      %486 = vmatprep.subr.bf16.mxu0 0
      %487 = vmatpush1.bf16.msra.mxu0 0
      %488 = vmatprep.subr.bf16.mxu0 0
      %489 = vmatpush1.bf16.msra.mxu0 0
      %490 = vmatprep.subr.bf16.mxu0 0
      %491 = vmatpush1.bf16.msra.mxu0 0
      %492 = vmatprep.subr.bf16.mxu0 0
      %493 = vmatpush1.bf16.msra.mxu0 %v476
      %494 = vmatprep.subr.bf16.mxu0 0
      %495 = vmatpush2.bf16.msra.mxu0 0
      %496 = vmatprep.subr.bf16.mxu0 0
      %497 = vmatpush2.bf16.msra.mxu0 0
      %498 = vmatprep.subr.bf16.mxu0 0
      %499 = vmatpush2.bf16.msra.mxu0 0
      %500 = vmatprep.subr.bf16.mxu0 0
      %501 = vmatpush2.bf16.msra.mxu0 0
      %502 = vmatprep.subr.bf16.mxu0 0
      %503 = vmatpush2.bf16.msra.mxu0 0
      %504 = vmatprep.subr.bf16.mxu0 0
      %505 = vmatpush2.bf16.msra.mxu0 0
      %506 = vmatprep.subr.bf16.mxu0 0
      %507 = vmatpush2.bf16.msra.mxu0 0
      %508 = vmatprep.subr.bf16.mxu0 0
      %509 = vmatpush2.bf16.msra.mxu0 0
      %510 = vmatprep.mubr.bf16.mxu0 0
      %511 = vmatmul.mubr.bf16.gmra.mxu0 %v473
      %v512 = vpop.f32.mrf.mxu0
      %v513 = vadd.f32 0.0, %v512
      %v514 = vpop.f32.mrf.mxu0
      %v515 = vpop.f32.mrf.mxu0
      %v516 = vpop.f32.mrf.mxu0
      %517 = vdwg.mxu0
      %v518 = vadd.f32 %v451, %v513
      %v519 = vld [vmem:[%s1] sm:$0x1]
      %v522 = vunpack.c.l.s4 1966171168
      %v523 = vunpack.c.0.s8 %v522
      %v524 = vlaneseq
      %v525 = vshrl.u32 %v524, 7
      %v526 = vsub.s32 %v523, %v525
      %v527 = vrot.slane %v519, %v526
      %v529 = vunpack.c.l.s4 1966171168
      %v530 = vunpack.c.0.s8 %v529
      %v531 = vlaneseq
      %v532 = vshrl.u32 %v531, 7
      %v533 = vsub.s32 %v530, %v532
      %v534 = vrot.slane %v527, %v533
      %535 = vrot.lane.b32.xlu0 %v534, 88
      %v536 = vpop.permute.xlu0 %535
      %537 = vrot.lane.b32.xlu0 %v221, 123
      %v538 = vpop.permute.xlu0 %537
      %v540 = vsel %vm224, %v536, 0
      %v543 = vsel %vm228, %v538, 0
      %545 = vmatprep.subr.bf16.mxu0 0
      %546 = vmatpush1.bf16.msra.mxu0 0
      %547 = vmatprep.subr.bf16.mxu0 0
      %548 = vmatpush1.bf16.msra.mxu0 0
      %549 = vmatprep.subr.bf16.mxu0 0
      %550 = vmatpush1.bf16.msra.mxu0 0
      %551 = vmatprep.subr.bf16.mxu0 0
      %552 = vmatpush1.bf16.msra.mxu0 0
      %553 = vmatprep.subr.bf16.mxu0 0
      %554 = vmatpush1.bf16.msra.mxu0 0
      %555 = vmatprep.subr.bf16.mxu0 0
      %556 = vmatpush1.bf16.msra.mxu0 0
      %557 = vmatprep.subr.bf16.mxu0 0
      %558 = vmatpush1.bf16.msra.mxu0 0
      %559 = vmatprep.subr.bf16.mxu0 0
      %560 = vmatpush1.bf16.msra.mxu0 %v543
      %561 = vmatprep.subr.bf16.mxu0 0
      %562 = vmatpush2.bf16.msra.mxu0 0
      %563 = vmatprep.subr.bf16.mxu0 0
      %564 = vmatpush2.bf16.msra.mxu0 0
      %565 = vmatprep.subr.bf16.mxu0 0
      %566 = vmatpush2.bf16.msra.mxu0 0
      %567 = vmatprep.subr.bf16.mxu0 0
      %568 = vmatpush2.bf16.msra.mxu0 0
      %569 = vmatprep.subr.bf16.mxu0 0
      %570 = vmatpush2.bf16.msra.mxu0 0
      %571 = vmatprep.subr.bf16.mxu0 0
      %572 = vmatpush2.bf16.msra.mxu0 0
      %573 = vmatprep.subr.bf16.mxu0 0
      %574 = vmatpush2.bf16.msra.mxu0 0
      %575 = vmatprep.subr.bf16.mxu0 0
      %576 = vmatpush2.bf16.msra.mxu0 0
      %577 = vmatprep.mubr.bf16.mxu0 0
      %578 = vmatmul.mubr.bf16.gmra.mxu0 %v540
      %v579 = vpop.f32.mrf.mxu0
      %v580 = vadd.f32 0.0, %v579
      %v581 = vpop.f32.mrf.mxu0
      %v582 = vpop.f32.mrf.mxu0
      %v583 = vpop.f32.mrf.mxu0
      %584 = vdwg.mxu0
      %v585 = vadd.f32 %v518, %v580
      %v586 = vld [vmem:[%s1] sm:$0x1]
      %v589 = vunpack.c.l.s4 1966171168
      %v590 = vunpack.c.0.s8 %v589
      %v591 = vlaneseq
      %v592 = vshrl.u32 %v591, 7
      %v593 = vsub.s32 %v590, %v592
      %v594 = vrot.slane %v586, %v593
      %v596 = vunpack.c.l.s4 1966171168
      %v597 = vunpack.c.0.s8 %v596
      %v598 = vlaneseq
      %v599 = vshrl.u32 %v598, 7
      %v600 = vsub.s32 %v597, %v599
      %v601 = vrot.slane %v594, %v600
      %602 = vrot.lane.b32.xlu0 %v601, 80
      %v603 = vpop.permute.xlu0 %602
      %604 = vrot.lane.b32.xlu0 %v221, 122
      %v605 = vpop.permute.xlu0 %604
      %v607 = vsel %vm224, %v603, 0
      %v610 = vsel %vm228, %v605, 0
      %612 = vmatprep.subr.bf16.mxu0 0
      %613 = vmatpush1.bf16.msra.mxu0 0
      %614 = vmatprep.subr.bf16.mxu0 0
      %615 = vmatpush1.bf16.msra.mxu0 0
      %616 = vmatprep.subr.bf16.mxu0 0
      %617 = vmatpush1.bf16.msra.mxu0 0
      %618 = vmatprep.subr.bf16.mxu0 0
      %619 = vmatpush1.bf16.msra.mxu0 0
      %620 = vmatprep.subr.bf16.mxu0 0
      %621 = vmatpush1.bf16.msra.mxu0 0
      %622 = vmatprep.subr.bf16.mxu0 0
      %623 = vmatpush1.bf16.msra.mxu0 0
      %624 = vmatprep.subr.bf16.mxu0 0
      %625 = vmatpush1.bf16.msra.mxu0 0
      %626 = vmatprep.subr.bf16.mxu0 0
      %627 = vmatpush1.bf16.msra.mxu0 %v610
      %628 = vmatprep.subr.bf16.mxu0 0
      %629 = vmatpush2.bf16.msra.mxu0 0
      %630 = vmatprep.subr.bf16.mxu0 0
      %631 = vmatpush2.bf16.msra.mxu0 0
      %632 = vmatprep.subr.bf16.mxu0 0
      %633 = vmatpush2.bf16.msra.mxu0 0
      %634 = vmatprep.subr.bf16.mxu0 0
      %635 = vmatpush2.bf16.msra.mxu0 0
      %636 = vmatprep.subr.bf16.mxu0 0
      %637 = vmatpush2.bf16.msra.mxu0 0
      %638 = vmatprep.subr.bf16.mxu0 0
      %639 = vmatpush2.bf16.msra.mxu0 0
      %640 = vmatprep.subr.bf16.mxu0 0
      %641 = vmatpush2.bf16.msra.mxu0 0
      %642 = vmatprep.subr.bf16.mxu0 0
      %643 = vmatpush2.bf16.msra.mxu0 0
      %644 = vmatprep.mubr.bf16.mxu0 0
      %645 = vmatmul.mubr.bf16.gmra.mxu0 %v607
      %v646 = vpop.f32.mrf.mxu0
      %v647 = vadd.f32 0.0, %v646
      %v648 = vpop.f32.mrf.mxu0
      %v649 = vpop.f32.mrf.mxu0
      %v650 = vpop.f32.mrf.mxu0
      %651 = vdwg.mxu0
      %v652 = vadd.f32 %v585, %v647
      %v653 = vld [vmem:[%s2] sm:$0x3]
      %655 = vset.pattern.permute.xlu0 0
      %656 = vperm.xlu0 %655, %v653
      %v657 = vpop.permute.xlu0 %656
      %v659 = vadd.f32 %v652, %v657
      %v660 = vtanh.pop %v659
      %v661 = vpack.c.bf16 %v660, %v660
      %vm662 = vcmask 516096
      %663 = vst.msk [vmem:[%s194] sm:$0x1] %vm662, %v661
      %p664 = scmp.lt.s32.totalorder %s18, 1
      %s665 = scalar_select %p664, %s18, 1
      %p666 = scmp.lt.s32.totalorder %s19, 0
      %s667 = scalar_select %p666, %s19, 0
      %s668 = sadd.s32 %s667, %s665
      %s669 = scalar_lea.vmem %s3, %s668
      // Predicated region
      $region33: #{generator_forward_pallas.59} parent=31 // pred_check
        %p670 = pneg %p116
      $region34: #{generator_forward_pallas.59} parent=31 // pred_check_branch
        %672 = sbr.rel (%p670) target = $region36
      $region35: #{generator_forward_pallas.59} parent=31 // pred_region
        _
      $region36: #{generator_forward_pallas.59} parent=31 // pred_fallthru
        _
    $region32: #{generator_forward_pallas.59} parent=5 // pred_fallthru
      _
    %p673 = scmp.le.s32.totalorder 2, %s9
    // Predicated region
    $region37: #{generator_forward_pallas.59} parent=5 // pred_check
      %p674 = pneg %p673
    $region38: #{generator_forward_pallas.59} parent=5 // pred_check_branch
      %676 = sbr.rel (%p674) target = $region40
    $region39: #{generator_forward_pallas.59} parent=5 // pred_region
      %s677 = ssub.s32 %s9, 2
      // Predicated region
      $region41: #{generator_forward_pallas.59} parent=39 // pred_check
        %p678 = pneg %p122
      $region42: #{generator_forward_pallas.59} parent=39 // pred_check_branch
        %680 = sbr.rel (%p678) target = $region44
      $region43: #{generator_forward_pallas.59} parent=39 // pred_region
        %p681 = scmp.lt.s32.totalorder %s20, 1
        %s682 = scalar_select %p681, %s20, 1
        %p683 = scmp.lt.s32.totalorder %s21, 0
        %s684 = scalar_select %p683, %s21, 0
        %s685 = sadd.s32 %s684, %s682
        %s686 = scalar_lea.vmem %s3, %s685
      $region44: #{generator_forward_pallas.59} parent=39 // pred_fallthru
        _
    $region40: #{generator_forward_pallas.59} parent=5 // pred_fallthru
      _
  $region6: #{generator_forward_pallas.59} parent=0 // loop_footer
    %s13 = sadd.s32 1, %s9
  $region7: #{generator_forward_pallas.59} parent=0 // loop_footer_branch
    %8 = sbr.rel target = $region3
  $region8: #{generator_forward_pallas.59} parent=0 // loop_exit
    _

</llo_original>
